<compile_context>
chip_gen: v7x
topology: tpu7x:2x2x1
jax: 0.10.0
libtpu: 0.0.40
codegen_flags: <defaults>
</compile_context>

<pallas_src>
import jax
import jax.numpy as jnp
from jax.experimental import pallas as pl
from jax.experimental.pallas import tpu as pltpu

EPS = 1e-5  # PyTorch InstanceNorm2d default eps


# ----------------------------- kernel helpers -----------------------------

def _instance_norm(y):
    """Per-channel normalization over rows of y (HW, Cp); two-pass variance."""
    mean = jnp.mean(y, axis=0, keepdims=True)
    yc = y - mean
    var = jnp.mean(yc * yc, axis=0, keepdims=True)
    return yc * jax.lax.rsqrt(var + EPS)


def _make_kernel(H, W, Wp2, mm_dtype):
    """Build the ResnetBlock kernel for static spatial dims H, W.

    Wp2 = padded width (W+2 rounded up to a multiple of 8) so the flattened
    padded image is sublane-aligned and the per-tap slices after the roll are
    tile-aligned (slice starts at column 0).
    """
    HW = H * W
    n_rows = (H + 2) * Wp2  # flattened padded spatial extent (multiple of 8)

    def conv3x3_reflect(x_flat, w_ref, bias):
        """x_flat: (HW, Cp) f32.  w_ref: (9, Cp, Cp) mm_dtype ref.  bias: (1, Cp) f32."""
        Cp = x_flat.shape[-1]
        x3 = x_flat.reshape(H, W, Cp)

        # --- reflection pad (value-level, no scratch-ref writes) ---
        # rows: padded[-1] = row 1, padded[H] = row H-2
        xr = jnp.concatenate([x3[1:2], x3, x3[H - 2:H - 1]], axis=0)        # (H+2, W, Cp)
        # cols: padded[-1] = col 1, padded[W] = col W-2, plus zero columns up
        # to the sublane-aligned width Wp2 (never read by any tap).
        cols = [xr[:, 1:2, :], xr, xr[:, W - 2:W - 1, :]]
        if Wp2 > W + 2:
            cols.append(jnp.zeros((H + 2, Wp2 - (W + 2), Cp), x_flat.dtype))
        xp = jnp.concatenate(cols, axis=1)                                   # (H+2, Wp2, Cp)
        pflat = xp.reshape(n_rows, Cp)

        # Accumulator initialized with the broadcast bias -> bias add is free.
        acc = jnp.broadcast_to(bias, (HW, Cp))

        # 9 accumulated K=Cp dots; no im2col slab.  The dx shift is one XLU
        # sublane roll of the flat padded slab (f32, safe lowering); each
        # shifted slab is cast once to the matmul dtype so the tap copies and
        # MXU loads move bf16.
        for dx in range(3):
            shifted = pflat if dx == 0 else pltpu.roll(pflat, shift=n_rows - dx, axis=0)
            s3 = shifted.reshape(H + 2, Wp2, Cp).astype(mm_dtype)
            for dy in range(3):
                tap = s3[dy:dy + H, :W, :].reshape(HW, Cp)                   # (HW, Cp) mm_dtype
                acc = acc + jnp.dot(tap, w_ref[dy * 3 + dx],
                                    preferred_element_type=jnp.float32)
        return acc  # (HW, Cp) f32, bias included

    def kernel(x_ref, w1_ref, b1_ref, w2_ref, b2_ref, out_ref):
        # conv1 -> InstanceNorm -> ReLU
        h = conv3x3_reflect(x_ref[...], w1_ref, b1_ref[...])
        h = jnp.maximum(_instance_norm(h), 0.0)
        # conv2 -> InstanceNorm
        h2 = _instance_norm(conv3x3_reflect(h, w2_ref, b2_ref[...]))
        # residual: re-read the (already resident) input block at the end
        out_ref[...] = x_ref[...] + h2

    return kernel


# -------------------------------- wrapper ----------------------------------

def _pick_vmem_limit_bytes():
    # Per-generation scoped-VMEM limit: ~3/4 of physical, capped at 100 MiB
    # (v5e/v6e: 96 MiB of 128 MiB; v7x: 48 MiB of 64 MiB).
    try:
        cap = int(pltpu.get_tpu_info().vmem_capacity_bytes)
    except Exception:
        cap = 128 * 1024 * 1024
    return min((cap * 3) // 4, 100 * 1024 * 1024)


def resnet_block(x_nchw, w1, b1, w2, b2, *, mm_dtype=jnp.bfloat16):
    """x_nchw: (B,C,H,W) f32.  w*: (Cout,Cin,3,3) PyTorch OIHW, b*: (C,).

    mm_dtype: dtype of the MXU matmul operands (bf16 recommended on v5e/v6e/v7x,
    f32 for bit-accurate checks). Accumulation, norms and residual stay f32.
    """
    B, C, H, W = x_nchw.shape
    assert H >= 3 and W >= 3, "ReflectionPad2d(1) requires H, W >= 3"

    Cp = max(128, ((C + 127) // 128) * 128)   # lane-dense channel padding
    Wp2 = ((W + 2 + 7) // 8) * 8              # sublane-aligned padded width
    HW = H * W

    # NHWC, channels zero-padded to Cp, flattened to a 2D (HW, Cp) block/sample.
    x = jnp.transpose(x_nchw, (0, 2, 3, 1)).astype(jnp.float32)
    if Cp != C:
        x = jnp.pad(x, ((0, 0), (0, 0), (0, 0), (0, Cp - C)))
    x = x.reshape(B, HW, Cp)

    def prep_w(w):
        # OIHW -> (dy, dx, ci, co), zero-pad channels, (9, Cp, Cp) in mm_dtype.
        wt = jnp.transpose(w, (2, 3, 1, 0)).astype(jnp.float32)
        if Cp != C:
            wt = jnp.pad(wt, ((0, 0), (0, 0), (0, Cp - C), (0, Cp - C)))
        return wt.reshape(9, Cp, Cp).astype(mm_dtype)

    def prep_b(b):
        bb = b.astype(jnp.float32)
        if Cp != C:
            bb = jnp.pad(bb, (0, Cp - C))
        return bb.reshape(1, Cp)

    w1k, w2k = prep_w(w1), prep_w(w2)
    b1k, b2k = prep_b(b1), prep_b(b2)

    kernel = _make_kernel(H, W, Wp2, mm_dtype)

    out = pl.pallas_call(
        kernel,
        out_shape=jax.ShapeDtypeStruct((B, HW, Cp), jnp.float32),
        grid_spec=pltpu.PrefetchScalarGridSpec(
            num_scalar_prefetch=0,
            grid=(B,),
            in_specs=[
                pl.BlockSpec((None, HW, Cp), lambda b: (b, 0, 0)),   # x  (1 sample, 2D)
                pl.BlockSpec((9, Cp, Cp), lambda b: (0, 0, 0)),      # w1 taps
                pl.BlockSpec((1, Cp), lambda b: (0, 0)),             # b1
                pl.BlockSpec((9, Cp, Cp), lambda b: (0, 0, 0)),      # w2 taps
                pl.BlockSpec((1, Cp), lambda b: (0, 0)),             # b2
            ],
            out_specs=pl.BlockSpec((None, HW, Cp), lambda b: (b, 0, 0)),
        ),
        compiler_params=pltpu.CompilerParams(
            dimension_semantics=("parallel",),
            vmem_limit_bytes=_pick_vmem_limit_bytes(),
        ),
    )(x, w1k, b1k, w2k, b2k)

    out = out.reshape(B, H, W, Cp)[..., :C]
    return jnp.transpose(out, (0, 3, 1, 2))   # back to NCHW


# ------------------------------ pure-JAX ref --------------------------------

def ref_resnet_block(x, w1, b1, w2, b2):
    def conv(inp, w, bias):
        xp = jnp.pad(inp, ((0, 0), (0, 0), (1, 1), (1, 1)), mode='reflect')
        y = jax.lax.conv_general_dilated(
            xp, w, (1, 1), 'VALID',
            dimension_numbers=('NCHW', 'OIHW', 'NCHW'))
        return y + bias[None, :, None, None]

    def inorm(y):
        m = jnp.mean(y, axis=(2, 3), keepdims=True)
        v = jnp.mean((y - m) ** 2, axis=(2, 3), keepdims=True)
        return (y - m) * jax.lax.rsqrt(v + EPS)

    h = jnp.maximum(inorm(conv(x, w1, b1)), 0.0)
    h = inorm(conv(h, w2, b2))
    return x + h


# ---------------------------------- main -----------------------------------

if __name__ == "__main__":
    B, C, H, W = 2, 4, 16, 16  # dim = 4

    key = jax.random.PRNGKey(0)
    kx, kw1, kb1, kw2, kb2 = jax.random.split(key, 5)

    x = jax.random.normal(kx, (B, C, H, W), dtype=jnp.float32)
    w1 = 0.1 * jax.random.normal(kw1, (C, C, 3, 3), dtype=jnp.float32)
    b1 = 0.1 * jax.random.normal(kb1, (C,), dtype=jnp.float32)
    w2 = 0.1 * jax.random.normal(kw2, (C, C, 3, 3), dtype=jnp.float32)
    b2 = 0.1 * jax.random.normal(kb2, (C,), dtype=jnp.float32)

    ref = ref_resnet_block(x, w1, b1, w2, b2)

    # Strict correctness check: f32 MXU operands.
    out_f32 = jax.block_until_ready(
        resnet_block(x, w1, b1, w2, b2, mm_dtype=jnp.float32))
    assert out_f32.shape == (B, C, H, W)
    assert jnp.allclose(out_f32, ref, atol=1e-3, rtol=1e-3), (
        f"f32 max abs err {float(jnp.max(jnp.abs(out_f32 - ref)))}")

    # Perf path: bf16 MXU operands, f32 accumulate / norm / residual.
    out_bf16 = jax.block_until_ready(
        resnet_block(x, w1, b1, w2, b2, mm_dtype=jnp.bfloat16))
    assert jnp.allclose(out_bf16, ref, atol=5e-2, rtol=5e-2), (
        f"bf16 max abs err {float(jnp.max(jnp.abs(out_bf16 - ref)))}")

    print("KERNEL_OK")
</pallas_src>

<mosaic_0001>
module attributes {stable_mosaic.version = 11 : i64} {
  func.func @kernel(%arg0: i32, %arg1: memref<1x256x128xf32, #tpu.memory_space<vmem>>, %arg2: memref<9x128x128xf32, #tpu.memory_space<vmem>>, %arg3: memref<1x128xf32, #tpu.memory_space<vmem>>, %arg4: memref<9x128x128xf32, #tpu.memory_space<vmem>>, %arg5: memref<1x128xf32, #tpu.memory_space<vmem>>, %arg6: memref<1x256x128xf32, #tpu.memory_space<vmem>>) attributes {dimension_semantics = [#tpu.dimension_semantics<parallel>], iteration_bounds = array<i64: 2>, scalar_prefetch = 0 : i64, scratch_operands = 0 : i64, tpu.core_type = #tpu.core_type<tc>, window_params = [{transform_indices = @transform_0, window_bounds = array<i64: 1, 256, 128>}, {pipeline_mode = #tpu.pipeline_mode<synchronous>, transform_indices = @transform_1, window_bounds = array<i64: 9, 128, 128>}, {pipeline_mode = #tpu.pipeline_mode<synchronous>, transform_indices = @transform_2, window_bounds = array<i64: 1, 128>}, {pipeline_mode = #tpu.pipeline_mode<synchronous>, transform_indices = @transform_3, window_bounds = array<i64: 9, 128, 128>}, {pipeline_mode = #tpu.pipeline_mode<synchronous>, transform_indices = @transform_4, window_bounds = array<i64: 1, 128>}, {transform_indices = @transform_5, window_bounds = array<i64: 1, 256, 128>}]} {
    %c0 = arith.constant 0 : index
    %c0_0 = arith.constant 0 : index
    %c0_1 = arith.constant 0 : index
    %0 = vector.load %arg1[%c0, %c0_0, %c0_1] : memref<1x256x128xf32, #tpu.memory_space<vmem>>, vector<1x256x128xf32>
    %1 = vector.shape_cast %0 : vector<1x256x128xf32> to vector<256x128xf32>
    %c0_2 = arith.constant 0 : index
    %c0_3 = arith.constant 0 : index
    %2 = vector.load %arg3[%c0_2, %c0_3] : memref<1x128xf32, #tpu.memory_space<vmem>>, vector<1x128xf32>
    %3 = vector.shape_cast %1 : vector<256x128xf32> to vector<16x16x128xf32>
    %4 = vector.extract_strided_slice %3 {offsets = [1, 0, 0], sizes = [1, 16, 128], strides = [1, 1, 1]} : vector<16x16x128xf32> to vector<1x16x128xf32>
    %5 = vector.extract_strided_slice %3 {offsets = [14, 0, 0], sizes = [1, 16, 128], strides = [1, 1, 1]} : vector<16x16x128xf32> to vector<1x16x128xf32>
    %6 = tpu.concatenate %4, %3, %5 in 0 : vector<1x16x128xf32>, vector<16x16x128xf32>, vector<1x16x128xf32> -> vector<18x16x128xf32>
    %7 = vector.extract_strided_slice %6 {offsets = [0, 1, 0], sizes = [18, 1, 128], strides = [1, 1, 1]} : vector<18x16x128xf32> to vector<18x1x128xf32>
    %8 = vector.extract_strided_slice %6 {offsets = [0, 14, 0], sizes = [18, 1, 128], strides = [1, 1, 1]} : vector<18x16x128xf32> to vector<18x1x128xf32>
    %cst = arith.constant 0.000000e+00 : f32
    %9 = vector.broadcast %cst : f32 to vector<18x6x128xf32>
    %10 = tpu.concatenate %7, %6, %8, %9 in 1 : vector<18x1x128xf32>, vector<18x16x128xf32>, vector<18x1x128xf32>, vector<18x6x128xf32> -> vector<18x24x128xf32>
    %11 = vector.shape_cast %10 : vector<18x24x128xf32> to vector<432x128xf32>
    %12 = vector.shape_cast %2 : vector<1x128xf32> to vector<1x128xf32>
    %13 = vector.broadcast %12 : vector<1x128xf32> to vector<256x128xf32>
    %14 = vector.shape_cast %11 : vector<432x128xf32> to vector<18x24x128xf32>
    %15 = vector.extract_strided_slice %14 {offsets = [0, 0, 0], sizes = [16, 16, 128], strides = [1, 1, 1]} : vector<18x24x128xf32> to vector<16x16x128xf32>
    %16 = vector.shape_cast %15 : vector<16x16x128xf32> to vector<256x128xf32>
    %c0_4 = arith.constant 0 : index
    %c0_5 = arith.constant 0 : index
    %c0_6 = arith.constant 0 : index
    %17 = vector.load %arg2[%c0_4, %c0_5, %c0_6] : memref<9x128x128xf32, #tpu.memory_space<vmem>>, vector<1x128x128xf32>
    %18 = vector.shape_cast %17 : vector<1x128x128xf32> to vector<128x128xf32>
    %cst_7 = arith.constant dense<0.000000e+00> : vector<256x128xf32>
    %19 = tpu.matmul %16, %18, %cst_7 {dimension_numbers = #tpu.dot_dimension_numbers<[1], [0], [0], [1], [0, 0, 1, 1], [], []>} : vector<256x128xf32>, vector<128x128xf32>, vector<256x128xf32> -> vector<256x128xf32>
    %20 = arith.addf %13, %19 : vector<256x128xf32>
    %21 = vector.extract_strided_slice %14 {offsets = [1, 0, 0], sizes = [16, 16, 128], strides = [1, 1, 1]} : vector<18x24x128xf32> to vector<16x16x128xf32>
    %22 = vector.shape_cast %21 : vector<16x16x128xf32> to vector<256x128xf32>
    %c3 = arith.constant 3 : index
    %c0_8 = arith.constant 0 : index
    %c0_9 = arith.constant 0 : index
    %23 = vector.load %arg2[%c3, %c0_8, %c0_9] : memref<9x128x128xf32, #tpu.memory_space<vmem>>, vector<1x128x128xf32>
    %24 = vector.shape_cast %23 : vector<1x128x128xf32> to vector<128x128xf32>
    %cst_10 = arith.constant dense<0.000000e+00> : vector<256x128xf32>
    %25 = tpu.matmul %22, %24, %cst_10 {dimension_numbers = #tpu.dot_dimension_numbers<[1], [0], [0], [1], [0, 0, 1, 1], [], []>} : vector<256x128xf32>, vector<128x128xf32>, vector<256x128xf32> -> vector<256x128xf32>
    %26 = arith.addf %20, %25 : vector<256x128xf32>
    %27 = vector.extract_strided_slice %14 {offsets = [2, 0, 0], sizes = [16, 16, 128], strides = [1, 1, 1]} : vector<18x24x128xf32> to vector<16x16x128xf32>
    %28 = vector.shape_cast %27 : vector<16x16x128xf32> to vector<256x128xf32>
    %c6 = arith.constant 6 : index
    %c0_11 = arith.constant 0 : index
    %c0_12 = arith.constant 0 : index
    %29 = vector.load %arg2[%c6, %c0_11, %c0_12] : memref<9x128x128xf32, #tpu.memory_space<vmem>>, vector<1x128x128xf32>
    %30 = vector.shape_cast %29 : vector<1x128x128xf32> to vector<128x128xf32>
    %cst_13 = arith.constant dense<0.000000e+00> : vector<256x128xf32>
    %31 = tpu.matmul %28, %30, %cst_13 {dimension_numbers = #tpu.dot_dimension_numbers<[1], [0], [0], [1], [0, 0, 1, 1], [], []>} : vector<256x128xf32>, vector<128x128xf32>, vector<256x128xf32> -> vector<256x128xf32>
    %32 = arith.addf %26, %31 : vector<256x128xf32>
    %c431_i32 = arith.constant 431 : i32
    %33 = tpu.dynamic_rotate %11 by %c431_i32 dim 0 : vector<432x128xf32>, i32 -> vector<432x128xf32>
    %34 = vector.shape_cast %33 : vector<432x128xf32> to vector<18x24x128xf32>
    %35 = vector.extract_strided_slice %34 {offsets = [0, 0, 0], sizes = [16, 16, 128], strides = [1, 1, 1]} : vector<18x24x128xf32> to vector<16x16x128xf32>
    %36 = vector.shape_cast %35 : vector<16x16x128xf32> to vector<256x128xf32>
    %c1 = arith.constant 1 : index
    %c0_14 = arith.constant 0 : index
    %c0_15 = arith.constant 0 : index
    %37 = vector.load %arg2[%c1, %c0_14, %c0_15] : memref<9x128x128xf32, #tpu.memory_space<vmem>>, vector<1x128x128xf32>
    %38 = vector.shape_cast %37 : vector<1x128x128xf32> to vector<128x128xf32>
    %cst_16 = arith.constant dense<0.000000e+00> : vector<256x128xf32>
    %39 = tpu.matmul %36, %38, %cst_16 {dimension_numbers = #tpu.dot_dimension_numbers<[1], [0], [0], [1], [0, 0, 1, 1], [], []>} : vector<256x128xf32>, vector<128x128xf32>, vector<256x128xf32> -> vector<256x128xf32>
    %40 = arith.addf %32, %39 : vector<256x128xf32>
    %41 = vector.extract_strided_slice %34 {offsets = [1, 0, 0], sizes = [16, 16, 128], strides = [1, 1, 1]} : vector<18x24x128xf32> to vector<16x16x128xf32>
    %42 = vector.shape_cast %41 : vector<16x16x128xf32> to vector<256x128xf32>
    %c4 = arith.constant 4 : index
    %c0_17 = arith.constant 0 : index
    %c0_18 = arith.constant 0 : index
    %43 = vector.load %arg2[%c4, %c0_17, %c0_18] : memref<9x128x128xf32, #tpu.memory_space<vmem>>, vector<1x128x128xf32>
    %44 = vector.shape_cast %43 : vector<1x128x128xf32> to vector<128x128xf32>
    %cst_19 = arith.constant dense<0.000000e+00> : vector<256x128xf32>
    %45 = tpu.matmul %42, %44, %cst_19 {dimension_numbers = #tpu.dot_dimension_numbers<[1], [0], [0], [1], [0, 0, 1, 1], [], []>} : vector<256x128xf32>, vector<128x128xf32>, vector<256x128xf32> -> vector<256x128xf32>
    %46 = arith.addf %40, %45 : vector<256x128xf32>
    %47 = vector.extract_strided_slice %34 {offsets = [2, 0, 0], sizes = [16, 16, 128], strides = [1, 1, 1]} : vector<18x24x128xf32> to vector<16x16x128xf32>
    %48 = vector.shape_cast %47 : vector<16x16x128xf32> to vector<256x128xf32>
    %c7 = arith.constant 7 : index
    %c0_20 = arith.constant 0 : index
    %c0_21 = arith.constant 0 : index
    %49 = vector.load %arg2[%c7, %c0_20, %c0_21] : memref<9x128x128xf32, #tpu.memory_space<vmem>>, vector<1x128x128xf32>
    %50 = vector.shape_cast %49 : vector<1x128x128xf32> to vector<128x128xf32>
    %cst_22 = arith.constant dense<0.000000e+00> : vector<256x128xf32>
    %51 = tpu.matmul %48, %50, %cst_22 {dimension_numbers = #tpu.dot_dimension_numbers<[1], [0], [0], [1], [0, 0, 1, 1], [], []>} : vector<256x128xf32>, vector<128x128xf32>, vector<256x128xf32> -> vector<256x128xf32>
    %52 = arith.addf %46, %51 : vector<256x128xf32>
    %c430_i32 = arith.constant 430 : i32
    %53 = tpu.dynamic_rotate %11 by %c430_i32 dim 0 : vector<432x128xf32>, i32 -> vector<432x128xf32>
    %54 = vector.shape_cast %53 : vector<432x128xf32> to vector<18x24x128xf32>
    %55 = vector.extract_strided_slice %54 {offsets = [0, 0, 0], sizes = [16, 16, 128], strides = [1, 1, 1]} : vector<18x24x128xf32> to vector<16x16x128xf32>
    %56 = vector.shape_cast %55 : vector<16x16x128xf32> to vector<256x128xf32>
    %c2 = arith.constant 2 : index
    %c0_23 = arith.constant 0 : index
    %c0_24 = arith.constant 0 : index
    %57 = vector.load %arg2[%c2, %c0_23, %c0_24] : memref<9x128x128xf32, #tpu.memory_space<vmem>>, vector<1x128x128xf32>
    %58 = vector.shape_cast %57 : vector<1x128x128xf32> to vector<128x128xf32>
    %cst_25 = arith.constant dense<0.000000e+00> : vector<256x128xf32>
    %59 = tpu.matmul %56, %58, %cst_25 {dimension_numbers = #tpu.dot_dimension_numbers<[1], [0], [0], [1], [0, 0, 1, 1], [], []>} : vector<256x128xf32>, vector<128x128xf32>, vector<256x128xf32> -> vector<256x128xf32>
    %60 = arith.addf %52, %59 : vector<256x128xf32>
    %61 = vector.extract_strided_slice %54 {offsets = [1, 0, 0], sizes = [16, 16, 128], strides = [1, 1, 1]} : vector<18x24x128xf32> to vector<16x16x128xf32>
    %62 = vector.shape_cast %61 : vector<16x16x128xf32> to vector<256x128xf32>
    %c5 = arith.constant 5 : index
    %c0_26 = arith.constant 0 : index
    %c0_27 = arith.constant 0 : index
    %63 = vector.load %arg2[%c5, %c0_26, %c0_27] : memref<9x128x128xf32, #tpu.memory_space<vmem>>, vector<1x128x128xf32>
    %64 = vector.shape_cast %63 : vector<1x128x128xf32> to vector<128x128xf32>
    %cst_28 = arith.constant dense<0.000000e+00> : vector<256x128xf32>
    %65 = tpu.matmul %62, %64, %cst_28 {dimension_numbers = #tpu.dot_dimension_numbers<[1], [0], [0], [1], [0, 0, 1, 1], [], []>} : vector<256x128xf32>, vector<128x128xf32>, vector<256x128xf32> -> vector<256x128xf32>
    %66 = arith.addf %60, %65 : vector<256x128xf32>
    %67 = vector.extract_strided_slice %54 {offsets = [2, 0, 0], sizes = [16, 16, 128], strides = [1, 1, 1]} : vector<18x24x128xf32> to vector<16x16x128xf32>
    %68 = vector.shape_cast %67 : vector<16x16x128xf32> to vector<256x128xf32>
    %c8 = arith.constant 8 : index
    %c0_29 = arith.constant 0 : index
    %c0_30 = arith.constant 0 : index
    %69 = vector.load %arg2[%c8, %c0_29, %c0_30] : memref<9x128x128xf32, #tpu.memory_space<vmem>>, vector<1x128x128xf32>
    %70 = vector.shape_cast %69 : vector<1x128x128xf32> to vector<128x128xf32>
    %cst_31 = arith.constant dense<0.000000e+00> : vector<256x128xf32>
    %71 = tpu.matmul %68, %70, %cst_31 {dimension_numbers = #tpu.dot_dimension_numbers<[1], [0], [0], [1], [0, 0, 1, 1], [], []>} : vector<256x128xf32>, vector<128x128xf32>, vector<256x128xf32> -> vector<256x128xf32>
    %72 = arith.addf %66, %71 : vector<256x128xf32>
    %cst_32 = arith.constant dense<0.000000e+00> : vector<128xf32>
    %73 = vector.multi_reduction <add>, %72, %cst_32 [0] : vector<256x128xf32> to vector<128xf32>
    %74 = vector.shape_cast %73 : vector<128xf32> to vector<1x128xf32>
    %cst_33 = arith.constant 2.560000e+02 : f32
    %75 = vector.broadcast %cst_33 : f32 to vector<1x128xf32>
    %76 = arith.divf %74, %75 : vector<1x128xf32>
    %77 = vector.broadcast %76 : vector<1x128xf32> to vector<256x128xf32>
    %78 = arith.subf %72, %77 : vector<256x128xf32>
    %79 = arith.mulf %78, %78 : vector<256x128xf32>
    %cst_34 = arith.constant dense<0.000000e+00> : vector<128xf32>
    %80 = vector.multi_reduction <add>, %79, %cst_34 [0] : vector<256x128xf32> to vector<128xf32>
    %81 = vector.shape_cast %80 : vector<128xf32> to vector<1x128xf32>
    %cst_35 = arith.constant 2.560000e+02 : f32
    %82 = vector.broadcast %cst_35 : f32 to vector<1x128xf32>
    %83 = arith.divf %81, %82 : vector<1x128xf32>
    %cst_36 = arith.constant 9.99999974E-6 : f32
    %84 = vector.broadcast %cst_36 : f32 to vector<1x128xf32>
    %85 = arith.addf %83, %84 : vector<1x128xf32>
    %86 = math.rsqrt %85 : vector<1x128xf32>
    %87 = vector.broadcast %86 : vector<1x128xf32> to vector<256x128xf32>
    %88 = arith.mulf %78, %87 : vector<256x128xf32>
    %cst_37 = arith.constant 0.000000e+00 : f32
    %89 = vector.broadcast %cst_37 : f32 to vector<256x128xf32>
    %90 = arith.maximumf %88, %89 : vector<256x128xf32>
    %c0_38 = arith.constant 0 : index
    %c0_39 = arith.constant 0 : index
    %91 = vector.load %arg5[%c0_38, %c0_39] : memref<1x128xf32, #tpu.memory_space<vmem>>, vector<1x128xf32>
    %92 = vector.shape_cast %90 : vector<256x128xf32> to vector<16x16x128xf32>
    %93 = vector.extract_strided_slice %92 {offsets = [1, 0, 0], sizes = [1, 16, 128], strides = [1, 1, 1]} : vector<16x16x128xf32> to vector<1x16x128xf32>
    %94 = vector.extract_strided_slice %92 {offsets = [14, 0, 0], sizes = [1, 16, 128], strides = [1, 1, 1]} : vector<16x16x128xf32> to vector<1x16x128xf32>
    %95 = tpu.concatenate %93, %92, %94 in 0 : vector<1x16x128xf32>, vector<16x16x128xf32>, vector<1x16x128xf32> -> vector<18x16x128xf32>
    %96 = vector.extract_strided_slice %95 {offsets = [0, 1, 0], sizes = [18, 1, 128], strides = [1, 1, 1]} : vector<18x16x128xf32> to vector<18x1x128xf32>
    %97 = vector.extract_strided_slice %95 {offsets = [0, 14, 0], sizes = [18, 1, 128], strides = [1, 1, 1]} : vector<18x16x128xf32> to vector<18x1x128xf32>
    %cst_40 = arith.constant 0.000000e+00 : f32
    %98 = vector.broadcast %cst_40 : f32 to vector<18x6x128xf32>
    %99 = tpu.concatenate %96, %95, %97, %98 in 1 : vector<18x1x128xf32>, vector<18x16x128xf32>, vector<18x1x128xf32>, vector<18x6x128xf32> -> vector<18x24x128xf32>
    %100 = vector.shape_cast %99 : vector<18x24x128xf32> to vector<432x128xf32>
    %101 = vector.shape_cast %91 : vector<1x128xf32> to vector<1x128xf32>
    %102 = vector.broadcast %101 : vector<1x128xf32> to vector<256x128xf32>
    %103 = vector.shape_cast %100 : vector<432x128xf32> to vector<18x24x128xf32>
    %104 = vector.extract_strided_slice %103 {offsets = [0, 0, 0], sizes = [16, 16, 128], strides = [1, 1, 1]} : vector<18x24x128xf32> to vector<16x16x128xf32>
    %105 = vector.shape_cast %104 : vector<16x16x128xf32> to vector<256x128xf32>
    %c0_41 = arith.constant 0 : index
    %c0_42 = arith.constant 0 : index
    %c0_43 = arith.constant 0 : index
    %106 = vector.load %arg4[%c0_41, %c0_42, %c0_43] : memref<9x128x128xf32, #tpu.memory_space<vmem>>, vector<1x128x128xf32>
    %107 = vector.shape_cast %106 : vector<1x128x128xf32> to vector<128x128xf32>
    %cst_44 = arith.constant dense<0.000000e+00> : vector<256x128xf32>
    %108 = tpu.matmul %105, %107, %cst_44 {dimension_numbers = #tpu.dot_dimension_numbers<[1], [0], [0], [1], [0, 0, 1, 1], [], []>} : vector<256x128xf32>, vector<128x128xf32>, vector<256x128xf32> -> vector<256x128xf32>
    %109 = arith.addf %102, %108 : vector<256x128xf32>
    %110 = vector.extract_strided_slice %103 {offsets = [1, 0, 0], sizes = [16, 16, 128], strides = [1, 1, 1]} : vector<18x24x128xf32> to vector<16x16x128xf32>
    %111 = vector.shape_cast %110 : vector<16x16x128xf32> to vector<256x128xf32>
    %c3_45 = arith.constant 3 : index
    %c0_46 = arith.constant 0 : index
    %c0_47 = arith.constant 0 : index
    %112 = vector.load %arg4[%c3_45, %c0_46, %c0_47] : memref<9x128x128xf32, #tpu.memory_space<vmem>>, vector<1x128x128xf32>
    %113 = vector.shape_cast %112 : vector<1x128x128xf32> to vector<128x128xf32>
    %cst_48 = arith.constant dense<0.000000e+00> : vector<256x128xf32>
    %114 = tpu.matmul %111, %113, %cst_48 {dimension_numbers = #tpu.dot_dimension_numbers<[1], [0], [0], [1], [0, 0, 1, 1], [], []>} : vector<256x128xf32>, vector<128x128xf32>, vector<256x128xf32> -> vector<256x128xf32>
    %115 = arith.addf %109, %114 : vector<256x128xf32>
    %116 = vector.extract_strided_slice %103 {offsets = [2, 0, 0], sizes = [16, 16, 128], strides = [1, 1, 1]} : vector<18x24x128xf32> to vector<16x16x128xf32>
    %117 = vector.shape_cast %116 : vector<16x16x128xf32> to vector<256x128xf32>
    %c6_49 = arith.constant 6 : index
    %c0_50 = arith.constant 0 : index
    %c0_51 = arith.constant 0 : index
    %118 = vector.load %arg4[%c6_49, %c0_50, %c0_51] : memref<9x128x128xf32, #tpu.memory_space<vmem>>, vector<1x128x128xf32>
    %119 = vector.shape_cast %118 : vector<1x128x128xf32> to vector<128x128xf32>
    %cst_52 = arith.constant dense<0.000000e+00> : vector<256x128xf32>
    %120 = tpu.matmul %117, %119, %cst_52 {dimension_numbers = #tpu.dot_dimension_numbers<[1], [0], [0], [1], [0, 0, 1, 1], [], []>} : vector<256x128xf32>, vector<128x128xf32>, vector<256x128xf32> -> vector<256x128xf32>
    %121 = arith.addf %115, %120 : vector<256x128xf32>
    %c431_i32_53 = arith.constant 431 : i32
    %122 = tpu.dynamic_rotate %100 by %c431_i32_53 dim 0 : vector<432x128xf32>, i32 -> vector<432x128xf32>
    %123 = vector.shape_cast %122 : vector<432x128xf32> to vector<18x24x128xf32>
    %124 = vector.extract_strided_slice %123 {offsets = [0, 0, 0], sizes = [16, 16, 128], strides = [1, 1, 1]} : vector<18x24x128xf32> to vector<16x16x128xf32>
    %125 = vector.shape_cast %124 : vector<16x16x128xf32> to vector<256x128xf32>
    %c1_54 = arith.constant 1 : index
    %c0_55 = arith.constant 0 : index
    %c0_56 = arith.constant 0 : index
    %126 = vector.load %arg4[%c1_54, %c0_55, %c0_56] : memref<9x128x128xf32, #tpu.memory_space<vmem>>, vector<1x128x128xf32>
    %127 = vector.shape_cast %126 : vector<1x128x128xf32> to vector<128x128xf32>
    %cst_57 = arith.constant dense<0.000000e+00> : vector<256x128xf32>
    %128 = tpu.matmul %125, %127, %cst_57 {dimension_numbers = #tpu.dot_dimension_numbers<[1], [0], [0], [1], [0, 0, 1, 1], [], []>} : vector<256x128xf32>, vector<128x128xf32>, vector<256x128xf32> -> vector<256x128xf32>
    %129 = arith.addf %121, %128 : vector<256x128xf32>
    %130 = vector.extract_strided_slice %123 {offsets = [1, 0, 0], sizes = [16, 16, 128], strides = [1, 1, 1]} : vector<18x24x128xf32> to vector<16x16x128xf32>
    %131 = vector.shape_cast %130 : vector<16x16x128xf32> to vector<256x128xf32>
    %c4_58 = arith.constant 4 : index
    %c0_59 = arith.constant 0 : index
    %c0_60 = arith.constant 0 : index
    %132 = vector.load %arg4[%c4_58, %c0_59, %c0_60] : memref<9x128x128xf32, #tpu.memory_space<vmem>>, vector<1x128x128xf32>
    %133 = vector.shape_cast %132 : vector<1x128x128xf32> to vector<128x128xf32>
    %cst_61 = arith.constant dense<0.000000e+00> : vector<256x128xf32>
    %134 = tpu.matmul %131, %133, %cst_61 {dimension_numbers = #tpu.dot_dimension_numbers<[1], [0], [0], [1], [0, 0, 1, 1], [], []>} : vector<256x128xf32>, vector<128x128xf32>, vector<256x128xf32> -> vector<256x128xf32>
    %135 = arith.addf %129, %134 : vector<256x128xf32>
    %136 = vector.extract_strided_slice %123 {offsets = [2, 0, 0], sizes = [16, 16, 128], strides = [1, 1, 1]} : vector<18x24x128xf32> to vector<16x16x128xf32>
    %137 = vector.shape_cast %136 : vector<16x16x128xf32> to vector<256x128xf32>
    %c7_62 = arith.constant 7 : index
    %c0_63 = arith.constant 0 : index
    %c0_64 = arith.constant 0 : index
    %138 = vector.load %arg4[%c7_62, %c0_63, %c0_64] : memref<9x128x128xf32, #tpu.memory_space<vmem>>, vector<1x128x128xf32>
    %139 = vector.shape_cast %138 : vector<1x128x128xf32> to vector<128x128xf32>
    %cst_65 = arith.constant dense<0.000000e+00> : vector<256x128xf32>
    %140 = tpu.matmul %137, %139, %cst_65 {dimension_numbers = #tpu.dot_dimension_numbers<[1], [0], [0], [1], [0, 0, 1, 1], [], []>} : vector<256x128xf32>, vector<128x128xf32>, vector<256x128xf32> -> vector<256x128xf32>
    %141 = arith.addf %135, %140 : vector<256x128xf32>
    %c430_i32_66 = arith.constant 430 : i32
    %142 = tpu.dynamic_rotate %100 by %c430_i32_66 dim 0 : vector<432x128xf32>, i32 -> vector<432x128xf32>
    %143 = vector.shape_cast %142 : vector<432x128xf32> to vector<18x24x128xf32>
    %144 = vector.extract_strided_slice %143 {offsets = [0, 0, 0], sizes = [16, 16, 128], strides = [1, 1, 1]} : vector<18x24x128xf32> to vector<16x16x128xf32>
    %145 = vector.shape_cast %144 : vector<16x16x128xf32> to vector<256x128xf32>
    %c2_67 = arith.constant 2 : index
    %c0_68 = arith.constant 0 : index
    %c0_69 = arith.constant 0 : index
    %146 = vector.load %arg4[%c2_67, %c0_68, %c0_69] : memref<9x128x128xf32, #tpu.memory_space<vmem>>, vector<1x128x128xf32>
    %147 = vector.shape_cast %146 : vector<1x128x128xf32> to vector<128x128xf32>
    %cst_70 = arith.constant dense<0.000000e+00> : vector<256x128xf32>
    %148 = tpu.matmul %145, %147, %cst_70 {dimension_numbers = #tpu.dot_dimension_numbers<[1], [0], [0], [1], [0, 0, 1, 1], [], []>} : vector<256x128xf32>, vector<128x128xf32>, vector<256x128xf32> -> vector<256x128xf32>
    %149 = arith.addf %141, %148 : vector<256x128xf32>
    %150 = vector.extract_strided_slice %143 {offsets = [1, 0, 0], sizes = [16, 16, 128], strides = [1, 1, 1]} : vector<18x24x128xf32> to vector<16x16x128xf32>
    %151 = vector.shape_cast %150 : vector<16x16x128xf32> to vector<256x128xf32>
    %c5_71 = arith.constant 5 : index
    %c0_72 = arith.constant 0 : index
    %c0_73 = arith.constant 0 : index
    %152 = vector.load %arg4[%c5_71, %c0_72, %c0_73] : memref<9x128x128xf32, #tpu.memory_space<vmem>>, vector<1x128x128xf32>
    %153 = vector.shape_cast %152 : vector<1x128x128xf32> to vector<128x128xf32>
    %cst_74 = arith.constant dense<0.000000e+00> : vector<256x128xf32>
    %154 = tpu.matmul %151, %153, %cst_74 {dimension_numbers = #tpu.dot_dimension_numbers<[1], [0], [0], [1], [0, 0, 1, 1], [], []>} : vector<256x128xf32>, vector<128x128xf32>, vector<256x128xf32> -> vector<256x128xf32>
    %155 = arith.addf %149, %154 : vector<256x128xf32>
    %156 = vector.extract_strided_slice %143 {offsets = [2, 0, 0], sizes = [16, 16, 128], strides = [1, 1, 1]} : vector<18x24x128xf32> to vector<16x16x128xf32>
    %157 = vector.shape_cast %156 : vector<16x16x128xf32> to vector<256x128xf32>
    %c8_75 = arith.constant 8 : index
    %c0_76 = arith.constant 0 : index
    %c0_77 = arith.constant 0 : index
    %158 = vector.load %arg4[%c8_75, %c0_76, %c0_77] : memref<9x128x128xf32, #tpu.memory_space<vmem>>, vector<1x128x128xf32>
    %159 = vector.shape_cast %158 : vector<1x128x128xf32> to vector<128x128xf32>
    %cst_78 = arith.constant dense<0.000000e+00> : vector<256x128xf32>
    %160 = tpu.matmul %157, %159, %cst_78 {dimension_numbers = #tpu.dot_dimension_numbers<[1], [0], [0], [1], [0, 0, 1, 1], [], []>} : vector<256x128xf32>, vector<128x128xf32>, vector<256x128xf32> -> vector<256x128xf32>
    %161 = arith.addf %155, %160 : vector<256x128xf32>
    %cst_79 = arith.constant dense<0.000000e+00> : vector<128xf32>
    %162 = vector.multi_reduction <add>, %161, %cst_79 [0] : vector<256x128xf32> to vector<128xf32>
    %163 = vector.shape_cast %162 : vector<128xf32> to vector<1x128xf32>
    %cst_80 = arith.constant 2.560000e+02 : f32
    %164 = vector.broadcast %cst_80 : f32 to vector<1x128xf32>
    %165 = arith.divf %163, %164 : vector<1x128xf32>
    %166 = vector.broadcast %165 : vector<1x128xf32> to vector<256x128xf32>
    %167 = arith.subf %161, %166 : vector<256x128xf32>
    %168 = arith.mulf %167, %167 : vector<256x128xf32>
    %cst_81 = arith.constant dense<0.000000e+00> : vector<128xf32>
    %169 = vector.multi_reduction <add>, %168, %cst_81 [0] : vector<256x128xf32> to vector<128xf32>
    %170 = vector.shape_cast %169 : vector<128xf32> to vector<1x128xf32>
    %cst_82 = arith.constant 2.560000e+02 : f32
    %171 = vector.broadcast %cst_82 : f32 to vector<1x128xf32>
    %172 = arith.divf %170, %171 : vector<1x128xf32>
    %cst_83 = arith.constant 9.99999974E-6 : f32
    %173 = vector.broadcast %cst_83 : f32 to vector<1x128xf32>
    %174 = arith.addf %172, %173 : vector<1x128xf32>
    %175 = math.rsqrt %174 : vector<1x128xf32>
    %176 = vector.broadcast %175 : vector<1x128xf32> to vector<256x128xf32>
    %177 = arith.mulf %167, %176 : vector<256x128xf32>
    %c0_84 = arith.constant 0 : index
    %c0_85 = arith.constant 0 : index
    %c0_86 = arith.constant 0 : index
    %178 = vector.load %arg1[%c0_84, %c0_85, %c0_86] : memref<1x256x128xf32, #tpu.memory_space<vmem>>, vector<1x256x128xf32>
    %179 = vector.shape_cast %178 : vector<1x256x128xf32> to vector<256x128xf32>
    %180 = arith.addf %179, %177 : vector<256x128xf32>
    %c0_87 = arith.constant 0 : index
    %c0_88 = arith.constant 0 : index
    %c0_89 = arith.constant 0 : index
    %181 = vector.load %arg6[%c0_87, %c0_88, %c0_89] : memref<1x256x128xf32, #tpu.memory_space<vmem>>, vector<1x256x128xf32>
    %182 = vector.shape_cast %181 : vector<1x256x128xf32> to vector<256x128xf32>
    %183 = vector.shape_cast %180 : vector<256x128xf32> to vector<1x256x128xf32>
    tpu.vector_store %arg6[%c0_87, %c0_88, %c0_89], %183 {strides = array<i32>} : memref<1x256x128xf32, #tpu.memory_space<vmem>>, vector<1x256x128xf32>,
    return
  }
  func.func @transform_0(%arg0: i32) -> (i32, i32, i32) {
    %c0_i32 = arith.constant 0 : i32
    %c0_i32_0 = arith.constant 0 : i32
    %c0_i32_1 = arith.constant 0 : i32
    return %arg0, %c0_i32, %c0_i32_0 : i32, i32, i32
  }
  func.func @transform_1(%arg0: i32) -> (i32, i32, i32) {
    %c0_i32 = arith.constant 0 : i32
    %c0_i32_0 = arith.constant 0 : i32
    %c0_i32_1 = arith.constant 0 : i32
    %c0_i32_2 = arith.constant 0 : i32
    return %c0_i32, %c0_i32_0, %c0_i32_1 : i32, i32, i32
  }
  func.func @transform_2(%arg0: i32) -> (i32, i32) {
    %c0_i32 = arith.constant 0 : i32
    %c0_i32_0 = arith.constant 0 : i32
    %c0_i32_1 = arith.constant 0 : i32
    return %c0_i32, %c0_i32_0 : i32, i32
  }
  func.func @transform_3(%arg0: i32) -> (i32, i32, i32) {
    %c0_i32 = arith.constant 0 : i32
    %c0_i32_0 = arith.constant 0 : i32
    %c0_i32_1 = arith.constant 0 : i32
    %c0_i32_2 = arith.constant 0 : i32
    return %c0_i32, %c0_i32_0, %c0_i32_1 : i32, i32, i32
  }
  func.func @transform_4(%arg0: i32) -> (i32, i32) {
    %c0_i32 = arith.constant 0 : i32
    %c0_i32_0 = arith.constant 0 : i32
    %c0_i32_1 = arith.constant 0 : i32
    return %c0_i32, %c0_i32_0 : i32, i32
  }
  func.func @transform_5(%arg0: i32) -> (i32, i32, i32) {
    %c0_i32 = arith.constant 0 : i32
    %c0_i32_0 = arith.constant 0 : i32
    %c0_i32_1 = arith.constant 0 : i32
    return %arg0, %c0_i32, %c0_i32_0 : i32, i32, i32
  }
}

</mosaic_0001>

<llo_original>
// kernel: tpu_custom_call.1
$region0: #{tpu_custom_call.1}
  #allocation0 [shape = 'u32[]', space=smem, size = 0x4, offset = 0x4, fixed_abs, tag = 'smem constant byte address 0x4 - core index']
  #allocation1 [shape = 'u32[144,128]{1,0:T(1,128)}', space=vmem, size = 0x12000, scoped, tag = 'internal scratch']
  %s0 = inlined_call_operand.hbm [shape: f32[2,256,128], index: 0, kind: input, shape index: {}]
  %s1 = inlined_call_operand.hbm [shape: f32[9,128,128], index: 1, kind: input, shape index: {}]
  %s2 = inlined_call_operand.hbm [shape: f32[1,128], index: 2, kind: input, shape index: {}]
  %s3 = inlined_call_operand.hbm [shape: f32[9,128,128], index: 3, kind: input, shape index: {}]
  %s4 = inlined_call_operand.hbm [shape: f32[1,128], index: 4, kind: input, shape index: {}]
  %s5 = inlined_call_operand.hbm [shape: f32[2,256,128], index: 5, kind: output, shape index: {}]
  %s6 = sld [smem:[#allocation0]]
  $region73: #{tpu_custom_call.1} parent=0
    _
  %s8 = ssub.s32 1, %s6
  %s9 = scalar_select 0, %s8, %s6
  $region1: #{tpu_custom_call.1} parent=0
    #allocation2 [shape = 'u8[262144]{0}', space=vmem, size = 0x40000, scoped, tag = 'input window, operand 0']
    #allocation3 [shape = 's32[2]{0}', space=sflag, size = 0x8, scoped, tag = 'scoped memory for tpu_custom_call.1']
    #allocation4 [shape = 's32[2]{0}', space=sflag, size = 0x8, scoped, tag = 'scoped memory for tpu_custom_call.1']
    #allocation5 [shape = 'u8[589824]{0}', space=vmem, size = 0x90000, scoped, tag = 'input window, operand 1, single buffered']
    #allocation6 [shape = 's32[1]{0}', space=sflag, size = 0x4, scoped, tag = 'scoped memory for tpu_custom_call.1']
    #allocation7 [shape = 'u8[512]{0}', space=vmem, size = 0x400, scoped, tag = 'input window, operand 2, single buffered']
    #allocation8 [shape = 'u8[589824]{0}', space=vmem, size = 0x90000, scoped, tag = 'input window, operand 3, single buffered']
    #allocation9 [shape = 's32[1]{0}', space=sflag, size = 0x4, scoped, tag = 'scoped memory for tpu_custom_call.1']
    #allocation10 [shape = 'u8[512]{0}', space=vmem, size = 0x400, scoped, tag = 'input window, operand 4, single buffered']
    #allocation11 [shape = 'u8[262144]{0}', space=vmem, size = 0x40000, scoped, tag = 'output window, operand 0']
    %10 = vsyncpa [#allocation3], 0
    %s11 = scalar_lea.sflag [#allocation3], 1
    %12 = vsyncpa %s11, 0
    %13 = vsyncpa [#allocation6], 0
    %14 = vsyncpa [#allocation9], 0
    %15 = vsyncpa [#allocation4], 0
    %s16 = scalar_lea.sflag [#allocation4], 1
    %17 = vsyncpa %s16, 0
    loop: start=0, step=1, limit=4
    $region2: #{tpu_custom_call.1} parent=1 // loop_pre_header
      _
    $region3: #{tpu_custom_call.1} parent=1 // loop_header
      %s19 = sphi 0, %s23
      %p20 = scmp.ge.s32.totalorder %s19, 4
      %s29 = sphi 0, %s31
      %s32 = sphi 0, %s29
      %s33 = sphi 0, %s32
      %s49 = sphi 0, %s33
      %s53 = sphi 0, %s53
      %s55 = sphi 0, %s53
      %s56 = sphi 0, %s55
      %s70 = sphi 0, %s56
      %s74 = sphi 0, %s74
      %s76 = sphi 0, %s74
      %s77 = sphi 0, %s76
      %s91 = sphi 0, %s77
      %s95 = sphi 0, %s95
      %s97 = sphi 0, %s95
      %s98 = sphi 0, %s97
      %s112 = sphi 0, %s98
      %s116 = sphi 0, %s116
      %s118 = sphi 0, %s116
      %s119 = sphi 0, %s118
      %s133 = sphi 0, %s119
      %s139 = sphi 0, %s141
      %s142 = sphi 0, %s139
      %s143 = sphi 0, %s142
      %s159 = sphi 0, %s143
    $region4: #{tpu_custom_call.1} parent=1 // loop_header_branch
      %22 = sbr.rel (%p20) target = $region8
    $region5: #{tpu_custom_call.1} parent=1 // loop_body
      %s24 = ssub.s32 %s19, 1
      %s25 = ssub.s32 %s19, 2
      %s26 = sadd.s32 %s19, 1
      %s27 = ssub.s32 %s19, %s26
      %p28 = scmp.eq.s32.totalorder %s27, 0
      %s30 = sadd.s32 %s29, 1
      %s31 = scalar_select %p28, %s29, %s30
      %p34 = pneg %p28
      %p35 = scmp.eq.s32.totalorder %s19, 1
      %p36 = por %p34, %p35
      %p37 = scmp.ne.s32.totalorder %s29, %s32
      %p38 = scmp.eq.s32.totalorder %s19, 0
      %p39 = por %p37, %p38
      %p40 = scmp.ne.s32.totalorder %s29, %s32
      %p41 = scmp.eq.s32.totalorder %s24, 1
      %p42 = por %p40, %p41
      %p43 = scmp.ne.s32.totalorder %s32, %s33
      %p44 = scmp.eq.s32.totalorder %s24, 0
      %p45 = por %p43, %p44
      %p46 = scmp.ne.s32.totalorder %s32, %s33
      %p47 = scmp.eq.s32.totalorder %s25, 1
      %p48 = por %p46, %p47
      %p50 = scmp.ne.s32.totalorder %s33, %s49
      %p51 = scmp.eq.s32.totalorder %s25, 0
      %p52 = por %p50, %p51
      %s54 = sadd.s32 %s53, 1
      %p57 = scmp.eq.s32.totalorder %s19, 1
      %p58 = scmp.ne.s32.totalorder %s53, %s55
      %p59 = scmp.eq.s32.totalorder %s19, 0
      %p60 = por %p58, %p59
      %p61 = scmp.ne.s32.totalorder %s53, %s55
      %p62 = scmp.eq.s32.totalorder %s24, 1
      %p63 = por %p61, %p62
      %p64 = scmp.ne.s32.totalorder %s55, %s56
      %p65 = scmp.eq.s32.totalorder %s24, 0
      %p66 = por %p64, %p65
      %p67 = scmp.ne.s32.totalorder %s55, %s56
      %p68 = scmp.eq.s32.totalorder %s25, 1
      %p69 = por %p67, %p68
      %p71 = scmp.ne.s32.totalorder %s56, %s70
      %p72 = scmp.eq.s32.totalorder %s25, 0
      %p73 = por %p71, %p72
      %s75 = sadd.s32 %s74, 1
      %p78 = scmp.eq.s32.totalorder %s19, 1
      %p79 = scmp.ne.s32.totalorder %s74, %s76
      %p80 = scmp.eq.s32.totalorder %s19, 0
      %p81 = por %p79, %p80
      %p82 = scmp.ne.s32.totalorder %s74, %s76
      %p83 = scmp.eq.s32.totalorder %s24, 1
      %p84 = por %p82, %p83
      %p85 = scmp.ne.s32.totalorder %s76, %s77
      %p86 = scmp.eq.s32.totalorder %s24, 0
      %p87 = por %p85, %p86
      %p88 = scmp.ne.s32.totalorder %s76, %s77
      %p89 = scmp.eq.s32.totalorder %s25, 1
      %p90 = por %p88, %p89
      %p92 = scmp.ne.s32.totalorder %s77, %s91
      %p93 = scmp.eq.s32.totalorder %s25, 0
      %p94 = por %p92, %p93
      %s96 = sadd.s32 %s95, 1
      %p99 = scmp.eq.s32.totalorder %s19, 1
      %p100 = scmp.ne.s32.totalorder %s95, %s97
      %p101 = scmp.eq.s32.totalorder %s19, 0
      %p102 = por %p100, %p101
      %p103 = scmp.ne.s32.totalorder %s95, %s97
      %p104 = scmp.eq.s32.totalorder %s24, 1
      %p105 = por %p103, %p104
      %p106 = scmp.ne.s32.totalorder %s97, %s98
      %p107 = scmp.eq.s32.totalorder %s24, 0
      %p108 = por %p106, %p107
      %p109 = scmp.ne.s32.totalorder %s97, %s98
      %p110 = scmp.eq.s32.totalorder %s25, 1
      %p111 = por %p109, %p110
      %p113 = scmp.ne.s32.totalorder %s98, %s112
      %p114 = scmp.eq.s32.totalorder %s25, 0
      %p115 = por %p113, %p114
      %s117 = sadd.s32 %s116, 1
      %p120 = scmp.eq.s32.totalorder %s19, 1
      %p121 = scmp.ne.s32.totalorder %s116, %s118
      %p122 = scmp.eq.s32.totalorder %s19, 0
      %p123 = por %p121, %p122
      %p124 = scmp.ne.s32.totalorder %s116, %s118
      %p125 = scmp.eq.s32.totalorder %s24, 1
      %p126 = por %p124, %p125
      %p127 = scmp.ne.s32.totalorder %s118, %s119
      %p128 = scmp.eq.s32.totalorder %s24, 0
      %p129 = por %p127, %p128
      %p130 = scmp.ne.s32.totalorder %s118, %s119
      %p131 = scmp.eq.s32.totalorder %s25, 1
      %p132 = por %p130, %p131
      %p134 = scmp.ne.s32.totalorder %s119, %s133
      %p135 = scmp.eq.s32.totalorder %s25, 0
      %p136 = por %p134, %p135
      %s137 = ssub.s32 %s19, %s26
      %p138 = scmp.eq.s32.totalorder %s137, 0
      %s140 = sadd.s32 %s139, 1
      %s141 = scalar_select %p138, %s139, %s140
      %p144 = pneg %p138
      %p145 = scmp.eq.s32.totalorder %s19, 1
      %p146 = por %p144, %p145
      %p147 = scmp.ne.s32.totalorder %s139, %s142
      %p148 = scmp.eq.s32.totalorder %s19, 0
      %p149 = por %p147, %p148
      %p150 = scmp.ne.s32.totalorder %s139, %s142
      %p151 = scmp.eq.s32.totalorder %s24, 1
      %p152 = por %p150, %p151
      %p153 = scmp.ne.s32.totalorder %s142, %s143
      %p154 = scmp.eq.s32.totalorder %s24, 0
      %p155 = por %p153, %p154
      %p156 = scmp.ne.s32.totalorder %s142, %s143
      %p157 = scmp.eq.s32.totalorder %s25, 1
      %p158 = por %p156, %p157
      %p160 = scmp.ne.s32.totalorder %s143, %s159
      %p161 = scmp.eq.s32.totalorder %s25, 0
      %p162 = por %p160, %p161
      %p163 = scmp.le.s32.totalorder 1, %s19
      %p164 = scmp.lt.s32.totalorder %s19, 3
      %p165 = pnand %p163, %p164
      %p166 = pneg %p165
      // Predicated region
      $region9: #{tpu_custom_call.1} parent=5 // pred_check
        _
      $region10: #{tpu_custom_call.1} parent=5 // pred_check_branch
        %168 = sbr.rel (%p165) target = $region12
      $region11: #{tpu_custom_call.1} parent=5 // pred_region
        %s169 = ssub.s32 %s19, 1
        // Predicated region
        $region13: #{tpu_custom_call.1} parent=11 // pred_check
          %p170 = pneg %p66
        $region14: #{tpu_custom_call.1} parent=11 // pred_check_branch
          %172 = sbr.rel (%p170) target = $region16
        $region15: #{tpu_custom_call.1} parent=11 // pred_region
          %s174 = ssub.s32 18432, 18432
          %175 = vsyncadd [#allocation6], %s174
          %s176 = sshll.u32 [#allocation5], 4
          %s177 = int_to_ptr.vmem [resolvable:$true] %s176
          %182 = dma.hbm_to_vmem [thread:$0]  %s1, 18432, %s177, [#allocation6], 128, 128, 8
        $region16: #{tpu_custom_call.1} parent=11 // pred_fallthru
          _
        // Predicated region
        $region17: #{tpu_custom_call.1} parent=11 // pred_check
          %p183 = pneg %p87
        $region18: #{tpu_custom_call.1} parent=11 // pred_check_branch
          %185 = sbr.rel (%p183) target = $region20
        $region19: #{tpu_custom_call.1} parent=11 // pred_region
          %s187 = ssub.s32 16, 16
          %188 = vsyncadd [#allocation6], %s187
          %s190 = sshll.u32 [#allocation7], 4
          %s191 = int_to_ptr.vmem [resolvable:$true] %s190
          %193 = dma.hbm_to_vmem [thread:$0]  %s2, 16, %s191, [#allocation6]
        $region20: #{tpu_custom_call.1} parent=11 // pred_fallthru
          _
        // Predicated region
        $region21: #{tpu_custom_call.1} parent=11 // pred_check
          %p194 = pneg %p108
        $region22: #{tpu_custom_call.1} parent=11 // pred_check_branch
          %196 = sbr.rel (%p194) target = $region24
        $region23: #{tpu_custom_call.1} parent=11 // pred_region
          %s198 = ssub.s32 18432, 18432
          %199 = vsyncadd [#allocation9], %s198
          %s200 = sshll.u32 [#allocation8], 4
          %s201 = int_to_ptr.vmem [resolvable:$true] %s200
          %206 = dma.hbm_to_vmem [thread:$0]  %s3, 18432, %s201, [#allocation9], 128, 128, 8
        $region24: #{tpu_custom_call.1} parent=11 // pred_fallthru
          _
        // Predicated region
        $region25: #{tpu_custom_call.1} parent=11 // pred_check
          %p207 = pneg %p129
        $region26: #{tpu_custom_call.1} parent=11 // pred_check_branch
          %209 = sbr.rel (%p207) target = $region28
        $region27: #{tpu_custom_call.1} parent=11 // pred_region
          %s211 = ssub.s32 16, 16
          %212 = vsyncadd [#allocation9], %s211
          %s214 = sshll.u32 [#allocation10], 4
          %s215 = int_to_ptr.vmem [resolvable:$true] %s214
          %217 = dma.hbm_to_vmem [thread:$0]  %s4, 16, %s215, [#allocation9]
        $region28: #{tpu_custom_call.1} parent=11 // pred_fallthru
          _
      $region12: #{tpu_custom_call.1} parent=5 // pred_fallthru
        _
      %p218 = scmp.lt.s32.totalorder %s19, 2
      // Predicated region
      $region29: #{tpu_custom_call.1} parent=5 // pred_check
        %p219 = pneg %p218
      $region30: #{tpu_custom_call.1} parent=5 // pred_check_branch
        %221 = sbr.rel (%p219) target = $region32
      $region31: #{tpu_custom_call.1} parent=5 // pred_region
        // Predicated region
        $region33: #{tpu_custom_call.1} parent=31 // pred_check
          %p222 = pneg %p39
        $region34: #{tpu_custom_call.1} parent=31 // pred_check_branch
          %224 = sbr.rel (%p222) target = $region36
        $region35: #{tpu_custom_call.1} parent=31 // pred_region
          %s225 = sand.u32 %s29, 1
          %s226 = scalar_lea.sflag [#allocation3], %s225
          %s227 = sand.u32 %s29, 1
          %s228 = smul.addr %s227, 256
          %s229 = scalar_lea.vmem [#allocation2], %s228
          %s231 = ssub.s32 4096, 4096
          %232 = vsyncadd %s226, %s231
          %s233 = smul.addr %s19, 32
          %s234 = smul.addr %s233, 128
          %s235 = scalar_lea.hbm %s0, %s234
          %s236 = sshll.u32 %s229, 4
          %s237 = int_to_ptr.vmem [resolvable:$true] %s236
          %242 = dma.hbm_to_vmem [thread:$0]  %s235, 4096, %s237, %s226, 128, 128, 8
        $region36: #{tpu_custom_call.1} parent=31 // pred_fallthru
          _
      $region32: #{tpu_custom_call.1} parent=5 // pred_fallthru
        _
      %p243 = scmp.le.s32.totalorder 1, %s19
      %p244 = scmp.lt.s32.totalorder %s19, 3
      %p245 = pnand %p243, %p244
      %p246 = pneg %p245
      // Predicated region
      $region37: #{tpu_custom_call.1} parent=5 // pred_check
        _
      $region38: #{tpu_custom_call.1} parent=5 // pred_check_branch
        %248 = sbr.rel (%p245) target = $region40
      $region39: #{tpu_custom_call.1} parent=5 // pred_region
        %s249 = ssub.s32 %s19, 1
        %s250 = sand.u32 %s32, 1
        %s251 = scalar_lea.sflag [#allocation3], %s250
        %s252 = sand.u32 %s32, 1
        %s253 = smul.addr %s252, 256
        %s254 = scalar_lea.vmem [#allocation2], %s253
        // Predicated region
        $region41: #{tpu_custom_call.1} parent=39 // pred_check
          %p255 = pneg %p45
        $region42: #{tpu_custom_call.1} parent=39 // pred_check_branch
          %257 = sbr.rel (%p255) target = $region44
        $region43: #{tpu_custom_call.1} parent=39 // pred_region
          %258 = dma.done %s251, 4096
        $region44: #{tpu_custom_call.1} parent=39 // pred_fallthru
          _
        // Predicated region
        $region45: #{tpu_custom_call.1} parent=39 // pred_check
          %p259 = pneg %p66
        $region46: #{tpu_custom_call.1} parent=39 // pred_check_branch
          %261 = sbr.rel (%p259) target = $region48
        $region47: #{tpu_custom_call.1} parent=39 // pred_region
          %262 = dma.done [#allocation6], 18432
        $region48: #{tpu_custom_call.1} parent=39 // pred_fallthru
          _
        // Predicated region
        $region49: #{tpu_custom_call.1} parent=39 // pred_check
          %p263 = pneg %p87
        $region50: #{tpu_custom_call.1} parent=39 // pred_check_branch
          %265 = sbr.rel (%p263) target = $region52
        $region51: #{tpu_custom_call.1} parent=39 // pred_region
          %266 = dma.done [#allocation6], 16
        $region52: #{tpu_custom_call.1} parent=39 // pred_fallthru
          _
        // Predicated region
        $region53: #{tpu_custom_call.1} parent=39 // pred_check
          %p267 = pneg %p108
        $region54: #{tpu_custom_call.1} parent=39 // pred_check_branch
          %269 = sbr.rel (%p267) target = $region56
        $region55: #{tpu_custom_call.1} parent=39 // pred_region
          %270 = dma.done [#allocation9], 18432
        $region56: #{tpu_custom_call.1} parent=39 // pred_fallthru
          _
        // Predicated region
        $region57: #{tpu_custom_call.1} parent=39 // pred_check
          %p271 = pneg %p129
        $region58: #{tpu_custom_call.1} parent=39 // pred_check_branch
          %273 = sbr.rel (%p271) target = $region60
        $region59: #{tpu_custom_call.1} parent=39 // pred_region
          %274 = dma.done [#allocation9], 16
        $region60: #{tpu_custom_call.1} parent=39 // pred_fallthru
          _
        %s275 = sand.u32 %s32, 1
        %s276 = scalar_lea.sflag [#allocation3], %s275
        %s277 = sand.u32 %s32, 1
        %s278 = smul.addr %s277, 256
        %s279 = scalar_lea.vmem [#allocation2], %s278
        %p280 = pneg %p45
        %p281 = pneg %p42
        %p282 = pneg %p66
        %p283 = pneg %p63
        %p284 = pneg %p87
        %p285 = pneg %p84
        %p286 = pneg %p108
        %p287 = pneg %p105
        %p288 = pneg %p129
        %p289 = pneg %p126
        %p290 = pneg %p155
        %p291 = pneg %p152
        %s292 = sand.u32 %s142, 1
        %s293 = scalar_lea.sflag [#allocation4], %s292
        %s294 = sand.u32 %s142, 1
        %s295 = smul.addr %s294, 256
        %s296 = scalar_lea.vmem [#allocation11], %s295
        %v297 = vld [vmem:[%s254] sm:$0xff]
        %v298 = vld [vmem:[%s254 + $0x8] sm:$0xff]
        %v299 = vld [vmem:[%s254 + $0x10] sm:$0xff]
        %v300 = vld [vmem:[%s254 + $0x18] sm:$0xff]
        %v301 = vld [vmem:[%s254 + $0x20] sm:$0xff]
        %v302 = vld [vmem:[%s254 + $0x28] sm:$0xff]
        %v303 = vld [vmem:[%s254 + $0x30] sm:$0xff]
        %v304 = vld [vmem:[%s254 + $0x38] sm:$0xff]
        %v305 = vld [vmem:[%s254 + $0x40] sm:$0xff]
        %v306 = vld [vmem:[%s254 + $0x48] sm:$0xff]
        %v307 = vld [vmem:[%s254 + $0x50] sm:$0xff]
        %v308 = vld [vmem:[%s254 + $0x58] sm:$0xff]
        %v309 = vld [vmem:[%s254 + $0x60] sm:$0xff]
        %v310 = vld [vmem:[%s254 + $0x68] sm:$0xff]
        %v311 = vld [vmem:[%s254 + $0x70] sm:$0xff]
        %v312 = vld [vmem:[%s254 + $0x78] sm:$0xff]
        %v313 = vld [vmem:[%s254 + $0x80] sm:$0xff]
        %v314 = vld [vmem:[%s254 + $0x88] sm:$0xff]
        %v315 = vld [vmem:[%s254 + $0x90] sm:$0xff]
        %v316 = vld [vmem:[%s254 + $0x98] sm:$0xff]
        %v317 = vld [vmem:[%s254 + $0xa0] sm:$0xff]
        %v318 = vld [vmem:[%s254 + $0xa8] sm:$0xff]
        %v319 = vld [vmem:[%s254 + $0xb0] sm:$0xff]
        %v320 = vld [vmem:[%s254 + $0xb8] sm:$0xff]
        %v321 = vld [vmem:[%s254 + $0xc0] sm:$0xff]
        %v322 = vld [vmem:[%s254 + $0xc8] sm:$0xff]
        %v323 = vld [vmem:[%s254 + $0xd0] sm:$0xff]
        %v324 = vld [vmem:[%s254 + $0xd8] sm:$0xff]
        %v325 = vld [vmem:[%s254 + $0xe0] sm:$0xff]
        %v326 = vld [vmem:[%s254 + $0xe8] sm:$0xff]
        %v327 = vld [vmem:[%s254 + $0xf0] sm:$0xff]
        %v328 = vld [vmem:[%s254 + $0xf8] sm:$0xff]
        %v329 = vld [vmem:[#allocation7] sm:$0x1]
        %v346 = vrot.slane %v299, 1
        %v347 = vrot.slane %v297, 1
        %v348 = vrot.slane %v301, 1
        %v349 = vrot.slane %v303, 1
        %v350 = vrot.slane %v305, 1
        %v351 = vrot.slane %v307, 1
        %v352 = vrot.slane %v309, 1
        %v353 = vrot.slane %v311, 1
        %v354 = vrot.slane %v313, 1
        %v355 = vrot.slane %v315, 1
        %v356 = vrot.slane %v317, 1
        %v357 = vrot.slane %v319, 1
        %v358 = vrot.slane %v321, 1
        %v359 = vrot.slane %v323, 1
        %v360 = vrot.slane %v325, 1
        %v361 = vrot.slane %v327, 1
        %vm394 = vcmask 1040384
        %v395 = vrot.slane %v299, 7
        %v396 = vrot.slane %v300, 7
        %v397 = vsel %vm394, %v395, %v396
        %v398 = vrot.slane %v297, 7
        %v399 = vrot.slane %v298, 7
        %v400 = vsel %vm394, %v398, %v399
        %v401 = vrot.slane %v301, 7
        %v402 = vrot.slane %v302, 7
        %v403 = vsel %vm394, %v401, %v402
        %v404 = vrot.slane %v303, 7
        %v405 = vrot.slane %v304, 7
        %v406 = vsel %vm394, %v404, %v405
        %v407 = vrot.slane %v305, 7
        %v408 = vrot.slane %v306, 7
        %v409 = vsel %vm394, %v407, %v408
        %v410 = vrot.slane %v307, 7
        %v411 = vrot.slane %v308, 7
        %v412 = vsel %vm394, %v410, %v411
        %v413 = vrot.slane %v309, 7
        %v414 = vrot.slane %v310, 7
        %v415 = vsel %vm394, %v413, %v414
        %v416 = vrot.slane %v311, 7
        %v417 = vrot.slane %v312, 7
        %v418 = vsel %vm394, %v416, %v417
        %v419 = vrot.slane %v313, 7
        %v420 = vrot.slane %v314, 7
        %v421 = vsel %vm394, %v419, %v420
        %v422 = vrot.slane %v315, 7
        %v423 = vrot.slane %v316, 7
        %v424 = vsel %vm394, %v422, %v423
        %v425 = vrot.slane %v317, 7
        %v426 = vrot.slane %v318, 7
        %v427 = vsel %vm394, %v425, %v426
        %v428 = vrot.slane %v319, 7
        %v429 = vrot.slane %v320, 7
        %v430 = vsel %vm394, %v428, %v429
        %v431 = vrot.slane %v321, 7
        %v432 = vrot.slane %v322, 7
        %v433 = vsel %vm394, %v431, %v432
        %v434 = vrot.slane %v323, 7
        %v435 = vrot.slane %v324, 7
        %v436 = vsel %vm394, %v434, %v435
        %v437 = vrot.slane %v325, 7
        %v438 = vrot.slane %v326, 7
        %v439 = vsel %vm394, %v437, %v438
        %v440 = vrot.slane %v327, 7
        %v441 = vrot.slane %v328, 7
        %v442 = vsel %vm394, %v440, %v441
        %v491 = vrot.slane %v300, 5
        %v492 = vrot.slane %v298, 5
        %v493 = vrot.slane %v302, 5
        %v494 = vrot.slane %v304, 5
        %v495 = vrot.slane %v306, 5
        %v496 = vrot.slane %v308, 5
        %v497 = vrot.slane %v310, 5
        %v498 = vrot.slane %v312, 5
        %v499 = vrot.slane %v314, 5
        %v500 = vrot.slane %v316, 5
        %v501 = vrot.slane %v318, 5
        %v502 = vrot.slane %v320, 5
        %v503 = vrot.slane %v322, 5
        %v504 = vrot.slane %v324, 5
        %v505 = vrot.slane %v326, 5
        %v506 = vrot.slane %v328, 5
        %v523 = vsel %vm394, %v346, %v395
        %v524 = vsel %vm394, %v347, %v398
        %v525 = vsel %vm394, %v348, %v401
        %v526 = vsel %vm394, %v349, %v404
        %v527 = vsel %vm394, %v350, %v407
        %v528 = vsel %vm394, %v351, %v410
        %v529 = vsel %vm394, %v352, %v413
        %v530 = vsel %vm394, %v353, %v416
        %v531 = vsel %vm394, %v354, %v419
        %v532 = vsel %vm394, %v355, %v422
        %v533 = vsel %vm394, %v356, %v425
        %v534 = vsel %vm394, %v357, %v428
        %v535 = vsel %vm394, %v358, %v431
        %v536 = vsel %vm394, %v359, %v434
        %v537 = vsel %vm394, %v360, %v437
        %v538 = vsel %vm394, %v361, %v440
        %v539 = vsel %vm394, %v396, %v491
        %v540 = vsel %vm394, %v399, %v492
        %v541 = vsel %vm394, %v402, %v493
        %v542 = vsel %vm394, %v405, %v494
        %v543 = vsel %vm394, %v408, %v495
        %v544 = vsel %vm394, %v411, %v496
        %v545 = vsel %vm394, %v414, %v497
        %v546 = vsel %vm394, %v417, %v498
        %v547 = vsel %vm394, %v420, %v499
        %v548 = vsel %vm394, %v423, %v500
        %v549 = vsel %vm394, %v426, %v501
        %v550 = vsel %vm394, %v429, %v502
        %v551 = vsel %vm394, %v432, %v503
        %v552 = vsel %vm394, %v435, %v504
        %v553 = vsel %vm394, %v438, %v505
        %v554 = vsel %vm394, %v441, %v506
        %vm555 = vcmask 1041408
        %v556 = vsel %vm555, %v539, 0.0
        %v557 = vsel %vm555, %v540, 0.0
        %v558 = vsel %vm555, %v541, 0.0
        %v559 = vsel %vm555, %v542, 0.0
        %v560 = vsel %vm555, %v543, 0.0
        %v561 = vsel %vm555, %v544, 0.0
        %v562 = vsel %vm555, %v545, 0.0
        %v563 = vsel %vm555, %v546, 0.0
        %v564 = vsel %vm555, %v547, 0.0
        %v565 = vsel %vm555, %v548, 0.0
        %v566 = vsel %vm555, %v549, 0.0
        %v567 = vsel %vm555, %v550, 0.0
        %v568 = vsel %vm555, %v551, 0.0
        %v569 = vsel %vm555, %v552, 0.0
        %v570 = vsel %vm555, %v553, 0.0
        %v571 = vsel %vm555, %v554, 0.0
        %v573 = vlaneseq
        %v574 = vshrl.u32 %v573, 7
        %v575 = vsub.s32 0, %v574
        %v576 = vrot.slane %v329, %v575
        %v578 = vld [vmem:[#allocation5] sm:$0xff]
        %v579 = vld [vmem:[#allocation5 + $0x8] sm:$0xff]
        %v580 = vld [vmem:[#allocation5 + $0x10] sm:$0xff]
        %v581 = vld [vmem:[#allocation5 + $0x18] sm:$0xff]
        %v582 = vld [vmem:[#allocation5 + $0x20] sm:$0xff]
        %v583 = vld [vmem:[#allocation5 + $0x28] sm:$0xff]
        %v584 = vld [vmem:[#allocation5 + $0x30] sm:$0xff]
        %v585 = vld [vmem:[#allocation5 + $0x38] sm:$0xff]
        %v586 = vld [vmem:[#allocation5 + $0x40] sm:$0xff]
        %v587 = vld [vmem:[#allocation5 + $0x48] sm:$0xff]
        %v588 = vld [vmem:[#allocation5 + $0x50] sm:$0xff]
        %v589 = vld [vmem:[#allocation5 + $0x58] sm:$0xff]
        %v590 = vld [vmem:[#allocation5 + $0x60] sm:$0xff]
        %v591 = vld [vmem:[#allocation5 + $0x68] sm:$0xff]
        %v592 = vld [vmem:[#allocation5 + $0x70] sm:$0xff]
        %v593 = vld [vmem:[#allocation5 + $0x78] sm:$0xff]
        %594 = vmatprep.subr.mxu0 0.0
        %595 = vmatpush1.msra.mxu0 %v578
        %596 = vmatprep.subr.mxu0 0.0
        %597 = vmatpush1.msra.mxu0 %v579
        %598 = vmatprep.subr.mxu0 0.0
        %599 = vmatpush1.msra.mxu0 %v580
        %600 = vmatprep.subr.mxu0 0.0
        %601 = vmatpush1.msra.mxu0 %v581
        %602 = vmatprep.subr.mxu0 0.0
        %603 = vmatpush1.msra.mxu0 %v582
        %604 = vmatprep.subr.mxu0 0.0
        %605 = vmatpush1.msra.mxu0 %v583
        %606 = vmatprep.subr.mxu0 0.0
        %607 = vmatpush1.msra.mxu0 %v584
        %608 = vmatprep.subr.mxu0 0.0
        %609 = vmatpush1.msra.mxu0 %v585
        %610 = vmatprep.subr.mxu0 0.0
        %611 = vmatpush1.msra.mxu0 %v586
        %612 = vmatprep.subr.mxu0 0.0
        %613 = vmatpush1.msra.mxu0 %v587
        %614 = vmatprep.subr.mxu0 0.0
        %615 = vmatpush1.msra.mxu0 %v588
        %616 = vmatprep.subr.mxu0 0.0
        %617 = vmatpush1.msra.mxu0 %v589
        %618 = vmatprep.subr.mxu0 0.0
        %619 = vmatpush1.msra.mxu0 %v590
        %620 = vmatprep.subr.mxu0 0.0
        %621 = vmatpush1.msra.mxu0 %v591
        %622 = vmatprep.subr.mxu0 0.0
        %623 = vmatpush1.msra.mxu0 %v592
        %624 = vmatprep.subr.mxu0 0.0
        %625 = vmatpush1.msra.mxu0 %v593
        %626 = vmatprep.subr.mxu0 0.0
        %627 = vmatpush1.msra.mxu0 0.0
        %628 = vmatprep.subr.mxu0 0.0
        %629 = vmatpush1.msra.mxu0 0.0
        %630 = vmatprep.subr.mxu0 0.0
        %631 = vmatpush1.msra.mxu0 0.0
        %632 = vmatprep.subr.mxu0 0.0
        %633 = vmatpush1.msra.mxu0 0.0
        %634 = vmatprep.subr.mxu0 0.0
        %635 = vmatpush1.msra.mxu0 0.0
        %636 = vmatprep.subr.mxu0 0.0
        %637 = vmatpush1.msra.mxu0 0.0
        %638 = vmatprep.subr.mxu0 0.0
        %639 = vmatpush1.msra.mxu0 0.0
        %640 = vmatprep.subr.mxu0 0.0
        %641 = vmatpush1.msra.mxu0 0.0
        %642 = vmatprep.subr.mxu0 0.0
        %643 = vmatpush1.msra.mxu0 0.0
        %644 = vmatprep.subr.mxu0 0.0
        %645 = vmatpush1.msra.mxu0 0.0
        %646 = vmatprep.subr.mxu0 0.0
        %647 = vmatpush1.msra.mxu0 0.0
        %648 = vmatprep.subr.mxu0 0.0
        %649 = vmatpush1.msra.mxu0 0.0
        %650 = vmatprep.subr.mxu0 0.0
        %651 = vmatpush1.msra.mxu0 0.0
        %652 = vmatprep.subr.mxu0 0.0
        %653 = vmatpush1.msra.mxu0 0.0
        %654 = vmatprep.subr.mxu0 0.0
        %655 = vmatpush1.msra.mxu0 0.0
        %656 = vmatprep.subr.mxu0 0.0
        %657 = vmatpush1.msra.mxu0 0.0
        %658 = vmatprep.mubr.f32.mxu0 0.0
        %659 = vmatmul.mubr.f32.gmra.mrb[0].mxu0 %v523
        %v660 = vpop.f32.mrb[0].mxu0
        %v661 = vadd.f32 0.0, %v660
        %v662 = vpop.f32.mrb[0].mxu0
        %663 = vmatprep.mubr.f32.mxu0 0.0
        %664 = vmatmul.mubr.f32.gmra.mrb[0].mxu0 %v397
        %v665 = vpop.f32.mrb[0].mxu0
        %v666 = vadd.f32 0.0, %v665
        %v667 = vpop.f32.mrb[0].mxu0
        %668 = vmatprep.mubr.f32.mxu0 0.0
        %669 = vmatmul.mubr.f32.gmra.mrb[0].mxu0 %v524
        %v670 = vpop.f32.mrb[0].mxu0
        %v671 = vadd.f32 0.0, %v670
        %v672 = vpop.f32.mrb[0].mxu0
        %673 = vmatprep.mubr.f32.mxu0 0.0
        %674 = vmatmul.mubr.f32.gmra.mrb[0].mxu0 %v400
        %v675 = vpop.f32.mrb[0].mxu0
        %v676 = vadd.f32 0.0, %v675
        %v677 = vpop.f32.mrb[0].mxu0
        %678 = vmatprep.mubr.f32.mxu0 0.0
        %679 = vmatmul.mubr.f32.gmra.mrb[0].mxu0 %v523
        %v680 = vpop.f32.mrb[0].mxu0
        %v681 = vadd.f32 0.0, %v680
        %v682 = vpop.f32.mrb[0].mxu0
        %683 = vmatprep.mubr.f32.mxu0 0.0
        %684 = vmatmul.mubr.f32.gmra.mrb[0].mxu0 %v397
        %v685 = vpop.f32.mrb[0].mxu0
        %v686 = vadd.f32 0.0, %v685
        %v687 = vpop.f32.mrb[0].mxu0
        %688 = vmatprep.mubr.f32.mxu0 0.0
        %689 = vmatmul.mubr.f32.gmra.mrb[0].mxu0 %v525
        %v690 = vpop.f32.mrb[0].mxu0
        %v691 = vadd.f32 0.0, %v690
        %v692 = vpop.f32.mrb[0].mxu0
        %693 = vmatprep.mubr.f32.mxu0 0.0
        %694 = vmatmul.mubr.f32.gmra.mrb[0].mxu0 %v403
        %v695 = vpop.f32.mrb[0].mxu0
        %v696 = vadd.f32 0.0, %v695
        %v697 = vpop.f32.mrb[0].mxu0
        %698 = vmatprep.mubr.f32.mxu0 0.0
        %699 = vmatmul.mubr.f32.gmra.mrb[0].mxu0 %v526
        %v700 = vpop.f32.mrb[0].mxu0
        %v701 = vadd.f32 0.0, %v700
        %v702 = vpop.f32.mrb[0].mxu0
        %703 = vmatprep.mubr.f32.mxu0 0.0
        %704 = vmatmul.mubr.f32.gmra.mrb[0].mxu0 %v406
        %v705 = vpop.f32.mrb[0].mxu0
        %v706 = vadd.f32 0.0, %v705
        %v707 = vpop.f32.mrb[0].mxu0
        %708 = vmatprep.mubr.f32.mxu0 0.0
        %709 = vmatmul.mubr.f32.gmra.mrb[0].mxu0 %v527
        %v710 = vpop.f32.mrb[0].mxu0
        %v711 = vadd.f32 0.0, %v710
        %v712 = vpop.f32.mrb[0].mxu0
        %713 = vmatprep.mubr.f32.mxu0 0.0
        %714 = vmatmul.mubr.f32.gmra.mrb[0].mxu0 %v409
        %v715 = vpop.f32.mrb[0].mxu0
        %v716 = vadd.f32 0.0, %v715
        %v717 = vpop.f32.mrb[0].mxu0
        %718 = vmatprep.mubr.f32.mxu0 0.0
        %719 = vmatmul.mubr.f32.gmra.mrb[0].mxu0 %v528
        %v720 = vpop.f32.mrb[0].mxu0
        %v721 = vadd.f32 0.0, %v720
        %v722 = vpop.f32.mrb[0].mxu0
        %723 = vmatprep.mubr.f32.mxu0 0.0
        %724 = vmatmul.mubr.f32.gmra.mrb[0].mxu0 %v412
        %v725 = vpop.f32.mrb[0].mxu0
        %v726 = vadd.f32 0.0, %v725
        %v727 = vpop.f32.mrb[0].mxu0
        %728 = vmatprep.mubr.f32.mxu0 0.0
        %729 = vmatmul.mubr.f32.gmra.mrb[0].mxu0 %v529
        %v730 = vpop.f32.mrb[0].mxu0
        %v731 = vadd.f32 0.0, %v730
        %v732 = vpop.f32.mrb[0].mxu0
        %733 = vmatprep.mubr.f32.mxu0 0.0
        %734 = vmatmul.mubr.f32.gmra.mrb[0].mxu0 %v415
        %v735 = vpop.f32.mrb[0].mxu0
        %v736 = vadd.f32 0.0, %v735
        %v737 = vpop.f32.mrb[0].mxu0
        %738 = vmatprep.mubr.f32.mxu0 0.0
        %739 = vmatmul.mubr.f32.gmra.mrb[0].mxu0 %v530
        %v740 = vpop.f32.mrb[0].mxu0
        %v741 = vadd.f32 0.0, %v740
        %v742 = vpop.f32.mrb[0].mxu0
        %743 = vmatprep.mubr.f32.mxu0 0.0
        %744 = vmatmul.mubr.f32.gmra.mrb[0].mxu0 %v418
        %v745 = vpop.f32.mrb[0].mxu0
        %v746 = vadd.f32 0.0, %v745
        %v747 = vpop.f32.mrb[0].mxu0
        %748 = vmatprep.mubr.f32.mxu0 0.0
        %749 = vmatmul.mubr.f32.gmra.mrb[0].mxu0 %v531
        %v750 = vpop.f32.mrb[0].mxu0
        %v751 = vadd.f32 0.0, %v750
        %v752 = vpop.f32.mrb[0].mxu0
        %753 = vmatprep.mubr.f32.mxu0 0.0
        %754 = vmatmul.mubr.f32.gmra.mrb[0].mxu0 %v421
        %v755 = vpop.f32.mrb[0].mxu0
        %v756 = vadd.f32 0.0, %v755
        %v757 = vpop.f32.mrb[0].mxu0
        %758 = vmatprep.mubr.f32.mxu0 0.0
        %759 = vmatmul.mubr.f32.gmra.mrb[0].mxu0 %v532
        %v760 = vpop.f32.mrb[0].mxu0
        %v761 = vadd.f32 0.0, %v760
        %v762 = vpop.f32.mrb[0].mxu0
        %763 = vmatprep.mubr.f32.mxu0 0.0
        %764 = vmatmul.mubr.f32.gmra.mrb[0].mxu0 %v424
        %v765 = vpop.f32.mrb[0].mxu0
        %v766 = vadd.f32 0.0, %v765
        %v767 = vpop.f32.mrb[0].mxu0
        %768 = vmatprep.mubr.f32.mxu0 0.0
        %769 = vmatmul.mubr.f32.gmra.mrb[0].mxu0 %v533
        %v770 = vpop.f32.mrb[0].mxu0
        %v771 = vadd.f32 0.0, %v770
        %v772 = vpop.f32.mrb[0].mxu0
        %773 = vmatprep.mubr.f32.mxu0 0.0
        %774 = vmatmul.mubr.f32.gmra.mrb[0].mxu0 %v427
        %v775 = vpop.f32.mrb[0].mxu0
        %v776 = vadd.f32 0.0, %v775
        %v777 = vpop.f32.mrb[0].mxu0
        %778 = vmatprep.mubr.f32.mxu0 0.0
        %779 = vmatmul.mubr.f32.gmra.mrb[0].mxu0 %v534
        %v780 = vpop.f32.mrb[0].mxu0
        %v781 = vadd.f32 0.0, %v780
        %v782 = vpop.f32.mrb[0].mxu0
        %783 = vmatprep.mubr.f32.mxu0 0.0
        %784 = vmatmul.mubr.f32.gmra.mrb[0].mxu0 %v430
        %v785 = vpop.f32.mrb[0].mxu0
        %v786 = vadd.f32 0.0, %v785
        %v787 = vpop.f32.mrb[0].mxu0
        %788 = vmatprep.mubr.f32.mxu0 0.0
        %789 = vmatmul.mubr.f32.gmra.mrb[0].mxu0 %v535
        %v790 = vpop.f32.mrb[0].mxu0
        %v791 = vadd.f32 0.0, %v790
        %v792 = vpop.f32.mrb[0].mxu0
        %793 = vmatprep.mubr.f32.mxu0 0.0
        %794 = vmatmul.mubr.f32.gmra.mrb[0].mxu0 %v433
        %v795 = vpop.f32.mrb[0].mxu0
        %v796 = vadd.f32 0.0, %v795
        %v797 = vpop.f32.mrb[0].mxu0
        %798 = vmatprep.mubr.f32.mxu0 0.0
        %799 = vmatmul.mubr.f32.gmra.mrb[0].mxu0 %v536
        %v800 = vpop.f32.mrb[0].mxu0
        %v801 = vadd.f32 0.0, %v800
        %v802 = vpop.f32.mrb[0].mxu0
        %803 = vmatprep.mubr.f32.mxu0 0.0
        %804 = vmatmul.mubr.f32.gmra.mrb[0].mxu0 %v436
        %v805 = vpop.f32.mrb[0].mxu0
        %v806 = vadd.f32 0.0, %v805
        %v807 = vpop.f32.mrb[0].mxu0
        %808 = vmatprep.mubr.f32.mxu0 0.0
        %809 = vmatmul.mubr.f32.gmra.mrb[0].mxu0 %v537
        %v810 = vpop.f32.mrb[0].mxu0
        %v811 = vadd.f32 0.0, %v810
        %v812 = vpop.f32.mrb[0].mxu0
        %813 = vmatprep.mubr.f32.mxu0 0.0
        %814 = vmatmul.mubr.f32.gmra.mrb[0].mxu0 %v439
        %v815 = vpop.f32.mrb[0].mxu0
        %v816 = vadd.f32 0.0, %v815
        %v817 = vpop.f32.mrb[0].mxu0
        %818 = vdwg.mxu0
        %v819 = vadd.f32 %v576, %v661
        %v820 = vadd.f32 %v576, %v666
        %v821 = vadd.f32 %v576, %v671
        %v822 = vadd.f32 %v576, %v676
        %v823 = vadd.f32 %v576, %v681
        %v824 = vadd.f32 %v576, %v686
        %v825 = vadd.f32 %v576, %v691
        %v826 = vadd.f32 %v576, %v696
        %v827 = vadd.f32 %v576, %v701
        %v828 = vadd.f32 %v576, %v706
        %v829 = vadd.f32 %v576, %v711
        %v830 = vadd.f32 %v576, %v716
        %v831 = vadd.f32 %v576, %v721
        %v832 = vadd.f32 %v576, %v726
        %v833 = vadd.f32 %v576, %v731
        %v834 = vadd.f32 %v576, %v736
        %v835 = vadd.f32 %v576, %v741
        %v836 = vadd.f32 %v576, %v746
        %v837 = vadd.f32 %v576, %v751
        %v838 = vadd.f32 %v576, %v756
        %v839 = vadd.f32 %v576, %v761
        %v840 = vadd.f32 %v576, %v766
        %v841 = vadd.f32 %v576, %v771
        %v842 = vadd.f32 %v576, %v776
        %v843 = vadd.f32 %v576, %v781
        %v844 = vadd.f32 %v576, %v786
        %v845 = vadd.f32 %v576, %v791
        %v846 = vadd.f32 %v576, %v796
        %v847 = vadd.f32 %v576, %v801
        %v848 = vadd.f32 %v576, %v806
        %v849 = vadd.f32 %v576, %v811
        %v850 = vadd.f32 %v576, %v816
        %s851 = scalar_lea.vmem [#allocation5], 384
        %v852 = vld [vmem:[%s851] sm:$0xff]
        %v853 = vld [vmem:[%s851 + $0x8] sm:$0xff]
        %v854 = vld [vmem:[%s851 + $0x10] sm:$0xff]
        %v855 = vld [vmem:[%s851 + $0x18] sm:$0xff]
        %v856 = vld [vmem:[%s851 + $0x20] sm:$0xff]
        %v857 = vld [vmem:[%s851 + $0x28] sm:$0xff]
        %v858 = vld [vmem:[%s851 + $0x30] sm:$0xff]
        %v859 = vld [vmem:[%s851 + $0x38] sm:$0xff]
        %v860 = vld [vmem:[%s851 + $0x40] sm:$0xff]
        %v861 = vld [vmem:[%s851 + $0x48] sm:$0xff]
        %v862 = vld [vmem:[%s851 + $0x50] sm:$0xff]
        %v863 = vld [vmem:[%s851 + $0x58] sm:$0xff]
        %v864 = vld [vmem:[%s851 + $0x60] sm:$0xff]
        %v865 = vld [vmem:[%s851 + $0x68] sm:$0xff]
        %v866 = vld [vmem:[%s851 + $0x70] sm:$0xff]
        %v867 = vld [vmem:[%s851 + $0x78] sm:$0xff]
        %868 = vmatprep.subr.mxu0 0.0
        %869 = vmatpush1.msra.mxu0 %v852
        %870 = vmatprep.subr.mxu0 0.0
        %871 = vmatpush1.msra.mxu0 %v853
        %872 = vmatprep.subr.mxu0 0.0
        %873 = vmatpush1.msra.mxu0 %v854
        %874 = vmatprep.subr.mxu0 0.0
        %875 = vmatpush1.msra.mxu0 %v855
        %876 = vmatprep.subr.mxu0 0.0
        %877 = vmatpush1.msra.mxu0 %v856
        %878 = vmatprep.subr.mxu0 0.0
        %879 = vmatpush1.msra.mxu0 %v857
        %880 = vmatprep.subr.mxu0 0.0
        %881 = vmatpush1.msra.mxu0 %v858
        %882 = vmatprep.subr.mxu0 0.0
        %883 = vmatpush1.msra.mxu0 %v859
        %884 = vmatprep.subr.mxu0 0.0
        %885 = vmatpush1.msra.mxu0 %v860
        %886 = vmatprep.subr.mxu0 0.0
        %887 = vmatpush1.msra.mxu0 %v861
        %888 = vmatprep.subr.mxu0 0.0
        %889 = vmatpush1.msra.mxu0 %v862
        %890 = vmatprep.subr.mxu0 0.0
        %891 = vmatpush1.msra.mxu0 %v863
        %892 = vmatprep.subr.mxu0 0.0
        %893 = vmatpush1.msra.mxu0 %v864
        %894 = vmatprep.subr.mxu0 0.0
        %895 = vmatpush1.msra.mxu0 %v865
        %896 = vmatprep.subr.mxu0 0.0
        %897 = vmatpush1.msra.mxu0 %v866
        %898 = vmatprep.subr.mxu0 0.0
        %899 = vmatpush1.msra.mxu0 %v867
        %900 = vmatprep.subr.mxu0 0.0
        %901 = vmatpush1.msra.mxu0 0.0
        %902 = vmatprep.subr.mxu0 0.0
        %903 = vmatpush1.msra.mxu0 0.0
        %904 = vmatprep.subr.mxu0 0.0
        %905 = vmatpush1.msra.mxu0 0.0
        %906 = vmatprep.subr.mxu0 0.0
        %907 = vmatpush1.msra.mxu0 0.0
        %908 = vmatprep.subr.mxu0 0.0
        %909 = vmatpush1.msra.mxu0 0.0
        %910 = vmatprep.subr.mxu0 0.0
        %911 = vmatpush1.msra.mxu0 0.0
        %912 = vmatprep.subr.mxu0 0.0
        %913 = vmatpush1.msra.mxu0 0.0
        %914 = vmatprep.subr.mxu0 0.0
        %915 = vmatpush1.msra.mxu0 0.0
        %916 = vmatprep.subr.mxu0 0.0
        %917 = vmatpush1.msra.mxu0 0.0
        %918 = vmatprep.subr.mxu0 0.0
        %919 = vmatpush1.msra.mxu0 0.0
        %920 = vmatprep.subr.mxu0 0.0
        %921 = vmatpush1.msra.mxu0 0.0
        %922 = vmatprep.subr.mxu0 0.0
        %923 = vmatpush1.msra.mxu0 0.0
        %924 = vmatprep.subr.mxu0 0.0
        %925 = vmatpush1.msra.mxu0 0.0
        %926 = vmatprep.subr.mxu0 0.0
        %927 = vmatpush1.msra.mxu0 0.0
        %928 = vmatprep.subr.mxu0 0.0
        %929 = vmatpush1.msra.mxu0 0.0
        %930 = vmatprep.subr.mxu0 0.0
        %931 = vmatpush1.msra.mxu0 0.0
        %932 = vmatprep.mubr.f32.mxu0 0.0
        %933 = vmatmul.mubr.f32.gmra.mrb[0].mxu0 %v524
        %v934 = vpop.f32.mrb[0].mxu0
        %v935 = vadd.f32 0.0, %v934
        %v936 = vpop.f32.mrb[0].mxu0
        %937 = vmatprep.mubr.f32.mxu0 0.0
        %938 = vmatmul.mubr.f32.gmra.mrb[0].mxu0 %v400
        %v939 = vpop.f32.mrb[0].mxu0
        %v940 = vadd.f32 0.0, %v939
        %v941 = vpop.f32.mrb[0].mxu0
        %942 = vmatprep.mubr.f32.mxu0 0.0
        %943 = vmatmul.mubr.f32.gmra.mrb[0].mxu0 %v523
        %v944 = vpop.f32.mrb[0].mxu0
        %v945 = vadd.f32 0.0, %v944
        %v946 = vpop.f32.mrb[0].mxu0
        %947 = vmatprep.mubr.f32.mxu0 0.0
        %948 = vmatmul.mubr.f32.gmra.mrb[0].mxu0 %v397
        %v949 = vpop.f32.mrb[0].mxu0
        %v950 = vadd.f32 0.0, %v949
        %v951 = vpop.f32.mrb[0].mxu0
        %952 = vmatprep.mubr.f32.mxu0 0.0
        %953 = vmatmul.mubr.f32.gmra.mrb[0].mxu0 %v525
        %v954 = vpop.f32.mrb[0].mxu0
        %v955 = vadd.f32 0.0, %v954
        %v956 = vpop.f32.mrb[0].mxu0
        %957 = vmatprep.mubr.f32.mxu0 0.0
        %958 = vmatmul.mubr.f32.gmra.mrb[0].mxu0 %v403
        %v959 = vpop.f32.mrb[0].mxu0
        %v960 = vadd.f32 0.0, %v959
        %v961 = vpop.f32.mrb[0].mxu0
        %962 = vmatprep.mubr.f32.mxu0 0.0
        %963 = vmatmul.mubr.f32.gmra.mrb[0].mxu0 %v526
        %v964 = vpop.f32.mrb[0].mxu0
        %v965 = vadd.f32 0.0, %v964
        %v966 = vpop.f32.mrb[0].mxu0
        %967 = vmatprep.mubr.f32.mxu0 0.0
        %968 = vmatmul.mubr.f32.gmra.mrb[0].mxu0 %v406
        %v969 = vpop.f32.mrb[0].mxu0
        %v970 = vadd.f32 0.0, %v969
        %v971 = vpop.f32.mrb[0].mxu0
        %972 = vmatprep.mubr.f32.mxu0 0.0
        %973 = vmatmul.mubr.f32.gmra.mrb[0].mxu0 %v527
        %v974 = vpop.f32.mrb[0].mxu0
        %v975 = vadd.f32 0.0, %v974
        %v976 = vpop.f32.mrb[0].mxu0
        %977 = vmatprep.mubr.f32.mxu0 0.0
        %978 = vmatmul.mubr.f32.gmra.mrb[0].mxu0 %v409
        %v979 = vpop.f32.mrb[0].mxu0
        %v980 = vadd.f32 0.0, %v979
        %v981 = vpop.f32.mrb[0].mxu0
        %982 = vmatprep.mubr.f32.mxu0 0.0
        %983 = vmatmul.mubr.f32.gmra.mrb[0].mxu0 %v528
        %v984 = vpop.f32.mrb[0].mxu0
        %v985 = vadd.f32 0.0, %v984
        %v986 = vpop.f32.mrb[0].mxu0
        %987 = vmatprep.mubr.f32.mxu0 0.0
        %988 = vmatmul.mubr.f32.gmra.mrb[0].mxu0 %v412
        %v989 = vpop.f32.mrb[0].mxu0
        %v990 = vadd.f32 0.0, %v989
        %v991 = vpop.f32.mrb[0].mxu0
        %992 = vmatprep.mubr.f32.mxu0 0.0
        %993 = vmatmul.mubr.f32.gmra.mrb[0].mxu0 %v529
        %v994 = vpop.f32.mrb[0].mxu0
        %v995 = vadd.f32 0.0, %v994
        %v996 = vpop.f32.mrb[0].mxu0
        %997 = vmatprep.mubr.f32.mxu0 0.0
        %998 = vmatmul.mubr.f32.gmra.mrb[0].mxu0 %v415
        %v999 = vpop.f32.mrb[0].mxu0
        %v1000 = vadd.f32 0.0, %v999
        %v1001 = vpop.f32.mrb[0].mxu0
        %1002 = vmatprep.mubr.f32.mxu0 0.0
        %1003 = vmatmul.mubr.f32.gmra.mrb[0].mxu0 %v530
        %v1004 = vpop.f32.mrb[0].mxu0
        %v1005 = vadd.f32 0.0, %v1004
        %v1006 = vpop.f32.mrb[0].mxu0
        %1007 = vmatprep.mubr.f32.mxu0 0.0
        %1008 = vmatmul.mubr.f32.gmra.mrb[0].mxu0 %v418
        %v1009 = vpop.f32.mrb[0].mxu0
        %v1010 = vadd.f32 0.0, %v1009
        %v1011 = vpop.f32.mrb[0].mxu0
        %1012 = vmatprep.mubr.f32.mxu0 0.0
        %1013 = vmatmul.mubr.f32.gmra.mrb[0].mxu0 %v531
        %v1014 = vpop.f32.mrb[0].mxu0
        %v1015 = vadd.f32 0.0, %v1014
        %v1016 = vpop.f32.mrb[0].mxu0
        %1017 = vmatprep.mubr.f32.mxu0 0.0
        %1018 = vmatmul.mubr.f32.gmra.mrb[0].mxu0 %v421
        %v1019 = vpop.f32.mrb[0].mxu0
        %v1020 = vadd.f32 0.0, %v1019
        %v1021 = vpop.f32.mrb[0].mxu0
        %1022 = vmatprep.mubr.f32.mxu0 0.0
        %1023 = vmatmul.mubr.f32.gmra.mrb[0].mxu0 %v532
        %v1024 = vpop.f32.mrb[0].mxu0
        %v1025 = vadd.f32 0.0, %v1024
        %v1026 = vpop.f32.mrb[0].mxu0
        %1027 = vmatprep.mubr.f32.mxu0 0.0
        %1028 = vmatmul.mubr.f32.gmra.mrb[0].mxu0 %v424
        %v1029 = vpop.f32.mrb[0].mxu0
        %v1030 = vadd.f32 0.0, %v1029
        %v1031 = vpop.f32.mrb[0].mxu0
        %1032 = vmatprep.mubr.f32.mxu0 0.0
        %1033 = vmatmul.mubr.f32.gmra.mrb[0].mxu0 %v533
        %v1034 = vpop.f32.mrb[0].mxu0
        %v1035 = vadd.f32 0.0, %v1034
        %v1036 = vpop.f32.mrb[0].mxu0
        %1037 = vmatprep.mubr.f32.mxu0 0.0
        %1038 = vmatmul.mubr.f32.gmra.mrb[0].mxu0 %v427
        %v1039 = vpop.f32.mrb[0].mxu0
        %v1040 = vadd.f32 0.0, %v1039
        %v1041 = vpop.f32.mrb[0].mxu0
        %1042 = vmatprep.mubr.f32.mxu0 0.0
        %1043 = vmatmul.mubr.f32.gmra.mrb[0].mxu0 %v534
        %v1044 = vpop.f32.mrb[0].mxu0
        %v1045 = vadd.f32 0.0, %v1044
        %v1046 = vpop.f32.mrb[0].mxu0
        %1047 = vmatprep.mubr.f32.mxu0 0.0
        %1048 = vmatmul.mubr.f32.gmra.mrb[0].mxu0 %v430
        %v1049 = vpop.f32.mrb[0].mxu0
        %v1050 = vadd.f32 0.0, %v1049
        %v1051 = vpop.f32.mrb[0].mxu0
        %1052 = vmatprep.mubr.f32.mxu0 0.0
        %1053 = vmatmul.mubr.f32.gmra.mrb[0].mxu0 %v535
        %v1054 = vpop.f32.mrb[0].mxu0
        %v1055 = vadd.f32 0.0, %v1054
        %v1056 = vpop.f32.mrb[0].mxu0
        %1057 = vmatprep.mubr.f32.mxu0 0.0
        %1058 = vmatmul.mubr.f32.gmra.mrb[0].mxu0 %v433
        %v1059 = vpop.f32.mrb[0].mxu0
        %v1060 = vadd.f32 0.0, %v1059
        %v1061 = vpop.f32.mrb[0].mxu0
        %1062 = vmatprep.mubr.f32.mxu0 0.0
        %1063 = vmatmul.mubr.f32.gmra.mrb[0].mxu0 %v536
        %v1064 = vpop.f32.mrb[0].mxu0
        %v1065 = vadd.f32 0.0, %v1064
        %v1066 = vpop.f32.mrb[0].mxu0
        %1067 = vmatprep.mubr.f32.mxu0 0.0
        %1068 = vmatmul.mubr.f32.gmra.mrb[0].mxu0 %v436
        %v1069 = vpop.f32.mrb[0].mxu0
        %v1070 = vadd.f32 0.0, %v1069
        %v1071 = vpop.f32.mrb[0].mxu0
        %1072 = vmatprep.mubr.f32.mxu0 0.0
        %1073 = vmatmul.mubr.f32.gmra.mrb[0].mxu0 %v537
        %v1074 = vpop.f32.mrb[0].mxu0
        %v1075 = vadd.f32 0.0, %v1074
        %v1076 = vpop.f32.mrb[0].mxu0
        %1077 = vmatprep.mubr.f32.mxu0 0.0
        %1078 = vmatmul.mubr.f32.gmra.mrb[0].mxu0 %v439
        %v1079 = vpop.f32.mrb[0].mxu0
        %v1080 = vadd.f32 0.0, %v1079
        %v1081 = vpop.f32.mrb[0].mxu0
        %1082 = vmatprep.mubr.f32.mxu0 0.0
        %1083 = vmatmul.mubr.f32.gmra.mrb[0].mxu0 %v538
        %v1084 = vpop.f32.mrb[0].mxu0
        %v1085 = vadd.f32 0.0, %v1084
        %v1086 = vpop.f32.mrb[0].mxu0
        %1087 = vmatprep.mubr.f32.mxu0 0.0
        %1088 = vmatmul.mubr.f32.gmra.mrb[0].mxu0 %v442
        %v1089 = vpop.f32.mrb[0].mxu0
        %v1090 = vadd.f32 0.0, %v1089
        %v1091 = vpop.f32.mrb[0].mxu0
        %1092 = vdwg.mxu0
        %v1093 = vadd.f32 %v819, %v935
        %v1094 = vadd.f32 %v820, %v940
        %v1095 = vadd.f32 %v821, %v945
        %v1096 = vadd.f32 %v822, %v950
        %v1097 = vadd.f32 %v823, %v955
        %v1098 = vadd.f32 %v824, %v960
        %v1099 = vadd.f32 %v825, %v965
        %v1100 = vadd.f32 %v826, %v970
        %v1101 = vadd.f32 %v827, %v975
        %v1102 = vadd.f32 %v828, %v980
        %v1103 = vadd.f32 %v829, %v985
        %v1104 = vadd.f32 %v830, %v990
        %v1105 = vadd.f32 %v831, %v995
        %v1106 = vadd.f32 %v832, %v1000
        %v1107 = vadd.f32 %v833, %v1005
        %v1108 = vadd.f32 %v834, %v1010
        %v1109 = vadd.f32 %v835, %v1015
        %v1110 = vadd.f32 %v836, %v1020
        %v1111 = vadd.f32 %v837, %v1025
        %v1112 = vadd.f32 %v838, %v1030
        %v1113 = vadd.f32 %v839, %v1035
        %v1114 = vadd.f32 %v840, %v1040
        %v1115 = vadd.f32 %v841, %v1045
        %v1116 = vadd.f32 %v842, %v1050
        %v1117 = vadd.f32 %v843, %v1055
        %v1118 = vadd.f32 %v844, %v1060
        %v1119 = vadd.f32 %v845, %v1065
        %v1120 = vadd.f32 %v846, %v1070
        %v1121 = vadd.f32 %v847, %v1075
        %v1122 = vadd.f32 %v848, %v1080
        %v1123 = vadd.f32 %v849, %v1085
        %v1124 = vadd.f32 %v850, %v1090
        %s1125 = scalar_lea.vmem [#allocation5], 768
        %v1126 = vld [vmem:[%s1125] sm:$0xff]
        %v1127 = vld [vmem:[%s1125 + $0x8] sm:$0xff]
        %v1128 = vld [vmem:[%s1125 + $0x10] sm:$0xff]
        %v1129 = vld [vmem:[%s1125 + $0x18] sm:$0xff]
        %v1130 = vld [vmem:[%s1125 + $0x20] sm:$0xff]
        %v1131 = vld [vmem:[%s1125 + $0x28] sm:$0xff]
        %v1132 = vld [vmem:[%s1125 + $0x30] sm:$0xff]
        %v1133 = vld [vmem:[%s1125 + $0x38] sm:$0xff]
        %v1134 = vld [vmem:[%s1125 + $0x40] sm:$0xff]
        %v1135 = vld [vmem:[%s1125 + $0x48] sm:$0xff]
        %v1136 = vld [vmem:[%s1125 + $0x50] sm:$0xff]
        %v1137 = vld [vmem:[%s1125 + $0x58] sm:$0xff]
        %v1138 = vld [vmem:[%s1125 + $0x60] sm:$0xff]
        %v1139 = vld [vmem:[%s1125 + $0x68] sm:$0xff]
        %v1140 = vld [vmem:[%s1125 + $0x70] sm:$0xff]
        %v1141 = vld [vmem:[%s1125 + $0x78] sm:$0xff]
        %1142 = vmatprep.subr.mxu0 0.0
        %1143 = vmatpush1.msra.mxu0 %v1126
        %1144 = vmatprep.subr.mxu0 0.0
        %1145 = vmatpush1.msra.mxu0 %v1127
        %1146 = vmatprep.subr.mxu0 0.0
        %1147 = vmatpush1.msra.mxu0 %v1128
        %1148 = vmatprep.subr.mxu0 0.0
        %1149 = vmatpush1.msra.mxu0 %v1129
        %1150 = vmatprep.subr.mxu0 0.0
        %1151 = vmatpush1.msra.mxu0 %v1130
        %1152 = vmatprep.subr.mxu0 0.0
        %1153 = vmatpush1.msra.mxu0 %v1131
        %1154 = vmatprep.subr.mxu0 0.0
        %1155 = vmatpush1.msra.mxu0 %v1132
        %1156 = vmatprep.subr.mxu0 0.0
        %1157 = vmatpush1.msra.mxu0 %v1133
        %1158 = vmatprep.subr.mxu0 0.0
        %1159 = vmatpush1.msra.mxu0 %v1134
        %1160 = vmatprep.subr.mxu0 0.0
        %1161 = vmatpush1.msra.mxu0 %v1135
        %1162 = vmatprep.subr.mxu0 0.0
        %1163 = vmatpush1.msra.mxu0 %v1136
        %1164 = vmatprep.subr.mxu0 0.0
        %1165 = vmatpush1.msra.mxu0 %v1137
        %1166 = vmatprep.subr.mxu0 0.0
        %1167 = vmatpush1.msra.mxu0 %v1138
        %1168 = vmatprep.subr.mxu0 0.0
        %1169 = vmatpush1.msra.mxu0 %v1139
        %1170 = vmatprep.subr.mxu0 0.0
        %1171 = vmatpush1.msra.mxu0 %v1140
        %1172 = vmatprep.subr.mxu0 0.0
        %1173 = vmatpush1.msra.mxu0 %v1141
        %1174 = vmatprep.subr.mxu0 0.0
        %1175 = vmatpush1.msra.mxu0 0.0
        %1176 = vmatprep.subr.mxu0 0.0
        %1177 = vmatpush1.msra.mxu0 0.0
        %1178 = vmatprep.subr.mxu0 0.0
        %1179 = vmatpush1.msra.mxu0 0.0
        %1180 = vmatprep.subr.mxu0 0.0
        %1181 = vmatpush1.msra.mxu0 0.0
        %1182 = vmatprep.subr.mxu0 0.0
        %1183 = vmatpush1.msra.mxu0 0.0
        %1184 = vmatprep.subr.mxu0 0.0
        %1185 = vmatpush1.msra.mxu0 0.0
        %1186 = vmatprep.subr.mxu0 0.0
        %1187 = vmatpush1.msra.mxu0 0.0
        %1188 = vmatprep.subr.mxu0 0.0
        %1189 = vmatpush1.msra.mxu0 0.0
        %1190 = vmatprep.subr.mxu0 0.0
        %1191 = vmatpush1.msra.mxu0 0.0
        %1192 = vmatprep.subr.mxu0 0.0
        %1193 = vmatpush1.msra.mxu0 0.0
        %1194 = vmatprep.subr.mxu0 0.0
        %1195 = vmatpush1.msra.mxu0 0.0
        %1196 = vmatprep.subr.mxu0 0.0
        %1197 = vmatpush1.msra.mxu0 0.0
        %1198 = vmatprep.subr.mxu0 0.0
        %1199 = vmatpush1.msra.mxu0 0.0
        %1200 = vmatprep.subr.mxu0 0.0
        %1201 = vmatpush1.msra.mxu0 0.0
        %1202 = vmatprep.subr.mxu0 0.0
        %1203 = vmatpush1.msra.mxu0 0.0
        %1204 = vmatprep.subr.mxu0 0.0
        %1205 = vmatpush1.msra.mxu0 0.0
        %1206 = vmatprep.mubr.f32.mxu0 0.0
        %1207 = vmatmul.mubr.f32.gmra.mrb[0].mxu0 %v523
        %v1208 = vpop.f32.mrb[0].mxu0
        %v1209 = vadd.f32 0.0, %v1208
        %v1210 = vpop.f32.mrb[0].mxu0
        %1211 = vmatprep.mubr.f32.mxu0 0.0
        %1212 = vmatmul.mubr.f32.gmra.mrb[0].mxu0 %v397
        %v1213 = vpop.f32.mrb[0].mxu0
        %v1214 = vadd.f32 0.0, %v1213
        %v1215 = vpop.f32.mrb[0].mxu0
        %1216 = vmatprep.mubr.f32.mxu0 0.0
        %1217 = vmatmul.mubr.f32.gmra.mrb[0].mxu0 %v525
        %v1218 = vpop.f32.mrb[0].mxu0
        %v1219 = vadd.f32 0.0, %v1218
        %v1220 = vpop.f32.mrb[0].mxu0
        %1221 = vmatprep.mubr.f32.mxu0 0.0
        %1222 = vmatmul.mubr.f32.gmra.mrb[0].mxu0 %v403
        %v1223 = vpop.f32.mrb[0].mxu0
        %v1224 = vadd.f32 0.0, %v1223
        %v1225 = vpop.f32.mrb[0].mxu0
        %1226 = vmatprep.mubr.f32.mxu0 0.0
        %1227 = vmatmul.mubr.f32.gmra.mrb[0].mxu0 %v526
        %v1228 = vpop.f32.mrb[0].mxu0
        %v1229 = vadd.f32 0.0, %v1228
        %v1230 = vpop.f32.mrb[0].mxu0
        %1231 = vmatprep.mubr.f32.mxu0 0.0
        %1232 = vmatmul.mubr.f32.gmra.mrb[0].mxu0 %v406
        %v1233 = vpop.f32.mrb[0].mxu0
        %v1234 = vadd.f32 0.0, %v1233
        %v1235 = vpop.f32.mrb[0].mxu0
        %1236 = vmatprep.mubr.f32.mxu0 0.0
        %1237 = vmatmul.mubr.f32.gmra.mrb[0].mxu0 %v527
        %v1238 = vpop.f32.mrb[0].mxu0
        %v1239 = vadd.f32 0.0, %v1238
        %v1240 = vpop.f32.mrb[0].mxu0
        %1241 = vmatprep.mubr.f32.mxu0 0.0
        %1242 = vmatmul.mubr.f32.gmra.mrb[0].mxu0 %v409
        %v1243 = vpop.f32.mrb[0].mxu0
        %v1244 = vadd.f32 0.0, %v1243
        %v1245 = vpop.f32.mrb[0].mxu0
        %1246 = vmatprep.mubr.f32.mxu0 0.0
        %1247 = vmatmul.mubr.f32.gmra.mrb[0].mxu0 %v528
        %v1248 = vpop.f32.mrb[0].mxu0
        %v1249 = vadd.f32 0.0, %v1248
        %v1250 = vpop.f32.mrb[0].mxu0
        %1251 = vmatprep.mubr.f32.mxu0 0.0
        %1252 = vmatmul.mubr.f32.gmra.mrb[0].mxu0 %v412
        %v1253 = vpop.f32.mrb[0].mxu0
        %v1254 = vadd.f32 0.0, %v1253
        %v1255 = vpop.f32.mrb[0].mxu0
        %1256 = vmatprep.mubr.f32.mxu0 0.0
        %1257 = vmatmul.mubr.f32.gmra.mrb[0].mxu0 %v529
        %v1258 = vpop.f32.mrb[0].mxu0
        %v1259 = vadd.f32 0.0, %v1258
        %v1260 = vpop.f32.mrb[0].mxu0
        %1261 = vmatprep.mubr.f32.mxu0 0.0
        %1262 = vmatmul.mubr.f32.gmra.mrb[0].mxu0 %v415
        %v1263 = vpop.f32.mrb[0].mxu0
        %v1264 = vadd.f32 0.0, %v1263
        %v1265 = vpop.f32.mrb[0].mxu0
        %1266 = vmatprep.mubr.f32.mxu0 0.0
        %1267 = vmatmul.mubr.f32.gmra.mrb[0].mxu0 %v530
        %v1268 = vpop.f32.mrb[0].mxu0
        %v1269 = vadd.f32 0.0, %v1268
        %v1270 = vpop.f32.mrb[0].mxu0
        %1271 = vmatprep.mubr.f32.mxu0 0.0
        %1272 = vmatmul.mubr.f32.gmra.mrb[0].mxu0 %v418
        %v1273 = vpop.f32.mrb[0].mxu0
        %v1274 = vadd.f32 0.0, %v1273
        %v1275 = vpop.f32.mrb[0].mxu0
        %1276 = vmatprep.mubr.f32.mxu0 0.0
        %1277 = vmatmul.mubr.f32.gmra.mrb[0].mxu0 %v531
        %v1278 = vpop.f32.mrb[0].mxu0
        %v1279 = vadd.f32 0.0, %v1278
        %v1280 = vpop.f32.mrb[0].mxu0
        %1281 = vmatprep.mubr.f32.mxu0 0.0
        %1282 = vmatmul.mubr.f32.gmra.mrb[0].mxu0 %v421
        %v1283 = vpop.f32.mrb[0].mxu0
        %v1284 = vadd.f32 0.0, %v1283
        %v1285 = vpop.f32.mrb[0].mxu0
        %1286 = vmatprep.mubr.f32.mxu0 0.0
        %1287 = vmatmul.mubr.f32.gmra.mrb[0].mxu0 %v532
        %v1288 = vpop.f32.mrb[0].mxu0
        %v1289 = vadd.f32 0.0, %v1288
        %v1290 = vpop.f32.mrb[0].mxu0
        %1291 = vmatprep.mubr.f32.mxu0 0.0
        %1292 = vmatmul.mubr.f32.gmra.mrb[0].mxu0 %v424
        %v1293 = vpop.f32.mrb[0].mxu0
        %v1294 = vadd.f32 0.0, %v1293
        %v1295 = vpop.f32.mrb[0].mxu0
        %1296 = vmatprep.mubr.f32.mxu0 0.0
        %1297 = vmatmul.mubr.f32.gmra.mrb[0].mxu0 %v533
        %v1298 = vpop.f32.mrb[0].mxu0
        %v1299 = vadd.f32 0.0, %v1298
        %v1300 = vpop.f32.mrb[0].mxu0
        %1301 = vmatprep.mubr.f32.mxu0 0.0
        %1302 = vmatmul.mubr.f32.gmra.mrb[0].mxu0 %v427
        %v1303 = vpop.f32.mrb[0].mxu0
        %v1304 = vadd.f32 0.0, %v1303
        %v1305 = vpop.f32.mrb[0].mxu0
        %1306 = vmatprep.mubr.f32.mxu0 0.0
        %1307 = vmatmul.mubr.f32.gmra.mrb[0].mxu0 %v534
        %v1308 = vpop.f32.mrb[0].mxu0
        %v1309 = vadd.f32 0.0, %v1308
        %v1310 = vpop.f32.mrb[0].mxu0
        %1311 = vmatprep.mubr.f32.mxu0 0.0
        %1312 = vmatmul.mubr.f32.gmra.mrb[0].mxu0 %v430
        %v1313 = vpop.f32.mrb[0].mxu0
        %v1314 = vadd.f32 0.0, %v1313
        %v1315 = vpop.f32.mrb[0].mxu0
        %1316 = vmatprep.mubr.f32.mxu0 0.0
        %1317 = vmatmul.mubr.f32.gmra.mrb[0].mxu0 %v535
        %v1318 = vpop.f32.mrb[0].mxu0
        %v1319 = vadd.f32 0.0, %v1318
        %v1320 = vpop.f32.mrb[0].mxu0
        %1321 = vmatprep.mubr.f32.mxu0 0.0
        %1322 = vmatmul.mubr.f32.gmra.mrb[0].mxu0 %v433
        %v1323 = vpop.f32.mrb[0].mxu0
        %v1324 = vadd.f32 0.0, %v1323
        %v1325 = vpop.f32.mrb[0].mxu0
        %1326 = vmatprep.mubr.f32.mxu0 0.0
        %1327 = vmatmul.mubr.f32.gmra.mrb[0].mxu0 %v536
        %v1328 = vpop.f32.mrb[0].mxu0
        %v1329 = vadd.f32 0.0, %v1328
        %v1330 = vpop.f32.mrb[0].mxu0
        %1331 = vmatprep.mubr.f32.mxu0 0.0
        %1332 = vmatmul.mubr.f32.gmra.mrb[0].mxu0 %v436
        %v1333 = vpop.f32.mrb[0].mxu0
        %v1334 = vadd.f32 0.0, %v1333
        %v1335 = vpop.f32.mrb[0].mxu0
        %1336 = vmatprep.mubr.f32.mxu0 0.0
        %1337 = vmatmul.mubr.f32.gmra.mrb[0].mxu0 %v537
        %v1338 = vpop.f32.mrb[0].mxu0
        %v1339 = vadd.f32 0.0, %v1338
        %v1340 = vpop.f32.mrb[0].mxu0
        %1341 = vmatprep.mubr.f32.mxu0 0.0
        %1342 = vmatmul.mubr.f32.gmra.mrb[0].mxu0 %v439
        %v1343 = vpop.f32.mrb[0].mxu0
        %v1344 = vadd.f32 0.0, %v1343
        %v1345 = vpop.f32.mrb[0].mxu0
        %1346 = vmatprep.mubr.f32.mxu0 0.0
        %1347 = vmatmul.mubr.f32.gmra.mrb[0].mxu0 %v538
        %v1348 = vpop.f32.mrb[0].mxu0
        %v1349 = vadd.f32 0.0, %v1348
        %v1350 = vpop.f32.mrb[0].mxu0
        %1351 = vmatprep.mubr.f32.mxu0 0.0
        %1352 = vmatmul.mubr.f32.gmra.mrb[0].mxu0 %v442
        %v1353 = vpop.f32.mrb[0].mxu0
        %v1354 = vadd.f32 0.0, %v1353
        %v1355 = vpop.f32.mrb[0].mxu0
        %1356 = vmatprep.mubr.f32.mxu0 0.0
        %1357 = vmatmul.mubr.f32.gmra.mrb[0].mxu0 %v537
        %v1358 = vpop.f32.mrb[0].mxu0
        %v1359 = vadd.f32 0.0, %v1358
        %v1360 = vpop.f32.mrb[0].mxu0
        %1361 = vmatprep.mubr.f32.mxu0 0.0
        %1362 = vmatmul.mubr.f32.gmra.mrb[0].mxu0 %v439
        %v1363 = vpop.f32.mrb[0].mxu0
        %v1364 = vadd.f32 0.0, %v1363
        %v1365 = vpop.f32.mrb[0].mxu0
        %1366 = vdwg.mxu0
        %v1367 = vadd.f32 %v1093, %v1209
        %v1368 = vadd.f32 %v1094, %v1214
        %v1369 = vadd.f32 %v1095, %v1219
        %v1370 = vadd.f32 %v1096, %v1224
        %v1371 = vadd.f32 %v1097, %v1229
        %v1372 = vadd.f32 %v1098, %v1234
        %v1373 = vadd.f32 %v1099, %v1239
        %v1374 = vadd.f32 %v1100, %v1244
        %v1375 = vadd.f32 %v1101, %v1249
        %v1376 = vadd.f32 %v1102, %v1254
        %v1377 = vadd.f32 %v1103, %v1259
        %v1378 = vadd.f32 %v1104, %v1264
        %v1379 = vadd.f32 %v1105, %v1269
        %v1380 = vadd.f32 %v1106, %v1274
        %v1381 = vadd.f32 %v1107, %v1279
        %v1382 = vadd.f32 %v1108, %v1284
        %v1383 = vadd.f32 %v1109, %v1289
        %v1384 = vadd.f32 %v1110, %v1294
        %v1385 = vadd.f32 %v1111, %v1299
        %v1386 = vadd.f32 %v1112, %v1304
        %v1387 = vadd.f32 %v1113, %v1309
        %v1388 = vadd.f32 %v1114, %v1314
        %v1389 = vadd.f32 %v1115, %v1319
        %v1390 = vadd.f32 %v1116, %v1324
        %v1391 = vadd.f32 %v1117, %v1329
        %v1392 = vadd.f32 %v1118, %v1334
        %v1393 = vadd.f32 %v1119, %v1339
        %v1394 = vadd.f32 %v1120, %v1344
        %v1395 = vadd.f32 %v1121, %v1349
        %v1396 = vadd.f32 %v1122, %v1354
        %v1397 = vadd.f32 %v1123, %v1359
        %v1398 = vadd.f32 %v1124, %v1364
        %v1399 = vrot.slane %v523, 1
        %v1400 = vrot.slane %v397, 1
        %v1401 = vrot.slane %v556, 1
        %v1402 = vrot.slane %v524, 1
        %v1403 = vrot.slane %v400, 1
        %v1404 = vrot.slane %v557, 1
        %v1405 = vrot.slane %v525, 1
        %v1406 = vrot.slane %v403, 1
        %v1407 = vrot.slane %v558, 1
        %v1408 = vrot.slane %v526, 1
        %v1409 = vrot.slane %v406, 1
        %v1410 = vrot.slane %v559, 1
        %v1411 = vrot.slane %v527, 1
        %v1412 = vrot.slane %v409, 1
        %v1413 = vrot.slane %v560, 1
        %v1414 = vrot.slane %v528, 1
        %v1415 = vrot.slane %v412, 1
        %v1416 = vrot.slane %v561, 1
        %v1417 = vrot.slane %v529, 1
        %v1418 = vrot.slane %v415, 1
        %v1419 = vrot.slane %v562, 1
        %v1420 = vrot.slane %v530, 1
        %v1421 = vrot.slane %v418, 1
        %v1422 = vrot.slane %v563, 1
        %v1423 = vrot.slane %v531, 1
        %v1424 = vrot.slane %v421, 1
        %v1425 = vrot.slane %v564, 1
        %v1426 = vrot.slane %v532, 1
        %v1427 = vrot.slane %v424, 1
        %v1428 = vrot.slane %v565, 1
        %v1429 = vrot.slane %v533, 1
        %v1430 = vrot.slane %v427, 1
        %v1431 = vrot.slane %v566, 1
        %v1432 = vrot.slane %v534, 1
        %v1433 = vrot.slane %v430, 1
        %v1434 = vrot.slane %v567, 1
        %v1435 = vrot.slane %v535, 1
        %v1436 = vrot.slane %v433, 1
        %v1437 = vrot.slane %v568, 1
        %v1438 = vrot.slane %v536, 1
        %v1439 = vrot.slane %v436, 1
        %v1440 = vrot.slane %v569, 1
        %v1441 = vrot.slane %v537, 1
        %v1442 = vrot.slane %v439, 1
        %v1443 = vrot.slane %v570, 1
        %v1444 = vrot.slane %v538, 1
        %v1445 = vrot.slane %v442, 1
        %v1446 = vrot.slane %v571, 1
        %v1447 = vlaneseq
        %v1448 = vshrl.u32 %v1447, 7
        %vm1449 = vcmp.lt.s32.totalorder %v1448, 7
        %v1450 = vsel %vm1449, %v1442, %v1443
        %v1451 = vsel %vm1449, %v1441, %v1442
        %v1452 = vsel %vm1449, %v1445, %v1446
        %v1453 = vsel %vm1449, %v1444, %v1445
        %v1454 = vsel %vm1449, %v1439, %v1440
        %v1455 = vsel %vm1449, %v1438, %v1439
        %v1456 = vsel %vm1449, %v1436, %v1437
        %v1457 = vsel %vm1449, %v1435, %v1436
        %v1458 = vsel %vm1449, %v1433, %v1434
        %v1459 = vsel %vm1449, %v1432, %v1433
        %v1460 = vsel %vm1449, %v1430, %v1431
        %v1461 = vsel %vm1449, %v1429, %v1430
        %v1462 = vsel %vm1449, %v1427, %v1428
        %v1463 = vsel %vm1449, %v1426, %v1427
        %v1464 = vsel %vm1449, %v1424, %v1425
        %v1465 = vsel %vm1449, %v1423, %v1424
        %v1466 = vsel %vm1449, %v1421, %v1422
        %v1467 = vsel %vm1449, %v1420, %v1421
        %v1468 = vsel %vm1449, %v1418, %v1419
        %v1469 = vsel %vm1449, %v1417, %v1418
        %v1470 = vsel %vm1449, %v1415, %v1416
        %v1471 = vsel %vm1449, %v1414, %v1415
        %v1472 = vsel %vm1449, %v1412, %v1413
        %v1473 = vsel %vm1449, %v1411, %v1412
        %v1474 = vsel %vm1449, %v1409, %v1410
        %v1475 = vsel %vm1449, %v1408, %v1409
        %v1476 = vsel %vm1449, %v1406, %v1407
        %v1477 = vsel %vm1449, %v1405, %v1406
        %v1478 = vsel %vm1449, %v1400, %v1401
        %v1479 = vsel %vm1449, %v1399, %v1400
        %v1480 = vsel %vm1449, %v1403, %v1404
        %v1481 = vsel %vm1449, %v1402, %v1403
        %s1482 = scalar_lea.vmem [#allocation5], 128
        %v1483 = vld [vmem:[%s1482] sm:$0xff]
        %v1484 = vld [vmem:[%s1482 + $0x8] sm:$0xff]
        %v1485 = vld [vmem:[%s1482 + $0x10] sm:$0xff]
        %v1486 = vld [vmem:[%s1482 + $0x18] sm:$0xff]
        %v1487 = vld [vmem:[%s1482 + $0x20] sm:$0xff]
        %v1488 = vld [vmem:[%s1482 + $0x28] sm:$0xff]
        %v1489 = vld [vmem:[%s1482 + $0x30] sm:$0xff]
        %v1490 = vld [vmem:[%s1482 + $0x38] sm:$0xff]
        %v1491 = vld [vmem:[%s1482 + $0x40] sm:$0xff]
        %v1492 = vld [vmem:[%s1482 + $0x48] sm:$0xff]
        %v1493 = vld [vmem:[%s1482 + $0x50] sm:$0xff]
        %v1494 = vld [vmem:[%s1482 + $0x58] sm:$0xff]
        %v1495 = vld [vmem:[%s1482 + $0x60] sm:$0xff]
        %v1496 = vld [vmem:[%s1482 + $0x68] sm:$0xff]
        %v1497 = vld [vmem:[%s1482 + $0x70] sm:$0xff]
        %v1498 = vld [vmem:[%s1482 + $0x78] sm:$0xff]
        %1499 = vmatprep.subr.mxu0 0.0
        %1500 = vmatpush1.msra.mxu0 %v1483
        %1501 = vmatprep.subr.mxu0 0.0
        %1502 = vmatpush1.msra.mxu0 %v1484
        %1503 = vmatprep.subr.mxu0 0.0
        %1504 = vmatpush1.msra.mxu0 %v1485
        %1505 = vmatprep.subr.mxu0 0.0
        %1506 = vmatpush1.msra.mxu0 %v1486
        %1507 = vmatprep.subr.mxu0 0.0
        %1508 = vmatpush1.msra.mxu0 %v1487
        %1509 = vmatprep.subr.mxu0 0.0
        %1510 = vmatpush1.msra.mxu0 %v1488
        %1511 = vmatprep.subr.mxu0 0.0
        %1512 = vmatpush1.msra.mxu0 %v1489
        %1513 = vmatprep.subr.mxu0 0.0
        %1514 = vmatpush1.msra.mxu0 %v1490
        %1515 = vmatprep.subr.mxu0 0.0
        %1516 = vmatpush1.msra.mxu0 %v1491
        %1517 = vmatprep.subr.mxu0 0.0
        %1518 = vmatpush1.msra.mxu0 %v1492
        %1519 = vmatprep.subr.mxu0 0.0
        %1520 = vmatpush1.msra.mxu0 %v1493
        %1521 = vmatprep.subr.mxu0 0.0
        %1522 = vmatpush1.msra.mxu0 %v1494
        %1523 = vmatprep.subr.mxu0 0.0
        %1524 = vmatpush1.msra.mxu0 %v1495
        %1525 = vmatprep.subr.mxu0 0.0
        %1526 = vmatpush1.msra.mxu0 %v1496
        %1527 = vmatprep.subr.mxu0 0.0
        %1528 = vmatpush1.msra.mxu0 %v1497
        %1529 = vmatprep.subr.mxu0 0.0
        %1530 = vmatpush1.msra.mxu0 %v1498
        %1531 = vmatprep.subr.mxu0 0.0
        %1532 = vmatpush1.msra.mxu0 0.0
        %1533 = vmatprep.subr.mxu0 0.0
        %1534 = vmatpush1.msra.mxu0 0.0
        %1535 = vmatprep.subr.mxu0 0.0
        %1536 = vmatpush1.msra.mxu0 0.0
        %1537 = vmatprep.subr.mxu0 0.0
        %1538 = vmatpush1.msra.mxu0 0.0
        %1539 = vmatprep.subr.mxu0 0.0
        %1540 = vmatpush1.msra.mxu0 0.0
        %1541 = vmatprep.subr.mxu0 0.0
        %1542 = vmatpush1.msra.mxu0 0.0
        %1543 = vmatprep.subr.mxu0 0.0
        %1544 = vmatpush1.msra.mxu0 0.0
        %1545 = vmatprep.subr.mxu0 0.0
        %1546 = vmatpush1.msra.mxu0 0.0
        %1547 = vmatprep.subr.mxu0 0.0
        %1548 = vmatpush1.msra.mxu0 0.0
        %1549 = vmatprep.subr.mxu0 0.0
        %1550 = vmatpush1.msra.mxu0 0.0
        %1551 = vmatprep.subr.mxu0 0.0
        %1552 = vmatpush1.msra.mxu0 0.0
        %1553 = vmatprep.subr.mxu0 0.0
        %1554 = vmatpush1.msra.mxu0 0.0
        %1555 = vmatprep.subr.mxu0 0.0
        %1556 = vmatpush1.msra.mxu0 0.0
        %1557 = vmatprep.subr.mxu0 0.0
        %1558 = vmatpush1.msra.mxu0 0.0
        %1559 = vmatprep.subr.mxu0 0.0
        %1560 = vmatpush1.msra.mxu0 0.0
        %1561 = vmatprep.subr.mxu0 0.0
        %1562 = vmatpush1.msra.mxu0 0.0
        %1563 = vmatprep.mubr.f32.mxu0 0.0
        %1564 = vmatmul.mubr.f32.gmra.mrb[0].mxu0 %v1479
        %v1565 = vpop.f32.mrb[0].mxu0
        %v1566 = vadd.f32 0.0, %v1565
        %v1567 = vpop.f32.mrb[0].mxu0
        %1568 = vmatprep.mubr.f32.mxu0 0.0
        %1569 = vmatmul.mubr.f32.gmra.mrb[0].mxu0 %v1478
        %v1570 = vpop.f32.mrb[0].mxu0
        %v1571 = vadd.f32 0.0, %v1570
        %v1572 = vpop.f32.mrb[0].mxu0
        %1573 = vmatprep.mubr.f32.mxu0 0.0
        %1574 = vmatmul.mubr.f32.gmra.mrb[0].mxu0 %v1481
        %v1575 = vpop.f32.mrb[0].mxu0
        %v1576 = vadd.f32 0.0, %v1575
        %v1577 = vpop.f32.mrb[0].mxu0
        %1578 = vmatprep.mubr.f32.mxu0 0.0
        %1579 = vmatmul.mubr.f32.gmra.mrb[0].mxu0 %v1480
        %v1580 = vpop.f32.mrb[0].mxu0
        %v1581 = vadd.f32 0.0, %v1580
        %v1582 = vpop.f32.mrb[0].mxu0
        %1583 = vmatprep.mubr.f32.mxu0 0.0
        %1584 = vmatmul.mubr.f32.gmra.mrb[0].mxu0 %v1479
        %v1585 = vpop.f32.mrb[0].mxu0
        %v1586 = vadd.f32 0.0, %v1585
        %v1587 = vpop.f32.mrb[0].mxu0
        %1588 = vmatprep.mubr.f32.mxu0 0.0
        %1589 = vmatmul.mubr.f32.gmra.mrb[0].mxu0 %v1478
        %v1590 = vpop.f32.mrb[0].mxu0
        %v1591 = vadd.f32 0.0, %v1590
        %v1592 = vpop.f32.mrb[0].mxu0
        %1593 = vmatprep.mubr.f32.mxu0 0.0
        %1594 = vmatmul.mubr.f32.gmra.mrb[0].mxu0 %v1477
        %v1595 = vpop.f32.mrb[0].mxu0
        %v1596 = vadd.f32 0.0, %v1595
        %v1597 = vpop.f32.mrb[0].mxu0
        %1598 = vmatprep.mubr.f32.mxu0 0.0
        %1599 = vmatmul.mubr.f32.gmra.mrb[0].mxu0 %v1476
        %v1600 = vpop.f32.mrb[0].mxu0
        %v1601 = vadd.f32 0.0, %v1600
        %v1602 = vpop.f32.mrb[0].mxu0
        %1603 = vmatprep.mubr.f32.mxu0 0.0
        %1604 = vmatmul.mubr.f32.gmra.mrb[0].mxu0 %v1475
        %v1605 = vpop.f32.mrb[0].mxu0
        %v1606 = vadd.f32 0.0, %v1605
        %v1607 = vpop.f32.mrb[0].mxu0
        %1608 = vmatprep.mubr.f32.mxu0 0.0
        %1609 = vmatmul.mubr.f32.gmra.mrb[0].mxu0 %v1474
        %v1610 = vpop.f32.mrb[0].mxu0
        %v1611 = vadd.f32 0.0, %v1610
        %v1612 = vpop.f32.mrb[0].mxu0
        %1613 = vmatprep.mubr.f32.mxu0 0.0
        %1614 = vmatmul.mubr.f32.gmra.mrb[0].mxu0 %v1473
        %v1615 = vpop.f32.mrb[0].mxu0
        %v1616 = vadd.f32 0.0, %v1615
        %v1617 = vpop.f32.mrb[0].mxu0
        %1618 = vmatprep.mubr.f32.mxu0 0.0
        %1619 = vmatmul.mubr.f32.gmra.mrb[0].mxu0 %v1472
        %v1620 = vpop.f32.mrb[0].mxu0
        %v1621 = vadd.f32 0.0, %v1620
        %v1622 = vpop.f32.mrb[0].mxu0
        %1623 = vmatprep.mubr.f32.mxu0 0.0
        %1624 = vmatmul.mubr.f32.gmra.mrb[0].mxu0 %v1471
        %v1625 = vpop.f32.mrb[0].mxu0
        %v1626 = vadd.f32 0.0, %v1625
        %v1627 = vpop.f32.mrb[0].mxu0
        %1628 = vmatprep.mubr.f32.mxu0 0.0
        %1629 = vmatmul.mubr.f32.gmra.mrb[0].mxu0 %v1470
        %v1630 = vpop.f32.mrb[0].mxu0
        %v1631 = vadd.f32 0.0, %v1630
        %v1632 = vpop.f32.mrb[0].mxu0
        %1633 = vmatprep.mubr.f32.mxu0 0.0
        %1634 = vmatmul.mubr.f32.gmra.mrb[0].mxu0 %v1469
        %v1635 = vpop.f32.mrb[0].mxu0
        %v1636 = vadd.f32 0.0, %v1635
        %v1637 = vpop.f32.mrb[0].mxu0
        %1638 = vmatprep.mubr.f32.mxu0 0.0
        %1639 = vmatmul.mubr.f32.gmra.mrb[0].mxu0 %v1468
        %v1640 = vpop.f32.mrb[0].mxu0
        %v1641 = vadd.f32 0.0, %v1640
        %v1642 = vpop.f32.mrb[0].mxu0
        %1643 = vmatprep.mubr.f32.mxu0 0.0
        %1644 = vmatmul.mubr.f32.gmra.mrb[0].mxu0 %v1467
        %v1645 = vpop.f32.mrb[0].mxu0
        %v1646 = vadd.f32 0.0, %v1645
        %v1647 = vpop.f32.mrb[0].mxu0
        %1648 = vmatprep.mubr.f32.mxu0 0.0
        %1649 = vmatmul.mubr.f32.gmra.mrb[0].mxu0 %v1466
        %v1650 = vpop.f32.mrb[0].mxu0
        %v1651 = vadd.f32 0.0, %v1650
        %v1652 = vpop.f32.mrb[0].mxu0
        %1653 = vmatprep.mubr.f32.mxu0 0.0
        %1654 = vmatmul.mubr.f32.gmra.mrb[0].mxu0 %v1465
        %v1655 = vpop.f32.mrb[0].mxu0
        %v1656 = vadd.f32 0.0, %v1655
        %v1657 = vpop.f32.mrb[0].mxu0
        %1658 = vmatprep.mubr.f32.mxu0 0.0
        %1659 = vmatmul.mubr.f32.gmra.mrb[0].mxu0 %v1464
        %v1660 = vpop.f32.mrb[0].mxu0
        %v1661 = vadd.f32 0.0, %v1660
        %v1662 = vpop.f32.mrb[0].mxu0
        %1663 = vmatprep.mubr.f32.mxu0 0.0
        %1664 = vmatmul.mubr.f32.gmra.mrb[0].mxu0 %v1463
        %v1665 = vpop.f32.mrb[0].mxu0
        %v1666 = vadd.f32 0.0, %v1665
        %v1667 = vpop.f32.mrb[0].mxu0
        %1668 = vmatprep.mubr.f32.mxu0 0.0
        %1669 = vmatmul.mubr.f32.gmra.mrb[0].mxu0 %v1462
        %v1670 = vpop.f32.mrb[0].mxu0
        %v1671 = vadd.f32 0.0, %v1670
        %v1672 = vpop.f32.mrb[0].mxu0
        %1673 = vmatprep.mubr.f32.mxu0 0.0
        %1674 = vmatmul.mubr.f32.gmra.mrb[0].mxu0 %v1461
        %v1675 = vpop.f32.mrb[0].mxu0
        %v1676 = vadd.f32 0.0, %v1675
        %v1677 = vpop.f32.mrb[0].mxu0
        %1678 = vmatprep.mubr.f32.mxu0 0.0
        %1679 = vmatmul.mubr.f32.gmra.mrb[0].mxu0 %v1460
        %v1680 = vpop.f32.mrb[0].mxu0
        %v1681 = vadd.f32 0.0, %v1680
        %v1682 = vpop.f32.mrb[0].mxu0
        %1683 = vmatprep.mubr.f32.mxu0 0.0
        %1684 = vmatmul.mubr.f32.gmra.mrb[0].mxu0 %v1459
        %v1685 = vpop.f32.mrb[0].mxu0
        %v1686 = vadd.f32 0.0, %v1685
        %v1687 = vpop.f32.mrb[0].mxu0
        %1688 = vmatprep.mubr.f32.mxu0 0.0
        %1689 = vmatmul.mubr.f32.gmra.mrb[0].mxu0 %v1458
        %v1690 = vpop.f32.mrb[0].mxu0
        %v1691 = vadd.f32 0.0, %v1690
        %v1692 = vpop.f32.mrb[0].mxu0
        %1693 = vmatprep.mubr.f32.mxu0 0.0
        %1694 = vmatmul.mubr.f32.gmra.mrb[0].mxu0 %v1457
        %v1695 = vpop.f32.mrb[0].mxu0
        %v1696 = vadd.f32 0.0, %v1695
        %v1697 = vpop.f32.mrb[0].mxu0
        %1698 = vmatprep.mubr.f32.mxu0 0.0
        %1699 = vmatmul.mubr.f32.gmra.mrb[0].mxu0 %v1456
        %v1700 = vpop.f32.mrb[0].mxu0
        %v1701 = vadd.f32 0.0, %v1700
        %v1702 = vpop.f32.mrb[0].mxu0
        %1703 = vmatprep.mubr.f32.mxu0 0.0
        %1704 = vmatmul.mubr.f32.gmra.mrb[0].mxu0 %v1455
        %v1705 = vpop.f32.mrb[0].mxu0
        %v1706 = vadd.f32 0.0, %v1705
        %v1707 = vpop.f32.mrb[0].mxu0
        %1708 = vmatprep.mubr.f32.mxu0 0.0
        %1709 = vmatmul.mubr.f32.gmra.mrb[0].mxu0 %v1454
        %v1710 = vpop.f32.mrb[0].mxu0
        %v1711 = vadd.f32 0.0, %v1710
        %v1712 = vpop.f32.mrb[0].mxu0
        %1713 = vmatprep.mubr.f32.mxu0 0.0
        %1714 = vmatmul.mubr.f32.gmra.mrb[0].mxu0 %v1451
        %v1715 = vpop.f32.mrb[0].mxu0
        %v1716 = vadd.f32 0.0, %v1715
        %v1717 = vpop.f32.mrb[0].mxu0
        %1718 = vmatprep.mubr.f32.mxu0 0.0
        %1719 = vmatmul.mubr.f32.gmra.mrb[0].mxu0 %v1450
        %v1720 = vpop.f32.mrb[0].mxu0
        %v1721 = vadd.f32 0.0, %v1720
        %v1722 = vpop.f32.mrb[0].mxu0
        %1723 = vdwg.mxu0
        %v1724 = vadd.f32 %v1367, %v1566
        %v1725 = vadd.f32 %v1368, %v1571
        %v1726 = vadd.f32 %v1369, %v1576
        %v1727 = vadd.f32 %v1370, %v1581
        %v1728 = vadd.f32 %v1371, %v1586
        %v1729 = vadd.f32 %v1372, %v1591
        %v1730 = vadd.f32 %v1373, %v1596
        %v1731 = vadd.f32 %v1374, %v1601
        %v1732 = vadd.f32 %v1375, %v1606
        %v1733 = vadd.f32 %v1376, %v1611
        %v1734 = vadd.f32 %v1377, %v1616
        %v1735 = vadd.f32 %v1378, %v1621
        %v1736 = vadd.f32 %v1379, %v1626
        %v1737 = vadd.f32 %v1380, %v1631
        %v1738 = vadd.f32 %v1381, %v1636
        %v1739 = vadd.f32 %v1382, %v1641
        %v1740 = vadd.f32 %v1383, %v1646
        %v1741 = vadd.f32 %v1384, %v1651
        %v1742 = vadd.f32 %v1385, %v1656
        %v1743 = vadd.f32 %v1386, %v1661
        %v1744 = vadd.f32 %v1387, %v1666
        %v1745 = vadd.f32 %v1388, %v1671
        %v1746 = vadd.f32 %v1389, %v1676
        %v1747 = vadd.f32 %v1390, %v1681
        %v1748 = vadd.f32 %v1391, %v1686
        %v1749 = vadd.f32 %v1392, %v1691
        %v1750 = vadd.f32 %v1393, %v1696
        %v1751 = vadd.f32 %v1394, %v1701
        %v1752 = vadd.f32 %v1395, %v1706
        %v1753 = vadd.f32 %v1396, %v1711
        %v1754 = vadd.f32 %v1397, %v1716
        %v1755 = vadd.f32 %v1398, %v1721
        %s1756 = scalar_lea.vmem [#allocation5], 512
        %v1757 = vld [vmem:[%s1756] sm:$0xff]
        %v1758 = vld [vmem:[%s1756 + $0x8] sm:$0xff]
        %v1759 = vld [vmem:[%s1756 + $0x10] sm:$0xff]
        %v1760 = vld [vmem:[%s1756 + $0x18] sm:$0xff]
        %v1761 = vld [vmem:[%s1756 + $0x20] sm:$0xff]
        %v1762 = vld [vmem:[%s1756 + $0x28] sm:$0xff]
        %v1763 = vld [vmem:[%s1756 + $0x30] sm:$0xff]
        %v1764 = vld [vmem:[%s1756 + $0x38] sm:$0xff]
        %v1765 = vld [vmem:[%s1756 + $0x40] sm:$0xff]
        %v1766 = vld [vmem:[%s1756 + $0x48] sm:$0xff]
        %v1767 = vld [vmem:[%s1756 + $0x50] sm:$0xff]
        %v1768 = vld [vmem:[%s1756 + $0x58] sm:$0xff]
        %v1769 = vld [vmem:[%s1756 + $0x60] sm:$0xff]
        %v1770 = vld [vmem:[%s1756 + $0x68] sm:$0xff]
        %v1771 = vld [vmem:[%s1756 + $0x70] sm:$0xff]
        %v1772 = vld [vmem:[%s1756 + $0x78] sm:$0xff]
        %1773 = vmatprep.subr.mxu0 0.0
        %1774 = vmatpush1.msra.mxu0 %v1757
        %1775 = vmatprep.subr.mxu0 0.0
        %1776 = vmatpush1.msra.mxu0 %v1758
        %1777 = vmatprep.subr.mxu0 0.0
        %1778 = vmatpush1.msra.mxu0 %v1759
        %1779 = vmatprep.subr.mxu0 0.0
        %1780 = vmatpush1.msra.mxu0 %v1760
        %1781 = vmatprep.subr.mxu0 0.0
        %1782 = vmatpush1.msra.mxu0 %v1761
        %1783 = vmatprep.subr.mxu0 0.0
        %1784 = vmatpush1.msra.mxu0 %v1762
        %1785 = vmatprep.subr.mxu0 0.0
        %1786 = vmatpush1.msra.mxu0 %v1763
        %1787 = vmatprep.subr.mxu0 0.0
        %1788 = vmatpush1.msra.mxu0 %v1764
        %1789 = vmatprep.subr.mxu0 0.0
        %1790 = vmatpush1.msra.mxu0 %v1765
        %1791 = vmatprep.subr.mxu0 0.0
        %1792 = vmatpush1.msra.mxu0 %v1766
        %1793 = vmatprep.subr.mxu0 0.0
        %1794 = vmatpush1.msra.mxu0 %v1767
        %1795 = vmatprep.subr.mxu0 0.0
        %1796 = vmatpush1.msra.mxu0 %v1768
        %1797 = vmatprep.subr.mxu0 0.0
        %1798 = vmatpush1.msra.mxu0 %v1769
        %1799 = vmatprep.subr.mxu0 0.0
        %1800 = vmatpush1.msra.mxu0 %v1770
        %1801 = vmatprep.subr.mxu0 0.0
        %1802 = vmatpush1.msra.mxu0 %v1771
        %1803 = vmatprep.subr.mxu0 0.0
        %1804 = vmatpush1.msra.mxu0 %v1772
        %1805 = vmatprep.subr.mxu0 0.0
        %1806 = vmatpush1.msra.mxu0 0.0
        %1807 = vmatprep.subr.mxu0 0.0
        %1808 = vmatpush1.msra.mxu0 0.0
        %1809 = vmatprep.subr.mxu0 0.0
        %1810 = vmatpush1.msra.mxu0 0.0
        %1811 = vmatprep.subr.mxu0 0.0
        %1812 = vmatpush1.msra.mxu0 0.0
        %1813 = vmatprep.subr.mxu0 0.0
        %1814 = vmatpush1.msra.mxu0 0.0
        %1815 = vmatprep.subr.mxu0 0.0
        %1816 = vmatpush1.msra.mxu0 0.0
        %1817 = vmatprep.subr.mxu0 0.0
        %1818 = vmatpush1.msra.mxu0 0.0
        %1819 = vmatprep.subr.mxu0 0.0
        %1820 = vmatpush1.msra.mxu0 0.0
        %1821 = vmatprep.subr.mxu0 0.0
        %1822 = vmatpush1.msra.mxu0 0.0
        %1823 = vmatprep.subr.mxu0 0.0
        %1824 = vmatpush1.msra.mxu0 0.0
        %1825 = vmatprep.subr.mxu0 0.0
        %1826 = vmatpush1.msra.mxu0 0.0
        %1827 = vmatprep.subr.mxu0 0.0
        %1828 = vmatpush1.msra.mxu0 0.0
        %1829 = vmatprep.subr.mxu0 0.0
        %1830 = vmatpush1.msra.mxu0 0.0
        %1831 = vmatprep.subr.mxu0 0.0
        %1832 = vmatpush1.msra.mxu0 0.0
        %1833 = vmatprep.subr.mxu0 0.0
        %1834 = vmatpush1.msra.mxu0 0.0
        %1835 = vmatprep.subr.mxu0 0.0
        %1836 = vmatpush1.msra.mxu0 0.0
        %1837 = vmatprep.mubr.f32.mxu0 0.0
        %1838 = vmatmul.mubr.f32.gmra.mrb[0].mxu0 %v1481
        %v1839 = vpop.f32.mrb[0].mxu0
        %v1840 = vadd.f32 0.0, %v1839
        %v1841 = vpop.f32.mrb[0].mxu0
        %1842 = vmatprep.mubr.f32.mxu0 0.0
        %1843 = vmatmul.mubr.f32.gmra.mrb[0].mxu0 %v1480
        %v1844 = vpop.f32.mrb[0].mxu0
        %v1845 = vadd.f32 0.0, %v1844
        %v1846 = vpop.f32.mrb[0].mxu0
        %1847 = vmatprep.mubr.f32.mxu0 0.0
        %1848 = vmatmul.mubr.f32.gmra.mrb[0].mxu0 %v1479
        %v1849 = vpop.f32.mrb[0].mxu0
        %v1850 = vadd.f32 0.0, %v1849
        %v1851 = vpop.f32.mrb[0].mxu0
        %1852 = vmatprep.mubr.f32.mxu0 0.0
        %1853 = vmatmul.mubr.f32.gmra.mrb[0].mxu0 %v1478
        %v1854 = vpop.f32.mrb[0].mxu0
        %v1855 = vadd.f32 0.0, %v1854
        %v1856 = vpop.f32.mrb[0].mxu0
        %1857 = vmatprep.mubr.f32.mxu0 0.0
        %1858 = vmatmul.mubr.f32.gmra.mrb[0].mxu0 %v1477
        %v1859 = vpop.f32.mrb[0].mxu0
        %v1860 = vadd.f32 0.0, %v1859
        %v1861 = vpop.f32.mrb[0].mxu0
        %1862 = vmatprep.mubr.f32.mxu0 0.0
        %1863 = vmatmul.mubr.f32.gmra.mrb[0].mxu0 %v1476
        %v1864 = vpop.f32.mrb[0].mxu0
        %v1865 = vadd.f32 0.0, %v1864
        %v1866 = vpop.f32.mrb[0].mxu0
        %1867 = vmatprep.mubr.f32.mxu0 0.0
        %1868 = vmatmul.mubr.f32.gmra.mrb[0].mxu0 %v1475
        %v1869 = vpop.f32.mrb[0].mxu0
        %v1870 = vadd.f32 0.0, %v1869
        %v1871 = vpop.f32.mrb[0].mxu0
        %1872 = vmatprep.mubr.f32.mxu0 0.0
        %1873 = vmatmul.mubr.f32.gmra.mrb[0].mxu0 %v1474
        %v1874 = vpop.f32.mrb[0].mxu0
        %v1875 = vadd.f32 0.0, %v1874
        %v1876 = vpop.f32.mrb[0].mxu0
        %1877 = vmatprep.mubr.f32.mxu0 0.0
        %1878 = vmatmul.mubr.f32.gmra.mrb[0].mxu0 %v1473
        %v1879 = vpop.f32.mrb[0].mxu0
        %v1880 = vadd.f32 0.0, %v1879
        %v1881 = vpop.f32.mrb[0].mxu0
        %1882 = vmatprep.mubr.f32.mxu0 0.0
        %1883 = vmatmul.mubr.f32.gmra.mrb[0].mxu0 %v1472
        %v1884 = vpop.f32.mrb[0].mxu0
        %v1885 = vadd.f32 0.0, %v1884
        %v1886 = vpop.f32.mrb[0].mxu0
        %1887 = vmatprep.mubr.f32.mxu0 0.0
        %1888 = vmatmul.mubr.f32.gmra.mrb[0].mxu0 %v1471
        %v1889 = vpop.f32.mrb[0].mxu0
        %v1890 = vadd.f32 0.0, %v1889
        %v1891 = vpop.f32.mrb[0].mxu0
        %1892 = vmatprep.mubr.f32.mxu0 0.0
        %1893 = vmatmul.mubr.f32.gmra.mrb[0].mxu0 %v1470
        %v1894 = vpop.f32.mrb[0].mxu0
        %v1895 = vadd.f32 0.0, %v1894
        %v1896 = vpop.f32.mrb[0].mxu0
        %1897 = vmatprep.mubr.f32.mxu0 0.0
        %1898 = vmatmul.mubr.f32.gmra.mrb[0].mxu0 %v1469
        %v1899 = vpop.f32.mrb[0].mxu0
        %v1900 = vadd.f32 0.0, %v1899
        %v1901 = vpop.f32.mrb[0].mxu0
        %1902 = vmatprep.mubr.f32.mxu0 0.0
        %1903 = vmatmul.mubr.f32.gmra.mrb[0].mxu0 %v1468
        %v1904 = vpop.f32.mrb[0].mxu0
        %v1905 = vadd.f32 0.0, %v1904
        %v1906 = vpop.f32.mrb[0].mxu0
        %1907 = vmatprep.mubr.f32.mxu0 0.0
        %1908 = vmatmul.mubr.f32.gmra.mrb[0].mxu0 %v1467
        %v1909 = vpop.f32.mrb[0].mxu0
        %v1910 = vadd.f32 0.0, %v1909
        %v1911 = vpop.f32.mrb[0].mxu0
        %1912 = vmatprep.mubr.f32.mxu0 0.0
        %1913 = vmatmul.mubr.f32.gmra.mrb[0].mxu0 %v1466
        %v1914 = vpop.f32.mrb[0].mxu0
        %v1915 = vadd.f32 0.0, %v1914
        %v1916 = vpop.f32.mrb[0].mxu0
        %1917 = vmatprep.mubr.f32.mxu0 0.0
        %1918 = vmatmul.mubr.f32.gmra.mrb[0].mxu0 %v1465
        %v1919 = vpop.f32.mrb[0].mxu0
        %v1920 = vadd.f32 0.0, %v1919
        %v1921 = vpop.f32.mrb[0].mxu0
        %1922 = vmatprep.mubr.f32.mxu0 0.0
        %1923 = vmatmul.mubr.f32.gmra.mrb[0].mxu0 %v1464
        %v1924 = vpop.f32.mrb[0].mxu0
        %v1925 = vadd.f32 0.0, %v1924
        %v1926 = vpop.f32.mrb[0].mxu0
        %1927 = vmatprep.mubr.f32.mxu0 0.0
        %1928 = vmatmul.mubr.f32.gmra.mrb[0].mxu0 %v1463
        %v1929 = vpop.f32.mrb[0].mxu0
        %v1930 = vadd.f32 0.0, %v1929
        %v1931 = vpop.f32.mrb[0].mxu0
        %1932 = vmatprep.mubr.f32.mxu0 0.0
        %1933 = vmatmul.mubr.f32.gmra.mrb[0].mxu0 %v1462
        %v1934 = vpop.f32.mrb[0].mxu0
        %v1935 = vadd.f32 0.0, %v1934
        %v1936 = vpop.f32.mrb[0].mxu0
        %1937 = vmatprep.mubr.f32.mxu0 0.0
        %1938 = vmatmul.mubr.f32.gmra.mrb[0].mxu0 %v1461
        %v1939 = vpop.f32.mrb[0].mxu0
        %v1940 = vadd.f32 0.0, %v1939
        %v1941 = vpop.f32.mrb[0].mxu0
        %1942 = vmatprep.mubr.f32.mxu0 0.0
        %1943 = vmatmul.mubr.f32.gmra.mrb[0].mxu0 %v1460
        %v1944 = vpop.f32.mrb[0].mxu0
        %v1945 = vadd.f32 0.0, %v1944
        %v1946 = vpop.f32.mrb[0].mxu0
        %1947 = vmatprep.mubr.f32.mxu0 0.0
        %1948 = vmatmul.mubr.f32.gmra.mrb[0].mxu0 %v1459
        %v1949 = vpop.f32.mrb[0].mxu0
        %v1950 = vadd.f32 0.0, %v1949
        %v1951 = vpop.f32.mrb[0].mxu0
        %1952 = vmatprep.mubr.f32.mxu0 0.0
        %1953 = vmatmul.mubr.f32.gmra.mrb[0].mxu0 %v1458
        %v1954 = vpop.f32.mrb[0].mxu0
        %v1955 = vadd.f32 0.0, %v1954
        %v1956 = vpop.f32.mrb[0].mxu0
        %1957 = vmatprep.mubr.f32.mxu0 0.0
        %1958 = vmatmul.mubr.f32.gmra.mrb[0].mxu0 %v1457
        %v1959 = vpop.f32.mrb[0].mxu0
        %v1960 = vadd.f32 0.0, %v1959
        %v1961 = vpop.f32.mrb[0].mxu0
        %1962 = vmatprep.mubr.f32.mxu0 0.0
        %1963 = vmatmul.mubr.f32.gmra.mrb[0].mxu0 %v1456
        %v1964 = vpop.f32.mrb[0].mxu0
        %v1965 = vadd.f32 0.0, %v1964
        %v1966 = vpop.f32.mrb[0].mxu0
        %1967 = vmatprep.mubr.f32.mxu0 0.0
        %1968 = vmatmul.mubr.f32.gmra.mrb[0].mxu0 %v1455
        %v1969 = vpop.f32.mrb[0].mxu0
        %v1970 = vadd.f32 0.0, %v1969
        %v1971 = vpop.f32.mrb[0].mxu0
        %1972 = vmatprep.mubr.f32.mxu0 0.0
        %1973 = vmatmul.mubr.f32.gmra.mrb[0].mxu0 %v1454
        %v1974 = vpop.f32.mrb[0].mxu0
        %v1975 = vadd.f32 0.0, %v1974
        %v1976 = vpop.f32.mrb[0].mxu0
        %1977 = vmatprep.mubr.f32.mxu0 0.0
        %1978 = vmatmul.mubr.f32.gmra.mrb[0].mxu0 %v1451
        %v1979 = vpop.f32.mrb[0].mxu0
        %v1980 = vadd.f32 0.0, %v1979
        %v1981 = vpop.f32.mrb[0].mxu0
        %1982 = vmatprep.mubr.f32.mxu0 0.0
        %1983 = vmatmul.mubr.f32.gmra.mrb[0].mxu0 %v1450
        %v1984 = vpop.f32.mrb[0].mxu0
        %v1985 = vadd.f32 0.0, %v1984
        %v1986 = vpop.f32.mrb[0].mxu0
        %1987 = vmatprep.mubr.f32.mxu0 0.0
        %1988 = vmatmul.mubr.f32.gmra.mrb[0].mxu0 %v1453
        %v1989 = vpop.f32.mrb[0].mxu0
        %v1990 = vadd.f32 0.0, %v1989
        %v1991 = vpop.f32.mrb[0].mxu0
        %1992 = vmatprep.mubr.f32.mxu0 0.0
        %1993 = vmatmul.mubr.f32.gmra.mrb[0].mxu0 %v1452
        %v1994 = vpop.f32.mrb[0].mxu0
        %v1995 = vadd.f32 0.0, %v1994
        %v1996 = vpop.f32.mrb[0].mxu0
        %1997 = vdwg.mxu0
        %v1998 = vadd.f32 %v1724, %v1840
        %v1999 = vadd.f32 %v1725, %v1845
        %v2000 = vadd.f32 %v1726, %v1850
        %v2001 = vadd.f32 %v1727, %v1855
        %v2002 = vadd.f32 %v1728, %v1860
        %v2003 = vadd.f32 %v1729, %v1865
        %v2004 = vadd.f32 %v1730, %v1870
        %v2005 = vadd.f32 %v1731, %v1875
        %v2006 = vadd.f32 %v1732, %v1880
        %v2007 = vadd.f32 %v1733, %v1885
        %v2008 = vadd.f32 %v1734, %v1890
        %v2009 = vadd.f32 %v1735, %v1895
        %v2010 = vadd.f32 %v1736, %v1900
        %v2011 = vadd.f32 %v1737, %v1905
        %v2012 = vadd.f32 %v1738, %v1910
        %v2013 = vadd.f32 %v1739, %v1915
        %v2014 = vadd.f32 %v1740, %v1920
        %v2015 = vadd.f32 %v1741, %v1925
        %v2016 = vadd.f32 %v1742, %v1930
        %v2017 = vadd.f32 %v1743, %v1935
        %v2018 = vadd.f32 %v1744, %v1940
        %v2019 = vadd.f32 %v1745, %v1945
        %v2020 = vadd.f32 %v1746, %v1950
        %v2021 = vadd.f32 %v1747, %v1955
        %v2022 = vadd.f32 %v1748, %v1960
        %v2023 = vadd.f32 %v1749, %v1965
        %v2024 = vadd.f32 %v1750, %v1970
        %v2025 = vadd.f32 %v1751, %v1975
        %v2026 = vadd.f32 %v1752, %v1980
        %v2027 = vadd.f32 %v1753, %v1985
        %v2028 = vadd.f32 %v1754, %v1990
        %v2029 = vadd.f32 %v1755, %v1995
        %s2030 = scalar_lea.vmem [#allocation5], 896
        %v2031 = vld [vmem:[%s2030] sm:$0xff]
        %v2032 = vld [vmem:[%s2030 + $0x8] sm:$0xff]
        %v2033 = vld [vmem:[%s2030 + $0x10] sm:$0xff]
        %v2034 = vld [vmem:[%s2030 + $0x18] sm:$0xff]
        %v2035 = vld [vmem:[%s2030 + $0x20] sm:$0xff]
        %v2036 = vld [vmem:[%s2030 + $0x28] sm:$0xff]
        %v2037 = vld [vmem:[%s2030 + $0x30] sm:$0xff]
        %v2038 = vld [vmem:[%s2030 + $0x38] sm:$0xff]
        %v2039 = vld [vmem:[%s2030 + $0x40] sm:$0xff]
        %v2040 = vld [vmem:[%s2030 + $0x48] sm:$0xff]
        %v2041 = vld [vmem:[%s2030 + $0x50] sm:$0xff]
        %v2042 = vld [vmem:[%s2030 + $0x58] sm:$0xff]
        %v2043 = vld [vmem:[%s2030 + $0x60] sm:$0xff]
        %v2044 = vld [vmem:[%s2030 + $0x68] sm:$0xff]
        %v2045 = vld [vmem:[%s2030 + $0x70] sm:$0xff]
        %v2046 = vld [vmem:[%s2030 + $0x78] sm:$0xff]
        %2047 = vmatprep.subr.mxu0 0.0
        %2048 = vmatpush1.msra.mxu0 %v2031
        %2049 = vmatprep.subr.mxu0 0.0
        %2050 = vmatpush1.msra.mxu0 %v2032
        %2051 = vmatprep.subr.mxu0 0.0
        %2052 = vmatpush1.msra.mxu0 %v2033
        %2053 = vmatprep.subr.mxu0 0.0
        %2054 = vmatpush1.msra.mxu0 %v2034
        %2055 = vmatprep.subr.mxu0 0.0
        %2056 = vmatpush1.msra.mxu0 %v2035
        %2057 = vmatprep.subr.mxu0 0.0
        %2058 = vmatpush1.msra.mxu0 %v2036
        %2059 = vmatprep.subr.mxu0 0.0
        %2060 = vmatpush1.msra.mxu0 %v2037
        %2061 = vmatprep.subr.mxu0 0.0
        %2062 = vmatpush1.msra.mxu0 %v2038
        %2063 = vmatprep.subr.mxu0 0.0
        %2064 = vmatpush1.msra.mxu0 %v2039
        %2065 = vmatprep.subr.mxu0 0.0
        %2066 = vmatpush1.msra.mxu0 %v2040
        %2067 = vmatprep.subr.mxu0 0.0
        %2068 = vmatpush1.msra.mxu0 %v2041
        %2069 = vmatprep.subr.mxu0 0.0
        %2070 = vmatpush1.msra.mxu0 %v2042
        %2071 = vmatprep.subr.mxu0 0.0
        %2072 = vmatpush1.msra.mxu0 %v2043
        %2073 = vmatprep.subr.mxu0 0.0
        %2074 = vmatpush1.msra.mxu0 %v2044
        %2075 = vmatprep.subr.mxu0 0.0
        %2076 = vmatpush1.msra.mxu0 %v2045
        %2077 = vmatprep.subr.mxu0 0.0
        %2078 = vmatpush1.msra.mxu0 %v2046
        %2079 = vmatprep.subr.mxu0 0.0
        %2080 = vmatpush1.msra.mxu0 0.0
        %2081 = vmatprep.subr.mxu0 0.0
        %2082 = vmatpush1.msra.mxu0 0.0
        %2083 = vmatprep.subr.mxu0 0.0
        %2084 = vmatpush1.msra.mxu0 0.0
        %2085 = vmatprep.subr.mxu0 0.0
        %2086 = vmatpush1.msra.mxu0 0.0
        %2087 = vmatprep.subr.mxu0 0.0
        %2088 = vmatpush1.msra.mxu0 0.0
        %2089 = vmatprep.subr.mxu0 0.0
        %2090 = vmatpush1.msra.mxu0 0.0
        %2091 = vmatprep.subr.mxu0 0.0
        %2092 = vmatpush1.msra.mxu0 0.0
        %2093 = vmatprep.subr.mxu0 0.0
        %2094 = vmatpush1.msra.mxu0 0.0
        %2095 = vmatprep.subr.mxu0 0.0
        %2096 = vmatpush1.msra.mxu0 0.0
        %2097 = vmatprep.subr.mxu0 0.0
        %2098 = vmatpush1.msra.mxu0 0.0
        %2099 = vmatprep.subr.mxu0 0.0
        %2100 = vmatpush1.msra.mxu0 0.0
        %2101 = vmatprep.subr.mxu0 0.0
        %2102 = vmatpush1.msra.mxu0 0.0
        %2103 = vmatprep.subr.mxu0 0.0
        %2104 = vmatpush1.msra.mxu0 0.0
        %2105 = vmatprep.subr.mxu0 0.0
        %2106 = vmatpush1.msra.mxu0 0.0
        %2107 = vmatprep.subr.mxu0 0.0
        %2108 = vmatpush1.msra.mxu0 0.0
        %2109 = vmatprep.subr.mxu0 0.0
        %2110 = vmatpush1.msra.mxu0 0.0
        %2111 = vmatprep.mubr.f32.mxu0 0.0
        %2112 = vmatmul.mubr.f32.gmra.mrb[0].mxu0 %v1479
        %v2113 = vpop.f32.mrb[0].mxu0
        %v2114 = vadd.f32 0.0, %v2113
        %v2115 = vpop.f32.mrb[0].mxu0
        %2116 = vmatprep.mubr.f32.mxu0 0.0
        %2117 = vmatmul.mubr.f32.gmra.mrb[0].mxu0 %v1478
        %v2118 = vpop.f32.mrb[0].mxu0
        %v2119 = vadd.f32 0.0, %v2118
        %v2120 = vpop.f32.mrb[0].mxu0
        %2121 = vmatprep.mubr.f32.mxu0 0.0
        %2122 = vmatmul.mubr.f32.gmra.mrb[0].mxu0 %v1477
        %v2123 = vpop.f32.mrb[0].mxu0
        %v2124 = vadd.f32 0.0, %v2123
        %v2125 = vpop.f32.mrb[0].mxu0
        %2126 = vmatprep.mubr.f32.mxu0 0.0
        %2127 = vmatmul.mubr.f32.gmra.mrb[0].mxu0 %v1476
        %v2128 = vpop.f32.mrb[0].mxu0
        %v2129 = vadd.f32 0.0, %v2128
        %v2130 = vpop.f32.mrb[0].mxu0
        %2131 = vmatprep.mubr.f32.mxu0 0.0
        %2132 = vmatmul.mubr.f32.gmra.mrb[0].mxu0 %v1475
        %v2133 = vpop.f32.mrb[0].mxu0
        %v2134 = vadd.f32 0.0, %v2133
        %v2135 = vpop.f32.mrb[0].mxu0
        %2136 = vmatprep.mubr.f32.mxu0 0.0
        %2137 = vmatmul.mubr.f32.gmra.mrb[0].mxu0 %v1474
        %v2138 = vpop.f32.mrb[0].mxu0
        %v2139 = vadd.f32 0.0, %v2138
        %v2140 = vpop.f32.mrb[0].mxu0
        %2141 = vmatprep.mubr.f32.mxu0 0.0
        %2142 = vmatmul.mubr.f32.gmra.mrb[0].mxu0 %v1473
        %v2143 = vpop.f32.mrb[0].mxu0
        %v2144 = vadd.f32 0.0, %v2143
        %v2145 = vpop.f32.mrb[0].mxu0
        %2146 = vmatprep.mubr.f32.mxu0 0.0
        %2147 = vmatmul.mubr.f32.gmra.mrb[0].mxu0 %v1472
        %v2148 = vpop.f32.mrb[0].mxu0
        %v2149 = vadd.f32 0.0, %v2148
        %v2150 = vpop.f32.mrb[0].mxu0
        %2151 = vmatprep.mubr.f32.mxu0 0.0
        %2152 = vmatmul.mubr.f32.gmra.mrb[0].mxu0 %v1471
        %v2153 = vpop.f32.mrb[0].mxu0
        %v2154 = vadd.f32 0.0, %v2153
        %v2155 = vpop.f32.mrb[0].mxu0
        %2156 = vmatprep.mubr.f32.mxu0 0.0
        %2157 = vmatmul.mubr.f32.gmra.mrb[0].mxu0 %v1470
        %v2158 = vpop.f32.mrb[0].mxu0
        %v2159 = vadd.f32 0.0, %v2158
        %v2160 = vpop.f32.mrb[0].mxu0
        %2161 = vmatprep.mubr.f32.mxu0 0.0
        %2162 = vmatmul.mubr.f32.gmra.mrb[0].mxu0 %v1469
        %v2163 = vpop.f32.mrb[0].mxu0
        %v2164 = vadd.f32 0.0, %v2163
        %v2165 = vpop.f32.mrb[0].mxu0
        %2166 = vmatprep.mubr.f32.mxu0 0.0
        %2167 = vmatmul.mubr.f32.gmra.mrb[0].mxu0 %v1468
        %v2168 = vpop.f32.mrb[0].mxu0
        %v2169 = vadd.f32 0.0, %v2168
        %v2170 = vpop.f32.mrb[0].mxu0
        %2171 = vmatprep.mubr.f32.mxu0 0.0
        %2172 = vmatmul.mubr.f32.gmra.mrb[0].mxu0 %v1467
        %v2173 = vpop.f32.mrb[0].mxu0
        %v2174 = vadd.f32 0.0, %v2173
        %v2175 = vpop.f32.mrb[0].mxu0
        %2176 = vmatprep.mubr.f32.mxu0 0.0
        %2177 = vmatmul.mubr.f32.gmra.mrb[0].mxu0 %v1466
        %v2178 = vpop.f32.mrb[0].mxu0
        %v2179 = vadd.f32 0.0, %v2178
        %v2180 = vpop.f32.mrb[0].mxu0
        %2181 = vmatprep.mubr.f32.mxu0 0.0
        %2182 = vmatmul.mubr.f32.gmra.mrb[0].mxu0 %v1465
        %v2183 = vpop.f32.mrb[0].mxu0
        %v2184 = vadd.f32 0.0, %v2183
        %v2185 = vpop.f32.mrb[0].mxu0
        %2186 = vmatprep.mubr.f32.mxu0 0.0
        %2187 = vmatmul.mubr.f32.gmra.mrb[0].mxu0 %v1464
        %v2188 = vpop.f32.mrb[0].mxu0
        %v2189 = vadd.f32 0.0, %v2188
        %v2190 = vpop.f32.mrb[0].mxu0
        %2191 = vmatprep.mubr.f32.mxu0 0.0
        %2192 = vmatmul.mubr.f32.gmra.mrb[0].mxu0 %v1463
        %v2193 = vpop.f32.mrb[0].mxu0
        %v2194 = vadd.f32 0.0, %v2193
        %v2195 = vpop.f32.mrb[0].mxu0
        %2196 = vmatprep.mubr.f32.mxu0 0.0
        %2197 = vmatmul.mubr.f32.gmra.mrb[0].mxu0 %v1462
        %v2198 = vpop.f32.mrb[0].mxu0
        %v2199 = vadd.f32 0.0, %v2198
        %v2200 = vpop.f32.mrb[0].mxu0
        %2201 = vmatprep.mubr.f32.mxu0 0.0
        %2202 = vmatmul.mubr.f32.gmra.mrb[0].mxu0 %v1461
        %v2203 = vpop.f32.mrb[0].mxu0
        %v2204 = vadd.f32 0.0, %v2203
        %v2205 = vpop.f32.mrb[0].mxu0
        %2206 = vmatprep.mubr.f32.mxu0 0.0
        %2207 = vmatmul.mubr.f32.gmra.mrb[0].mxu0 %v1460
        %v2208 = vpop.f32.mrb[0].mxu0
        %v2209 = vadd.f32 0.0, %v2208
        %v2210 = vpop.f32.mrb[0].mxu0
        %2211 = vmatprep.mubr.f32.mxu0 0.0
        %2212 = vmatmul.mubr.f32.gmra.mrb[0].mxu0 %v1459
        %v2213 = vpop.f32.mrb[0].mxu0
        %v2214 = vadd.f32 0.0, %v2213
        %v2215 = vpop.f32.mrb[0].mxu0
        %2216 = vmatprep.mubr.f32.mxu0 0.0
        %2217 = vmatmul.mubr.f32.gmra.mrb[0].mxu0 %v1458
        %v2218 = vpop.f32.mrb[0].mxu0
        %v2219 = vadd.f32 0.0, %v2218
        %v2220 = vpop.f32.mrb[0].mxu0
        %2221 = vmatprep.mubr.f32.mxu0 0.0
        %2222 = vmatmul.mubr.f32.gmra.mrb[0].mxu0 %v1457
        %v2223 = vpop.f32.mrb[0].mxu0
        %v2224 = vadd.f32 0.0, %v2223
        %v2225 = vpop.f32.mrb[0].mxu0
        %2226 = vmatprep.mubr.f32.mxu0 0.0
        %2227 = vmatmul.mubr.f32.gmra.mrb[0].mxu0 %v1456
        %v2228 = vpop.f32.mrb[0].mxu0
        %v2229 = vadd.f32 0.0, %v2228
        %v2230 = vpop.f32.mrb[0].mxu0
        %2231 = vmatprep.mubr.f32.mxu0 0.0
        %2232 = vmatmul.mubr.f32.gmra.mrb[0].mxu0 %v1455
        %v2233 = vpop.f32.mrb[0].mxu0
        %v2234 = vadd.f32 0.0, %v2233
        %v2235 = vpop.f32.mrb[0].mxu0
        %2236 = vmatprep.mubr.f32.mxu0 0.0
        %2237 = vmatmul.mubr.f32.gmra.mrb[0].mxu0 %v1454
        %v2238 = vpop.f32.mrb[0].mxu0
        %v2239 = vadd.f32 0.0, %v2238
        %v2240 = vpop.f32.mrb[0].mxu0
        %2241 = vmatprep.mubr.f32.mxu0 0.0
        %2242 = vmatmul.mubr.f32.gmra.mrb[0].mxu0 %v1451
        %v2243 = vpop.f32.mrb[0].mxu0
        %v2244 = vadd.f32 0.0, %v2243
        %v2245 = vpop.f32.mrb[0].mxu0
        %2246 = vmatprep.mubr.f32.mxu0 0.0
        %2247 = vmatmul.mubr.f32.gmra.mrb[0].mxu0 %v1450
        %v2248 = vpop.f32.mrb[0].mxu0
        %v2249 = vadd.f32 0.0, %v2248
        %v2250 = vpop.f32.mrb[0].mxu0
        %2251 = vmatprep.mubr.f32.mxu0 0.0
        %2252 = vmatmul.mubr.f32.gmra.mrb[0].mxu0 %v1453
        %v2253 = vpop.f32.mrb[0].mxu0
        %v2254 = vadd.f32 0.0, %v2253
        %v2255 = vpop.f32.mrb[0].mxu0
        %2256 = vmatprep.mubr.f32.mxu0 0.0
        %2257 = vmatmul.mubr.f32.gmra.mrb[0].mxu0 %v1452
        %v2258 = vpop.f32.mrb[0].mxu0
        %v2259 = vadd.f32 0.0, %v2258
        %v2260 = vpop.f32.mrb[0].mxu0
        %2261 = vmatprep.mubr.f32.mxu0 0.0
        %2262 = vmatmul.mubr.f32.gmra.mrb[0].mxu0 %v1451
        %v2263 = vpop.f32.mrb[0].mxu0
        %v2264 = vadd.f32 0.0, %v2263
        %v2265 = vpop.f32.mrb[0].mxu0
        %2266 = vmatprep.mubr.f32.mxu0 0.0
        %2267 = vmatmul.mubr.f32.gmra.mrb[0].mxu0 %v1450
        %v2268 = vpop.f32.mrb[0].mxu0
        %v2269 = vadd.f32 0.0, %v2268
        %v2270 = vpop.f32.mrb[0].mxu0
        %2271 = vdwg.mxu0
        %v2272 = vadd.f32 %v1998, %v2114
        %v2273 = vadd.f32 %v1999, %v2119
        %v2274 = vadd.f32 %v2000, %v2124
        %v2275 = vadd.f32 %v2001, %v2129
        %v2276 = vadd.f32 %v2002, %v2134
        %v2277 = vadd.f32 %v2003, %v2139
        %v2278 = vadd.f32 %v2004, %v2144
        %v2279 = vadd.f32 %v2005, %v2149
        %v2280 = vadd.f32 %v2006, %v2154
        %v2281 = vadd.f32 %v2007, %v2159
        %v2282 = vadd.f32 %v2008, %v2164
        %v2283 = vadd.f32 %v2009, %v2169
        %v2284 = vadd.f32 %v2010, %v2174
        %v2285 = vadd.f32 %v2011, %v2179
        %v2286 = vadd.f32 %v2012, %v2184
        %v2287 = vadd.f32 %v2013, %v2189
        %v2288 = vadd.f32 %v2014, %v2194
        %v2289 = vadd.f32 %v2015, %v2199
        %v2290 = vadd.f32 %v2016, %v2204
        %v2291 = vadd.f32 %v2017, %v2209
        %v2292 = vadd.f32 %v2018, %v2214
        %v2293 = vadd.f32 %v2019, %v2219
        %v2294 = vadd.f32 %v2020, %v2224
        %v2295 = vadd.f32 %v2021, %v2229
        %v2296 = vadd.f32 %v2022, %v2234
        %v2297 = vadd.f32 %v2023, %v2239
        %v2298 = vadd.f32 %v2024, %v2244
        %v2299 = vadd.f32 %v2025, %v2249
        %v2300 = vadd.f32 %v2026, %v2254
        %v2301 = vadd.f32 %v2027, %v2259
        %v2302 = vadd.f32 %v2028, %v2264
        %v2303 = vadd.f32 %v2029, %v2269
        %v2304 = vrot.slane %v523, 2
        %v2305 = vrot.slane %v397, 2
        %v2306 = vrot.slane %v556, 2
        %v2307 = vrot.slane %v524, 2
        %v2308 = vrot.slane %v400, 2
        %v2309 = vrot.slane %v557, 2
        %v2310 = vrot.slane %v525, 2
        %v2311 = vrot.slane %v403, 2
        %v2312 = vrot.slane %v558, 2
        %v2313 = vrot.slane %v526, 2
        %v2314 = vrot.slane %v406, 2
        %v2315 = vrot.slane %v559, 2
        %v2316 = vrot.slane %v527, 2
        %v2317 = vrot.slane %v409, 2
        %v2318 = vrot.slane %v560, 2
        %v2319 = vrot.slane %v528, 2
        %v2320 = vrot.slane %v412, 2
        %v2321 = vrot.slane %v561, 2
        %v2322 = vrot.slane %v529, 2
        %v2323 = vrot.slane %v415, 2
        %v2324 = vrot.slane %v562, 2
        %v2325 = vrot.slane %v530, 2
        %v2326 = vrot.slane %v418, 2
        %v2327 = vrot.slane %v563, 2
        %v2328 = vrot.slane %v531, 2
        %v2329 = vrot.slane %v421, 2
        %v2330 = vrot.slane %v564, 2
        %v2331 = vrot.slane %v532, 2
        %v2332 = vrot.slane %v424, 2
        %v2333 = vrot.slane %v565, 2
        %v2334 = vrot.slane %v533, 2
        %v2335 = vrot.slane %v427, 2
        %v2336 = vrot.slane %v566, 2
        %v2337 = vrot.slane %v534, 2
        %v2338 = vrot.slane %v430, 2
        %v2339 = vrot.slane %v567, 2
        %v2340 = vrot.slane %v535, 2
        %v2341 = vrot.slane %v433, 2
        %v2342 = vrot.slane %v568, 2
        %v2343 = vrot.slane %v536, 2
        %v2344 = vrot.slane %v436, 2
        %v2345 = vrot.slane %v569, 2
        %v2346 = vrot.slane %v537, 2
        %v2347 = vrot.slane %v439, 2
        %v2348 = vrot.slane %v570, 2
        %v2349 = vrot.slane %v538, 2
        %v2350 = vrot.slane %v442, 2
        %v2351 = vrot.slane %v571, 2
        %vm2352 = vcmp.lt.s32.totalorder %v1448, 6
        %v2353 = vsel %vm2352, %v2347, %v2348
        %v2354 = vsel %vm2352, %v2346, %v2347
        %v2355 = vsel %vm2352, %v2350, %v2351
        %v2356 = vsel %vm2352, %v2349, %v2350
        %v2357 = vsel %vm2352, %v2344, %v2345
        %v2358 = vsel %vm2352, %v2343, %v2344
        %v2359 = vsel %vm2352, %v2341, %v2342
        %v2360 = vsel %vm2352, %v2340, %v2341
        %v2361 = vsel %vm2352, %v2338, %v2339
        %v2362 = vsel %vm2352, %v2337, %v2338
        %v2363 = vsel %vm2352, %v2335, %v2336
        %v2364 = vsel %vm2352, %v2334, %v2335
        %v2365 = vsel %vm2352, %v2332, %v2333
        %v2366 = vsel %vm2352, %v2331, %v2332
        %v2367 = vsel %vm2352, %v2329, %v2330
        %v2368 = vsel %vm2352, %v2328, %v2329
        %v2369 = vsel %vm2352, %v2326, %v2327
        %v2370 = vsel %vm2352, %v2325, %v2326
        %v2371 = vsel %vm2352, %v2323, %v2324
        %v2372 = vsel %vm2352, %v2322, %v2323
        %v2373 = vsel %vm2352, %v2320, %v2321
        %v2374 = vsel %vm2352, %v2319, %v2320
        %v2375 = vsel %vm2352, %v2317, %v2318
        %v2376 = vsel %vm2352, %v2316, %v2317
        %v2377 = vsel %vm2352, %v2314, %v2315
        %v2378 = vsel %vm2352, %v2313, %v2314
        %v2379 = vsel %vm2352, %v2311, %v2312
        %v2380 = vsel %vm2352, %v2310, %v2311
        %v2381 = vsel %vm2352, %v2305, %v2306
        %v2382 = vsel %vm2352, %v2304, %v2305
        %v2383 = vsel %vm2352, %v2308, %v2309
        %v2384 = vsel %vm2352, %v2307, %v2308
        %s2385 = scalar_lea.vmem [#allocation5], 256
        %v2386 = vld [vmem:[%s2385] sm:$0xff]
        %v2387 = vld [vmem:[%s2385 + $0x8] sm:$0xff]
        %v2388 = vld [vmem:[%s2385 + $0x10] sm:$0xff]
        %v2389 = vld [vmem:[%s2385 + $0x18] sm:$0xff]
        %v2390 = vld [vmem:[%s2385 + $0x20] sm:$0xff]
        %v2391 = vld [vmem:[%s2385 + $0x28] sm:$0xff]
        %v2392 = vld [vmem:[%s2385 + $0x30] sm:$0xff]
        %v2393 = vld [vmem:[%s2385 + $0x38] sm:$0xff]
        %v2394 = vld [vmem:[%s2385 + $0x40] sm:$0xff]
        %v2395 = vld [vmem:[%s2385 + $0x48] sm:$0xff]
        %v2396 = vld [vmem:[%s2385 + $0x50] sm:$0xff]
        %v2397 = vld [vmem:[%s2385 + $0x58] sm:$0xff]
        %v2398 = vld [vmem:[%s2385 + $0x60] sm:$0xff]
        %v2399 = vld [vmem:[%s2385 + $0x68] sm:$0xff]
        %v2400 = vld [vmem:[%s2385 + $0x70] sm:$0xff]
        %v2401 = vld [vmem:[%s2385 + $0x78] sm:$0xff]
        %2402 = vmatprep.subr.mxu0 0.0
        %2403 = vmatpush1.msra.mxu0 %v2386
        %2404 = vmatprep.subr.mxu0 0.0
        %2405 = vmatpush1.msra.mxu0 %v2387
        %2406 = vmatprep.subr.mxu0 0.0
        %2407 = vmatpush1.msra.mxu0 %v2388
        %2408 = vmatprep.subr.mxu0 0.0
        %2409 = vmatpush1.msra.mxu0 %v2389
        %2410 = vmatprep.subr.mxu0 0.0
        %2411 = vmatpush1.msra.mxu0 %v2390
        %2412 = vmatprep.subr.mxu0 0.0
        %2413 = vmatpush1.msra.mxu0 %v2391
        %2414 = vmatprep.subr.mxu0 0.0
        %2415 = vmatpush1.msra.mxu0 %v2392
        %2416 = vmatprep.subr.mxu0 0.0
        %2417 = vmatpush1.msra.mxu0 %v2393
        %2418 = vmatprep.subr.mxu0 0.0
        %2419 = vmatpush1.msra.mxu0 %v2394
        %2420 = vmatprep.subr.mxu0 0.0
        %2421 = vmatpush1.msra.mxu0 %v2395
        %2422 = vmatprep.subr.mxu0 0.0
        %2423 = vmatpush1.msra.mxu0 %v2396
        %2424 = vmatprep.subr.mxu0 0.0
        %2425 = vmatpush1.msra.mxu0 %v2397
        %2426 = vmatprep.subr.mxu0 0.0
        %2427 = vmatpush1.msra.mxu0 %v2398
        %2428 = vmatprep.subr.mxu0 0.0
        %2429 = vmatpush1.msra.mxu0 %v2399
        %2430 = vmatprep.subr.mxu0 0.0
        %2431 = vmatpush1.msra.mxu0 %v2400
        %2432 = vmatprep.subr.mxu0 0.0
        %2433 = vmatpush1.msra.mxu0 %v2401
        %2434 = vmatprep.subr.mxu0 0.0
        %2435 = vmatpush1.msra.mxu0 0.0
        %2436 = vmatprep.subr.mxu0 0.0
        %2437 = vmatpush1.msra.mxu0 0.0
        %2438 = vmatprep.subr.mxu0 0.0
        %2439 = vmatpush1.msra.mxu0 0.0
        %2440 = vmatprep.subr.mxu0 0.0
        %2441 = vmatpush1.msra.mxu0 0.0
        %2442 = vmatprep.subr.mxu0 0.0
        %2443 = vmatpush1.msra.mxu0 0.0
        %2444 = vmatprep.subr.mxu0 0.0
        %2445 = vmatpush1.msra.mxu0 0.0
        %2446 = vmatprep.subr.mxu0 0.0
        %2447 = vmatpush1.msra.mxu0 0.0
        %2448 = vmatprep.subr.mxu0 0.0
        %2449 = vmatpush1.msra.mxu0 0.0
        %2450 = vmatprep.subr.mxu0 0.0
        %2451 = vmatpush1.msra.mxu0 0.0
        %2452 = vmatprep.subr.mxu0 0.0
        %2453 = vmatpush1.msra.mxu0 0.0
        %2454 = vmatprep.subr.mxu0 0.0
        %2455 = vmatpush1.msra.mxu0 0.0
        %2456 = vmatprep.subr.mxu0 0.0
        %2457 = vmatpush1.msra.mxu0 0.0
        %2458 = vmatprep.subr.mxu0 0.0
        %2459 = vmatpush1.msra.mxu0 0.0
        %2460 = vmatprep.subr.mxu0 0.0
        %2461 = vmatpush1.msra.mxu0 0.0
        %2462 = vmatprep.subr.mxu0 0.0
        %2463 = vmatpush1.msra.mxu0 0.0
        %2464 = vmatprep.subr.mxu0 0.0
        %2465 = vmatpush1.msra.mxu0 0.0
        %2466 = vmatprep.mubr.f32.mxu0 0.0
        %2467 = vmatmul.mubr.f32.gmra.mrb[0].mxu0 %v2382
        %v2468 = vpop.f32.mrb[0].mxu0
        %v2469 = vadd.f32 0.0, %v2468
        %v2470 = vpop.f32.mrb[0].mxu0
        %2471 = vmatprep.mubr.f32.mxu0 0.0
        %2472 = vmatmul.mubr.f32.gmra.mrb[0].mxu0 %v2381
        %v2473 = vpop.f32.mrb[0].mxu0
        %v2474 = vadd.f32 0.0, %v2473
        %v2475 = vpop.f32.mrb[0].mxu0
        %2476 = vmatprep.mubr.f32.mxu0 0.0
        %2477 = vmatmul.mubr.f32.gmra.mrb[0].mxu0 %v2384
        %v2478 = vpop.f32.mrb[0].mxu0
        %v2479 = vadd.f32 0.0, %v2478
        %v2480 = vpop.f32.mrb[0].mxu0
        %2481 = vmatprep.mubr.f32.mxu0 0.0
        %2482 = vmatmul.mubr.f32.gmra.mrb[0].mxu0 %v2383
        %v2483 = vpop.f32.mrb[0].mxu0
        %v2484 = vadd.f32 0.0, %v2483
        %v2485 = vpop.f32.mrb[0].mxu0
        %2486 = vmatprep.mubr.f32.mxu0 0.0
        %2487 = vmatmul.mubr.f32.gmra.mrb[0].mxu0 %v2382
        %v2488 = vpop.f32.mrb[0].mxu0
        %v2489 = vadd.f32 0.0, %v2488
        %v2490 = vpop.f32.mrb[0].mxu0
        %2491 = vmatprep.mubr.f32.mxu0 0.0
        %2492 = vmatmul.mubr.f32.gmra.mrb[0].mxu0 %v2381
        %v2493 = vpop.f32.mrb[0].mxu0
        %v2494 = vadd.f32 0.0, %v2493
        %v2495 = vpop.f32.mrb[0].mxu0
        %2496 = vmatprep.mubr.f32.mxu0 0.0
        %2497 = vmatmul.mubr.f32.gmra.mrb[0].mxu0 %v2380
        %v2498 = vpop.f32.mrb[0].mxu0
        %v2499 = vadd.f32 0.0, %v2498
        %v2500 = vpop.f32.mrb[0].mxu0
        %2501 = vmatprep.mubr.f32.mxu0 0.0
        %2502 = vmatmul.mubr.f32.gmra.mrb[0].mxu0 %v2379
        %v2503 = vpop.f32.mrb[0].mxu0
        %v2504 = vadd.f32 0.0, %v2503
        %v2505 = vpop.f32.mrb[0].mxu0
        %2506 = vmatprep.mubr.f32.mxu0 0.0
        %2507 = vmatmul.mubr.f32.gmra.mrb[0].mxu0 %v2378
        %v2508 = vpop.f32.mrb[0].mxu0
        %v2509 = vadd.f32 0.0, %v2508
        %v2510 = vpop.f32.mrb[0].mxu0
        %2511 = vmatprep.mubr.f32.mxu0 0.0
        %2512 = vmatmul.mubr.f32.gmra.mrb[0].mxu0 %v2377
        %v2513 = vpop.f32.mrb[0].mxu0
        %v2514 = vadd.f32 0.0, %v2513
        %v2515 = vpop.f32.mrb[0].mxu0
        %2516 = vmatprep.mubr.f32.mxu0 0.0
        %2517 = vmatmul.mubr.f32.gmra.mrb[0].mxu0 %v2376
        %v2518 = vpop.f32.mrb[0].mxu0
        %v2519 = vadd.f32 0.0, %v2518
        %v2520 = vpop.f32.mrb[0].mxu0
        %2521 = vmatprep.mubr.f32.mxu0 0.0
        %2522 = vmatmul.mubr.f32.gmra.mrb[0].mxu0 %v2375
        %v2523 = vpop.f32.mrb[0].mxu0
        %v2524 = vadd.f32 0.0, %v2523
        %v2525 = vpop.f32.mrb[0].mxu0
        %2526 = vmatprep.mubr.f32.mxu0 0.0
        %2527 = vmatmul.mubr.f32.gmra.mrb[0].mxu0 %v2374
        %v2528 = vpop.f32.mrb[0].mxu0
        %v2529 = vadd.f32 0.0, %v2528
        %v2530 = vpop.f32.mrb[0].mxu0
        %2531 = vmatprep.mubr.f32.mxu0 0.0
        %2532 = vmatmul.mubr.f32.gmra.mrb[0].mxu0 %v2373
        %v2533 = vpop.f32.mrb[0].mxu0
        %v2534 = vadd.f32 0.0, %v2533
        %v2535 = vpop.f32.mrb[0].mxu0
        %2536 = vmatprep.mubr.f32.mxu0 0.0
        %2537 = vmatmul.mubr.f32.gmra.mrb[0].mxu0 %v2372
        %v2538 = vpop.f32.mrb[0].mxu0
        %v2539 = vadd.f32 0.0, %v2538
        %v2540 = vpop.f32.mrb[0].mxu0
        %2541 = vmatprep.mubr.f32.mxu0 0.0
        %2542 = vmatmul.mubr.f32.gmra.mrb[0].mxu0 %v2371
        %v2543 = vpop.f32.mrb[0].mxu0
        %v2544 = vadd.f32 0.0, %v2543
        %v2545 = vpop.f32.mrb[0].mxu0
        %2546 = vmatprep.mubr.f32.mxu0 0.0
        %2547 = vmatmul.mubr.f32.gmra.mrb[0].mxu0 %v2370
        %v2548 = vpop.f32.mrb[0].mxu0
        %v2549 = vadd.f32 0.0, %v2548
        %v2550 = vpop.f32.mrb[0].mxu0
        %2551 = vmatprep.mubr.f32.mxu0 0.0
        %2552 = vmatmul.mubr.f32.gmra.mrb[0].mxu0 %v2369
        %v2553 = vpop.f32.mrb[0].mxu0
        %v2554 = vadd.f32 0.0, %v2553
        %v2555 = vpop.f32.mrb[0].mxu0
        %2556 = vmatprep.mubr.f32.mxu0 0.0
        %2557 = vmatmul.mubr.f32.gmra.mrb[0].mxu0 %v2368
        %v2558 = vpop.f32.mrb[0].mxu0
        %v2559 = vadd.f32 0.0, %v2558
        %v2560 = vpop.f32.mrb[0].mxu0
        %2561 = vmatprep.mubr.f32.mxu0 0.0
        %2562 = vmatmul.mubr.f32.gmra.mrb[0].mxu0 %v2367
        %v2563 = vpop.f32.mrb[0].mxu0
        %v2564 = vadd.f32 0.0, %v2563
        %v2565 = vpop.f32.mrb[0].mxu0
        %2566 = vmatprep.mubr.f32.mxu0 0.0
        %2567 = vmatmul.mubr.f32.gmra.mrb[0].mxu0 %v2366
        %v2568 = vpop.f32.mrb[0].mxu0
        %v2569 = vadd.f32 0.0, %v2568
        %v2570 = vpop.f32.mrb[0].mxu0
        %2571 = vmatprep.mubr.f32.mxu0 0.0
        %2572 = vmatmul.mubr.f32.gmra.mrb[0].mxu0 %v2365
        %v2573 = vpop.f32.mrb[0].mxu0
        %v2574 = vadd.f32 0.0, %v2573
        %v2575 = vpop.f32.mrb[0].mxu0
        %2576 = vmatprep.mubr.f32.mxu0 0.0
        %2577 = vmatmul.mubr.f32.gmra.mrb[0].mxu0 %v2364
        %v2578 = vpop.f32.mrb[0].mxu0
        %v2579 = vadd.f32 0.0, %v2578
        %v2580 = vpop.f32.mrb[0].mxu0
        %2581 = vmatprep.mubr.f32.mxu0 0.0
        %2582 = vmatmul.mubr.f32.gmra.mrb[0].mxu0 %v2363
        %v2583 = vpop.f32.mrb[0].mxu0
        %v2584 = vadd.f32 0.0, %v2583
        %v2585 = vpop.f32.mrb[0].mxu0
        %2586 = vmatprep.mubr.f32.mxu0 0.0
        %2587 = vmatmul.mubr.f32.gmra.mrb[0].mxu0 %v2362
        %v2588 = vpop.f32.mrb[0].mxu0
        %v2589 = vadd.f32 0.0, %v2588
        %v2590 = vpop.f32.mrb[0].mxu0
        %2591 = vmatprep.mubr.f32.mxu0 0.0
        %2592 = vmatmul.mubr.f32.gmra.mrb[0].mxu0 %v2361
        %v2593 = vpop.f32.mrb[0].mxu0
        %v2594 = vadd.f32 0.0, %v2593
        %v2595 = vpop.f32.mrb[0].mxu0
        %2596 = vmatprep.mubr.f32.mxu0 0.0
        %2597 = vmatmul.mubr.f32.gmra.mrb[0].mxu0 %v2360
        %v2598 = vpop.f32.mrb[0].mxu0
        %v2599 = vadd.f32 0.0, %v2598
        %v2600 = vpop.f32.mrb[0].mxu0
        %2601 = vmatprep.mubr.f32.mxu0 0.0
        %2602 = vmatmul.mubr.f32.gmra.mrb[0].mxu0 %v2359
        %v2603 = vpop.f32.mrb[0].mxu0
        %v2604 = vadd.f32 0.0, %v2603
        %v2605 = vpop.f32.mrb[0].mxu0
        %2606 = vmatprep.mubr.f32.mxu0 0.0
        %2607 = vmatmul.mubr.f32.gmra.mrb[0].mxu0 %v2358
        %v2608 = vpop.f32.mrb[0].mxu0
        %v2609 = vadd.f32 0.0, %v2608
        %v2610 = vpop.f32.mrb[0].mxu0
        %2611 = vmatprep.mubr.f32.mxu0 0.0
        %2612 = vmatmul.mubr.f32.gmra.mrb[0].mxu0 %v2357
        %v2613 = vpop.f32.mrb[0].mxu0
        %v2614 = vadd.f32 0.0, %v2613
        %v2615 = vpop.f32.mrb[0].mxu0
        %2616 = vmatprep.mubr.f32.mxu0 0.0
        %2617 = vmatmul.mubr.f32.gmra.mrb[0].mxu0 %v2354
        %v2618 = vpop.f32.mrb[0].mxu0
        %v2619 = vadd.f32 0.0, %v2618
        %v2620 = vpop.f32.mrb[0].mxu0
        %2621 = vmatprep.mubr.f32.mxu0 0.0
        %2622 = vmatmul.mubr.f32.gmra.mrb[0].mxu0 %v2353
        %v2623 = vpop.f32.mrb[0].mxu0
        %v2624 = vadd.f32 0.0, %v2623
        %v2625 = vpop.f32.mrb[0].mxu0
        %2626 = vdwg.mxu0
        %v2627 = vadd.f32 %v2272, %v2469
        %v2628 = vadd.f32 %v2273, %v2474
        %v2629 = vadd.f32 %v2274, %v2479
        %v2630 = vadd.f32 %v2275, %v2484
        %v2631 = vadd.f32 %v2276, %v2489
        %v2632 = vadd.f32 %v2277, %v2494
        %v2633 = vadd.f32 %v2278, %v2499
        %v2634 = vadd.f32 %v2279, %v2504
        %v2635 = vadd.f32 %v2280, %v2509
        %v2636 = vadd.f32 %v2281, %v2514
        %v2637 = vadd.f32 %v2282, %v2519
        %v2638 = vadd.f32 %v2283, %v2524
        %v2639 = vadd.f32 %v2284, %v2529
        %v2640 = vadd.f32 %v2285, %v2534
        %v2641 = vadd.f32 %v2286, %v2539
        %v2642 = vadd.f32 %v2287, %v2544
        %v2643 = vadd.f32 %v2288, %v2549
        %v2644 = vadd.f32 %v2289, %v2554
        %v2645 = vadd.f32 %v2290, %v2559
        %v2646 = vadd.f32 %v2291, %v2564
        %v2647 = vadd.f32 %v2292, %v2569
        %v2648 = vadd.f32 %v2293, %v2574
        %v2649 = vadd.f32 %v2294, %v2579
        %v2650 = vadd.f32 %v2295, %v2584
        %v2651 = vadd.f32 %v2296, %v2589
        %v2652 = vadd.f32 %v2297, %v2594
        %v2653 = vadd.f32 %v2298, %v2599
        %v2654 = vadd.f32 %v2299, %v2604
        %v2655 = vadd.f32 %v2300, %v2609
        %v2656 = vadd.f32 %v2301, %v2614
        %v2657 = vadd.f32 %v2302, %v2619
        %v2658 = vadd.f32 %v2303, %v2624
        %s2659 = scalar_lea.vmem [#allocation5], 640
        %v2660 = vld [vmem:[%s2659] sm:$0xff]
        %v2661 = vld [vmem:[%s2659 + $0x8] sm:$0xff]
        %v2662 = vld [vmem:[%s2659 + $0x10] sm:$0xff]
        %v2663 = vld [vmem:[%s2659 + $0x18] sm:$0xff]
        %v2664 = vld [vmem:[%s2659 + $0x20] sm:$0xff]
        %v2665 = vld [vmem:[%s2659 + $0x28] sm:$0xff]
        %v2666 = vld [vmem:[%s2659 + $0x30] sm:$0xff]
        %v2667 = vld [vmem:[%s2659 + $0x38] sm:$0xff]
        %v2668 = vld [vmem:[%s2659 + $0x40] sm:$0xff]
        %v2669 = vld [vmem:[%s2659 + $0x48] sm:$0xff]
        %v2670 = vld [vmem:[%s2659 + $0x50] sm:$0xff]
        %v2671 = vld [vmem:[%s2659 + $0x58] sm:$0xff]
        %v2672 = vld [vmem:[%s2659 + $0x60] sm:$0xff]
        %v2673 = vld [vmem:[%s2659 + $0x68] sm:$0xff]
        %v2674 = vld [vmem:[%s2659 + $0x70] sm:$0xff]
        %v2675 = vld [vmem:[%s2659 + $0x78] sm:$0xff]
        %2676 = vmatprep.subr.mxu0 0.0
        %2677 = vmatpush1.msra.mxu0 %v2660
        %2678 = vmatprep.subr.mxu0 0.0
        %2679 = vmatpush1.msra.mxu0 %v2661
        %2680 = vmatprep.subr.mxu0 0.0
        %2681 = vmatpush1.msra.mxu0 %v2662
        %2682 = vmatprep.subr.mxu0 0.0
        %2683 = vmatpush1.msra.mxu0 %v2663
        %2684 = vmatprep.subr.mxu0 0.0
        %2685 = vmatpush1.msra.mxu0 %v2664
        %2686 = vmatprep.subr.mxu0 0.0
        %2687 = vmatpush1.msra.mxu0 %v2665
        %2688 = vmatprep.subr.mxu0 0.0
        %2689 = vmatpush1.msra.mxu0 %v2666
        %2690 = vmatprep.subr.mxu0 0.0
        %2691 = vmatpush1.msra.mxu0 %v2667
        %2692 = vmatprep.subr.mxu0 0.0
        %2693 = vmatpush1.msra.mxu0 %v2668
        %2694 = vmatprep.subr.mxu0 0.0
        %2695 = vmatpush1.msra.mxu0 %v2669
        %2696 = vmatprep.subr.mxu0 0.0
        %2697 = vmatpush1.msra.mxu0 %v2670
        %2698 = vmatprep.subr.mxu0 0.0
        %2699 = vmatpush1.msra.mxu0 %v2671
        %2700 = vmatprep.subr.mxu0 0.0
        %2701 = vmatpush1.msra.mxu0 %v2672
        %2702 = vmatprep.subr.mxu0 0.0
        %2703 = vmatpush1.msra.mxu0 %v2673
        %2704 = vmatprep.subr.mxu0 0.0
        %2705 = vmatpush1.msra.mxu0 %v2674
        %2706 = vmatprep.subr.mxu0 0.0
        %2707 = vmatpush1.msra.mxu0 %v2675
        %2708 = vmatprep.subr.mxu0 0.0
        %2709 = vmatpush1.msra.mxu0 0.0
        %2710 = vmatprep.subr.mxu0 0.0
        %2711 = vmatpush1.msra.mxu0 0.0
        %2712 = vmatprep.subr.mxu0 0.0
        %2713 = vmatpush1.msra.mxu0 0.0
        %2714 = vmatprep.subr.mxu0 0.0
        %2715 = vmatpush1.msra.mxu0 0.0
        %2716 = vmatprep.subr.mxu0 0.0
        %2717 = vmatpush1.msra.mxu0 0.0
        %2718 = vmatprep.subr.mxu0 0.0
        %2719 = vmatpush1.msra.mxu0 0.0
        %2720 = vmatprep.subr.mxu0 0.0
        %2721 = vmatpush1.msra.mxu0 0.0
        %2722 = vmatprep.subr.mxu0 0.0
        %2723 = vmatpush1.msra.mxu0 0.0
        %2724 = vmatprep.subr.mxu0 0.0
        %2725 = vmatpush1.msra.mxu0 0.0
        %2726 = vmatprep.subr.mxu0 0.0
        %2727 = vmatpush1.msra.mxu0 0.0
        %2728 = vmatprep.subr.mxu0 0.0
        %2729 = vmatpush1.msra.mxu0 0.0
        %2730 = vmatprep.subr.mxu0 0.0
        %2731 = vmatpush1.msra.mxu0 0.0
        %2732 = vmatprep.subr.mxu0 0.0
        %2733 = vmatpush1.msra.mxu0 0.0
        %2734 = vmatprep.subr.mxu0 0.0
        %2735 = vmatpush1.msra.mxu0 0.0
        %2736 = vmatprep.subr.mxu0 0.0
        %2737 = vmatpush1.msra.mxu0 0.0
        %2738 = vmatprep.subr.mxu0 0.0
        %2739 = vmatpush1.msra.mxu0 0.0
        %2740 = vmatprep.mubr.f32.mxu0 0.0
        %2741 = vmatmul.mubr.f32.gmra.mrb[0].mxu0 %v2384
        %v2742 = vpop.f32.mrb[0].mxu0
        %v2743 = vadd.f32 0.0, %v2742
        %v2744 = vpop.f32.mrb[0].mxu0
        %2745 = vmatprep.mubr.f32.mxu0 0.0
        %2746 = vmatmul.mubr.f32.gmra.mrb[0].mxu0 %v2383
        %v2747 = vpop.f32.mrb[0].mxu0
        %v2748 = vadd.f32 0.0, %v2747
        %v2749 = vpop.f32.mrb[0].mxu0
        %2750 = vmatprep.mubr.f32.mxu0 0.0
        %2751 = vmatmul.mubr.f32.gmra.mrb[0].mxu0 %v2382
        %v2752 = vpop.f32.mrb[0].mxu0
        %v2753 = vadd.f32 0.0, %v2752
        %v2754 = vpop.f32.mrb[0].mxu0
        %2755 = vmatprep.mubr.f32.mxu0 0.0
        %2756 = vmatmul.mubr.f32.gmra.mrb[0].mxu0 %v2381
        %v2757 = vpop.f32.mrb[0].mxu0
        %v2758 = vadd.f32 0.0, %v2757
        %v2759 = vpop.f32.mrb[0].mxu0
        %2760 = vmatprep.mubr.f32.mxu0 0.0
        %2761 = vmatmul.mubr.f32.gmra.mrb[0].mxu0 %v2380
        %v2762 = vpop.f32.mrb[0].mxu0
        %v2763 = vadd.f32 0.0, %v2762
        %v2764 = vpop.f32.mrb[0].mxu0
        %2765 = vmatprep.mubr.f32.mxu0 0.0
        %2766 = vmatmul.mubr.f32.gmra.mrb[0].mxu0 %v2379
        %v2767 = vpop.f32.mrb[0].mxu0
        %v2768 = vadd.f32 0.0, %v2767
        %v2769 = vpop.f32.mrb[0].mxu0
        %2770 = vmatprep.mubr.f32.mxu0 0.0
        %2771 = vmatmul.mubr.f32.gmra.mrb[0].mxu0 %v2378
        %v2772 = vpop.f32.mrb[0].mxu0
        %v2773 = vadd.f32 0.0, %v2772
        %v2774 = vpop.f32.mrb[0].mxu0
        %2775 = vmatprep.mubr.f32.mxu0 0.0
        %2776 = vmatmul.mubr.f32.gmra.mrb[0].mxu0 %v2377
        %v2777 = vpop.f32.mrb[0].mxu0
        %v2778 = vadd.f32 0.0, %v2777
        %v2779 = vpop.f32.mrb[0].mxu0
        %2780 = vmatprep.mubr.f32.mxu0 0.0
        %2781 = vmatmul.mubr.f32.gmra.mrb[0].mxu0 %v2376
        %v2782 = vpop.f32.mrb[0].mxu0
        %v2783 = vadd.f32 0.0, %v2782
        %v2784 = vpop.f32.mrb[0].mxu0
        %2785 = vmatprep.mubr.f32.mxu0 0.0
        %2786 = vmatmul.mubr.f32.gmra.mrb[0].mxu0 %v2375
        %v2787 = vpop.f32.mrb[0].mxu0
        %v2788 = vadd.f32 0.0, %v2787
        %v2789 = vpop.f32.mrb[0].mxu0
        %2790 = vmatprep.mubr.f32.mxu0 0.0
        %2791 = vmatmul.mubr.f32.gmra.mrb[0].mxu0 %v2374
        %v2792 = vpop.f32.mrb[0].mxu0
        %v2793 = vadd.f32 0.0, %v2792
        %v2794 = vpop.f32.mrb[0].mxu0
        %2795 = vmatprep.mubr.f32.mxu0 0.0
        %2796 = vmatmul.mubr.f32.gmra.mrb[0].mxu0 %v2373
        %v2797 = vpop.f32.mrb[0].mxu0
        %v2798 = vadd.f32 0.0, %v2797
        %v2799 = vpop.f32.mrb[0].mxu0
        %2800 = vmatprep.mubr.f32.mxu0 0.0
        %2801 = vmatmul.mubr.f32.gmra.mrb[0].mxu0 %v2372
        %v2802 = vpop.f32.mrb[0].mxu0
        %v2803 = vadd.f32 0.0, %v2802
        %v2804 = vpop.f32.mrb[0].mxu0
        %2805 = vmatprep.mubr.f32.mxu0 0.0
        %2806 = vmatmul.mubr.f32.gmra.mrb[0].mxu0 %v2371
        %v2807 = vpop.f32.mrb[0].mxu0
        %v2808 = vadd.f32 0.0, %v2807
        %v2809 = vpop.f32.mrb[0].mxu0
        %2810 = vmatprep.mubr.f32.mxu0 0.0
        %2811 = vmatmul.mubr.f32.gmra.mrb[0].mxu0 %v2370
        %v2812 = vpop.f32.mrb[0].mxu0
        %v2813 = vadd.f32 0.0, %v2812
        %v2814 = vpop.f32.mrb[0].mxu0
        %2815 = vmatprep.mubr.f32.mxu0 0.0
        %2816 = vmatmul.mubr.f32.gmra.mrb[0].mxu0 %v2369
        %v2817 = vpop.f32.mrb[0].mxu0
        %v2818 = vadd.f32 0.0, %v2817
        %v2819 = vpop.f32.mrb[0].mxu0
        %2820 = vmatprep.mubr.f32.mxu0 0.0
        %2821 = vmatmul.mubr.f32.gmra.mrb[0].mxu0 %v2368
        %v2822 = vpop.f32.mrb[0].mxu0
        %v2823 = vadd.f32 0.0, %v2822
        %v2824 = vpop.f32.mrb[0].mxu0
        %2825 = vmatprep.mubr.f32.mxu0 0.0
        %2826 = vmatmul.mubr.f32.gmra.mrb[0].mxu0 %v2367
        %v2827 = vpop.f32.mrb[0].mxu0
        %v2828 = vadd.f32 0.0, %v2827
        %v2829 = vpop.f32.mrb[0].mxu0
        %2830 = vmatprep.mubr.f32.mxu0 0.0
        %2831 = vmatmul.mubr.f32.gmra.mrb[0].mxu0 %v2366
        %v2832 = vpop.f32.mrb[0].mxu0
        %v2833 = vadd.f32 0.0, %v2832
        %v2834 = vpop.f32.mrb[0].mxu0
        %2835 = vmatprep.mubr.f32.mxu0 0.0
        %2836 = vmatmul.mubr.f32.gmra.mrb[0].mxu0 %v2365
        %v2837 = vpop.f32.mrb[0].mxu0
        %v2838 = vadd.f32 0.0, %v2837
        %v2839 = vpop.f32.mrb[0].mxu0
        %2840 = vmatprep.mubr.f32.mxu0 0.0
        %2841 = vmatmul.mubr.f32.gmra.mrb[0].mxu0 %v2364
        %v2842 = vpop.f32.mrb[0].mxu0
        %v2843 = vadd.f32 0.0, %v2842
        %v2844 = vpop.f32.mrb[0].mxu0
        %2845 = vmatprep.mubr.f32.mxu0 0.0
        %2846 = vmatmul.mubr.f32.gmra.mrb[0].mxu0 %v2363
        %v2847 = vpop.f32.mrb[0].mxu0
        %v2848 = vadd.f32 0.0, %v2847
        %v2849 = vpop.f32.mrb[0].mxu0
        %2850 = vmatprep.mubr.f32.mxu0 0.0
        %2851 = vmatmul.mubr.f32.gmra.mrb[0].mxu0 %v2362
        %v2852 = vpop.f32.mrb[0].mxu0
        %v2853 = vadd.f32 0.0, %v2852
        %v2854 = vpop.f32.mrb[0].mxu0
        %2855 = vmatprep.mubr.f32.mxu0 0.0
        %2856 = vmatmul.mubr.f32.gmra.mrb[0].mxu0 %v2361
        %v2857 = vpop.f32.mrb[0].mxu0
        %v2858 = vadd.f32 0.0, %v2857
        %v2859 = vpop.f32.mrb[0].mxu0
        %2860 = vmatprep.mubr.f32.mxu0 0.0
        %2861 = vmatmul.mubr.f32.gmra.mrb[0].mxu0 %v2360
        %v2862 = vpop.f32.mrb[0].mxu0
        %v2863 = vadd.f32 0.0, %v2862
        %v2864 = vpop.f32.mrb[0].mxu0
        %2865 = vmatprep.mubr.f32.mxu0 0.0
        %2866 = vmatmul.mubr.f32.gmra.mrb[0].mxu0 %v2359
        %v2867 = vpop.f32.mrb[0].mxu0
        %v2868 = vadd.f32 0.0, %v2867
        %v2869 = vpop.f32.mrb[0].mxu0
        %2870 = vmatprep.mubr.f32.mxu0 0.0
        %2871 = vmatmul.mubr.f32.gmra.mrb[0].mxu0 %v2358
        %v2872 = vpop.f32.mrb[0].mxu0
        %v2873 = vadd.f32 0.0, %v2872
        %v2874 = vpop.f32.mrb[0].mxu0
        %2875 = vmatprep.mubr.f32.mxu0 0.0
        %2876 = vmatmul.mubr.f32.gmra.mrb[0].mxu0 %v2357
        %v2877 = vpop.f32.mrb[0].mxu0
        %v2878 = vadd.f32 0.0, %v2877
        %v2879 = vpop.f32.mrb[0].mxu0
        %2880 = vmatprep.mubr.f32.mxu0 0.0
        %2881 = vmatmul.mubr.f32.gmra.mrb[0].mxu0 %v2354
        %v2882 = vpop.f32.mrb[0].mxu0
        %v2883 = vadd.f32 0.0, %v2882
        %v2884 = vpop.f32.mrb[0].mxu0
        %2885 = vmatprep.mubr.f32.mxu0 0.0
        %2886 = vmatmul.mubr.f32.gmra.mrb[0].mxu0 %v2353
        %v2887 = vpop.f32.mrb[0].mxu0
        %v2888 = vadd.f32 0.0, %v2887
        %v2889 = vpop.f32.mrb[0].mxu0
        %2890 = vmatprep.mubr.f32.mxu0 0.0
        %2891 = vmatmul.mubr.f32.gmra.mrb[0].mxu0 %v2356
        %v2892 = vpop.f32.mrb[0].mxu0
        %v2893 = vadd.f32 0.0, %v2892
        %v2894 = vpop.f32.mrb[0].mxu0
        %2895 = vmatprep.mubr.f32.mxu0 0.0
        %2896 = vmatmul.mubr.f32.gmra.mrb[0].mxu0 %v2355
        %v2897 = vpop.f32.mrb[0].mxu0
        %v2898 = vadd.f32 0.0, %v2897
        %v2899 = vpop.f32.mrb[0].mxu0
        %2900 = vdwg.mxu0
        %v2901 = vadd.f32 %v2627, %v2743
        %v2902 = vadd.f32 %v2628, %v2748
        %v2903 = vadd.f32 %v2629, %v2753
        %v2904 = vadd.f32 %v2630, %v2758
        %v2905 = vadd.f32 %v2631, %v2763
        %v2906 = vadd.f32 %v2632, %v2768
        %v2907 = vadd.f32 %v2633, %v2773
        %v2908 = vadd.f32 %v2634, %v2778
        %v2909 = vadd.f32 %v2635, %v2783
        %v2910 = vadd.f32 %v2636, %v2788
        %v2911 = vadd.f32 %v2637, %v2793
        %v2912 = vadd.f32 %v2638, %v2798
        %v2913 = vadd.f32 %v2639, %v2803
        %v2914 = vadd.f32 %v2640, %v2808
        %v2915 = vadd.f32 %v2641, %v2813
        %v2916 = vadd.f32 %v2642, %v2818
        %v2917 = vadd.f32 %v2643, %v2823
        %v2918 = vadd.f32 %v2644, %v2828
        %v2919 = vadd.f32 %v2645, %v2833
        %v2920 = vadd.f32 %v2646, %v2838
        %v2921 = vadd.f32 %v2647, %v2843
        %v2922 = vadd.f32 %v2648, %v2848
        %v2923 = vadd.f32 %v2649, %v2853
        %v2924 = vadd.f32 %v2650, %v2858
        %v2925 = vadd.f32 %v2651, %v2863
        %v2926 = vadd.f32 %v2652, %v2868
        %v2927 = vadd.f32 %v2653, %v2873
        %v2928 = vadd.f32 %v2654, %v2878
        %v2929 = vadd.f32 %v2655, %v2883
        %v2930 = vadd.f32 %v2656, %v2888
        %v2931 = vadd.f32 %v2657, %v2893
        %v2932 = vadd.f32 %v2658, %v2898
        %s2933 = scalar_lea.vmem [#allocation5], 1024
        %v2934 = vld [vmem:[%s2933] sm:$0xff]
        %v2935 = vld [vmem:[%s2933 + $0x8] sm:$0xff]
        %v2936 = vld [vmem:[%s2933 + $0x10] sm:$0xff]
        %v2937 = vld [vmem:[%s2933 + $0x18] sm:$0xff]
        %v2938 = vld [vmem:[%s2933 + $0x20] sm:$0xff]
        %v2939 = vld [vmem:[%s2933 + $0x28] sm:$0xff]
        %v2940 = vld [vmem:[%s2933 + $0x30] sm:$0xff]
        %v2941 = vld [vmem:[%s2933 + $0x38] sm:$0xff]
        %v2942 = vld [vmem:[%s2933 + $0x40] sm:$0xff]
        %v2943 = vld [vmem:[%s2933 + $0x48] sm:$0xff]
        %v2944 = vld [vmem:[%s2933 + $0x50] sm:$0xff]
        %v2945 = vld [vmem:[%s2933 + $0x58] sm:$0xff]
        %v2946 = vld [vmem:[%s2933 + $0x60] sm:$0xff]
        %v2947 = vld [vmem:[%s2933 + $0x68] sm:$0xff]
        %v2948 = vld [vmem:[%s2933 + $0x70] sm:$0xff]
        %v2949 = vld [vmem:[%s2933 + $0x78] sm:$0xff]
        %2950 = vmatprep.subr.mxu0 0.0
        %2951 = vmatpush1.msra.mxu0 %v2934
        %2952 = vmatprep.subr.mxu0 0.0
        %2953 = vmatpush1.msra.mxu0 %v2935
        %2954 = vmatprep.subr.mxu0 0.0
        %2955 = vmatpush1.msra.mxu0 %v2936
        %2956 = vmatprep.subr.mxu0 0.0
        %2957 = vmatpush1.msra.mxu0 %v2937
        %2958 = vmatprep.subr.mxu0 0.0
        %2959 = vmatpush1.msra.mxu0 %v2938
        %2960 = vmatprep.subr.mxu0 0.0
        %2961 = vmatpush1.msra.mxu0 %v2939
        %2962 = vmatprep.subr.mxu0 0.0
        %2963 = vmatpush1.msra.mxu0 %v2940
        %2964 = vmatprep.subr.mxu0 0.0
        %2965 = vmatpush1.msra.mxu0 %v2941
        %2966 = vmatprep.subr.mxu0 0.0
        %2967 = vmatpush1.msra.mxu0 %v2942
        %2968 = vmatprep.subr.mxu0 0.0
        %2969 = vmatpush1.msra.mxu0 %v2943
        %2970 = vmatprep.subr.mxu0 0.0
        %2971 = vmatpush1.msra.mxu0 %v2944
        %2972 = vmatprep.subr.mxu0 0.0
        %2973 = vmatpush1.msra.mxu0 %v2945
        %2974 = vmatprep.subr.mxu0 0.0
        %2975 = vmatpush1.msra.mxu0 %v2946
        %2976 = vmatprep.subr.mxu0 0.0
        %2977 = vmatpush1.msra.mxu0 %v2947
        %2978 = vmatprep.subr.mxu0 0.0
        %2979 = vmatpush1.msra.mxu0 %v2948
        %2980 = vmatprep.subr.mxu0 0.0
        %2981 = vmatpush1.msra.mxu0 %v2949
        %2982 = vmatprep.subr.mxu0 0.0
        %2983 = vmatpush1.msra.mxu0 0.0
        %2984 = vmatprep.subr.mxu0 0.0
        %2985 = vmatpush1.msra.mxu0 0.0
        %2986 = vmatprep.subr.mxu0 0.0
        %2987 = vmatpush1.msra.mxu0 0.0
        %2988 = vmatprep.subr.mxu0 0.0
        %2989 = vmatpush1.msra.mxu0 0.0
        %2990 = vmatprep.subr.mxu0 0.0
        %2991 = vmatpush1.msra.mxu0 0.0
        %2992 = vmatprep.subr.mxu0 0.0
        %2993 = vmatpush1.msra.mxu0 0.0
        %2994 = vmatprep.subr.mxu0 0.0
        %2995 = vmatpush1.msra.mxu0 0.0
        %2996 = vmatprep.subr.mxu0 0.0
        %2997 = vmatpush1.msra.mxu0 0.0
        %2998 = vmatprep.subr.mxu0 0.0
        %2999 = vmatpush1.msra.mxu0 0.0
        %3000 = vmatprep.subr.mxu0 0.0
        %3001 = vmatpush1.msra.mxu0 0.0
        %3002 = vmatprep.subr.mxu0 0.0
        %3003 = vmatpush1.msra.mxu0 0.0
        %3004 = vmatprep.subr.mxu0 0.0
        %3005 = vmatpush1.msra.mxu0 0.0
        %3006 = vmatprep.subr.mxu0 0.0
        %3007 = vmatpush1.msra.mxu0 0.0
        %3008 = vmatprep.subr.mxu0 0.0
        %3009 = vmatpush1.msra.mxu0 0.0
        %3010 = vmatprep.subr.mxu0 0.0
        %3011 = vmatpush1.msra.mxu0 0.0
        %3012 = vmatprep.subr.mxu0 0.0
        %3013 = vmatpush1.msra.mxu0 0.0
        %3014 = vmatprep.mubr.f32.mxu0 0.0
        %3015 = vmatmul.mubr.f32.gmra.mrb[0].mxu0 %v2382
        %v3016 = vpop.f32.mrb[0].mxu0
        %v3017 = vadd.f32 0.0, %v3016
        %v3018 = vpop.f32.mrb[0].mxu0
        %3019 = vmatprep.mubr.f32.mxu0 0.0
        %3020 = vmatmul.mubr.f32.gmra.mrb[0].mxu0 %v2381
        %v3021 = vpop.f32.mrb[0].mxu0
        %v3022 = vadd.f32 0.0, %v3021
        %v3023 = vpop.f32.mrb[0].mxu0
        %3024 = vmatprep.mubr.f32.mxu0 0.0
        %3025 = vmatmul.mubr.f32.gmra.mrb[0].mxu0 %v2380
        %v3026 = vpop.f32.mrb[0].mxu0
        %v3027 = vadd.f32 0.0, %v3026
        %v3028 = vpop.f32.mrb[0].mxu0
        %3029 = vmatprep.mubr.f32.mxu0 0.0
        %3030 = vmatmul.mubr.f32.gmra.mrb[0].mxu0 %v2379
        %v3031 = vpop.f32.mrb[0].mxu0
        %v3032 = vadd.f32 0.0, %v3031
        %v3033 = vpop.f32.mrb[0].mxu0
        %3034 = vmatprep.mubr.f32.mxu0 0.0
        %3035 = vmatmul.mubr.f32.gmra.mrb[0].mxu0 %v2378
        %v3036 = vpop.f32.mrb[0].mxu0
        %v3037 = vadd.f32 0.0, %v3036
        %v3038 = vpop.f32.mrb[0].mxu0
        %3039 = vmatprep.mubr.f32.mxu0 0.0
        %3040 = vmatmul.mubr.f32.gmra.mrb[0].mxu0 %v2377
        %v3041 = vpop.f32.mrb[0].mxu0
        %v3042 = vadd.f32 0.0, %v3041
        %v3043 = vpop.f32.mrb[0].mxu0
        %3044 = vmatprep.mubr.f32.mxu0 0.0
        %3045 = vmatmul.mubr.f32.gmra.mrb[0].mxu0 %v2376
        %v3046 = vpop.f32.mrb[0].mxu0
        %v3047 = vadd.f32 0.0, %v3046
        %v3048 = vpop.f32.mrb[0].mxu0
        %3049 = vmatprep.mubr.f32.mxu0 0.0
        %3050 = vmatmul.mubr.f32.gmra.mrb[0].mxu0 %v2375
        %v3051 = vpop.f32.mrb[0].mxu0
        %v3052 = vadd.f32 0.0, %v3051
        %v3053 = vpop.f32.mrb[0].mxu0
        %3054 = vmatprep.mubr.f32.mxu0 0.0
        %3055 = vmatmul.mubr.f32.gmra.mrb[0].mxu0 %v2374
        %v3056 = vpop.f32.mrb[0].mxu0
        %v3057 = vadd.f32 0.0, %v3056
        %v3058 = vpop.f32.mrb[0].mxu0
        %3059 = vmatprep.mubr.f32.mxu0 0.0
        %3060 = vmatmul.mubr.f32.gmra.mrb[0].mxu0 %v2373
        %v3061 = vpop.f32.mrb[0].mxu0
        %v3062 = vadd.f32 0.0, %v3061
        %v3063 = vpop.f32.mrb[0].mxu0
        %3064 = vmatprep.mubr.f32.mxu0 0.0
        %3065 = vmatmul.mubr.f32.gmra.mrb[0].mxu0 %v2372
        %v3066 = vpop.f32.mrb[0].mxu0
        %v3067 = vadd.f32 0.0, %v3066
        %v3068 = vpop.f32.mrb[0].mxu0
        %3069 = vmatprep.mubr.f32.mxu0 0.0
        %3070 = vmatmul.mubr.f32.gmra.mrb[0].mxu0 %v2371
        %v3071 = vpop.f32.mrb[0].mxu0
        %v3072 = vadd.f32 0.0, %v3071
        %v3073 = vpop.f32.mrb[0].mxu0
        %3074 = vmatprep.mubr.f32.mxu0 0.0
        %3075 = vmatmul.mubr.f32.gmra.mrb[0].mxu0 %v2370
        %v3076 = vpop.f32.mrb[0].mxu0
        %v3077 = vadd.f32 0.0, %v3076
        %v3078 = vpop.f32.mrb[0].mxu0
        %3079 = vmatprep.mubr.f32.mxu0 0.0
        %3080 = vmatmul.mubr.f32.gmra.mrb[0].mxu0 %v2369
        %v3081 = vpop.f32.mrb[0].mxu0
        %v3082 = vadd.f32 0.0, %v3081
        %v3083 = vpop.f32.mrb[0].mxu0
        %3084 = vmatprep.mubr.f32.mxu0 0.0
        %3085 = vmatmul.mubr.f32.gmra.mrb[0].mxu0 %v2368
        %v3086 = vpop.f32.mrb[0].mxu0
        %v3087 = vadd.f32 0.0, %v3086
        %v3088 = vpop.f32.mrb[0].mxu0
        %3089 = vmatprep.mubr.f32.mxu0 0.0
        %3090 = vmatmul.mubr.f32.gmra.mrb[0].mxu0 %v2367
        %v3091 = vpop.f32.mrb[0].mxu0
        %v3092 = vadd.f32 0.0, %v3091
        %v3093 = vpop.f32.mrb[0].mxu0
        %3094 = vmatprep.mubr.f32.mxu0 0.0
        %3095 = vmatmul.mubr.f32.gmra.mrb[0].mxu0 %v2366
        %v3096 = vpop.f32.mrb[0].mxu0
        %v3097 = vadd.f32 0.0, %v3096
        %v3098 = vpop.f32.mrb[0].mxu0
        %3099 = vmatprep.mubr.f32.mxu0 0.0
        %3100 = vmatmul.mubr.f32.gmra.mrb[0].mxu0 %v2365
        %v3101 = vpop.f32.mrb[0].mxu0
        %v3102 = vadd.f32 0.0, %v3101
        %v3103 = vpop.f32.mrb[0].mxu0
        %3104 = vmatprep.mubr.f32.mxu0 0.0
        %3105 = vmatmul.mubr.f32.gmra.mrb[0].mxu0 %v2364
        %v3106 = vpop.f32.mrb[0].mxu0
        %v3107 = vadd.f32 0.0, %v3106
        %v3108 = vpop.f32.mrb[0].mxu0
        %3109 = vmatprep.mubr.f32.mxu0 0.0
        %3110 = vmatmul.mubr.f32.gmra.mrb[0].mxu0 %v2363
        %v3111 = vpop.f32.mrb[0].mxu0
        %v3112 = vadd.f32 0.0, %v3111
        %v3113 = vpop.f32.mrb[0].mxu0
        %3114 = vmatprep.mubr.f32.mxu0 0.0
        %3115 = vmatmul.mubr.f32.gmra.mrb[0].mxu0 %v2362
        %v3116 = vpop.f32.mrb[0].mxu0
        %v3117 = vadd.f32 0.0, %v3116
        %v3118 = vpop.f32.mrb[0].mxu0
        %3119 = vmatprep.mubr.f32.mxu0 0.0
        %3120 = vmatmul.mubr.f32.gmra.mrb[0].mxu0 %v2361
        %v3121 = vpop.f32.mrb[0].mxu0
        %v3122 = vadd.f32 0.0, %v3121
        %v3123 = vpop.f32.mrb[0].mxu0
        %3124 = vmatprep.mubr.f32.mxu0 0.0
        %3125 = vmatmul.mubr.f32.gmra.mrb[0].mxu0 %v2360
        %v3126 = vpop.f32.mrb[0].mxu0
        %v3127 = vadd.f32 0.0, %v3126
        %v3128 = vpop.f32.mrb[0].mxu0
        %3129 = vmatprep.mubr.f32.mxu0 0.0
        %3130 = vmatmul.mubr.f32.gmra.mrb[0].mxu0 %v2359
        %v3131 = vpop.f32.mrb[0].mxu0
        %v3132 = vadd.f32 0.0, %v3131
        %v3133 = vpop.f32.mrb[0].mxu0
        %3134 = vmatprep.mubr.f32.mxu0 0.0
        %3135 = vmatmul.mubr.f32.gmra.mrb[0].mxu0 %v2358
        %v3136 = vpop.f32.mrb[0].mxu0
        %v3137 = vadd.f32 0.0, %v3136
        %v3138 = vpop.f32.mrb[0].mxu0
        %3139 = vmatprep.mubr.f32.mxu0 0.0
        %3140 = vmatmul.mubr.f32.gmra.mrb[0].mxu0 %v2357
        %v3141 = vpop.f32.mrb[0].mxu0
        %v3142 = vadd.f32 0.0, %v3141
        %v3143 = vpop.f32.mrb[0].mxu0
        %3144 = vmatprep.mubr.f32.mxu0 0.0
        %3145 = vmatmul.mubr.f32.gmra.mrb[0].mxu0 %v2354
        %v3146 = vpop.f32.mrb[0].mxu0
        %v3147 = vadd.f32 0.0, %v3146
        %v3148 = vpop.f32.mrb[0].mxu0
        %3149 = vmatprep.mubr.f32.mxu0 0.0
        %3150 = vmatmul.mubr.f32.gmra.mrb[0].mxu0 %v2353
        %v3151 = vpop.f32.mrb[0].mxu0
        %v3152 = vadd.f32 0.0, %v3151
        %v3153 = vpop.f32.mrb[0].mxu0
        %3154 = vmatprep.mubr.f32.mxu0 0.0
        %3155 = vmatmul.mubr.f32.gmra.mrb[0].mxu0 %v2356
        %v3156 = vpop.f32.mrb[0].mxu0
        %v3157 = vadd.f32 0.0, %v3156
        %v3158 = vpop.f32.mrb[0].mxu0
        %3159 = vmatprep.mubr.f32.mxu0 0.0
        %3160 = vmatmul.mubr.f32.gmra.mrb[0].mxu0 %v2355
        %v3161 = vpop.f32.mrb[0].mxu0
        %v3162 = vadd.f32 0.0, %v3161
        %v3163 = vpop.f32.mrb[0].mxu0
        %3164 = vmatprep.mubr.f32.mxu0 0.0
        %3165 = vmatmul.mubr.f32.gmra.mrb[0].mxu0 %v2354
        %v3166 = vpop.f32.mrb[0].mxu0
        %v3167 = vadd.f32 0.0, %v3166
        %v3168 = vpop.f32.mrb[0].mxu0
        %3169 = vmatprep.mubr.f32.mxu0 0.0
        %3170 = vmatmul.mubr.f32.gmra.mrb[0].mxu0 %v2353
        %v3171 = vpop.f32.mrb[0].mxu0
        %v3172 = vadd.f32 0.0, %v3171
        %v3173 = vpop.f32.mrb[0].mxu0
        %3174 = vdwg.mxu0
        %v3175 = vadd.f32 %v2901, %v3017
        %v3176 = vadd.f32 %v2902, %v3022
        %v3177 = vadd.f32 %v2903, %v3027
        %v3178 = vadd.f32 %v2904, %v3032
        %v3179 = vadd.f32 %v2905, %v3037
        %v3180 = vadd.f32 %v2906, %v3042
        %v3181 = vadd.f32 %v2907, %v3047
        %v3182 = vadd.f32 %v2908, %v3052
        %v3183 = vadd.f32 %v2909, %v3057
        %v3184 = vadd.f32 %v2910, %v3062
        %v3185 = vadd.f32 %v2911, %v3067
        %v3186 = vadd.f32 %v2912, %v3072
        %v3187 = vadd.f32 %v2913, %v3077
        %v3188 = vadd.f32 %v2914, %v3082
        %v3189 = vadd.f32 %v2915, %v3087
        %v3190 = vadd.f32 %v2916, %v3092
        %v3191 = vadd.f32 %v2917, %v3097
        %v3192 = vadd.f32 %v2918, %v3102
        %v3193 = vadd.f32 %v2919, %v3107
        %v3194 = vadd.f32 %v2920, %v3112
        %v3195 = vadd.f32 %v2921, %v3117
        %v3196 = vadd.f32 %v2922, %v3122
        %v3197 = vadd.f32 %v2923, %v3127
        %v3198 = vadd.f32 %v2924, %v3132
        %v3199 = vadd.f32 %v2925, %v3137
        %v3200 = vadd.f32 %v2926, %v3142
        %v3201 = vadd.f32 %v2927, %v3147
        %v3202 = vadd.f32 %v2928, %v3152
        %v3203 = vadd.f32 %v2929, %v3157
        %v3204 = vadd.f32 %v2930, %v3162
        %v3205 = vadd.f32 %v2931, %v3167
        %v3206 = vadd.f32 %v2932, %v3172
        %v3207 = vadd.f32 %v3175, %v3176
        %v3208 = vadd.f32 %v3207, %v3177
        %v3209 = vadd.f32 %v3208, %v3178
        %v3210 = vadd.f32 %v3209, %v3179
        %v3211 = vadd.f32 %v3210, %v3180
        %v3212 = vadd.f32 %v3211, %v3181
        %v3213 = vadd.f32 %v3212, %v3182
        %v3214 = vadd.f32 %v3213, %v3183
        %v3215 = vadd.f32 %v3214, %v3184
        %v3216 = vadd.f32 %v3215, %v3185
        %v3217 = vadd.f32 %v3216, %v3186
        %v3218 = vadd.f32 %v3217, %v3187
        %v3219 = vadd.f32 %v3218, %v3188
        %v3220 = vadd.f32 %v3219, %v3189
        %v3221 = vadd.f32 %v3220, %v3190
        %v3222 = vadd.f32 %v3221, %v3191
        %v3223 = vadd.f32 %v3222, %v3192
        %v3224 = vadd.f32 %v3223, %v3193
        %v3225 = vadd.f32 %v3224, %v3194
        %v3226 = vadd.f32 %v3225, %v3195
        %v3227 = vadd.f32 %v3226, %v3196
        %v3228 = vadd.f32 %v3227, %v3197
        %v3229 = vadd.f32 %v3228, %v3198
        %v3230 = vadd.f32 %v3229, %v3199
        %v3231 = vadd.f32 %v3230, %v3200
        %v3232 = vadd.f32 %v3231, %v3201
        %v3233 = vadd.f32 %v3232, %v3202
        %v3234 = vadd.f32 %v3233, %v3203
        %v3235 = vadd.f32 %v3234, %v3204
        %v3236 = vadd.f32 %v3235, %v3205
        %v3237 = vadd.f32 %v3236, %v3206
        %v3238 = vrot.slane %v3237, 4
        %v3239 = vadd.f32 %v3237, %v3238
        %v3240 = vrot.slane %v3239, 2
        %v3241 = vadd.f32 %v3239, %v3240
        %v3242 = vrot.slane %v3241, 1
        %v3243 = vadd.f32 %v3241, %v3242
        %v3244 = vrcp.pop 256.0
        %v3245 = vmul.f32 %v3243, %v3244
        %v3246 = vsub.f32 %v3175, %v3245
        %v3247 = vsub.f32 %v3176, %v3245
        %v3248 = vsub.f32 %v3177, %v3245
        %v3249 = vsub.f32 %v3178, %v3245
        %v3250 = vsub.f32 %v3179, %v3245
        %v3251 = vsub.f32 %v3180, %v3245
        %v3252 = vsub.f32 %v3181, %v3245
        %v3253 = vsub.f32 %v3182, %v3245
        %v3254 = vsub.f32 %v3183, %v3245
        %v3255 = vsub.f32 %v3184, %v3245
        %v3256 = vsub.f32 %v3185, %v3245
        %v3257 = vsub.f32 %v3186, %v3245
        %v3258 = vsub.f32 %v3187, %v3245
        %v3259 = vsub.f32 %v3188, %v3245
        %v3260 = vsub.f32 %v3189, %v3245
        %v3261 = vsub.f32 %v3190, %v3245
        %v3262 = vsub.f32 %v3191, %v3245
        %v3263 = vsub.f32 %v3192, %v3245
        %v3264 = vsub.f32 %v3193, %v3245
        %v3265 = vsub.f32 %v3194, %v3245
        %v3266 = vsub.f32 %v3195, %v3245
        %v3267 = vsub.f32 %v3196, %v3245
        %v3268 = vsub.f32 %v3197, %v3245
        %v3269 = vsub.f32 %v3198, %v3245
        %v3270 = vsub.f32 %v3199, %v3245
        %v3271 = vsub.f32 %v3200, %v3245
        %v3272 = vsub.f32 %v3201, %v3245
        %v3273 = vsub.f32 %v3202, %v3245
        %v3274 = vsub.f32 %v3203, %v3245
        %v3275 = vsub.f32 %v3204, %v3245
        %v3276 = vsub.f32 %v3205, %v3245
        %v3277 = vsub.f32 %v3206, %v3245
        %v3278 = vmul.f32 %v3246, %v3246
        %v3279 = vmul.f32 %v3247, %v3247
        %v3280 = vmul.f32 %v3248, %v3248
        %v3281 = vmul.f32 %v3249, %v3249
        %v3282 = vmul.f32 %v3250, %v3250
        %v3283 = vmul.f32 %v3251, %v3251
        %v3284 = vmul.f32 %v3252, %v3252
        %v3285 = vmul.f32 %v3253, %v3253
        %v3286 = vmul.f32 %v3254, %v3254
        %v3287 = vmul.f32 %v3255, %v3255
        %v3288 = vmul.f32 %v3256, %v3256
        %v3289 = vmul.f32 %v3257, %v3257
        %v3290 = vmul.f32 %v3258, %v3258
        %v3291 = vmul.f32 %v3259, %v3259
        %v3292 = vmul.f32 %v3260, %v3260
        %v3293 = vmul.f32 %v3261, %v3261
        %v3294 = vmul.f32 %v3262, %v3262
        %v3295 = vmul.f32 %v3263, %v3263
        %v3296 = vmul.f32 %v3264, %v3264
        %v3297 = vmul.f32 %v3265, %v3265
        %v3298 = vmul.f32 %v3266, %v3266
        %v3299 = vmul.f32 %v3267, %v3267
        %v3300 = vmul.f32 %v3268, %v3268
        %v3301 = vmul.f32 %v3269, %v3269
        %v3302 = vmul.f32 %v3270, %v3270
        %v3303 = vmul.f32 %v3271, %v3271
        %v3304 = vmul.f32 %v3272, %v3272
        %v3305 = vmul.f32 %v3273, %v3273
        %v3306 = vmul.f32 %v3274, %v3274
        %v3307 = vmul.f32 %v3275, %v3275
        %v3308 = vmul.f32 %v3276, %v3276
        %v3309 = vmul.f32 %v3277, %v3277
        %v3310 = vadd.f32 %v3278, %v3279
        %v3311 = vadd.f32 %v3310, %v3280
        %v3312 = vadd.f32 %v3311, %v3281
        %v3313 = vadd.f32 %v3312, %v3282
        %v3314 = vadd.f32 %v3313, %v3283
        %v3315 = vadd.f32 %v3314, %v3284
        %v3316 = vadd.f32 %v3315, %v3285
        %v3317 = vadd.f32 %v3316, %v3286
        %v3318 = vadd.f32 %v3317, %v3287
        %v3319 = vadd.f32 %v3318, %v3288
        %v3320 = vadd.f32 %v3319, %v3289
        %v3321 = vadd.f32 %v3320, %v3290
        %v3322 = vadd.f32 %v3321, %v3291
        %v3323 = vadd.f32 %v3322, %v3292
        %v3324 = vadd.f32 %v3323, %v3293
        %v3325 = vadd.f32 %v3324, %v3294
        %v3326 = vadd.f32 %v3325, %v3295
        %v3327 = vadd.f32 %v3326, %v3296
        %v3328 = vadd.f32 %v3327, %v3297
        %v3329 = vadd.f32 %v3328, %v3298
        %v3330 = vadd.f32 %v3329, %v3299
        %v3331 = vadd.f32 %v3330, %v3300
        %v3332 = vadd.f32 %v3331, %v3301
        %v3333 = vadd.f32 %v3332, %v3302
        %v3334 = vadd.f32 %v3333, %v3303
        %v3335 = vadd.f32 %v3334, %v3304
        %v3336 = vadd.f32 %v3335, %v3305
        %v3337 = vadd.f32 %v3336, %v3306
        %v3338 = vadd.f32 %v3337, %v3307
        %v3339 = vadd.f32 %v3338, %v3308
        %v3340 = vadd.f32 %v3339, %v3309
        %v3341 = vrot.slane %v3340, 4
        %v3342 = vadd.f32 %v3340, %v3341
        %v3343 = vrot.slane %v3342, 2
        %v3344 = vadd.f32 %v3342, %v3343
        %v3345 = vrot.slane %v3344, 1
        %v3346 = vadd.f32 %v3344, %v3345
        %v3347 = vmul.f32 %v3346, %v3244
        %v3348 = vadd.f32 %v3347, 1e-05
        %v3349 = vrsqrt.pop %v3348
        %v3350 = vmul.f32 %v3246, %v3349
        %v3351 = vmul.f32 %v3247, %v3349
        %v3352 = vmul.f32 %v3248, %v3349
        %v3353 = vmul.f32 %v3249, %v3349
        %v3354 = vmul.f32 %v3250, %v3349
        %v3355 = vmul.f32 %v3251, %v3349
        %v3356 = vmul.f32 %v3252, %v3349
        %v3357 = vmul.f32 %v3253, %v3349
        %v3358 = vmul.f32 %v3254, %v3349
        %v3359 = vmul.f32 %v3255, %v3349
        %v3360 = vmul.f32 %v3256, %v3349
        %v3361 = vmul.f32 %v3257, %v3349
        %v3362 = vmul.f32 %v3258, %v3349
        %v3363 = vmul.f32 %v3259, %v3349
        %v3364 = vmul.f32 %v3260, %v3349
        %v3365 = vmul.f32 %v3261, %v3349
        %v3366 = vmul.f32 %v3262, %v3349
        %v3367 = vmul.f32 %v3263, %v3349
        %v3368 = vmul.f32 %v3264, %v3349
        %v3369 = vmul.f32 %v3265, %v3349
        %v3370 = vmul.f32 %v3266, %v3349
        %v3371 = vmul.f32 %v3267, %v3349
        %v3372 = vmul.f32 %v3268, %v3349
        %v3373 = vmul.f32 %v3269, %v3349
        %v3374 = vmul.f32 %v3270, %v3349
        %v3375 = vmul.f32 %v3271, %v3349
        %v3376 = vmul.f32 %v3272, %v3349
        %v3377 = vmul.f32 %v3273, %v3349
        %v3378 = vmul.f32 %v3274, %v3349
        %v3379 = vmul.f32 %v3275, %v3349
        %v3380 = vmul.f32 %v3276, %v3349
        %v3381 = vmul.f32 %v3277, %v3349
        %v3382 = vmax.f32 %v3350, 0.0
        %v3383 = vmax.f32 %v3351, 0.0
        %v3384 = vmax.f32 %v3352, 0.0
        %v3385 = vmax.f32 %v3353, 0.0
        %v3386 = vmax.f32 %v3354, 0.0
        %v3387 = vmax.f32 %v3355, 0.0
        %v3388 = vmax.f32 %v3356, 0.0
        %v3389 = vmax.f32 %v3357, 0.0
        %v3390 = vmax.f32 %v3358, 0.0
        %v3391 = vmax.f32 %v3359, 0.0
        %v3392 = vmax.f32 %v3360, 0.0
        %v3393 = vmax.f32 %v3361, 0.0
        %v3394 = vmax.f32 %v3362, 0.0
        %v3395 = vmax.f32 %v3363, 0.0
        %v3396 = vmax.f32 %v3364, 0.0
        %v3397 = vmax.f32 %v3365, 0.0
        %v3398 = vmax.f32 %v3366, 0.0
        %v3399 = vmax.f32 %v3367, 0.0
        %v3400 = vmax.f32 %v3368, 0.0
        %v3401 = vmax.f32 %v3369, 0.0
        %v3402 = vmax.f32 %v3370, 0.0
        %v3403 = vmax.f32 %v3371, 0.0
        %v3404 = vmax.f32 %v3372, 0.0
        %v3405 = vmax.f32 %v3373, 0.0
        %v3406 = vmax.f32 %v3374, 0.0
        %v3407 = vmax.f32 %v3375, 0.0
        %v3408 = vmax.f32 %v3376, 0.0
        %v3409 = vmax.f32 %v3377, 0.0
        %v3410 = vmax.f32 %v3378, 0.0
        %v3411 = vmax.f32 %v3379, 0.0
        %v3412 = vmax.f32 %v3380, 0.0
        %v3413 = vmax.f32 %v3381, 0.0
        %v3414 = vld [vmem:[#allocation10] sm:$0x1]
        %v3431 = vrot.slane %v3384, 1
        %v3432 = vrot.slane %v3382, 1
        %v3433 = vrot.slane %v3386, 1
        %v3434 = vrot.slane %v3388, 1
        %v3435 = vrot.slane %v3390, 1
        %v3436 = vrot.slane %v3392, 1
        %v3437 = vrot.slane %v3394, 1
        %v3438 = vrot.slane %v3396, 1
        %v3439 = vrot.slane %v3398, 1
        %v3440 = vrot.slane %v3400, 1
        %v3441 = vrot.slane %v3402, 1
        %v3442 = vrot.slane %v3404, 1
        %v3443 = vrot.slane %v3406, 1
        %v3444 = vrot.slane %v3408, 1
        %v3445 = vrot.slane %v3410, 1
        %v3446 = vrot.slane %v3412, 1
        %v3479 = vrot.slane %v3384, 7
        %v3480 = vrot.slane %v3385, 7
        %v3481 = vsel %vm394, %v3479, %v3480
        %v3482 = vrot.slane %v3382, 7
        %v3483 = vrot.slane %v3383, 7
        %v3484 = vsel %vm394, %v3482, %v3483
        %v3485 = vrot.slane %v3386, 7
        %v3486 = vrot.slane %v3387, 7
        %v3487 = vsel %vm394, %v3485, %v3486
        %v3488 = vrot.slane %v3388, 7
        %v3489 = vrot.slane %v3389, 7
        %v3490 = vsel %vm394, %v3488, %v3489
        %v3491 = vrot.slane %v3390, 7
        %v3492 = vrot.slane %v3391, 7
        %v3493 = vsel %vm394, %v3491, %v3492
        %v3494 = vrot.slane %v3392, 7
        %v3495 = vrot.slane %v3393, 7
        %v3496 = vsel %vm394, %v3494, %v3495
        %v3497 = vrot.slane %v3394, 7
        %v3498 = vrot.slane %v3395, 7
        %v3499 = vsel %vm394, %v3497, %v3498
        %v3500 = vrot.slane %v3396, 7
        %v3501 = vrot.slane %v3397, 7
        %v3502 = vsel %vm394, %v3500, %v3501
        %v3503 = vrot.slane %v3398, 7
        %v3504 = vrot.slane %v3399, 7
        %v3505 = vsel %vm394, %v3503, %v3504
        %v3506 = vrot.slane %v3400, 7
        %v3507 = vrot.slane %v3401, 7
        %v3508 = vsel %vm394, %v3506, %v3507
        %v3509 = vrot.slane %v3402, 7
        %v3510 = vrot.slane %v3403, 7
        %v3511 = vsel %vm394, %v3509, %v3510
        %v3512 = vrot.slane %v3404, 7
        %v3513 = vrot.slane %v3405, 7
        %v3514 = vsel %vm394, %v3512, %v3513
        %v3515 = vrot.slane %v3406, 7
        %v3516 = vrot.slane %v3407, 7
        %v3517 = vsel %vm394, %v3515, %v3516
        %v3518 = vrot.slane %v3408, 7
        %v3519 = vrot.slane %v3409, 7
        %v3520 = vsel %vm394, %v3518, %v3519
        %v3521 = vrot.slane %v3410, 7
        %v3522 = vrot.slane %v3411, 7
        %v3523 = vsel %vm394, %v3521, %v3522
        %v3524 = vrot.slane %v3412, 7
        %v3525 = vrot.slane %v3413, 7
        %v3526 = vsel %vm394, %v3524, %v3525
        %v3575 = vrot.slane %v3385, 5
        %v3576 = vrot.slane %v3383, 5
        %v3577 = vrot.slane %v3387, 5
        %v3578 = vrot.slane %v3389, 5
        %v3579 = vrot.slane %v3391, 5
        %v3580 = vrot.slane %v3393, 5
        %v3581 = vrot.slane %v3395, 5
        %v3582 = vrot.slane %v3397, 5
        %v3583 = vrot.slane %v3399, 5
        %v3584 = vrot.slane %v3401, 5
        %v3585 = vrot.slane %v3403, 5
        %v3586 = vrot.slane %v3405, 5
        %v3587 = vrot.slane %v3407, 5
        %v3588 = vrot.slane %v3409, 5
        %v3589 = vrot.slane %v3411, 5
        %v3590 = vrot.slane %v3413, 5
        %v3607 = vsel %vm394, %v3431, %v3479
        %v3608 = vsel %vm394, %v3432, %v3482
        %v3609 = vsel %vm394, %v3433, %v3485
        %v3610 = vsel %vm394, %v3434, %v3488
        %v3611 = vsel %vm394, %v3435, %v3491
        %v3612 = vsel %vm394, %v3436, %v3494
        %v3613 = vsel %vm394, %v3437, %v3497
        %v3614 = vsel %vm394, %v3438, %v3500
        %v3615 = vsel %vm394, %v3439, %v3503
        %v3616 = vsel %vm394, %v3440, %v3506
        %v3617 = vsel %vm394, %v3441, %v3509
        %v3618 = vsel %vm394, %v3442, %v3512
        %v3619 = vsel %vm394, %v3443, %v3515
        %v3620 = vsel %vm394, %v3444, %v3518
        %v3621 = vsel %vm394, %v3445, %v3521
        %v3622 = vsel %vm394, %v3446, %v3524
        %v3623 = vsel %vm394, %v3480, %v3575
        %v3624 = vsel %vm394, %v3483, %v3576
        %v3625 = vsel %vm394, %v3486, %v3577
        %v3626 = vsel %vm394, %v3489, %v3578
        %v3627 = vsel %vm394, %v3492, %v3579
        %v3628 = vsel %vm394, %v3495, %v3580
        %v3629 = vsel %vm394, %v3498, %v3581
        %v3630 = vsel %vm394, %v3501, %v3582
        %v3631 = vsel %vm394, %v3504, %v3583
        %v3632 = vsel %vm394, %v3507, %v3584
        %v3633 = vsel %vm394, %v3510, %v3585
        %v3634 = vsel %vm394, %v3513, %v3586
        %v3635 = vsel %vm394, %v3516, %v3587
        %v3636 = vsel %vm394, %v3519, %v3588
        %v3637 = vsel %vm394, %v3522, %v3589
        %v3638 = vsel %vm394, %v3525, %v3590
        %v3639 = vsel %vm555, %v3623, 0.0
        %v3640 = vsel %vm555, %v3624, 0.0
        %v3641 = vsel %vm555, %v3625, 0.0
        %v3642 = vsel %vm555, %v3626, 0.0
        %v3643 = vsel %vm555, %v3627, 0.0
        %v3644 = vsel %vm555, %v3628, 0.0
        %v3645 = vsel %vm555, %v3629, 0.0
        %v3646 = vsel %vm555, %v3630, 0.0
        %v3647 = vsel %vm555, %v3631, 0.0
        %v3648 = vsel %vm555, %v3632, 0.0
        %v3649 = vsel %vm555, %v3633, 0.0
        %v3650 = vsel %vm555, %v3634, 0.0
        %v3651 = vsel %vm555, %v3635, 0.0
        %v3652 = vsel %vm555, %v3636, 0.0
        %v3653 = vsel %vm555, %v3637, 0.0
        %v3654 = vsel %vm555, %v3638, 0.0
        %v3656 = vlaneseq
        %v3657 = vshrl.u32 %v3656, 7
        %v3658 = vsub.s32 0, %v3657
        %v3659 = vrot.slane %v3414, %v3658
        %v3661 = vld [vmem:[#allocation8] sm:$0xff]
        %v3662 = vld [vmem:[#allocation8 + $0x8] sm:$0xff]
        %v3663 = vld [vmem:[#allocation8 + $0x10] sm:$0xff]
        %v3664 = vld [vmem:[#allocation8 + $0x18] sm:$0xff]
        %v3665 = vld [vmem:[#allocation8 + $0x20] sm:$0xff]
        %v3666 = vld [vmem:[#allocation8 + $0x28] sm:$0xff]
        %v3667 = vld [vmem:[#allocation8 + $0x30] sm:$0xff]
        %v3668 = vld [vmem:[#allocation8 + $0x38] sm:$0xff]
        %v3669 = vld [vmem:[#allocation8 + $0x40] sm:$0xff]
        %v3670 = vld [vmem:[#allocation8 + $0x48] sm:$0xff]
        %v3671 = vld [vmem:[#allocation8 + $0x50] sm:$0xff]
        %v3672 = vld [vmem:[#allocation8 + $0x58] sm:$0xff]
        %v3673 = vld [vmem:[#allocation8 + $0x60] sm:$0xff]
        %v3674 = vld [vmem:[#allocation8 + $0x68] sm:$0xff]
        %v3675 = vld [vmem:[#allocation8 + $0x70] sm:$0xff]
        %v3676 = vld [vmem:[#allocation8 + $0x78] sm:$0xff]
        %3677 = vmatprep.subr.mxu0 0.0
        %3678 = vmatpush1.msra.mxu0 %v3661
        %3679 = vmatprep.subr.mxu0 0.0
        %3680 = vmatpush1.msra.mxu0 %v3662
        %3681 = vmatprep.subr.mxu0 0.0
        %3682 = vmatpush1.msra.mxu0 %v3663
        %3683 = vmatprep.subr.mxu0 0.0
        %3684 = vmatpush1.msra.mxu0 %v3664
        %3685 = vmatprep.subr.mxu0 0.0
        %3686 = vmatpush1.msra.mxu0 %v3665
        %3687 = vmatprep.subr.mxu0 0.0
        %3688 = vmatpush1.msra.mxu0 %v3666
        %3689 = vmatprep.subr.mxu0 0.0
        %3690 = vmatpush1.msra.mxu0 %v3667
        %3691 = vmatprep.subr.mxu0 0.0
        %3692 = vmatpush1.msra.mxu0 %v3668
        %3693 = vmatprep.subr.mxu0 0.0
        %3694 = vmatpush1.msra.mxu0 %v3669
        %3695 = vmatprep.subr.mxu0 0.0
        %3696 = vmatpush1.msra.mxu0 %v3670
        %3697 = vmatprep.subr.mxu0 0.0
        %3698 = vmatpush1.msra.mxu0 %v3671
        %3699 = vmatprep.subr.mxu0 0.0
        %3700 = vmatpush1.msra.mxu0 %v3672
        %3701 = vmatprep.subr.mxu0 0.0
        %3702 = vmatpush1.msra.mxu0 %v3673
        %3703 = vmatprep.subr.mxu0 0.0
        %3704 = vmatpush1.msra.mxu0 %v3674
        %3705 = vmatprep.subr.mxu0 0.0
        %3706 = vmatpush1.msra.mxu0 %v3675
        %3707 = vmatprep.subr.mxu0 0.0
        %3708 = vmatpush1.msra.mxu0 %v3676
        %3709 = vmatprep.subr.mxu0 0.0
        %3710 = vmatpush1.msra.mxu0 0.0
        %3711 = vmatprep.subr.mxu0 0.0
        %3712 = vmatpush1.msra.mxu0 0.0
        %3713 = vmatprep.subr.mxu0 0.0
        %3714 = vmatpush1.msra.mxu0 0.0
        %3715 = vmatprep.subr.mxu0 0.0
        %3716 = vmatpush1.msra.mxu0 0.0
        %3717 = vmatprep.subr.mxu0 0.0
        %3718 = vmatpush1.msra.mxu0 0.0
        %3719 = vmatprep.subr.mxu0 0.0
        %3720 = vmatpush1.msra.mxu0 0.0
        %3721 = vmatprep.subr.mxu0 0.0
        %3722 = vmatpush1.msra.mxu0 0.0
        %3723 = vmatprep.subr.mxu0 0.0
        %3724 = vmatpush1.msra.mxu0 0.0
        %3725 = vmatprep.subr.mxu0 0.0
        %3726 = vmatpush1.msra.mxu0 0.0
        %3727 = vmatprep.subr.mxu0 0.0
        %3728 = vmatpush1.msra.mxu0 0.0
        %3729 = vmatprep.subr.mxu0 0.0
        %3730 = vmatpush1.msra.mxu0 0.0
        %3731 = vmatprep.subr.mxu0 0.0
        %3732 = vmatpush1.msra.mxu0 0.0
        %3733 = vmatprep.subr.mxu0 0.0
        %3734 = vmatpush1.msra.mxu0 0.0
        %3735 = vmatprep.subr.mxu0 0.0
        %3736 = vmatpush1.msra.mxu0 0.0
        %3737 = vmatprep.subr.mxu0 0.0
        %3738 = vmatpush1.msra.mxu0 0.0
        %3739 = vmatprep.subr.mxu0 0.0
        %3740 = vmatpush1.msra.mxu0 0.0
        %3741 = vmatprep.mubr.f32.mxu0 0.0
        %3742 = vmatmul.mubr.f32.gmra.mrb[0].mxu0 %v3607
        %v3743 = vpop.f32.mrb[0].mxu0
        %v3744 = vadd.f32 0.0, %v3743
        %v3745 = vpop.f32.mrb[0].mxu0
        %3746 = vmatprep.mubr.f32.mxu0 0.0
        %3747 = vmatmul.mubr.f32.gmra.mrb[0].mxu0 %v3481
        %v3748 = vpop.f32.mrb[0].mxu0
        %v3749 = vadd.f32 0.0, %v3748
        %v3750 = vpop.f32.mrb[0].mxu0
        %3751 = vmatprep.mubr.f32.mxu0 0.0
        %3752 = vmatmul.mubr.f32.gmra.mrb[0].mxu0 %v3608
        %v3753 = vpop.f32.mrb[0].mxu0
        %v3754 = vadd.f32 0.0, %v3753
        %v3755 = vpop.f32.mrb[0].mxu0
        %3756 = vmatprep.mubr.f32.mxu0 0.0
        %3757 = vmatmul.mubr.f32.gmra.mrb[0].mxu0 %v3484
        %v3758 = vpop.f32.mrb[0].mxu0
        %v3759 = vadd.f32 0.0, %v3758
        %v3760 = vpop.f32.mrb[0].mxu0
        %3761 = vmatprep.mubr.f32.mxu0 0.0
        %3762 = vmatmul.mubr.f32.gmra.mrb[0].mxu0 %v3607
        %v3763 = vpop.f32.mrb[0].mxu0
        %v3764 = vadd.f32 0.0, %v3763
        %v3765 = vpop.f32.mrb[0].mxu0
        %3766 = vmatprep.mubr.f32.mxu0 0.0
        %3767 = vmatmul.mubr.f32.gmra.mrb[0].mxu0 %v3481
        %v3768 = vpop.f32.mrb[0].mxu0
        %v3769 = vadd.f32 0.0, %v3768
        %v3770 = vpop.f32.mrb[0].mxu0
        %3771 = vmatprep.mubr.f32.mxu0 0.0
        %3772 = vmatmul.mubr.f32.gmra.mrb[0].mxu0 %v3609
        %v3773 = vpop.f32.mrb[0].mxu0
        %v3774 = vadd.f32 0.0, %v3773
        %v3775 = vpop.f32.mrb[0].mxu0
        %3776 = vmatprep.mubr.f32.mxu0 0.0
        %3777 = vmatmul.mubr.f32.gmra.mrb[0].mxu0 %v3487
        %v3778 = vpop.f32.mrb[0].mxu0
        %v3779 = vadd.f32 0.0, %v3778
        %v3780 = vpop.f32.mrb[0].mxu0
        %3781 = vmatprep.mubr.f32.mxu0 0.0
        %3782 = vmatmul.mubr.f32.gmra.mrb[0].mxu0 %v3610
        %v3783 = vpop.f32.mrb[0].mxu0
        %v3784 = vadd.f32 0.0, %v3783
        %v3785 = vpop.f32.mrb[0].mxu0
        %3786 = vmatprep.mubr.f32.mxu0 0.0
        %3787 = vmatmul.mubr.f32.gmra.mrb[0].mxu0 %v3490
        %v3788 = vpop.f32.mrb[0].mxu0
        %v3789 = vadd.f32 0.0, %v3788
        %v3790 = vpop.f32.mrb[0].mxu0
        %3791 = vmatprep.mubr.f32.mxu0 0.0
        %3792 = vmatmul.mubr.f32.gmra.mrb[0].mxu0 %v3611
        %v3793 = vpop.f32.mrb[0].mxu0
        %v3794 = vadd.f32 0.0, %v3793
        %v3795 = vpop.f32.mrb[0].mxu0
        %3796 = vmatprep.mubr.f32.mxu0 0.0
        %3797 = vmatmul.mubr.f32.gmra.mrb[0].mxu0 %v3493
        %v3798 = vpop.f32.mrb[0].mxu0
        %v3799 = vadd.f32 0.0, %v3798
        %v3800 = vpop.f32.mrb[0].mxu0
        %3801 = vmatprep.mubr.f32.mxu0 0.0
        %3802 = vmatmul.mubr.f32.gmra.mrb[0].mxu0 %v3612
        %v3803 = vpop.f32.mrb[0].mxu0
        %v3804 = vadd.f32 0.0, %v3803
        %v3805 = vpop.f32.mrb[0].mxu0
        %3806 = vmatprep.mubr.f32.mxu0 0.0
        %3807 = vmatmul.mubr.f32.gmra.mrb[0].mxu0 %v3496
        %v3808 = vpop.f32.mrb[0].mxu0
        %v3809 = vadd.f32 0.0, %v3808
        %v3810 = vpop.f32.mrb[0].mxu0
        %3811 = vmatprep.mubr.f32.mxu0 0.0
        %3812 = vmatmul.mubr.f32.gmra.mrb[0].mxu0 %v3613
        %v3813 = vpop.f32.mrb[0].mxu0
        %v3814 = vadd.f32 0.0, %v3813
        %v3815 = vpop.f32.mrb[0].mxu0
        %3816 = vmatprep.mubr.f32.mxu0 0.0
        %3817 = vmatmul.mubr.f32.gmra.mrb[0].mxu0 %v3499
        %v3818 = vpop.f32.mrb[0].mxu0
        %v3819 = vadd.f32 0.0, %v3818
        %v3820 = vpop.f32.mrb[0].mxu0
        %3821 = vmatprep.mubr.f32.mxu0 0.0
        %3822 = vmatmul.mubr.f32.gmra.mrb[0].mxu0 %v3614
        %v3823 = vpop.f32.mrb[0].mxu0
        %v3824 = vadd.f32 0.0, %v3823
        %v3825 = vpop.f32.mrb[0].mxu0
        %3826 = vmatprep.mubr.f32.mxu0 0.0
        %3827 = vmatmul.mubr.f32.gmra.mrb[0].mxu0 %v3502
        %v3828 = vpop.f32.mrb[0].mxu0
        %v3829 = vadd.f32 0.0, %v3828
        %v3830 = vpop.f32.mrb[0].mxu0
        %3831 = vmatprep.mubr.f32.mxu0 0.0
        %3832 = vmatmul.mubr.f32.gmra.mrb[0].mxu0 %v3615
        %v3833 = vpop.f32.mrb[0].mxu0
        %v3834 = vadd.f32 0.0, %v3833
        %v3835 = vpop.f32.mrb[0].mxu0
        %3836 = vmatprep.mubr.f32.mxu0 0.0
        %3837 = vmatmul.mubr.f32.gmra.mrb[0].mxu0 %v3505
        %v3838 = vpop.f32.mrb[0].mxu0
        %v3839 = vadd.f32 0.0, %v3838
        %v3840 = vpop.f32.mrb[0].mxu0
        %3841 = vmatprep.mubr.f32.mxu0 0.0
        %3842 = vmatmul.mubr.f32.gmra.mrb[0].mxu0 %v3616
        %v3843 = vpop.f32.mrb[0].mxu0
        %v3844 = vadd.f32 0.0, %v3843
        %v3845 = vpop.f32.mrb[0].mxu0
        %3846 = vmatprep.mubr.f32.mxu0 0.0
        %3847 = vmatmul.mubr.f32.gmra.mrb[0].mxu0 %v3508
        %v3848 = vpop.f32.mrb[0].mxu0
        %v3849 = vadd.f32 0.0, %v3848
        %v3850 = vpop.f32.mrb[0].mxu0
        %3851 = vmatprep.mubr.f32.mxu0 0.0
        %3852 = vmatmul.mubr.f32.gmra.mrb[0].mxu0 %v3617
        %v3853 = vpop.f32.mrb[0].mxu0
        %v3854 = vadd.f32 0.0, %v3853
        %v3855 = vpop.f32.mrb[0].mxu0
        %3856 = vmatprep.mubr.f32.mxu0 0.0
        %3857 = vmatmul.mubr.f32.gmra.mrb[0].mxu0 %v3511
        %v3858 = vpop.f32.mrb[0].mxu0
        %v3859 = vadd.f32 0.0, %v3858
        %v3860 = vpop.f32.mrb[0].mxu0
        %3861 = vmatprep.mubr.f32.mxu0 0.0
        %3862 = vmatmul.mubr.f32.gmra.mrb[0].mxu0 %v3618
        %v3863 = vpop.f32.mrb[0].mxu0
        %v3864 = vadd.f32 0.0, %v3863
        %v3865 = vpop.f32.mrb[0].mxu0
        %3866 = vmatprep.mubr.f32.mxu0 0.0
        %3867 = vmatmul.mubr.f32.gmra.mrb[0].mxu0 %v3514
        %v3868 = vpop.f32.mrb[0].mxu0
        %v3869 = vadd.f32 0.0, %v3868
        %v3870 = vpop.f32.mrb[0].mxu0
        %3871 = vmatprep.mubr.f32.mxu0 0.0
        %3872 = vmatmul.mubr.f32.gmra.mrb[0].mxu0 %v3619
        %v3873 = vpop.f32.mrb[0].mxu0
        %v3874 = vadd.f32 0.0, %v3873
        %v3875 = vpop.f32.mrb[0].mxu0
        %3876 = vmatprep.mubr.f32.mxu0 0.0
        %3877 = vmatmul.mubr.f32.gmra.mrb[0].mxu0 %v3517
        %v3878 = vpop.f32.mrb[0].mxu0
        %v3879 = vadd.f32 0.0, %v3878
        %v3880 = vpop.f32.mrb[0].mxu0
        %3881 = vmatprep.mubr.f32.mxu0 0.0
        %3882 = vmatmul.mubr.f32.gmra.mrb[0].mxu0 %v3620
        %v3883 = vpop.f32.mrb[0].mxu0
        %v3884 = vadd.f32 0.0, %v3883
        %v3885 = vpop.f32.mrb[0].mxu0
        %3886 = vmatprep.mubr.f32.mxu0 0.0
        %3887 = vmatmul.mubr.f32.gmra.mrb[0].mxu0 %v3520
        %v3888 = vpop.f32.mrb[0].mxu0
        %v3889 = vadd.f32 0.0, %v3888
        %v3890 = vpop.f32.mrb[0].mxu0
        %3891 = vmatprep.mubr.f32.mxu0 0.0
        %3892 = vmatmul.mubr.f32.gmra.mrb[0].mxu0 %v3621
        %v3893 = vpop.f32.mrb[0].mxu0
        %v3894 = vadd.f32 0.0, %v3893
        %v3895 = vpop.f32.mrb[0].mxu0
        %3896 = vmatprep.mubr.f32.mxu0 0.0
        %3897 = vmatmul.mubr.f32.gmra.mrb[0].mxu0 %v3523
        %v3898 = vpop.f32.mrb[0].mxu0
        %v3899 = vadd.f32 0.0, %v3898
        %v3900 = vpop.f32.mrb[0].mxu0
        %3901 = vdwg.mxu0
        %v3902 = vadd.f32 %v3659, %v3744
        %v3903 = vadd.f32 %v3659, %v3749
        %v3904 = vadd.f32 %v3659, %v3754
        %v3905 = vadd.f32 %v3659, %v3759
        %v3906 = vadd.f32 %v3659, %v3764
        %v3907 = vadd.f32 %v3659, %v3769
        %v3908 = vadd.f32 %v3659, %v3774
        %v3909 = vadd.f32 %v3659, %v3779
        %v3910 = vadd.f32 %v3659, %v3784
        %v3911 = vadd.f32 %v3659, %v3789
        %v3912 = vadd.f32 %v3659, %v3794
        %v3913 = vadd.f32 %v3659, %v3799
        %v3914 = vadd.f32 %v3659, %v3804
        %v3915 = vadd.f32 %v3659, %v3809
        %v3916 = vadd.f32 %v3659, %v3814
        %v3917 = vadd.f32 %v3659, %v3819
        %v3918 = vadd.f32 %v3659, %v3824
        %v3919 = vadd.f32 %v3659, %v3829
        %v3920 = vadd.f32 %v3659, %v3834
        %v3921 = vadd.f32 %v3659, %v3839
        %v3922 = vadd.f32 %v3659, %v3844
        %v3923 = vadd.f32 %v3659, %v3849
        %v3924 = vadd.f32 %v3659, %v3854
        %v3925 = vadd.f32 %v3659, %v3859
        %v3926 = vadd.f32 %v3659, %v3864
        %v3927 = vadd.f32 %v3659, %v3869
        %v3928 = vadd.f32 %v3659, %v3874
        %v3929 = vadd.f32 %v3659, %v3879
        %v3930 = vadd.f32 %v3659, %v3884
        %v3931 = vadd.f32 %v3659, %v3889
        %v3932 = vadd.f32 %v3659, %v3894
        %v3933 = vadd.f32 %v3659, %v3899
        %s3934 = scalar_lea.vmem [#allocation8], 384
        %v3935 = vld [vmem:[%s3934] sm:$0xff]
        %v3936 = vld [vmem:[%s3934 + $0x8] sm:$0xff]
        %v3937 = vld [vmem:[%s3934 + $0x10] sm:$0xff]
        %v3938 = vld [vmem:[%s3934 + $0x18] sm:$0xff]
        %v3939 = vld [vmem:[%s3934 + $0x20] sm:$0xff]
        %v3940 = vld [vmem:[%s3934 + $0x28] sm:$0xff]
        %v3941 = vld [vmem:[%s3934 + $0x30] sm:$0xff]
        %v3942 = vld [vmem:[%s3934 + $0x38] sm:$0xff]
        %v3943 = vld [vmem:[%s3934 + $0x40] sm:$0xff]
        %v3944 = vld [vmem:[%s3934 + $0x48] sm:$0xff]
        %v3945 = vld [vmem:[%s3934 + $0x50] sm:$0xff]
        %v3946 = vld [vmem:[%s3934 + $0x58] sm:$0xff]
        %v3947 = vld [vmem:[%s3934 + $0x60] sm:$0xff]
        %v3948 = vld [vmem:[%s3934 + $0x68] sm:$0xff]
        %v3949 = vld [vmem:[%s3934 + $0x70] sm:$0xff]
        %v3950 = vld [vmem:[%s3934 + $0x78] sm:$0xff]
        %3951 = vmatprep.subr.mxu0 0.0
        %3952 = vmatpush1.msra.mxu0 %v3935
        %3953 = vmatprep.subr.mxu0 0.0
        %3954 = vmatpush1.msra.mxu0 %v3936
        %3955 = vmatprep.subr.mxu0 0.0
        %3956 = vmatpush1.msra.mxu0 %v3937
        %3957 = vmatprep.subr.mxu0 0.0
        %3958 = vmatpush1.msra.mxu0 %v3938
        %3959 = vmatprep.subr.mxu0 0.0
        %3960 = vmatpush1.msra.mxu0 %v3939
        %3961 = vmatprep.subr.mxu0 0.0
        %3962 = vmatpush1.msra.mxu0 %v3940
        %3963 = vmatprep.subr.mxu0 0.0
        %3964 = vmatpush1.msra.mxu0 %v3941
        %3965 = vmatprep.subr.mxu0 0.0
        %3966 = vmatpush1.msra.mxu0 %v3942
        %3967 = vmatprep.subr.mxu0 0.0
        %3968 = vmatpush1.msra.mxu0 %v3943
        %3969 = vmatprep.subr.mxu0 0.0
        %3970 = vmatpush1.msra.mxu0 %v3944
        %3971 = vmatprep.subr.mxu0 0.0
        %3972 = vmatpush1.msra.mxu0 %v3945
        %3973 = vmatprep.subr.mxu0 0.0
        %3974 = vmatpush1.msra.mxu0 %v3946
        %3975 = vmatprep.subr.mxu0 0.0
        %3976 = vmatpush1.msra.mxu0 %v3947
        %3977 = vmatprep.subr.mxu0 0.0
        %3978 = vmatpush1.msra.mxu0 %v3948
        %3979 = vmatprep.subr.mxu0 0.0
        %3980 = vmatpush1.msra.mxu0 %v3949
        %3981 = vmatprep.subr.mxu0 0.0
        %3982 = vmatpush1.msra.mxu0 %v3950
        %3983 = vmatprep.subr.mxu0 0.0
        %3984 = vmatpush1.msra.mxu0 0.0
        %3985 = vmatprep.subr.mxu0 0.0
        %3986 = vmatpush1.msra.mxu0 0.0
        %3987 = vmatprep.subr.mxu0 0.0
        %3988 = vmatpush1.msra.mxu0 0.0
        %3989 = vmatprep.subr.mxu0 0.0
        %3990 = vmatpush1.msra.mxu0 0.0
        %3991 = vmatprep.subr.mxu0 0.0
        %3992 = vmatpush1.msra.mxu0 0.0
        %3993 = vmatprep.subr.mxu0 0.0
        %3994 = vmatpush1.msra.mxu0 0.0
        %3995 = vmatprep.subr.mxu0 0.0
        %3996 = vmatpush1.msra.mxu0 0.0
        %3997 = vmatprep.subr.mxu0 0.0
        %3998 = vmatpush1.msra.mxu0 0.0
        %3999 = vmatprep.subr.mxu0 0.0
        %4000 = vmatpush1.msra.mxu0 0.0
        %4001 = vmatprep.subr.mxu0 0.0
        %4002 = vmatpush1.msra.mxu0 0.0
        %4003 = vmatprep.subr.mxu0 0.0
        %4004 = vmatpush1.msra.mxu0 0.0
        %4005 = vmatprep.subr.mxu0 0.0
        %4006 = vmatpush1.msra.mxu0 0.0
        %4007 = vmatprep.subr.mxu0 0.0
        %4008 = vmatpush1.msra.mxu0 0.0
        %4009 = vmatprep.subr.mxu0 0.0
        %4010 = vmatpush1.msra.mxu0 0.0
        %4011 = vmatprep.subr.mxu0 0.0
        %4012 = vmatpush1.msra.mxu0 0.0
        %4013 = vmatprep.subr.mxu0 0.0
        %4014 = vmatpush1.msra.mxu0 0.0
        %4015 = vmatprep.mubr.f32.mxu0 0.0
        %4016 = vmatmul.mubr.f32.gmra.mrb[0].mxu0 %v3608
        %v4017 = vpop.f32.mrb[0].mxu0
        %v4018 = vadd.f32 0.0, %v4017
        %v4019 = vpop.f32.mrb[0].mxu0
        %4020 = vmatprep.mubr.f32.mxu0 0.0
        %4021 = vmatmul.mubr.f32.gmra.mrb[0].mxu0 %v3484
        %v4022 = vpop.f32.mrb[0].mxu0
        %v4023 = vadd.f32 0.0, %v4022
        %v4024 = vpop.f32.mrb[0].mxu0
        %4025 = vmatprep.mubr.f32.mxu0 0.0
        %4026 = vmatmul.mubr.f32.gmra.mrb[0].mxu0 %v3607
        %v4027 = vpop.f32.mrb[0].mxu0
        %v4028 = vadd.f32 0.0, %v4027
        %v4029 = vpop.f32.mrb[0].mxu0
        %4030 = vmatprep.mubr.f32.mxu0 0.0
        %4031 = vmatmul.mubr.f32.gmra.mrb[0].mxu0 %v3481
        %v4032 = vpop.f32.mrb[0].mxu0
        %v4033 = vadd.f32 0.0, %v4032
        %v4034 = vpop.f32.mrb[0].mxu0
        %4035 = vmatprep.mubr.f32.mxu0 0.0
        %4036 = vmatmul.mubr.f32.gmra.mrb[0].mxu0 %v3609
        %v4037 = vpop.f32.mrb[0].mxu0
        %v4038 = vadd.f32 0.0, %v4037
        %v4039 = vpop.f32.mrb[0].mxu0
        %4040 = vmatprep.mubr.f32.mxu0 0.0
        %4041 = vmatmul.mubr.f32.gmra.mrb[0].mxu0 %v3487
        %v4042 = vpop.f32.mrb[0].mxu0
        %v4043 = vadd.f32 0.0, %v4042
        %v4044 = vpop.f32.mrb[0].mxu0
        %4045 = vmatprep.mubr.f32.mxu0 0.0
        %4046 = vmatmul.mubr.f32.gmra.mrb[0].mxu0 %v3610
        %v4047 = vpop.f32.mrb[0].mxu0
        %v4048 = vadd.f32 0.0, %v4047
        %v4049 = vpop.f32.mrb[0].mxu0
        %4050 = vmatprep.mubr.f32.mxu0 0.0
        %4051 = vmatmul.mubr.f32.gmra.mrb[0].mxu0 %v3490
        %v4052 = vpop.f32.mrb[0].mxu0
        %v4053 = vadd.f32 0.0, %v4052
        %v4054 = vpop.f32.mrb[0].mxu0
        %4055 = vmatprep.mubr.f32.mxu0 0.0
        %4056 = vmatmul.mubr.f32.gmra.mrb[0].mxu0 %v3611
        %v4057 = vpop.f32.mrb[0].mxu0
        %v4058 = vadd.f32 0.0, %v4057
        %v4059 = vpop.f32.mrb[0].mxu0
        %4060 = vmatprep.mubr.f32.mxu0 0.0
        %4061 = vmatmul.mubr.f32.gmra.mrb[0].mxu0 %v3493
        %v4062 = vpop.f32.mrb[0].mxu0
        %v4063 = vadd.f32 0.0, %v4062
        %v4064 = vpop.f32.mrb[0].mxu0
        %4065 = vmatprep.mubr.f32.mxu0 0.0
        %4066 = vmatmul.mubr.f32.gmra.mrb[0].mxu0 %v3612
        %v4067 = vpop.f32.mrb[0].mxu0
        %v4068 = vadd.f32 0.0, %v4067
        %v4069 = vpop.f32.mrb[0].mxu0
        %4070 = vmatprep.mubr.f32.mxu0 0.0
        %4071 = vmatmul.mubr.f32.gmra.mrb[0].mxu0 %v3496
        %v4072 = vpop.f32.mrb[0].mxu0
        %v4073 = vadd.f32 0.0, %v4072
        %v4074 = vpop.f32.mrb[0].mxu0
        %4075 = vmatprep.mubr.f32.mxu0 0.0
        %4076 = vmatmul.mubr.f32.gmra.mrb[0].mxu0 %v3613
        %v4077 = vpop.f32.mrb[0].mxu0
        %v4078 = vadd.f32 0.0, %v4077
        %v4079 = vpop.f32.mrb[0].mxu0
        %4080 = vmatprep.mubr.f32.mxu0 0.0
        %4081 = vmatmul.mubr.f32.gmra.mrb[0].mxu0 %v3499
        %v4082 = vpop.f32.mrb[0].mxu0
        %v4083 = vadd.f32 0.0, %v4082
        %v4084 = vpop.f32.mrb[0].mxu0
        %4085 = vmatprep.mubr.f32.mxu0 0.0
        %4086 = vmatmul.mubr.f32.gmra.mrb[0].mxu0 %v3614
        %v4087 = vpop.f32.mrb[0].mxu0
        %v4088 = vadd.f32 0.0, %v4087
        %v4089 = vpop.f32.mrb[0].mxu0
        %4090 = vmatprep.mubr.f32.mxu0 0.0
        %4091 = vmatmul.mubr.f32.gmra.mrb[0].mxu0 %v3502
        %v4092 = vpop.f32.mrb[0].mxu0
        %v4093 = vadd.f32 0.0, %v4092
        %v4094 = vpop.f32.mrb[0].mxu0
        %4095 = vmatprep.mubr.f32.mxu0 0.0
        %4096 = vmatmul.mubr.f32.gmra.mrb[0].mxu0 %v3615
        %v4097 = vpop.f32.mrb[0].mxu0
        %v4098 = vadd.f32 0.0, %v4097
        %v4099 = vpop.f32.mrb[0].mxu0
        %4100 = vmatprep.mubr.f32.mxu0 0.0
        %4101 = vmatmul.mubr.f32.gmra.mrb[0].mxu0 %v3505
        %v4102 = vpop.f32.mrb[0].mxu0
        %v4103 = vadd.f32 0.0, %v4102
        %v4104 = vpop.f32.mrb[0].mxu0
        %4105 = vmatprep.mubr.f32.mxu0 0.0
        %4106 = vmatmul.mubr.f32.gmra.mrb[0].mxu0 %v3616
        %v4107 = vpop.f32.mrb[0].mxu0
        %v4108 = vadd.f32 0.0, %v4107
        %v4109 = vpop.f32.mrb[0].mxu0
        %4110 = vmatprep.mubr.f32.mxu0 0.0
        %4111 = vmatmul.mubr.f32.gmra.mrb[0].mxu0 %v3508
        %v4112 = vpop.f32.mrb[0].mxu0
        %v4113 = vadd.f32 0.0, %v4112
        %v4114 = vpop.f32.mrb[0].mxu0
        %4115 = vmatprep.mubr.f32.mxu0 0.0
        %4116 = vmatmul.mubr.f32.gmra.mrb[0].mxu0 %v3617
        %v4117 = vpop.f32.mrb[0].mxu0
        %v4118 = vadd.f32 0.0, %v4117
        %v4119 = vpop.f32.mrb[0].mxu0
        %4120 = vmatprep.mubr.f32.mxu0 0.0
        %4121 = vmatmul.mubr.f32.gmra.mrb[0].mxu0 %v3511
        %v4122 = vpop.f32.mrb[0].mxu0
        %v4123 = vadd.f32 0.0, %v4122
        %v4124 = vpop.f32.mrb[0].mxu0
        %4125 = vmatprep.mubr.f32.mxu0 0.0
        %4126 = vmatmul.mubr.f32.gmra.mrb[0].mxu0 %v3618
        %v4127 = vpop.f32.mrb[0].mxu0
        %v4128 = vadd.f32 0.0, %v4127
        %v4129 = vpop.f32.mrb[0].mxu0
        %4130 = vmatprep.mubr.f32.mxu0 0.0
        %4131 = vmatmul.mubr.f32.gmra.mrb[0].mxu0 %v3514
        %v4132 = vpop.f32.mrb[0].mxu0
        %v4133 = vadd.f32 0.0, %v4132
        %v4134 = vpop.f32.mrb[0].mxu0
        %4135 = vmatprep.mubr.f32.mxu0 0.0
        %4136 = vmatmul.mubr.f32.gmra.mrb[0].mxu0 %v3619
        %v4137 = vpop.f32.mrb[0].mxu0
        %v4138 = vadd.f32 0.0, %v4137
        %v4139 = vpop.f32.mrb[0].mxu0
        %4140 = vmatprep.mubr.f32.mxu0 0.0
        %4141 = vmatmul.mubr.f32.gmra.mrb[0].mxu0 %v3517
        %v4142 = vpop.f32.mrb[0].mxu0
        %v4143 = vadd.f32 0.0, %v4142
        %v4144 = vpop.f32.mrb[0].mxu0
        %4145 = vmatprep.mubr.f32.mxu0 0.0
        %4146 = vmatmul.mubr.f32.gmra.mrb[0].mxu0 %v3620
        %v4147 = vpop.f32.mrb[0].mxu0
        %v4148 = vadd.f32 0.0, %v4147
        %v4149 = vpop.f32.mrb[0].mxu0
        %4150 = vmatprep.mubr.f32.mxu0 0.0
        %4151 = vmatmul.mubr.f32.gmra.mrb[0].mxu0 %v3520
        %v4152 = vpop.f32.mrb[0].mxu0
        %v4153 = vadd.f32 0.0, %v4152
        %v4154 = vpop.f32.mrb[0].mxu0
        %4155 = vmatprep.mubr.f32.mxu0 0.0
        %4156 = vmatmul.mubr.f32.gmra.mrb[0].mxu0 %v3621
        %v4157 = vpop.f32.mrb[0].mxu0
        %v4158 = vadd.f32 0.0, %v4157
        %v4159 = vpop.f32.mrb[0].mxu0
        %4160 = vmatprep.mubr.f32.mxu0 0.0
        %4161 = vmatmul.mubr.f32.gmra.mrb[0].mxu0 %v3523
        %v4162 = vpop.f32.mrb[0].mxu0
        %v4163 = vadd.f32 0.0, %v4162
        %v4164 = vpop.f32.mrb[0].mxu0
        %4165 = vmatprep.mubr.f32.mxu0 0.0
        %4166 = vmatmul.mubr.f32.gmra.mrb[0].mxu0 %v3622
        %v4167 = vpop.f32.mrb[0].mxu0
        %v4168 = vadd.f32 0.0, %v4167
        %v4169 = vpop.f32.mrb[0].mxu0
        %4170 = vmatprep.mubr.f32.mxu0 0.0
        %4171 = vmatmul.mubr.f32.gmra.mrb[0].mxu0 %v3526
        %v4172 = vpop.f32.mrb[0].mxu0
        %v4173 = vadd.f32 0.0, %v4172
        %v4174 = vpop.f32.mrb[0].mxu0
        %4175 = vdwg.mxu0
        %v4176 = vadd.f32 %v3902, %v4018
        %v4177 = vadd.f32 %v3903, %v4023
        %v4178 = vadd.f32 %v3904, %v4028
        %v4179 = vadd.f32 %v3905, %v4033
        %v4180 = vadd.f32 %v3906, %v4038
        %v4181 = vadd.f32 %v3907, %v4043
        %v4182 = vadd.f32 %v3908, %v4048
        %v4183 = vadd.f32 %v3909, %v4053
        %v4184 = vadd.f32 %v3910, %v4058
        %v4185 = vadd.f32 %v3911, %v4063
        %v4186 = vadd.f32 %v3912, %v4068
        %v4187 = vadd.f32 %v3913, %v4073
        %v4188 = vadd.f32 %v3914, %v4078
        %v4189 = vadd.f32 %v3915, %v4083
        %v4190 = vadd.f32 %v3916, %v4088
        %v4191 = vadd.f32 %v3917, %v4093
        %v4192 = vadd.f32 %v3918, %v4098
        %v4193 = vadd.f32 %v3919, %v4103
        %v4194 = vadd.f32 %v3920, %v4108
        %v4195 = vadd.f32 %v3921, %v4113
        %v4196 = vadd.f32 %v3922, %v4118
        %v4197 = vadd.f32 %v3923, %v4123
        %v4198 = vadd.f32 %v3924, %v4128
        %v4199 = vadd.f32 %v3925, %v4133
        %v4200 = vadd.f32 %v3926, %v4138
        %v4201 = vadd.f32 %v3927, %v4143
        %v4202 = vadd.f32 %v3928, %v4148
        %v4203 = vadd.f32 %v3929, %v4153
        %v4204 = vadd.f32 %v3930, %v4158
        %v4205 = vadd.f32 %v3931, %v4163
        %v4206 = vadd.f32 %v3932, %v4168
        %v4207 = vadd.f32 %v3933, %v4173
        %s4208 = scalar_lea.vmem [#allocation8], 768
        %v4209 = vld [vmem:[%s4208] sm:$0xff]
        %v4210 = vld [vmem:[%s4208 + $0x8] sm:$0xff]
        %v4211 = vld [vmem:[%s4208 + $0x10] sm:$0xff]
        %v4212 = vld [vmem:[%s4208 + $0x18] sm:$0xff]
        %v4213 = vld [vmem:[%s4208 + $0x20] sm:$0xff]
        %v4214 = vld [vmem:[%s4208 + $0x28] sm:$0xff]
        %v4215 = vld [vmem:[%s4208 + $0x30] sm:$0xff]
        %v4216 = vld [vmem:[%s4208 + $0x38] sm:$0xff]
        %v4217 = vld [vmem:[%s4208 + $0x40] sm:$0xff]
        %v4218 = vld [vmem:[%s4208 + $0x48] sm:$0xff]
        %v4219 = vld [vmem:[%s4208 + $0x50] sm:$0xff]
        %v4220 = vld [vmem:[%s4208 + $0x58] sm:$0xff]
        %v4221 = vld [vmem:[%s4208 + $0x60] sm:$0xff]
        %v4222 = vld [vmem:[%s4208 + $0x68] sm:$0xff]
        %v4223 = vld [vmem:[%s4208 + $0x70] sm:$0xff]
        %v4224 = vld [vmem:[%s4208 + $0x78] sm:$0xff]
        %4225 = vmatprep.subr.mxu0 0.0
        %4226 = vmatpush1.msra.mxu0 %v4209
        %4227 = vmatprep.subr.mxu0 0.0
        %4228 = vmatpush1.msra.mxu0 %v4210
        %4229 = vmatprep.subr.mxu0 0.0
        %4230 = vmatpush1.msra.mxu0 %v4211
        %4231 = vmatprep.subr.mxu0 0.0
        %4232 = vmatpush1.msra.mxu0 %v4212
        %4233 = vmatprep.subr.mxu0 0.0
        %4234 = vmatpush1.msra.mxu0 %v4213
        %4235 = vmatprep.subr.mxu0 0.0
        %4236 = vmatpush1.msra.mxu0 %v4214
        %4237 = vmatprep.subr.mxu0 0.0
        %4238 = vmatpush1.msra.mxu0 %v4215
        %4239 = vmatprep.subr.mxu0 0.0
        %4240 = vmatpush1.msra.mxu0 %v4216
        %4241 = vmatprep.subr.mxu0 0.0
        %4242 = vmatpush1.msra.mxu0 %v4217
        %4243 = vmatprep.subr.mxu0 0.0
        %4244 = vmatpush1.msra.mxu0 %v4218
        %4245 = vmatprep.subr.mxu0 0.0
        %4246 = vmatpush1.msra.mxu0 %v4219
        %4247 = vmatprep.subr.mxu0 0.0
        %4248 = vmatpush1.msra.mxu0 %v4220
        %4249 = vmatprep.subr.mxu0 0.0
        %4250 = vmatpush1.msra.mxu0 %v4221
        %4251 = vmatprep.subr.mxu0 0.0
        %4252 = vmatpush1.msra.mxu0 %v4222
        %4253 = vmatprep.subr.mxu0 0.0
        %4254 = vmatpush1.msra.mxu0 %v4223
        %4255 = vmatprep.subr.mxu0 0.0
        %4256 = vmatpush1.msra.mxu0 %v4224
        %4257 = vmatprep.subr.mxu0 0.0
        %4258 = vmatpush1.msra.mxu0 0.0
        %4259 = vmatprep.subr.mxu0 0.0
        %4260 = vmatpush1.msra.mxu0 0.0
        %4261 = vmatprep.subr.mxu0 0.0
        %4262 = vmatpush1.msra.mxu0 0.0
        %4263 = vmatprep.subr.mxu0 0.0
        %4264 = vmatpush1.msra.mxu0 0.0
        %4265 = vmatprep.subr.mxu0 0.0
        %4266 = vmatpush1.msra.mxu0 0.0
        %4267 = vmatprep.subr.mxu0 0.0
        %4268 = vmatpush1.msra.mxu0 0.0
        %4269 = vmatprep.subr.mxu0 0.0
        %4270 = vmatpush1.msra.mxu0 0.0
        %4271 = vmatprep.subr.mxu0 0.0
        %4272 = vmatpush1.msra.mxu0 0.0
        %4273 = vmatprep.subr.mxu0 0.0
        %4274 = vmatpush1.msra.mxu0 0.0
        %4275 = vmatprep.subr.mxu0 0.0
        %4276 = vmatpush1.msra.mxu0 0.0
        %4277 = vmatprep.subr.mxu0 0.0
        %4278 = vmatpush1.msra.mxu0 0.0
        %4279 = vmatprep.subr.mxu0 0.0
        %4280 = vmatpush1.msra.mxu0 0.0
        %4281 = vmatprep.subr.mxu0 0.0
        %4282 = vmatpush1.msra.mxu0 0.0
        %4283 = vmatprep.subr.mxu0 0.0
        %4284 = vmatpush1.msra.mxu0 0.0
        %4285 = vmatprep.subr.mxu0 0.0
        %4286 = vmatpush1.msra.mxu0 0.0
        %4287 = vmatprep.subr.mxu0 0.0
        %4288 = vmatpush1.msra.mxu0 0.0
        %4289 = vmatprep.mubr.f32.mxu0 0.0
        %4290 = vmatmul.mubr.f32.gmra.mrb[0].mxu0 %v3607
        %v4291 = vpop.f32.mrb[0].mxu0
        %v4292 = vadd.f32 0.0, %v4291
        %v4293 = vpop.f32.mrb[0].mxu0
        %4294 = vmatprep.mubr.f32.mxu0 0.0
        %4295 = vmatmul.mubr.f32.gmra.mrb[0].mxu0 %v3481
        %v4296 = vpop.f32.mrb[0].mxu0
        %v4297 = vadd.f32 0.0, %v4296
        %v4298 = vpop.f32.mrb[0].mxu0
        %4299 = vmatprep.mubr.f32.mxu0 0.0
        %4300 = vmatmul.mubr.f32.gmra.mrb[0].mxu0 %v3609
        %v4301 = vpop.f32.mrb[0].mxu0
        %v4302 = vadd.f32 0.0, %v4301
        %v4303 = vpop.f32.mrb[0].mxu0
        %4304 = vmatprep.mubr.f32.mxu0 0.0
        %4305 = vmatmul.mubr.f32.gmra.mrb[0].mxu0 %v3487
        %v4306 = vpop.f32.mrb[0].mxu0
        %v4307 = vadd.f32 0.0, %v4306
        %v4308 = vpop.f32.mrb[0].mxu0
        %4309 = vmatprep.mubr.f32.mxu0 0.0
        %4310 = vmatmul.mubr.f32.gmra.mrb[0].mxu0 %v3610
        %v4311 = vpop.f32.mrb[0].mxu0
        %v4312 = vadd.f32 0.0, %v4311
        %v4313 = vpop.f32.mrb[0].mxu0
        %4314 = vmatprep.mubr.f32.mxu0 0.0
        %4315 = vmatmul.mubr.f32.gmra.mrb[0].mxu0 %v3490
        %v4316 = vpop.f32.mrb[0].mxu0
        %v4317 = vadd.f32 0.0, %v4316
        %v4318 = vpop.f32.mrb[0].mxu0
        %4319 = vmatprep.mubr.f32.mxu0 0.0
        %4320 = vmatmul.mubr.f32.gmra.mrb[0].mxu0 %v3611
        %v4321 = vpop.f32.mrb[0].mxu0
        %v4322 = vadd.f32 0.0, %v4321
        %v4323 = vpop.f32.mrb[0].mxu0
        %4324 = vmatprep.mubr.f32.mxu0 0.0
        %4325 = vmatmul.mubr.f32.gmra.mrb[0].mxu0 %v3493
        %v4326 = vpop.f32.mrb[0].mxu0
        %v4327 = vadd.f32 0.0, %v4326
        %v4328 = vpop.f32.mrb[0].mxu0
        %4329 = vmatprep.mubr.f32.mxu0 0.0
        %4330 = vmatmul.mubr.f32.gmra.mrb[0].mxu0 %v3612
        %v4331 = vpop.f32.mrb[0].mxu0
        %v4332 = vadd.f32 0.0, %v4331
        %v4333 = vpop.f32.mrb[0].mxu0
        %4334 = vmatprep.mubr.f32.mxu0 0.0
        %4335 = vmatmul.mubr.f32.gmra.mrb[0].mxu0 %v3496
        %v4336 = vpop.f32.mrb[0].mxu0
        %v4337 = vadd.f32 0.0, %v4336
        %v4338 = vpop.f32.mrb[0].mxu0
        %4339 = vmatprep.mubr.f32.mxu0 0.0
        %4340 = vmatmul.mubr.f32.gmra.mrb[0].mxu0 %v3613
        %v4341 = vpop.f32.mrb[0].mxu0
        %v4342 = vadd.f32 0.0, %v4341
        %v4343 = vpop.f32.mrb[0].mxu0
        %4344 = vmatprep.mubr.f32.mxu0 0.0
        %4345 = vmatmul.mubr.f32.gmra.mrb[0].mxu0 %v3499
        %v4346 = vpop.f32.mrb[0].mxu0
        %v4347 = vadd.f32 0.0, %v4346
        %v4348 = vpop.f32.mrb[0].mxu0
        %4349 = vmatprep.mubr.f32.mxu0 0.0
        %4350 = vmatmul.mubr.f32.gmra.mrb[0].mxu0 %v3614
        %v4351 = vpop.f32.mrb[0].mxu0
        %v4352 = vadd.f32 0.0, %v4351
        %v4353 = vpop.f32.mrb[0].mxu0
        %4354 = vmatprep.mubr.f32.mxu0 0.0
        %4355 = vmatmul.mubr.f32.gmra.mrb[0].mxu0 %v3502
        %v4356 = vpop.f32.mrb[0].mxu0
        %v4357 = vadd.f32 0.0, %v4356
        %v4358 = vpop.f32.mrb[0].mxu0
        %4359 = vmatprep.mubr.f32.mxu0 0.0
        %4360 = vmatmul.mubr.f32.gmra.mrb[0].mxu0 %v3615
        %v4361 = vpop.f32.mrb[0].mxu0
        %v4362 = vadd.f32 0.0, %v4361
        %v4363 = vpop.f32.mrb[0].mxu0
        %4364 = vmatprep.mubr.f32.mxu0 0.0
        %4365 = vmatmul.mubr.f32.gmra.mrb[0].mxu0 %v3505
        %v4366 = vpop.f32.mrb[0].mxu0
        %v4367 = vadd.f32 0.0, %v4366
        %v4368 = vpop.f32.mrb[0].mxu0
        %4369 = vmatprep.mubr.f32.mxu0 0.0
        %4370 = vmatmul.mubr.f32.gmra.mrb[0].mxu0 %v3616
        %v4371 = vpop.f32.mrb[0].mxu0
        %v4372 = vadd.f32 0.0, %v4371
        %v4373 = vpop.f32.mrb[0].mxu0
        %4374 = vmatprep.mubr.f32.mxu0 0.0
        %4375 = vmatmul.mubr.f32.gmra.mrb[0].mxu0 %v3508
        %v4376 = vpop.f32.mrb[0].mxu0
        %v4377 = vadd.f32 0.0, %v4376
        %v4378 = vpop.f32.mrb[0].mxu0
        %4379 = vmatprep.mubr.f32.mxu0 0.0
        %4380 = vmatmul.mubr.f32.gmra.mrb[0].mxu0 %v3617
        %v4381 = vpop.f32.mrb[0].mxu0
        %v4382 = vadd.f32 0.0, %v4381
        %v4383 = vpop.f32.mrb[0].mxu0
        %4384 = vmatprep.mubr.f32.mxu0 0.0
        %4385 = vmatmul.mubr.f32.gmra.mrb[0].mxu0 %v3511
        %v4386 = vpop.f32.mrb[0].mxu0
        %v4387 = vadd.f32 0.0, %v4386
        %v4388 = vpop.f32.mrb[0].mxu0
        %4389 = vmatprep.mubr.f32.mxu0 0.0
        %4390 = vmatmul.mubr.f32.gmra.mrb[0].mxu0 %v3618
        %v4391 = vpop.f32.mrb[0].mxu0
        %v4392 = vadd.f32 0.0, %v4391
        %v4393 = vpop.f32.mrb[0].mxu0
        %4394 = vmatprep.mubr.f32.mxu0 0.0
        %4395 = vmatmul.mubr.f32.gmra.mrb[0].mxu0 %v3514
        %v4396 = vpop.f32.mrb[0].mxu0
        %v4397 = vadd.f32 0.0, %v4396
        %v4398 = vpop.f32.mrb[0].mxu0
        %4399 = vmatprep.mubr.f32.mxu0 0.0
        %4400 = vmatmul.mubr.f32.gmra.mrb[0].mxu0 %v3619
        %v4401 = vpop.f32.mrb[0].mxu0
        %v4402 = vadd.f32 0.0, %v4401
        %v4403 = vpop.f32.mrb[0].mxu0
        %4404 = vmatprep.mubr.f32.mxu0 0.0
        %4405 = vmatmul.mubr.f32.gmra.mrb[0].mxu0 %v3517
        %v4406 = vpop.f32.mrb[0].mxu0
        %v4407 = vadd.f32 0.0, %v4406
        %v4408 = vpop.f32.mrb[0].mxu0
        %4409 = vmatprep.mubr.f32.mxu0 0.0
        %4410 = vmatmul.mubr.f32.gmra.mrb[0].mxu0 %v3620
        %v4411 = vpop.f32.mrb[0].mxu0
        %v4412 = vadd.f32 0.0, %v4411
        %v4413 = vpop.f32.mrb[0].mxu0
        %4414 = vmatprep.mubr.f32.mxu0 0.0
        %4415 = vmatmul.mubr.f32.gmra.mrb[0].mxu0 %v3520
        %v4416 = vpop.f32.mrb[0].mxu0
        %v4417 = vadd.f32 0.0, %v4416
        %v4418 = vpop.f32.mrb[0].mxu0
        %4419 = vmatprep.mubr.f32.mxu0 0.0
        %4420 = vmatmul.mubr.f32.gmra.mrb[0].mxu0 %v3621
        %v4421 = vpop.f32.mrb[0].mxu0
        %v4422 = vadd.f32 0.0, %v4421
        %v4423 = vpop.f32.mrb[0].mxu0
        %4424 = vmatprep.mubr.f32.mxu0 0.0
        %4425 = vmatmul.mubr.f32.gmra.mrb[0].mxu0 %v3523
        %v4426 = vpop.f32.mrb[0].mxu0
        %v4427 = vadd.f32 0.0, %v4426
        %v4428 = vpop.f32.mrb[0].mxu0
        %4429 = vmatprep.mubr.f32.mxu0 0.0
        %4430 = vmatmul.mubr.f32.gmra.mrb[0].mxu0 %v3622
        %v4431 = vpop.f32.mrb[0].mxu0
        %v4432 = vadd.f32 0.0, %v4431
        %v4433 = vpop.f32.mrb[0].mxu0
        %4434 = vmatprep.mubr.f32.mxu0 0.0
        %4435 = vmatmul.mubr.f32.gmra.mrb[0].mxu0 %v3526
        %v4436 = vpop.f32.mrb[0].mxu0
        %v4437 = vadd.f32 0.0, %v4436
        %v4438 = vpop.f32.mrb[0].mxu0
        %4439 = vmatprep.mubr.f32.mxu0 0.0
        %4440 = vmatmul.mubr.f32.gmra.mrb[0].mxu0 %v3621
        %v4441 = vpop.f32.mrb[0].mxu0
        %v4442 = vadd.f32 0.0, %v4441
        %v4443 = vpop.f32.mrb[0].mxu0
        %4444 = vmatprep.mubr.f32.mxu0 0.0
        %4445 = vmatmul.mubr.f32.gmra.mrb[0].mxu0 %v3523
        %v4446 = vpop.f32.mrb[0].mxu0
        %v4447 = vadd.f32 0.0, %v4446
        %v4448 = vpop.f32.mrb[0].mxu0
        %4449 = vdwg.mxu0
        %v4450 = vadd.f32 %v4176, %v4292
        %v4451 = vadd.f32 %v4177, %v4297
        %v4452 = vadd.f32 %v4178, %v4302
        %v4453 = vadd.f32 %v4179, %v4307
        %v4454 = vadd.f32 %v4180, %v4312
        %v4455 = vadd.f32 %v4181, %v4317
        %v4456 = vadd.f32 %v4182, %v4322
        %v4457 = vadd.f32 %v4183, %v4327
        %v4458 = vadd.f32 %v4184, %v4332
        %v4459 = vadd.f32 %v4185, %v4337
        %v4460 = vadd.f32 %v4186, %v4342
        %v4461 = vadd.f32 %v4187, %v4347
        %v4462 = vadd.f32 %v4188, %v4352
        %v4463 = vadd.f32 %v4189, %v4357
        %v4464 = vadd.f32 %v4190, %v4362
        %v4465 = vadd.f32 %v4191, %v4367
        %v4466 = vadd.f32 %v4192, %v4372
        %v4467 = vadd.f32 %v4193, %v4377
        %v4468 = vadd.f32 %v4194, %v4382
        %v4469 = vadd.f32 %v4195, %v4387
        %v4470 = vadd.f32 %v4196, %v4392
        %v4471 = vadd.f32 %v4197, %v4397
        %v4472 = vadd.f32 %v4198, %v4402
        %v4473 = vadd.f32 %v4199, %v4407
        %v4474 = vadd.f32 %v4200, %v4412
        %v4475 = vadd.f32 %v4201, %v4417
        %v4476 = vadd.f32 %v4202, %v4422
        %v4477 = vadd.f32 %v4203, %v4427
        %v4478 = vadd.f32 %v4204, %v4432
        %v4479 = vadd.f32 %v4205, %v4437
        %v4480 = vadd.f32 %v4206, %v4442
        %v4481 = vadd.f32 %v4207, %v4447
        %v4482 = vrot.slane %v3607, 1
        %v4483 = vrot.slane %v3481, 1
        %v4484 = vrot.slane %v3639, 1
        %v4485 = vrot.slane %v3608, 1
        %v4486 = vrot.slane %v3484, 1
        %v4487 = vrot.slane %v3640, 1
        %v4488 = vrot.slane %v3609, 1
        %v4489 = vrot.slane %v3487, 1
        %v4490 = vrot.slane %v3641, 1
        %v4491 = vrot.slane %v3610, 1
        %v4492 = vrot.slane %v3490, 1
        %v4493 = vrot.slane %v3642, 1
        %v4494 = vrot.slane %v3611, 1
        %v4495 = vrot.slane %v3493, 1
        %v4496 = vrot.slane %v3643, 1
        %v4497 = vrot.slane %v3612, 1
        %v4498 = vrot.slane %v3496, 1
        %v4499 = vrot.slane %v3644, 1
        %v4500 = vrot.slane %v3613, 1
        %v4501 = vrot.slane %v3499, 1
        %v4502 = vrot.slane %v3645, 1
        %v4503 = vrot.slane %v3614, 1
        %v4504 = vrot.slane %v3502, 1
        %v4505 = vrot.slane %v3646, 1
        %v4506 = vrot.slane %v3615, 1
        %v4507 = vrot.slane %v3505, 1
        %v4508 = vrot.slane %v3647, 1
        %v4509 = vrot.slane %v3616, 1
        %v4510 = vrot.slane %v3508, 1
        %v4511 = vrot.slane %v3648, 1
        %v4512 = vrot.slane %v3617, 1
        %v4513 = vrot.slane %v3511, 1
        %v4514 = vrot.slane %v3649, 1
        %v4515 = vrot.slane %v3618, 1
        %v4516 = vrot.slane %v3514, 1
        %v4517 = vrot.slane %v3650, 1
        %v4518 = vrot.slane %v3619, 1
        %v4519 = vrot.slane %v3517, 1
        %v4520 = vrot.slane %v3651, 1
        %v4521 = vrot.slane %v3620, 1
        %v4522 = vrot.slane %v3520, 1
        %v4523 = vrot.slane %v3652, 1
        %v4524 = vrot.slane %v3621, 1
        %v4525 = vrot.slane %v3523, 1
        %v4526 = vrot.slane %v3653, 1
        %v4527 = vrot.slane %v3622, 1
        %v4528 = vrot.slane %v3526, 1
        %v4529 = vrot.slane %v3654, 1
        %v4530 = vsel %vm1449, %v4525, %v4526
        %v4531 = vsel %vm1449, %v4524, %v4525
        %v4532 = vsel %vm1449, %v4528, %v4529
        %v4533 = vsel %vm1449, %v4527, %v4528
        %v4534 = vsel %vm1449, %v4522, %v4523
        %v4535 = vsel %vm1449, %v4521, %v4522
        %v4536 = vsel %vm1449, %v4519, %v4520
        %v4537 = vsel %vm1449, %v4518, %v4519
        %v4538 = vsel %vm1449, %v4516, %v4517
        %v4539 = vsel %vm1449, %v4515, %v4516
        %v4540 = vsel %vm1449, %v4513, %v4514
        %v4541 = vsel %vm1449, %v4512, %v4513
        %v4542 = vsel %vm1449, %v4510, %v4511
        %v4543 = vsel %vm1449, %v4509, %v4510
        %v4544 = vsel %vm1449, %v4507, %v4508
        %v4545 = vsel %vm1449, %v4506, %v4507
        %v4546 = vsel %vm1449, %v4504, %v4505
        %v4547 = vsel %vm1449, %v4503, %v4504
        %v4548 = vsel %vm1449, %v4501, %v4502
        %v4549 = vsel %vm1449, %v4500, %v4501
        %v4550 = vsel %vm1449, %v4498, %v4499
        %v4551 = vsel %vm1449, %v4497, %v4498
        %v4552 = vsel %vm1449, %v4495, %v4496
        %v4553 = vsel %vm1449, %v4494, %v4495
        %v4554 = vsel %vm1449, %v4492, %v4493
        %v4555 = vsel %vm1449, %v4491, %v4492
        %v4556 = vsel %vm1449, %v4489, %v4490
        %v4557 = vsel %vm1449, %v4488, %v4489
        %v4558 = vsel %vm1449, %v4483, %v4484
        %v4559 = vsel %vm1449, %v4482, %v4483
        %v4560 = vsel %vm1449, %v4486, %v4487
        %v4561 = vsel %vm1449, %v4485, %v4486
        %s4562 = scalar_lea.vmem [#allocation8], 128
        %v4563 = vld [vmem:[%s4562] sm:$0xff]
        %v4564 = vld [vmem:[%s4562 + $0x8] sm:$0xff]
        %v4565 = vld [vmem:[%s4562 + $0x10] sm:$0xff]
        %v4566 = vld [vmem:[%s4562 + $0x18] sm:$0xff]
        %v4567 = vld [vmem:[%s4562 + $0x20] sm:$0xff]
        %v4568 = vld [vmem:[%s4562 + $0x28] sm:$0xff]
        %v4569 = vld [vmem:[%s4562 + $0x30] sm:$0xff]
        %v4570 = vld [vmem:[%s4562 + $0x38] sm:$0xff]
        %v4571 = vld [vmem:[%s4562 + $0x40] sm:$0xff]
        %v4572 = vld [vmem:[%s4562 + $0x48] sm:$0xff]
        %v4573 = vld [vmem:[%s4562 + $0x50] sm:$0xff]
        %v4574 = vld [vmem:[%s4562 + $0x58] sm:$0xff]
        %v4575 = vld [vmem:[%s4562 + $0x60] sm:$0xff]
        %v4576 = vld [vmem:[%s4562 + $0x68] sm:$0xff]
        %v4577 = vld [vmem:[%s4562 + $0x70] sm:$0xff]
        %v4578 = vld [vmem:[%s4562 + $0x78] sm:$0xff]
        %4579 = vmatprep.subr.mxu0 0.0
        %4580 = vmatpush1.msra.mxu0 %v4563
        %4581 = vmatprep.subr.mxu0 0.0
        %4582 = vmatpush1.msra.mxu0 %v4564
        %4583 = vmatprep.subr.mxu0 0.0
        %4584 = vmatpush1.msra.mxu0 %v4565
        %4585 = vmatprep.subr.mxu0 0.0
        %4586 = vmatpush1.msra.mxu0 %v4566
        %4587 = vmatprep.subr.mxu0 0.0
        %4588 = vmatpush1.msra.mxu0 %v4567
        %4589 = vmatprep.subr.mxu0 0.0
        %4590 = vmatpush1.msra.mxu0 %v4568
        %4591 = vmatprep.subr.mxu0 0.0
        %4592 = vmatpush1.msra.mxu0 %v4569
        %4593 = vmatprep.subr.mxu0 0.0
        %4594 = vmatpush1.msra.mxu0 %v4570
        %4595 = vmatprep.subr.mxu0 0.0
        %4596 = vmatpush1.msra.mxu0 %v4571
        %4597 = vmatprep.subr.mxu0 0.0
        %4598 = vmatpush1.msra.mxu0 %v4572
        %4599 = vmatprep.subr.mxu0 0.0
        %4600 = vmatpush1.msra.mxu0 %v4573
        %4601 = vmatprep.subr.mxu0 0.0
        %4602 = vmatpush1.msra.mxu0 %v4574
        %4603 = vmatprep.subr.mxu0 0.0
        %4604 = vmatpush1.msra.mxu0 %v4575
        %4605 = vmatprep.subr.mxu0 0.0
        %4606 = vmatpush1.msra.mxu0 %v4576
        %4607 = vmatprep.subr.mxu0 0.0
        %4608 = vmatpush1.msra.mxu0 %v4577
        %4609 = vmatprep.subr.mxu0 0.0
        %4610 = vmatpush1.msra.mxu0 %v4578
        %4611 = vmatprep.subr.mxu0 0.0
        %4612 = vmatpush1.msra.mxu0 0.0
        %4613 = vmatprep.subr.mxu0 0.0
        %4614 = vmatpush1.msra.mxu0 0.0
        %4615 = vmatprep.subr.mxu0 0.0
        %4616 = vmatpush1.msra.mxu0 0.0
        %4617 = vmatprep.subr.mxu0 0.0
        %4618 = vmatpush1.msra.mxu0 0.0
        %4619 = vmatprep.subr.mxu0 0.0
        %4620 = vmatpush1.msra.mxu0 0.0
        %4621 = vmatprep.subr.mxu0 0.0
        %4622 = vmatpush1.msra.mxu0 0.0
        %4623 = vmatprep.subr.mxu0 0.0
        %4624 = vmatpush1.msra.mxu0 0.0
        %4625 = vmatprep.subr.mxu0 0.0
        %4626 = vmatpush1.msra.mxu0 0.0
        %4627 = vmatprep.subr.mxu0 0.0
        %4628 = vmatpush1.msra.mxu0 0.0
        %4629 = vmatprep.subr.mxu0 0.0
        %4630 = vmatpush1.msra.mxu0 0.0
        %4631 = vmatprep.subr.mxu0 0.0
        %4632 = vmatpush1.msra.mxu0 0.0
        %4633 = vmatprep.subr.mxu0 0.0
        %4634 = vmatpush1.msra.mxu0 0.0
        %4635 = vmatprep.subr.mxu0 0.0
        %4636 = vmatpush1.msra.mxu0 0.0
        %4637 = vmatprep.subr.mxu0 0.0
        %4638 = vmatpush1.msra.mxu0 0.0
        %4639 = vmatprep.subr.mxu0 0.0
        %4640 = vmatpush1.msra.mxu0 0.0
        %4641 = vmatprep.subr.mxu0 0.0
        %4642 = vmatpush1.msra.mxu0 0.0
        %4643 = vmatprep.mubr.f32.mxu0 0.0
        %4644 = vmatmul.mubr.f32.gmra.mrb[0].mxu0 %v4559
        %v4645 = vpop.f32.mrb[0].mxu0
        %v4646 = vadd.f32 0.0, %v4645
        %v4647 = vpop.f32.mrb[0].mxu0
        %4648 = vmatprep.mubr.f32.mxu0 0.0
        %4649 = vmatmul.mubr.f32.gmra.mrb[0].mxu0 %v4558
        %v4650 = vpop.f32.mrb[0].mxu0
        %v4651 = vadd.f32 0.0, %v4650
        %v4652 = vpop.f32.mrb[0].mxu0
        %4653 = vmatprep.mubr.f32.mxu0 0.0
        %4654 = vmatmul.mubr.f32.gmra.mrb[0].mxu0 %v4561
        %v4655 = vpop.f32.mrb[0].mxu0
        %v4656 = vadd.f32 0.0, %v4655
        %v4657 = vpop.f32.mrb[0].mxu0
        %4658 = vmatprep.mubr.f32.mxu0 0.0
        %4659 = vmatmul.mubr.f32.gmra.mrb[0].mxu0 %v4560
        %v4660 = vpop.f32.mrb[0].mxu0
        %v4661 = vadd.f32 0.0, %v4660
        %v4662 = vpop.f32.mrb[0].mxu0
        %4663 = vmatprep.mubr.f32.mxu0 0.0
        %4664 = vmatmul.mubr.f32.gmra.mrb[0].mxu0 %v4559
        %v4665 = vpop.f32.mrb[0].mxu0
        %v4666 = vadd.f32 0.0, %v4665
        %v4667 = vpop.f32.mrb[0].mxu0
        %4668 = vmatprep.mubr.f32.mxu0 0.0
        %4669 = vmatmul.mubr.f32.gmra.mrb[0].mxu0 %v4558
        %v4670 = vpop.f32.mrb[0].mxu0
        %v4671 = vadd.f32 0.0, %v4670
        %v4672 = vpop.f32.mrb[0].mxu0
        %4673 = vmatprep.mubr.f32.mxu0 0.0
        %4674 = vmatmul.mubr.f32.gmra.mrb[0].mxu0 %v4557
        %v4675 = vpop.f32.mrb[0].mxu0
        %v4676 = vadd.f32 0.0, %v4675
        %v4677 = vpop.f32.mrb[0].mxu0
        %4678 = vmatprep.mubr.f32.mxu0 0.0
        %4679 = vmatmul.mubr.f32.gmra.mrb[0].mxu0 %v4556
        %v4680 = vpop.f32.mrb[0].mxu0
        %v4681 = vadd.f32 0.0, %v4680
        %v4682 = vpop.f32.mrb[0].mxu0
        %4683 = vmatprep.mubr.f32.mxu0 0.0
        %4684 = vmatmul.mubr.f32.gmra.mrb[0].mxu0 %v4555
        %v4685 = vpop.f32.mrb[0].mxu0
        %v4686 = vadd.f32 0.0, %v4685
        %v4687 = vpop.f32.mrb[0].mxu0
        %4688 = vmatprep.mubr.f32.mxu0 0.0
        %4689 = vmatmul.mubr.f32.gmra.mrb[0].mxu0 %v4554
        %v4690 = vpop.f32.mrb[0].mxu0
        %v4691 = vadd.f32 0.0, %v4690
        %v4692 = vpop.f32.mrb[0].mxu0
        %4693 = vmatprep.mubr.f32.mxu0 0.0
        %4694 = vmatmul.mubr.f32.gmra.mrb[0].mxu0 %v4553
        %v4695 = vpop.f32.mrb[0].mxu0
        %v4696 = vadd.f32 0.0, %v4695
        %v4697 = vpop.f32.mrb[0].mxu0
        %4698 = vmatprep.mubr.f32.mxu0 0.0
        %4699 = vmatmul.mubr.f32.gmra.mrb[0].mxu0 %v4552
        %v4700 = vpop.f32.mrb[0].mxu0
        %v4701 = vadd.f32 0.0, %v4700
        %v4702 = vpop.f32.mrb[0].mxu0
        %4703 = vmatprep.mubr.f32.mxu0 0.0
        %4704 = vmatmul.mubr.f32.gmra.mrb[0].mxu0 %v4551
        %v4705 = vpop.f32.mrb[0].mxu0
        %v4706 = vadd.f32 0.0, %v4705
        %v4707 = vpop.f32.mrb[0].mxu0
        %4708 = vmatprep.mubr.f32.mxu0 0.0
        %4709 = vmatmul.mubr.f32.gmra.mrb[0].mxu0 %v4550
        %v4710 = vpop.f32.mrb[0].mxu0
        %v4711 = vadd.f32 0.0, %v4710
        %v4712 = vpop.f32.mrb[0].mxu0
        %4713 = vmatprep.mubr.f32.mxu0 0.0
        %4714 = vmatmul.mubr.f32.gmra.mrb[0].mxu0 %v4549
        %v4715 = vpop.f32.mrb[0].mxu0
        %v4716 = vadd.f32 0.0, %v4715
        %v4717 = vpop.f32.mrb[0].mxu0
        %4718 = vmatprep.mubr.f32.mxu0 0.0
        %4719 = vmatmul.mubr.f32.gmra.mrb[0].mxu0 %v4548
        %v4720 = vpop.f32.mrb[0].mxu0
        %v4721 = vadd.f32 0.0, %v4720
        %v4722 = vpop.f32.mrb[0].mxu0
        %4723 = vmatprep.mubr.f32.mxu0 0.0
        %4724 = vmatmul.mubr.f32.gmra.mrb[0].mxu0 %v4547
        %v4725 = vpop.f32.mrb[0].mxu0
        %v4726 = vadd.f32 0.0, %v4725
        %v4727 = vpop.f32.mrb[0].mxu0
        %4728 = vmatprep.mubr.f32.mxu0 0.0
        %4729 = vmatmul.mubr.f32.gmra.mrb[0].mxu0 %v4546
        %v4730 = vpop.f32.mrb[0].mxu0
        %v4731 = vadd.f32 0.0, %v4730
        %v4732 = vpop.f32.mrb[0].mxu0
        %4733 = vmatprep.mubr.f32.mxu0 0.0
        %4734 = vmatmul.mubr.f32.gmra.mrb[0].mxu0 %v4545
        %v4735 = vpop.f32.mrb[0].mxu0
        %v4736 = vadd.f32 0.0, %v4735
        %v4737 = vpop.f32.mrb[0].mxu0
        %4738 = vmatprep.mubr.f32.mxu0 0.0
        %4739 = vmatmul.mubr.f32.gmra.mrb[0].mxu0 %v4544
        %v4740 = vpop.f32.mrb[0].mxu0
        %v4741 = vadd.f32 0.0, %v4740
        %v4742 = vpop.f32.mrb[0].mxu0
        %4743 = vmatprep.mubr.f32.mxu0 0.0
        %4744 = vmatmul.mubr.f32.gmra.mrb[0].mxu0 %v4543
        %v4745 = vpop.f32.mrb[0].mxu0
        %v4746 = vadd.f32 0.0, %v4745
        %v4747 = vpop.f32.mrb[0].mxu0
        %4748 = vmatprep.mubr.f32.mxu0 0.0
        %4749 = vmatmul.mubr.f32.gmra.mrb[0].mxu0 %v4542
        %v4750 = vpop.f32.mrb[0].mxu0
        %v4751 = vadd.f32 0.0, %v4750
        %v4752 = vpop.f32.mrb[0].mxu0
        %4753 = vmatprep.mubr.f32.mxu0 0.0
        %4754 = vmatmul.mubr.f32.gmra.mrb[0].mxu0 %v4541
        %v4755 = vpop.f32.mrb[0].mxu0
        %v4756 = vadd.f32 0.0, %v4755
        %v4757 = vpop.f32.mrb[0].mxu0
        %4758 = vmatprep.mubr.f32.mxu0 0.0
        %4759 = vmatmul.mubr.f32.gmra.mrb[0].mxu0 %v4540
        %v4760 = vpop.f32.mrb[0].mxu0
        %v4761 = vadd.f32 0.0, %v4760
        %v4762 = vpop.f32.mrb[0].mxu0
        %4763 = vmatprep.mubr.f32.mxu0 0.0
        %4764 = vmatmul.mubr.f32.gmra.mrb[0].mxu0 %v4539
        %v4765 = vpop.f32.mrb[0].mxu0
        %v4766 = vadd.f32 0.0, %v4765
        %v4767 = vpop.f32.mrb[0].mxu0
        %4768 = vmatprep.mubr.f32.mxu0 0.0
        %4769 = vmatmul.mubr.f32.gmra.mrb[0].mxu0 %v4538
        %v4770 = vpop.f32.mrb[0].mxu0
        %v4771 = vadd.f32 0.0, %v4770
        %v4772 = vpop.f32.mrb[0].mxu0
        %4773 = vmatprep.mubr.f32.mxu0 0.0
        %4774 = vmatmul.mubr.f32.gmra.mrb[0].mxu0 %v4537
        %v4775 = vpop.f32.mrb[0].mxu0
        %v4776 = vadd.f32 0.0, %v4775
        %v4777 = vpop.f32.mrb[0].mxu0
        %4778 = vmatprep.mubr.f32.mxu0 0.0
        %4779 = vmatmul.mubr.f32.gmra.mrb[0].mxu0 %v4536
        %v4780 = vpop.f32.mrb[0].mxu0
        %v4781 = vadd.f32 0.0, %v4780
        %v4782 = vpop.f32.mrb[0].mxu0
        %4783 = vmatprep.mubr.f32.mxu0 0.0
        %4784 = vmatmul.mubr.f32.gmra.mrb[0].mxu0 %v4535
        %v4785 = vpop.f32.mrb[0].mxu0
        %v4786 = vadd.f32 0.0, %v4785
        %v4787 = vpop.f32.mrb[0].mxu0
        %4788 = vmatprep.mubr.f32.mxu0 0.0
        %4789 = vmatmul.mubr.f32.gmra.mrb[0].mxu0 %v4534
        %v4790 = vpop.f32.mrb[0].mxu0
        %v4791 = vadd.f32 0.0, %v4790
        %v4792 = vpop.f32.mrb[0].mxu0
        %4793 = vmatprep.mubr.f32.mxu0 0.0
        %4794 = vmatmul.mubr.f32.gmra.mrb[0].mxu0 %v4531
        %v4795 = vpop.f32.mrb[0].mxu0
        %v4796 = vadd.f32 0.0, %v4795
        %v4797 = vpop.f32.mrb[0].mxu0
        %4798 = vmatprep.mubr.f32.mxu0 0.0
        %4799 = vmatmul.mubr.f32.gmra.mrb[0].mxu0 %v4530
        %v4800 = vpop.f32.mrb[0].mxu0
        %v4801 = vadd.f32 0.0, %v4800
        %v4802 = vpop.f32.mrb[0].mxu0
        %4803 = vdwg.mxu0
        %v4804 = vadd.f32 %v4450, %v4646
        %v4805 = vadd.f32 %v4451, %v4651
        %v4806 = vadd.f32 %v4452, %v4656
        %v4807 = vadd.f32 %v4453, %v4661
        %v4808 = vadd.f32 %v4454, %v4666
        %v4809 = vadd.f32 %v4455, %v4671
        %v4810 = vadd.f32 %v4456, %v4676
        %v4811 = vadd.f32 %v4457, %v4681
        %v4812 = vadd.f32 %v4458, %v4686
        %v4813 = vadd.f32 %v4459, %v4691
        %v4814 = vadd.f32 %v4460, %v4696
        %v4815 = vadd.f32 %v4461, %v4701
        %v4816 = vadd.f32 %v4462, %v4706
        %v4817 = vadd.f32 %v4463, %v4711
        %v4818 = vadd.f32 %v4464, %v4716
        %v4819 = vadd.f32 %v4465, %v4721
        %v4820 = vadd.f32 %v4466, %v4726
        %v4821 = vadd.f32 %v4467, %v4731
        %v4822 = vadd.f32 %v4468, %v4736
        %v4823 = vadd.f32 %v4469, %v4741
        %v4824 = vadd.f32 %v4470, %v4746
        %v4825 = vadd.f32 %v4471, %v4751
        %v4826 = vadd.f32 %v4472, %v4756
        %v4827 = vadd.f32 %v4473, %v4761
        %v4828 = vadd.f32 %v4474, %v4766
        %v4829 = vadd.f32 %v4475, %v4771
        %v4830 = vadd.f32 %v4476, %v4776
        %v4831 = vadd.f32 %v4477, %v4781
        %v4832 = vadd.f32 %v4478, %v4786
        %v4833 = vadd.f32 %v4479, %v4791
        %v4834 = vadd.f32 %v4480, %v4796
        %v4835 = vadd.f32 %v4481, %v4801
        %s4836 = scalar_lea.vmem [#allocation8], 512
        %v4837 = vld [vmem:[%s4836] sm:$0xff]
        %v4838 = vld [vmem:[%s4836 + $0x8] sm:$0xff]
        %v4839 = vld [vmem:[%s4836 + $0x10] sm:$0xff]
        %v4840 = vld [vmem:[%s4836 + $0x18] sm:$0xff]
        %v4841 = vld [vmem:[%s4836 + $0x20] sm:$0xff]
        %v4842 = vld [vmem:[%s4836 + $0x28] sm:$0xff]
        %v4843 = vld [vmem:[%s4836 + $0x30] sm:$0xff]
        %v4844 = vld [vmem:[%s4836 + $0x38] sm:$0xff]
        %v4845 = vld [vmem:[%s4836 + $0x40] sm:$0xff]
        %v4846 = vld [vmem:[%s4836 + $0x48] sm:$0xff]
        %v4847 = vld [vmem:[%s4836 + $0x50] sm:$0xff]
        %v4848 = vld [vmem:[%s4836 + $0x58] sm:$0xff]
        %v4849 = vld [vmem:[%s4836 + $0x60] sm:$0xff]
        %v4850 = vld [vmem:[%s4836 + $0x68] sm:$0xff]
        %v4851 = vld [vmem:[%s4836 + $0x70] sm:$0xff]
        %v4852 = vld [vmem:[%s4836 + $0x78] sm:$0xff]
        %4853 = vmatprep.subr.mxu0 0.0
        %4854 = vmatpush1.msra.mxu0 %v4837
        %4855 = vmatprep.subr.mxu0 0.0
        %4856 = vmatpush1.msra.mxu0 %v4838
        %4857 = vmatprep.subr.mxu0 0.0
        %4858 = vmatpush1.msra.mxu0 %v4839
        %4859 = vmatprep.subr.mxu0 0.0
        %4860 = vmatpush1.msra.mxu0 %v4840
        %4861 = vmatprep.subr.mxu0 0.0
        %4862 = vmatpush1.msra.mxu0 %v4841
        %4863 = vmatprep.subr.mxu0 0.0
        %4864 = vmatpush1.msra.mxu0 %v4842
        %4865 = vmatprep.subr.mxu0 0.0
        %4866 = vmatpush1.msra.mxu0 %v4843
        %4867 = vmatprep.subr.mxu0 0.0
        %4868 = vmatpush1.msra.mxu0 %v4844
        %4869 = vmatprep.subr.mxu0 0.0
        %4870 = vmatpush1.msra.mxu0 %v4845
        %4871 = vmatprep.subr.mxu0 0.0
        %4872 = vmatpush1.msra.mxu0 %v4846
        %4873 = vmatprep.subr.mxu0 0.0
        %4874 = vmatpush1.msra.mxu0 %v4847
        %4875 = vmatprep.subr.mxu0 0.0
        %4876 = vmatpush1.msra.mxu0 %v4848
        %4877 = vmatprep.subr.mxu0 0.0
        %4878 = vmatpush1.msra.mxu0 %v4849
        %4879 = vmatprep.subr.mxu0 0.0
        %4880 = vmatpush1.msra.mxu0 %v4850
        %4881 = vmatprep.subr.mxu0 0.0
        %4882 = vmatpush1.msra.mxu0 %v4851
        %4883 = vmatprep.subr.mxu0 0.0
        %4884 = vmatpush1.msra.mxu0 %v4852
        %4885 = vmatprep.subr.mxu0 0.0
        %4886 = vmatpush1.msra.mxu0 0.0
        %4887 = vmatprep.subr.mxu0 0.0
        %4888 = vmatpush1.msra.mxu0 0.0
        %4889 = vmatprep.subr.mxu0 0.0
        %4890 = vmatpush1.msra.mxu0 0.0
        %4891 = vmatprep.subr.mxu0 0.0
        %4892 = vmatpush1.msra.mxu0 0.0
        %4893 = vmatprep.subr.mxu0 0.0
        %4894 = vmatpush1.msra.mxu0 0.0
        %4895 = vmatprep.subr.mxu0 0.0
        %4896 = vmatpush1.msra.mxu0 0.0
        %4897 = vmatprep.subr.mxu0 0.0
        %4898 = vmatpush1.msra.mxu0 0.0
        %4899 = vmatprep.subr.mxu0 0.0
        %4900 = vmatpush1.msra.mxu0 0.0
        %4901 = vmatprep.subr.mxu0 0.0
        %4902 = vmatpush1.msra.mxu0 0.0
        %4903 = vmatprep.subr.mxu0 0.0
        %4904 = vmatpush1.msra.mxu0 0.0
        %4905 = vmatprep.subr.mxu0 0.0
        %4906 = vmatpush1.msra.mxu0 0.0
        %4907 = vmatprep.subr.mxu0 0.0
        %4908 = vmatpush1.msra.mxu0 0.0
        %4909 = vmatprep.subr.mxu0 0.0
        %4910 = vmatpush1.msra.mxu0 0.0
        %4911 = vmatprep.subr.mxu0 0.0
        %4912 = vmatpush1.msra.mxu0 0.0
        %4913 = vmatprep.subr.mxu0 0.0
        %4914 = vmatpush1.msra.mxu0 0.0
        %4915 = vmatprep.subr.mxu0 0.0
        %4916 = vmatpush1.msra.mxu0 0.0
        %4917 = vmatprep.mubr.f32.mxu0 0.0
        %4918 = vmatmul.mubr.f32.gmra.mrb[0].mxu0 %v4561
        %v4919 = vpop.f32.mrb[0].mxu0
        %v4920 = vadd.f32 0.0, %v4919
        %v4921 = vpop.f32.mrb[0].mxu0
        %4922 = vmatprep.mubr.f32.mxu0 0.0
        %4923 = vmatmul.mubr.f32.gmra.mrb[0].mxu0 %v4560
        %v4924 = vpop.f32.mrb[0].mxu0
        %v4925 = vadd.f32 0.0, %v4924
        %v4926 = vpop.f32.mrb[0].mxu0
        %4927 = vmatprep.mubr.f32.mxu0 0.0
        %4928 = vmatmul.mubr.f32.gmra.mrb[0].mxu0 %v4559
        %v4929 = vpop.f32.mrb[0].mxu0
        %v4930 = vadd.f32 0.0, %v4929
        %v4931 = vpop.f32.mrb[0].mxu0
        %4932 = vmatprep.mubr.f32.mxu0 0.0
        %4933 = vmatmul.mubr.f32.gmra.mrb[0].mxu0 %v4558
        %v4934 = vpop.f32.mrb[0].mxu0
        %v4935 = vadd.f32 0.0, %v4934
        %v4936 = vpop.f32.mrb[0].mxu0
        %4937 = vmatprep.mubr.f32.mxu0 0.0
        %4938 = vmatmul.mubr.f32.gmra.mrb[0].mxu0 %v4557
        %v4939 = vpop.f32.mrb[0].mxu0
        %v4940 = vadd.f32 0.0, %v4939
        %v4941 = vpop.f32.mrb[0].mxu0
        %4942 = vmatprep.mubr.f32.mxu0 0.0
        %4943 = vmatmul.mubr.f32.gmra.mrb[0].mxu0 %v4556
        %v4944 = vpop.f32.mrb[0].mxu0
        %v4945 = vadd.f32 0.0, %v4944
        %v4946 = vpop.f32.mrb[0].mxu0
        %4947 = vmatprep.mubr.f32.mxu0 0.0
        %4948 = vmatmul.mubr.f32.gmra.mrb[0].mxu0 %v4555
        %v4949 = vpop.f32.mrb[0].mxu0
        %v4950 = vadd.f32 0.0, %v4949
        %v4951 = vpop.f32.mrb[0].mxu0
        %4952 = vmatprep.mubr.f32.mxu0 0.0
        %4953 = vmatmul.mubr.f32.gmra.mrb[0].mxu0 %v4554
        %v4954 = vpop.f32.mrb[0].mxu0
        %v4955 = vadd.f32 0.0, %v4954
        %v4956 = vpop.f32.mrb[0].mxu0
        %4957 = vmatprep.mubr.f32.mxu0 0.0
        %4958 = vmatmul.mubr.f32.gmra.mrb[0].mxu0 %v4553
        %v4959 = vpop.f32.mrb[0].mxu0
        %v4960 = vadd.f32 0.0, %v4959
        %v4961 = vpop.f32.mrb[0].mxu0
        %4962 = vmatprep.mubr.f32.mxu0 0.0
        %4963 = vmatmul.mubr.f32.gmra.mrb[0].mxu0 %v4552
        %v4964 = vpop.f32.mrb[0].mxu0
        %v4965 = vadd.f32 0.0, %v4964
        %v4966 = vpop.f32.mrb[0].mxu0
        %4967 = vmatprep.mubr.f32.mxu0 0.0
        %4968 = vmatmul.mubr.f32.gmra.mrb[0].mxu0 %v4551
        %v4969 = vpop.f32.mrb[0].mxu0
        %v4970 = vadd.f32 0.0, %v4969
        %v4971 = vpop.f32.mrb[0].mxu0
        %4972 = vmatprep.mubr.f32.mxu0 0.0
        %4973 = vmatmul.mubr.f32.gmra.mrb[0].mxu0 %v4550
        %v4974 = vpop.f32.mrb[0].mxu0
        %v4975 = vadd.f32 0.0, %v4974
        %v4976 = vpop.f32.mrb[0].mxu0
        %4977 = vmatprep.mubr.f32.mxu0 0.0
        %4978 = vmatmul.mubr.f32.gmra.mrb[0].mxu0 %v4549
        %v4979 = vpop.f32.mrb[0].mxu0
        %v4980 = vadd.f32 0.0, %v4979
        %v4981 = vpop.f32.mrb[0].mxu0
        %4982 = vmatprep.mubr.f32.mxu0 0.0
        %4983 = vmatmul.mubr.f32.gmra.mrb[0].mxu0 %v4548
        %v4984 = vpop.f32.mrb[0].mxu0
        %v4985 = vadd.f32 0.0, %v4984
        %v4986 = vpop.f32.mrb[0].mxu0
        %4987 = vmatprep.mubr.f32.mxu0 0.0
        %4988 = vmatmul.mubr.f32.gmra.mrb[0].mxu0 %v4547
        %v4989 = vpop.f32.mrb[0].mxu0
        %v4990 = vadd.f32 0.0, %v4989
        %v4991 = vpop.f32.mrb[0].mxu0
        %4992 = vmatprep.mubr.f32.mxu0 0.0
        %4993 = vmatmul.mubr.f32.gmra.mrb[0].mxu0 %v4546
        %v4994 = vpop.f32.mrb[0].mxu0
        %v4995 = vadd.f32 0.0, %v4994
        %v4996 = vpop.f32.mrb[0].mxu0
        %4997 = vmatprep.mubr.f32.mxu0 0.0
        %4998 = vmatmul.mubr.f32.gmra.mrb[0].mxu0 %v4545
        %v4999 = vpop.f32.mrb[0].mxu0
        %v5000 = vadd.f32 0.0, %v4999
        %v5001 = vpop.f32.mrb[0].mxu0
        %5002 = vmatprep.mubr.f32.mxu0 0.0
        %5003 = vmatmul.mubr.f32.gmra.mrb[0].mxu0 %v4544
        %v5004 = vpop.f32.mrb[0].mxu0
        %v5005 = vadd.f32 0.0, %v5004
        %v5006 = vpop.f32.mrb[0].mxu0
        %5007 = vmatprep.mubr.f32.mxu0 0.0
        %5008 = vmatmul.mubr.f32.gmra.mrb[0].mxu0 %v4543
        %v5009 = vpop.f32.mrb[0].mxu0
        %v5010 = vadd.f32 0.0, %v5009
        %v5011 = vpop.f32.mrb[0].mxu0
        %5012 = vmatprep.mubr.f32.mxu0 0.0
        %5013 = vmatmul.mubr.f32.gmra.mrb[0].mxu0 %v4542
        %v5014 = vpop.f32.mrb[0].mxu0
        %v5015 = vadd.f32 0.0, %v5014
        %v5016 = vpop.f32.mrb[0].mxu0
        %5017 = vmatprep.mubr.f32.mxu0 0.0
        %5018 = vmatmul.mubr.f32.gmra.mrb[0].mxu0 %v4541
        %v5019 = vpop.f32.mrb[0].mxu0
        %v5020 = vadd.f32 0.0, %v5019
        %v5021 = vpop.f32.mrb[0].mxu0
        %5022 = vmatprep.mubr.f32.mxu0 0.0
        %5023 = vmatmul.mubr.f32.gmra.mrb[0].mxu0 %v4540
        %v5024 = vpop.f32.mrb[0].mxu0
        %v5025 = vadd.f32 0.0, %v5024
        %v5026 = vpop.f32.mrb[0].mxu0
        %5027 = vmatprep.mubr.f32.mxu0 0.0
        %5028 = vmatmul.mubr.f32.gmra.mrb[0].mxu0 %v4539
        %v5029 = vpop.f32.mrb[0].mxu0
        %v5030 = vadd.f32 0.0, %v5029
        %v5031 = vpop.f32.mrb[0].mxu0
        %5032 = vmatprep.mubr.f32.mxu0 0.0
        %5033 = vmatmul.mubr.f32.gmra.mrb[0].mxu0 %v4538
        %v5034 = vpop.f32.mrb[0].mxu0
        %v5035 = vadd.f32 0.0, %v5034
        %v5036 = vpop.f32.mrb[0].mxu0
        %5037 = vmatprep.mubr.f32.mxu0 0.0
        %5038 = vmatmul.mubr.f32.gmra.mrb[0].mxu0 %v4537
        %v5039 = vpop.f32.mrb[0].mxu0
        %v5040 = vadd.f32 0.0, %v5039
        %v5041 = vpop.f32.mrb[0].mxu0
        %5042 = vmatprep.mubr.f32.mxu0 0.0
        %5043 = vmatmul.mubr.f32.gmra.mrb[0].mxu0 %v4536
        %v5044 = vpop.f32.mrb[0].mxu0
        %v5045 = vadd.f32 0.0, %v5044
        %v5046 = vpop.f32.mrb[0].mxu0
        %5047 = vmatprep.mubr.f32.mxu0 0.0
        %5048 = vmatmul.mubr.f32.gmra.mrb[0].mxu0 %v4535
        %v5049 = vpop.f32.mrb[0].mxu0
        %v5050 = vadd.f32 0.0, %v5049
        %v5051 = vpop.f32.mrb[0].mxu0
        %5052 = vmatprep.mubr.f32.mxu0 0.0
        %5053 = vmatmul.mubr.f32.gmra.mrb[0].mxu0 %v4534
        %v5054 = vpop.f32.mrb[0].mxu0
        %v5055 = vadd.f32 0.0, %v5054
        %v5056 = vpop.f32.mrb[0].mxu0
        %5057 = vmatprep.mubr.f32.mxu0 0.0
        %5058 = vmatmul.mubr.f32.gmra.mrb[0].mxu0 %v4531
        %v5059 = vpop.f32.mrb[0].mxu0
        %v5060 = vadd.f32 0.0, %v5059
        %v5061 = vpop.f32.mrb[0].mxu0
        %5062 = vmatprep.mubr.f32.mxu0 0.0
        %5063 = vmatmul.mubr.f32.gmra.mrb[0].mxu0 %v4530
        %v5064 = vpop.f32.mrb[0].mxu0
        %v5065 = vadd.f32 0.0, %v5064
        %v5066 = vpop.f32.mrb[0].mxu0
        %5067 = vmatprep.mubr.f32.mxu0 0.0
        %5068 = vmatmul.mubr.f32.gmra.mrb[0].mxu0 %v4533
        %v5069 = vpop.f32.mrb[0].mxu0
        %v5070 = vadd.f32 0.0, %v5069
        %v5071 = vpop.f32.mrb[0].mxu0
        %5072 = vmatprep.mubr.f32.mxu0 0.0
        %5073 = vmatmul.mubr.f32.gmra.mrb[0].mxu0 %v4532
        %v5074 = vpop.f32.mrb[0].mxu0
        %v5075 = vadd.f32 0.0, %v5074
        %v5076 = vpop.f32.mrb[0].mxu0
        %5077 = vdwg.mxu0
        %v5078 = vadd.f32 %v4804, %v4920
        %v5079 = vadd.f32 %v4805, %v4925
        %v5080 = vadd.f32 %v4806, %v4930
        %v5081 = vadd.f32 %v4807, %v4935
        %v5082 = vadd.f32 %v4808, %v4940
        %v5083 = vadd.f32 %v4809, %v4945
        %v5084 = vadd.f32 %v4810, %v4950
        %v5085 = vadd.f32 %v4811, %v4955
        %v5086 = vadd.f32 %v4812, %v4960
        %v5087 = vadd.f32 %v4813, %v4965
        %v5088 = vadd.f32 %v4814, %v4970
        %v5089 = vadd.f32 %v4815, %v4975
        %v5090 = vadd.f32 %v4816, %v4980
        %v5091 = vadd.f32 %v4817, %v4985
        %v5092 = vadd.f32 %v4818, %v4990
        %v5093 = vadd.f32 %v4819, %v4995
        %v5094 = vadd.f32 %v4820, %v5000
        %v5095 = vadd.f32 %v4821, %v5005
        %v5096 = vadd.f32 %v4822, %v5010
        %v5097 = vadd.f32 %v4823, %v5015
        %v5098 = vadd.f32 %v4824, %v5020
        %v5099 = vadd.f32 %v4825, %v5025
        %v5100 = vadd.f32 %v4826, %v5030
        %v5101 = vadd.f32 %v4827, %v5035
        %v5102 = vadd.f32 %v4828, %v5040
        %v5103 = vadd.f32 %v4829, %v5045
        %v5104 = vadd.f32 %v4830, %v5050
        %v5105 = vadd.f32 %v4831, %v5055
        %v5106 = vadd.f32 %v4832, %v5060
        %v5107 = vadd.f32 %v4833, %v5065
        %v5108 = vadd.f32 %v4834, %v5070
        %v5109 = vadd.f32 %v4835, %v5075
        %s5110 = scalar_lea.vmem [#allocation8], 896
        %v5111 = vld [vmem:[%s5110] sm:$0xff]
        %v5112 = vld [vmem:[%s5110 + $0x8] sm:$0xff]
        %v5113 = vld [vmem:[%s5110 + $0x10] sm:$0xff]
        %v5114 = vld [vmem:[%s5110 + $0x18] sm:$0xff]
        %v5115 = vld [vmem:[%s5110 + $0x20] sm:$0xff]
        %v5116 = vld [vmem:[%s5110 + $0x28] sm:$0xff]
        %v5117 = vld [vmem:[%s5110 + $0x30] sm:$0xff]
        %v5118 = vld [vmem:[%s5110 + $0x38] sm:$0xff]
        %v5119 = vld [vmem:[%s5110 + $0x40] sm:$0xff]
        %v5120 = vld [vmem:[%s5110 + $0x48] sm:$0xff]
        %v5121 = vld [vmem:[%s5110 + $0x50] sm:$0xff]
        %v5122 = vld [vmem:[%s5110 + $0x58] sm:$0xff]
        %v5123 = vld [vmem:[%s5110 + $0x60] sm:$0xff]
        %v5124 = vld [vmem:[%s5110 + $0x68] sm:$0xff]
        %v5125 = vld [vmem:[%s5110 + $0x70] sm:$0xff]
        %v5126 = vld [vmem:[%s5110 + $0x78] sm:$0xff]
        %5127 = vmatprep.subr.mxu0 0.0
        %5128 = vmatpush1.msra.mxu0 %v5111
        %5129 = vmatprep.subr.mxu0 0.0
        %5130 = vmatpush1.msra.mxu0 %v5112
        %5131 = vmatprep.subr.mxu0 0.0
        %5132 = vmatpush1.msra.mxu0 %v5113
        %5133 = vmatprep.subr.mxu0 0.0
        %5134 = vmatpush1.msra.mxu0 %v5114
        %5135 = vmatprep.subr.mxu0 0.0
        %5136 = vmatpush1.msra.mxu0 %v5115
        %5137 = vmatprep.subr.mxu0 0.0
        %5138 = vmatpush1.msra.mxu0 %v5116
        %5139 = vmatprep.subr.mxu0 0.0
        %5140 = vmatpush1.msra.mxu0 %v5117
        %5141 = vmatprep.subr.mxu0 0.0
        %5142 = vmatpush1.msra.mxu0 %v5118
        %5143 = vmatprep.subr.mxu0 0.0
        %5144 = vmatpush1.msra.mxu0 %v5119
        %5145 = vmatprep.subr.mxu0 0.0
        %5146 = vmatpush1.msra.mxu0 %v5120
        %5147 = vmatprep.subr.mxu0 0.0
        %5148 = vmatpush1.msra.mxu0 %v5121
        %5149 = vmatprep.subr.mxu0 0.0
        %5150 = vmatpush1.msra.mxu0 %v5122
        %5151 = vmatprep.subr.mxu0 0.0
        %5152 = vmatpush1.msra.mxu0 %v5123
        %5153 = vmatprep.subr.mxu0 0.0
        %5154 = vmatpush1.msra.mxu0 %v5124
        %5155 = vmatprep.subr.mxu0 0.0
        %5156 = vmatpush1.msra.mxu0 %v5125
        %5157 = vmatprep.subr.mxu0 0.0
        %5158 = vmatpush1.msra.mxu0 %v5126
        %5159 = vmatprep.subr.mxu0 0.0
        %5160 = vmatpush1.msra.mxu0 0.0
        %5161 = vmatprep.subr.mxu0 0.0
        %5162 = vmatpush1.msra.mxu0 0.0
        %5163 = vmatprep.subr.mxu0 0.0
        %5164 = vmatpush1.msra.mxu0 0.0
        %5165 = vmatprep.subr.mxu0 0.0
        %5166 = vmatpush1.msra.mxu0 0.0
        %5167 = vmatprep.subr.mxu0 0.0
        %5168 = vmatpush1.msra.mxu0 0.0
        %5169 = vmatprep.subr.mxu0 0.0
        %5170 = vmatpush1.msra.mxu0 0.0
        %5171 = vmatprep.subr.mxu0 0.0
        %5172 = vmatpush1.msra.mxu0 0.0
        %5173 = vmatprep.subr.mxu0 0.0
        %5174 = vmatpush1.msra.mxu0 0.0
        %5175 = vmatprep.subr.mxu0 0.0
        %5176 = vmatpush1.msra.mxu0 0.0
        %5177 = vmatprep.subr.mxu0 0.0
        %5178 = vmatpush1.msra.mxu0 0.0
        %5179 = vmatprep.subr.mxu0 0.0
        %5180 = vmatpush1.msra.mxu0 0.0
        %5181 = vmatprep.subr.mxu0 0.0
        %5182 = vmatpush1.msra.mxu0 0.0
        %5183 = vmatprep.subr.mxu0 0.0
        %5184 = vmatpush1.msra.mxu0 0.0
        %5185 = vmatprep.subr.mxu0 0.0
        %5186 = vmatpush1.msra.mxu0 0.0
        %5187 = vmatprep.subr.mxu0 0.0
        %5188 = vmatpush1.msra.mxu0 0.0
        %5189 = vmatprep.subr.mxu0 0.0
        %5190 = vmatpush1.msra.mxu0 0.0
        %5191 = vmatprep.mubr.f32.mxu0 0.0
        %5192 = vmatmul.mubr.f32.gmra.mrb[0].mxu0 %v4559
        %v5193 = vpop.f32.mrb[0].mxu0
        %v5194 = vadd.f32 0.0, %v5193
        %v5195 = vpop.f32.mrb[0].mxu0
        %5196 = vmatprep.mubr.f32.mxu0 0.0
        %5197 = vmatmul.mubr.f32.gmra.mrb[0].mxu0 %v4558
        %v5198 = vpop.f32.mrb[0].mxu0
        %v5199 = vadd.f32 0.0, %v5198
        %v5200 = vpop.f32.mrb[0].mxu0
        %5201 = vmatprep.mubr.f32.mxu0 0.0
        %5202 = vmatmul.mubr.f32.gmra.mrb[0].mxu0 %v4557
        %v5203 = vpop.f32.mrb[0].mxu0
        %v5204 = vadd.f32 0.0, %v5203
        %v5205 = vpop.f32.mrb[0].mxu0
        %5206 = vmatprep.mubr.f32.mxu0 0.0
        %5207 = vmatmul.mubr.f32.gmra.mrb[0].mxu0 %v4556
        %v5208 = vpop.f32.mrb[0].mxu0
        %v5209 = vadd.f32 0.0, %v5208
        %v5210 = vpop.f32.mrb[0].mxu0
        %5211 = vmatprep.mubr.f32.mxu0 0.0
        %5212 = vmatmul.mubr.f32.gmra.mrb[0].mxu0 %v4555
        %v5213 = vpop.f32.mrb[0].mxu0
        %v5214 = vadd.f32 0.0, %v5213
        %v5215 = vpop.f32.mrb[0].mxu0
        %5216 = vmatprep.mubr.f32.mxu0 0.0
        %5217 = vmatmul.mubr.f32.gmra.mrb[0].mxu0 %v4554
        %v5218 = vpop.f32.mrb[0].mxu0
        %v5219 = vadd.f32 0.0, %v5218
        %v5220 = vpop.f32.mrb[0].mxu0
        %5221 = vmatprep.mubr.f32.mxu0 0.0
        %5222 = vmatmul.mubr.f32.gmra.mrb[0].mxu0 %v4553
        %v5223 = vpop.f32.mrb[0].mxu0
        %v5224 = vadd.f32 0.0, %v5223
        %v5225 = vpop.f32.mrb[0].mxu0
        %5226 = vmatprep.mubr.f32.mxu0 0.0
        %5227 = vmatmul.mubr.f32.gmra.mrb[0].mxu0 %v4552
        %v5228 = vpop.f32.mrb[0].mxu0
        %v5229 = vadd.f32 0.0, %v5228
        %v5230 = vpop.f32.mrb[0].mxu0
        %5231 = vmatprep.mubr.f32.mxu0 0.0
        %5232 = vmatmul.mubr.f32.gmra.mrb[0].mxu0 %v4551
        %v5233 = vpop.f32.mrb[0].mxu0
        %v5234 = vadd.f32 0.0, %v5233
        %v5235 = vpop.f32.mrb[0].mxu0
        %5236 = vmatprep.mubr.f32.mxu0 0.0
        %5237 = vmatmul.mubr.f32.gmra.mrb[0].mxu0 %v4550
        %v5238 = vpop.f32.mrb[0].mxu0
        %v5239 = vadd.f32 0.0, %v5238
        %v5240 = vpop.f32.mrb[0].mxu0
        %5241 = vmatprep.mubr.f32.mxu0 0.0
        %5242 = vmatmul.mubr.f32.gmra.mrb[0].mxu0 %v4549
        %v5243 = vpop.f32.mrb[0].mxu0
        %v5244 = vadd.f32 0.0, %v5243
        %v5245 = vpop.f32.mrb[0].mxu0
        %5246 = vmatprep.mubr.f32.mxu0 0.0
        %5247 = vmatmul.mubr.f32.gmra.mrb[0].mxu0 %v4548
        %v5248 = vpop.f32.mrb[0].mxu0
        %v5249 = vadd.f32 0.0, %v5248
        %v5250 = vpop.f32.mrb[0].mxu0
        %5251 = vmatprep.mubr.f32.mxu0 0.0
        %5252 = vmatmul.mubr.f32.gmra.mrb[0].mxu0 %v4547
        %v5253 = vpop.f32.mrb[0].mxu0
        %v5254 = vadd.f32 0.0, %v5253
        %v5255 = vpop.f32.mrb[0].mxu0
        %5256 = vmatprep.mubr.f32.mxu0 0.0
        %5257 = vmatmul.mubr.f32.gmra.mrb[0].mxu0 %v4546
        %v5258 = vpop.f32.mrb[0].mxu0
        %v5259 = vadd.f32 0.0, %v5258
        %v5260 = vpop.f32.mrb[0].mxu0
        %5261 = vmatprep.mubr.f32.mxu0 0.0
        %5262 = vmatmul.mubr.f32.gmra.mrb[0].mxu0 %v4545
        %v5263 = vpop.f32.mrb[0].mxu0
        %v5264 = vadd.f32 0.0, %v5263
        %v5265 = vpop.f32.mrb[0].mxu0
        %5266 = vmatprep.mubr.f32.mxu0 0.0
        %5267 = vmatmul.mubr.f32.gmra.mrb[0].mxu0 %v4544
        %v5268 = vpop.f32.mrb[0].mxu0
        %v5269 = vadd.f32 0.0, %v5268
        %v5270 = vpop.f32.mrb[0].mxu0
        %5271 = vmatprep.mubr.f32.mxu0 0.0
        %5272 = vmatmul.mubr.f32.gmra.mrb[0].mxu0 %v4543
        %v5273 = vpop.f32.mrb[0].mxu0
        %v5274 = vadd.f32 0.0, %v5273
        %v5275 = vpop.f32.mrb[0].mxu0
        %5276 = vmatprep.mubr.f32.mxu0 0.0
        %5277 = vmatmul.mubr.f32.gmra.mrb[0].mxu0 %v4542
        %v5278 = vpop.f32.mrb[0].mxu0
        %v5279 = vadd.f32 0.0, %v5278
        %v5280 = vpop.f32.mrb[0].mxu0
        %5281 = vmatprep.mubr.f32.mxu0 0.0
        %5282 = vmatmul.mubr.f32.gmra.mrb[0].mxu0 %v4541
        %v5283 = vpop.f32.mrb[0].mxu0
        %v5284 = vadd.f32 0.0, %v5283
        %v5285 = vpop.f32.mrb[0].mxu0
        %5286 = vmatprep.mubr.f32.mxu0 0.0
        %5287 = vmatmul.mubr.f32.gmra.mrb[0].mxu0 %v4540
        %v5288 = vpop.f32.mrb[0].mxu0
        %v5289 = vadd.f32 0.0, %v5288
        %v5290 = vpop.f32.mrb[0].mxu0
        %5291 = vmatprep.mubr.f32.mxu0 0.0
        %5292 = vmatmul.mubr.f32.gmra.mrb[0].mxu0 %v4539
        %v5293 = vpop.f32.mrb[0].mxu0
        %v5294 = vadd.f32 0.0, %v5293
        %v5295 = vpop.f32.mrb[0].mxu0
        %5296 = vmatprep.mubr.f32.mxu0 0.0
        %5297 = vmatmul.mubr.f32.gmra.mrb[0].mxu0 %v4538
        %v5298 = vpop.f32.mrb[0].mxu0
        %v5299 = vadd.f32 0.0, %v5298
        %v5300 = vpop.f32.mrb[0].mxu0
        %5301 = vmatprep.mubr.f32.mxu0 0.0
        %5302 = vmatmul.mubr.f32.gmra.mrb[0].mxu0 %v4537
        %v5303 = vpop.f32.mrb[0].mxu0
        %v5304 = vadd.f32 0.0, %v5303
        %v5305 = vpop.f32.mrb[0].mxu0
        %5306 = vmatprep.mubr.f32.mxu0 0.0
        %5307 = vmatmul.mubr.f32.gmra.mrb[0].mxu0 %v4536
        %v5308 = vpop.f32.mrb[0].mxu0
        %v5309 = vadd.f32 0.0, %v5308
        %v5310 = vpop.f32.mrb[0].mxu0
        %5311 = vmatprep.mubr.f32.mxu0 0.0
        %5312 = vmatmul.mubr.f32.gmra.mrb[0].mxu0 %v4535
        %v5313 = vpop.f32.mrb[0].mxu0
        %v5314 = vadd.f32 0.0, %v5313
        %v5315 = vpop.f32.mrb[0].mxu0
        %5316 = vmatprep.mubr.f32.mxu0 0.0
        %5317 = vmatmul.mubr.f32.gmra.mrb[0].mxu0 %v4534
        %v5318 = vpop.f32.mrb[0].mxu0
        %v5319 = vadd.f32 0.0, %v5318
        %v5320 = vpop.f32.mrb[0].mxu0
        %5321 = vmatprep.mubr.f32.mxu0 0.0
        %5322 = vmatmul.mubr.f32.gmra.mrb[0].mxu0 %v4531
        %v5323 = vpop.f32.mrb[0].mxu0
        %v5324 = vadd.f32 0.0, %v5323
        %v5325 = vpop.f32.mrb[0].mxu0
        %5326 = vmatprep.mubr.f32.mxu0 0.0
        %5327 = vmatmul.mubr.f32.gmra.mrb[0].mxu0 %v4530
        %v5328 = vpop.f32.mrb[0].mxu0
        %v5329 = vadd.f32 0.0, %v5328
        %v5330 = vpop.f32.mrb[0].mxu0
        %5331 = vmatprep.mubr.f32.mxu0 0.0
        %5332 = vmatmul.mubr.f32.gmra.mrb[0].mxu0 %v4533
        %v5333 = vpop.f32.mrb[0].mxu0
        %v5334 = vadd.f32 0.0, %v5333
        %v5335 = vpop.f32.mrb[0].mxu0
        %5336 = vmatprep.mubr.f32.mxu0 0.0
        %5337 = vmatmul.mubr.f32.gmra.mrb[0].mxu0 %v4532
        %v5338 = vpop.f32.mrb[0].mxu0
        %v5339 = vadd.f32 0.0, %v5338
        %v5340 = vpop.f32.mrb[0].mxu0
        %5341 = vmatprep.mubr.f32.mxu0 0.0
        %5342 = vmatmul.mubr.f32.gmra.mrb[0].mxu0 %v4531
        %v5343 = vpop.f32.mrb[0].mxu0
        %v5344 = vadd.f32 0.0, %v5343
        %v5345 = vpop.f32.mrb[0].mxu0
        %5346 = vmatprep.mubr.f32.mxu0 0.0
        %5347 = vmatmul.mubr.f32.gmra.mrb[0].mxu0 %v4530
        %v5348 = vpop.f32.mrb[0].mxu0
        %v5349 = vadd.f32 0.0, %v5348
        %v5350 = vpop.f32.mrb[0].mxu0
        %5351 = vdwg.mxu0
        %v5352 = vadd.f32 %v5078, %v5194
        %v5353 = vadd.f32 %v5079, %v5199
        %v5354 = vadd.f32 %v5080, %v5204
        %v5355 = vadd.f32 %v5081, %v5209
        %v5356 = vadd.f32 %v5082, %v5214
        %v5357 = vadd.f32 %v5083, %v5219
        %v5358 = vadd.f32 %v5084, %v5224
        %v5359 = vadd.f32 %v5085, %v5229
        %v5360 = vadd.f32 %v5086, %v5234
        %v5361 = vadd.f32 %v5087, %v5239
        %v5362 = vadd.f32 %v5088, %v5244
        %v5363 = vadd.f32 %v5089, %v5249
        %v5364 = vadd.f32 %v5090, %v5254
        %v5365 = vadd.f32 %v5091, %v5259
        %v5366 = vadd.f32 %v5092, %v5264
        %v5367 = vadd.f32 %v5093, %v5269
        %v5368 = vadd.f32 %v5094, %v5274
        %v5369 = vadd.f32 %v5095, %v5279
        %v5370 = vadd.f32 %v5096, %v5284
        %v5371 = vadd.f32 %v5097, %v5289
        %v5372 = vadd.f32 %v5098, %v5294
        %v5373 = vadd.f32 %v5099, %v5299
        %v5374 = vadd.f32 %v5100, %v5304
        %v5375 = vadd.f32 %v5101, %v5309
        %v5376 = vadd.f32 %v5102, %v5314
        %v5377 = vadd.f32 %v5103, %v5319
        %v5378 = vadd.f32 %v5104, %v5324
        %v5379 = vadd.f32 %v5105, %v5329
        %v5380 = vadd.f32 %v5106, %v5334
        %v5381 = vadd.f32 %v5107, %v5339
        %v5382 = vadd.f32 %v5108, %v5344
        %v5383 = vadd.f32 %v5109, %v5349
        %v5384 = vrot.slane %v3607, 2
        %v5385 = vrot.slane %v3481, 2
        %v5386 = vrot.slane %v3639, 2
        %v5387 = vrot.slane %v3608, 2
        %v5388 = vrot.slane %v3484, 2
        %v5389 = vrot.slane %v3640, 2
        %v5390 = vrot.slane %v3609, 2
        %v5391 = vrot.slane %v3487, 2
        %v5392 = vrot.slane %v3641, 2
        %v5393 = vrot.slane %v3610, 2
        %v5394 = vrot.slane %v3490, 2
        %v5395 = vrot.slane %v3642, 2
        %v5396 = vrot.slane %v3611, 2
        %v5397 = vrot.slane %v3493, 2
        %v5398 = vrot.slane %v3643, 2
        %v5399 = vrot.slane %v3612, 2
        %v5400 = vrot.slane %v3496, 2
        %v5401 = vrot.slane %v3644, 2
        %v5402 = vrot.slane %v3613, 2
        %v5403 = vrot.slane %v3499, 2
        %v5404 = vrot.slane %v3645, 2
        %v5405 = vrot.slane %v3614, 2
        %v5406 = vrot.slane %v3502, 2
        %v5407 = vrot.slane %v3646, 2
        %v5408 = vrot.slane %v3615, 2
        %v5409 = vrot.slane %v3505, 2
        %v5410 = vrot.slane %v3647, 2
        %v5411 = vrot.slane %v3616, 2
        %v5412 = vrot.slane %v3508, 2
        %v5413 = vrot.slane %v3648, 2
        %v5414 = vrot.slane %v3617, 2
        %v5415 = vrot.slane %v3511, 2
        %v5416 = vrot.slane %v3649, 2
        %v5417 = vrot.slane %v3618, 2
        %v5418 = vrot.slane %v3514, 2
        %v5419 = vrot.slane %v3650, 2
        %v5420 = vrot.slane %v3619, 2
        %v5421 = vrot.slane %v3517, 2
        %v5422 = vrot.slane %v3651, 2
        %v5423 = vrot.slane %v3620, 2
        %v5424 = vrot.slane %v3520, 2
        %v5425 = vrot.slane %v3652, 2
        %v5426 = vrot.slane %v3621, 2
        %v5427 = vrot.slane %v3523, 2
        %v5428 = vrot.slane %v3653, 2
        %v5429 = vrot.slane %v3622, 2
        %v5430 = vrot.slane %v3526, 2
        %v5431 = vrot.slane %v3654, 2
        %v5432 = vsel %vm2352, %v5427, %v5428
        %v5433 = vsel %vm2352, %v5426, %v5427
        %v5434 = vsel %vm2352, %v5430, %v5431
        %v5435 = vsel %vm2352, %v5429, %v5430
        %v5436 = vsel %vm2352, %v5424, %v5425
        %v5437 = vsel %vm2352, %v5423, %v5424
        %v5438 = vsel %vm2352, %v5421, %v5422
        %v5439 = vsel %vm2352, %v5420, %v5421
        %v5440 = vsel %vm2352, %v5418, %v5419
        %v5441 = vsel %vm2352, %v5417, %v5418
        %v5442 = vsel %vm2352, %v5415, %v5416
        %v5443 = vsel %vm2352, %v5414, %v5415
        %v5444 = vsel %vm2352, %v5412, %v5413
        %v5445 = vsel %vm2352, %v5411, %v5412
        %v5446 = vsel %vm2352, %v5409, %v5410
        %v5447 = vsel %vm2352, %v5408, %v5409
        %v5448 = vsel %vm2352, %v5406, %v5407
        %v5449 = vsel %vm2352, %v5405, %v5406
        %v5450 = vsel %vm2352, %v5403, %v5404
        %v5451 = vsel %vm2352, %v5402, %v5403
        %v5452 = vsel %vm2352, %v5400, %v5401
        %v5453 = vsel %vm2352, %v5399, %v5400
        %v5454 = vsel %vm2352, %v5397, %v5398
        %v5455 = vsel %vm2352, %v5396, %v5397
        %v5456 = vsel %vm2352, %v5394, %v5395
        %v5457 = vsel %vm2352, %v5393, %v5394
        %v5458 = vsel %vm2352, %v5391, %v5392
        %v5459 = vsel %vm2352, %v5390, %v5391
        %v5460 = vsel %vm2352, %v5385, %v5386
        %v5461 = vsel %vm2352, %v5384, %v5385
        %v5462 = vsel %vm2352, %v5388, %v5389
        %v5463 = vsel %vm2352, %v5387, %v5388
        %s5464 = scalar_lea.vmem [#allocation8], 256
        %v5465 = vld [vmem:[%s5464] sm:$0xff]
        %v5466 = vld [vmem:[%s5464 + $0x8] sm:$0xff]
        %v5467 = vld [vmem:[%s5464 + $0x10] sm:$0xff]
        %v5468 = vld [vmem:[%s5464 + $0x18] sm:$0xff]
        %v5469 = vld [vmem:[%s5464 + $0x20] sm:$0xff]
        %v5470 = vld [vmem:[%s5464 + $0x28] sm:$0xff]
        %v5471 = vld [vmem:[%s5464 + $0x30] sm:$0xff]
        %v5472 = vld [vmem:[%s5464 + $0x38] sm:$0xff]
        %v5473 = vld [vmem:[%s5464 + $0x40] sm:$0xff]
        %v5474 = vld [vmem:[%s5464 + $0x48] sm:$0xff]
        %v5475 = vld [vmem:[%s5464 + $0x50] sm:$0xff]
        %v5476 = vld [vmem:[%s5464 + $0x58] sm:$0xff]
        %v5477 = vld [vmem:[%s5464 + $0x60] sm:$0xff]
        %v5478 = vld [vmem:[%s5464 + $0x68] sm:$0xff]
        %v5479 = vld [vmem:[%s5464 + $0x70] sm:$0xff]
        %v5480 = vld [vmem:[%s5464 + $0x78] sm:$0xff]
        %5481 = vmatprep.subr.mxu0 0.0
        %5482 = vmatpush1.msra.mxu0 %v5465
        %5483 = vmatprep.subr.mxu0 0.0
        %5484 = vmatpush1.msra.mxu0 %v5466
        %5485 = vmatprep.subr.mxu0 0.0
        %5486 = vmatpush1.msra.mxu0 %v5467
        %5487 = vmatprep.subr.mxu0 0.0
        %5488 = vmatpush1.msra.mxu0 %v5468
        %5489 = vmatprep.subr.mxu0 0.0
        %5490 = vmatpush1.msra.mxu0 %v5469
        %5491 = vmatprep.subr.mxu0 0.0
        %5492 = vmatpush1.msra.mxu0 %v5470
        %5493 = vmatprep.subr.mxu0 0.0
        %5494 = vmatpush1.msra.mxu0 %v5471
        %5495 = vmatprep.subr.mxu0 0.0
        %5496 = vmatpush1.msra.mxu0 %v5472
        %5497 = vmatprep.subr.mxu0 0.0
        %5498 = vmatpush1.msra.mxu0 %v5473
        %5499 = vmatprep.subr.mxu0 0.0
        %5500 = vmatpush1.msra.mxu0 %v5474
        %5501 = vmatprep.subr.mxu0 0.0
        %5502 = vmatpush1.msra.mxu0 %v5475
        %5503 = vmatprep.subr.mxu0 0.0
        %5504 = vmatpush1.msra.mxu0 %v5476
        %5505 = vmatprep.subr.mxu0 0.0
        %5506 = vmatpush1.msra.mxu0 %v5477
        %5507 = vmatprep.subr.mxu0 0.0
        %5508 = vmatpush1.msra.mxu0 %v5478
        %5509 = vmatprep.subr.mxu0 0.0
        %5510 = vmatpush1.msra.mxu0 %v5479
        %5511 = vmatprep.subr.mxu0 0.0
        %5512 = vmatpush1.msra.mxu0 %v5480
        %5513 = vmatprep.subr.mxu0 0.0
        %5514 = vmatpush1.msra.mxu0 0.0
        %5515 = vmatprep.subr.mxu0 0.0
        %5516 = vmatpush1.msra.mxu0 0.0
        %5517 = vmatprep.subr.mxu0 0.0
        %5518 = vmatpush1.msra.mxu0 0.0
        %5519 = vmatprep.subr.mxu0 0.0
        %5520 = vmatpush1.msra.mxu0 0.0
        %5521 = vmatprep.subr.mxu0 0.0
        %5522 = vmatpush1.msra.mxu0 0.0
        %5523 = vmatprep.subr.mxu0 0.0
        %5524 = vmatpush1.msra.mxu0 0.0
        %5525 = vmatprep.subr.mxu0 0.0
        %5526 = vmatpush1.msra.mxu0 0.0
        %5527 = vmatprep.subr.mxu0 0.0
        %5528 = vmatpush1.msra.mxu0 0.0
        %5529 = vmatprep.subr.mxu0 0.0
        %5530 = vmatpush1.msra.mxu0 0.0
        %5531 = vmatprep.subr.mxu0 0.0
        %5532 = vmatpush1.msra.mxu0 0.0
        %5533 = vmatprep.subr.mxu0 0.0
        %5534 = vmatpush1.msra.mxu0 0.0
        %5535 = vmatprep.subr.mxu0 0.0
        %5536 = vmatpush1.msra.mxu0 0.0
        %5537 = vmatprep.subr.mxu0 0.0
        %5538 = vmatpush1.msra.mxu0 0.0
        %5539 = vmatprep.subr.mxu0 0.0
        %5540 = vmatpush1.msra.mxu0 0.0
        %5541 = vmatprep.subr.mxu0 0.0
        %5542 = vmatpush1.msra.mxu0 0.0
        %5543 = vmatprep.subr.mxu0 0.0
        %5544 = vmatpush1.msra.mxu0 0.0
        %5545 = vmatprep.mubr.f32.mxu0 0.0
        %5546 = vmatmul.mubr.f32.gmra.mrb[0].mxu0 %v5461
        %v5547 = vpop.f32.mrb[0].mxu0
        %v5548 = vadd.f32 0.0, %v5547
        %v5549 = vpop.f32.mrb[0].mxu0
        %5550 = vmatprep.mubr.f32.mxu0 0.0
        %5551 = vmatmul.mubr.f32.gmra.mrb[0].mxu0 %v5460
        %v5552 = vpop.f32.mrb[0].mxu0
        %v5553 = vadd.f32 0.0, %v5552
        %v5554 = vpop.f32.mrb[0].mxu0
        %5555 = vmatprep.mubr.f32.mxu0 0.0
        %5556 = vmatmul.mubr.f32.gmra.mrb[0].mxu0 %v5463
        %v5557 = vpop.f32.mrb[0].mxu0
        %v5558 = vadd.f32 0.0, %v5557
        %v5559 = vpop.f32.mrb[0].mxu0
        %5560 = vmatprep.mubr.f32.mxu0 0.0
        %5561 = vmatmul.mubr.f32.gmra.mrb[0].mxu0 %v5462
        %v5562 = vpop.f32.mrb[0].mxu0
        %v5563 = vadd.f32 0.0, %v5562
        %v5564 = vpop.f32.mrb[0].mxu0
        %5565 = vmatprep.mubr.f32.mxu0 0.0
        %5566 = vmatmul.mubr.f32.gmra.mrb[0].mxu0 %v5461
        %v5567 = vpop.f32.mrb[0].mxu0
        %v5568 = vadd.f32 0.0, %v5567
        %v5569 = vpop.f32.mrb[0].mxu0
        %5570 = vmatprep.mubr.f32.mxu0 0.0
        %5571 = vmatmul.mubr.f32.gmra.mrb[0].mxu0 %v5460
        %v5572 = vpop.f32.mrb[0].mxu0
        %v5573 = vadd.f32 0.0, %v5572
        %v5574 = vpop.f32.mrb[0].mxu0
        %5575 = vmatprep.mubr.f32.mxu0 0.0
        %5576 = vmatmul.mubr.f32.gmra.mrb[0].mxu0 %v5459
        %v5577 = vpop.f32.mrb[0].mxu0
        %v5578 = vadd.f32 0.0, %v5577
        %v5579 = vpop.f32.mrb[0].mxu0
        %5580 = vmatprep.mubr.f32.mxu0 0.0
        %5581 = vmatmul.mubr.f32.gmra.mrb[0].mxu0 %v5458
        %v5582 = vpop.f32.mrb[0].mxu0
        %v5583 = vadd.f32 0.0, %v5582
        %v5584 = vpop.f32.mrb[0].mxu0
        %5585 = vmatprep.mubr.f32.mxu0 0.0
        %5586 = vmatmul.mubr.f32.gmra.mrb[0].mxu0 %v5457
        %v5587 = vpop.f32.mrb[0].mxu0
        %v5588 = vadd.f32 0.0, %v5587
        %v5589 = vpop.f32.mrb[0].mxu0
        %5590 = vmatprep.mubr.f32.mxu0 0.0
        %5591 = vmatmul.mubr.f32.gmra.mrb[0].mxu0 %v5456
        %v5592 = vpop.f32.mrb[0].mxu0
        %v5593 = vadd.f32 0.0, %v5592
        %v5594 = vpop.f32.mrb[0].mxu0
        %5595 = vmatprep.mubr.f32.mxu0 0.0
        %5596 = vmatmul.mubr.f32.gmra.mrb[0].mxu0 %v5455
        %v5597 = vpop.f32.mrb[0].mxu0
        %v5598 = vadd.f32 0.0, %v5597
        %v5599 = vpop.f32.mrb[0].mxu0
        %5600 = vmatprep.mubr.f32.mxu0 0.0
        %5601 = vmatmul.mubr.f32.gmra.mrb[0].mxu0 %v5454
        %v5602 = vpop.f32.mrb[0].mxu0
        %v5603 = vadd.f32 0.0, %v5602
        %v5604 = vpop.f32.mrb[0].mxu0
        %5605 = vmatprep.mubr.f32.mxu0 0.0
        %5606 = vmatmul.mubr.f32.gmra.mrb[0].mxu0 %v5453
        %v5607 = vpop.f32.mrb[0].mxu0
        %v5608 = vadd.f32 0.0, %v5607
        %v5609 = vpop.f32.mrb[0].mxu0
        %5610 = vmatprep.mubr.f32.mxu0 0.0
        %5611 = vmatmul.mubr.f32.gmra.mrb[0].mxu0 %v5452
        %v5612 = vpop.f32.mrb[0].mxu0
        %v5613 = vadd.f32 0.0, %v5612
        %v5614 = vpop.f32.mrb[0].mxu0
        %5615 = vmatprep.mubr.f32.mxu0 0.0
        %5616 = vmatmul.mubr.f32.gmra.mrb[0].mxu0 %v5451
        %v5617 = vpop.f32.mrb[0].mxu0
        %v5618 = vadd.f32 0.0, %v5617
        %v5619 = vpop.f32.mrb[0].mxu0
        %5620 = vmatprep.mubr.f32.mxu0 0.0
        %5621 = vmatmul.mubr.f32.gmra.mrb[0].mxu0 %v5450
        %v5622 = vpop.f32.mrb[0].mxu0
        %v5623 = vadd.f32 0.0, %v5622
        %v5624 = vpop.f32.mrb[0].mxu0
        %5625 = vmatprep.mubr.f32.mxu0 0.0
        %5626 = vmatmul.mubr.f32.gmra.mrb[0].mxu0 %v5449
        %v5627 = vpop.f32.mrb[0].mxu0
        %v5628 = vadd.f32 0.0, %v5627
        %v5629 = vpop.f32.mrb[0].mxu0
        %5630 = vmatprep.mubr.f32.mxu0 0.0
        %5631 = vmatmul.mubr.f32.gmra.mrb[0].mxu0 %v5448
        %v5632 = vpop.f32.mrb[0].mxu0
        %v5633 = vadd.f32 0.0, %v5632
        %v5634 = vpop.f32.mrb[0].mxu0
        %5635 = vmatprep.mubr.f32.mxu0 0.0
        %5636 = vmatmul.mubr.f32.gmra.mrb[0].mxu0 %v5447
        %v5637 = vpop.f32.mrb[0].mxu0
        %v5638 = vadd.f32 0.0, %v5637
        %v5639 = vpop.f32.mrb[0].mxu0
        %5640 = vmatprep.mubr.f32.mxu0 0.0
        %5641 = vmatmul.mubr.f32.gmra.mrb[0].mxu0 %v5446
        %v5642 = vpop.f32.mrb[0].mxu0
        %v5643 = vadd.f32 0.0, %v5642
        %v5644 = vpop.f32.mrb[0].mxu0
        %5645 = vmatprep.mubr.f32.mxu0 0.0
        %5646 = vmatmul.mubr.f32.gmra.mrb[0].mxu0 %v5445
        %v5647 = vpop.f32.mrb[0].mxu0
        %v5648 = vadd.f32 0.0, %v5647
        %v5649 = vpop.f32.mrb[0].mxu0
        %5650 = vmatprep.mubr.f32.mxu0 0.0
        %5651 = vmatmul.mubr.f32.gmra.mrb[0].mxu0 %v5444
        %v5652 = vpop.f32.mrb[0].mxu0
        %v5653 = vadd.f32 0.0, %v5652
        %v5654 = vpop.f32.mrb[0].mxu0
        %5655 = vmatprep.mubr.f32.mxu0 0.0
        %5656 = vmatmul.mubr.f32.gmra.mrb[0].mxu0 %v5443
        %v5657 = vpop.f32.mrb[0].mxu0
        %v5658 = vadd.f32 0.0, %v5657
        %v5659 = vpop.f32.mrb[0].mxu0
        %5660 = vmatprep.mubr.f32.mxu0 0.0
        %5661 = vmatmul.mubr.f32.gmra.mrb[0].mxu0 %v5442
        %v5662 = vpop.f32.mrb[0].mxu0
        %v5663 = vadd.f32 0.0, %v5662
        %v5664 = vpop.f32.mrb[0].mxu0
        %5665 = vmatprep.mubr.f32.mxu0 0.0
        %5666 = vmatmul.mubr.f32.gmra.mrb[0].mxu0 %v5441
        %v5667 = vpop.f32.mrb[0].mxu0
        %v5668 = vadd.f32 0.0, %v5667
        %v5669 = vpop.f32.mrb[0].mxu0
        %5670 = vmatprep.mubr.f32.mxu0 0.0
        %5671 = vmatmul.mubr.f32.gmra.mrb[0].mxu0 %v5440
        %v5672 = vpop.f32.mrb[0].mxu0
        %v5673 = vadd.f32 0.0, %v5672
        %v5674 = vpop.f32.mrb[0].mxu0
        %5675 = vmatprep.mubr.f32.mxu0 0.0
        %5676 = vmatmul.mubr.f32.gmra.mrb[0].mxu0 %v5439
        %v5677 = vpop.f32.mrb[0].mxu0
        %v5678 = vadd.f32 0.0, %v5677
        %v5679 = vpop.f32.mrb[0].mxu0
        %5680 = vmatprep.mubr.f32.mxu0 0.0
        %5681 = vmatmul.mubr.f32.gmra.mrb[0].mxu0 %v5438
        %v5682 = vpop.f32.mrb[0].mxu0
        %v5683 = vadd.f32 0.0, %v5682
        %v5684 = vpop.f32.mrb[0].mxu0
        %5685 = vmatprep.mubr.f32.mxu0 0.0
        %5686 = vmatmul.mubr.f32.gmra.mrb[0].mxu0 %v5437
        %v5687 = vpop.f32.mrb[0].mxu0
        %v5688 = vadd.f32 0.0, %v5687
        %v5689 = vpop.f32.mrb[0].mxu0
        %5690 = vmatprep.mubr.f32.mxu0 0.0
        %5691 = vmatmul.mubr.f32.gmra.mrb[0].mxu0 %v5436
        %v5692 = vpop.f32.mrb[0].mxu0
        %v5693 = vadd.f32 0.0, %v5692
        %v5694 = vpop.f32.mrb[0].mxu0
        %5695 = vmatprep.mubr.f32.mxu0 0.0
        %5696 = vmatmul.mubr.f32.gmra.mrb[0].mxu0 %v5433
        %v5697 = vpop.f32.mrb[0].mxu0
        %v5698 = vadd.f32 0.0, %v5697
        %v5699 = vpop.f32.mrb[0].mxu0
        %5700 = vmatprep.mubr.f32.mxu0 0.0
        %5701 = vmatmul.mubr.f32.gmra.mrb[0].mxu0 %v5432
        %v5702 = vpop.f32.mrb[0].mxu0
        %v5703 = vadd.f32 0.0, %v5702
        %v5704 = vpop.f32.mrb[0].mxu0
        %5705 = vdwg.mxu0
        %v5706 = vadd.f32 %v5352, %v5548
        %v5707 = vadd.f32 %v5353, %v5553
        %v5708 = vadd.f32 %v5354, %v5558
        %v5709 = vadd.f32 %v5355, %v5563
        %v5710 = vadd.f32 %v5356, %v5568
        %v5711 = vadd.f32 %v5357, %v5573
        %v5712 = vadd.f32 %v5358, %v5578
        %v5713 = vadd.f32 %v5359, %v5583
        %v5714 = vadd.f32 %v5360, %v5588
        %v5715 = vadd.f32 %v5361, %v5593
        %v5716 = vadd.f32 %v5362, %v5598
        %v5717 = vadd.f32 %v5363, %v5603
        %v5718 = vadd.f32 %v5364, %v5608
        %v5719 = vadd.f32 %v5365, %v5613
        %v5720 = vadd.f32 %v5366, %v5618
        %v5721 = vadd.f32 %v5367, %v5623
        %v5722 = vadd.f32 %v5368, %v5628
        %v5723 = vadd.f32 %v5369, %v5633
        %v5724 = vadd.f32 %v5370, %v5638
        %v5725 = vadd.f32 %v5371, %v5643
        %v5726 = vadd.f32 %v5372, %v5648
        %v5727 = vadd.f32 %v5373, %v5653
        %v5728 = vadd.f32 %v5374, %v5658
        %v5729 = vadd.f32 %v5375, %v5663
        %v5730 = vadd.f32 %v5376, %v5668
        %v5731 = vadd.f32 %v5377, %v5673
        %v5732 = vadd.f32 %v5378, %v5678
        %v5733 = vadd.f32 %v5379, %v5683
        %v5734 = vadd.f32 %v5380, %v5688
        %v5735 = vadd.f32 %v5381, %v5693
        %v5736 = vadd.f32 %v5382, %v5698
        %v5737 = vadd.f32 %v5383, %v5703
        %s5738 = scalar_lea.vmem [#allocation8], 640
        %v5739 = vld [vmem:[%s5738] sm:$0xff]
        %v5740 = vld [vmem:[%s5738 + $0x8] sm:$0xff]
        %v5741 = vld [vmem:[%s5738 + $0x10] sm:$0xff]
        %v5742 = vld [vmem:[%s5738 + $0x18] sm:$0xff]
        %v5743 = vld [vmem:[%s5738 + $0x20] sm:$0xff]
        %v5744 = vld [vmem:[%s5738 + $0x28] sm:$0xff]
        %v5745 = vld [vmem:[%s5738 + $0x30] sm:$0xff]
        %v5746 = vld [vmem:[%s5738 + $0x38] sm:$0xff]
        %v5747 = vld [vmem:[%s5738 + $0x40] sm:$0xff]
        %v5748 = vld [vmem:[%s5738 + $0x48] sm:$0xff]
        %v5749 = vld [vmem:[%s5738 + $0x50] sm:$0xff]
        %v5750 = vld [vmem:[%s5738 + $0x58] sm:$0xff]
        %v5751 = vld [vmem:[%s5738 + $0x60] sm:$0xff]
        %v5752 = vld [vmem:[%s5738 + $0x68] sm:$0xff]
        %v5753 = vld [vmem:[%s5738 + $0x70] sm:$0xff]
        %v5754 = vld [vmem:[%s5738 + $0x78] sm:$0xff]
        %5755 = vmatprep.subr.mxu0 0.0
        %5756 = vmatpush1.msra.mxu0 %v5739
        %5757 = vmatprep.subr.mxu0 0.0
        %5758 = vmatpush1.msra.mxu0 %v5740
        %5759 = vmatprep.subr.mxu0 0.0
        %5760 = vmatpush1.msra.mxu0 %v5741
        %5761 = vmatprep.subr.mxu0 0.0
        %5762 = vmatpush1.msra.mxu0 %v5742
        %5763 = vmatprep.subr.mxu0 0.0
        %5764 = vmatpush1.msra.mxu0 %v5743
        %5765 = vmatprep.subr.mxu0 0.0
        %5766 = vmatpush1.msra.mxu0 %v5744
        %5767 = vmatprep.subr.mxu0 0.0
        %5768 = vmatpush1.msra.mxu0 %v5745
        %5769 = vmatprep.subr.mxu0 0.0
        %5770 = vmatpush1.msra.mxu0 %v5746
        %5771 = vmatprep.subr.mxu0 0.0
        %5772 = vmatpush1.msra.mxu0 %v5747
        %5773 = vmatprep.subr.mxu0 0.0
        %5774 = vmatpush1.msra.mxu0 %v5748
        %5775 = vmatprep.subr.mxu0 0.0
        %5776 = vmatpush1.msra.mxu0 %v5749
        %5777 = vmatprep.subr.mxu0 0.0
        %5778 = vmatpush1.msra.mxu0 %v5750
        %5779 = vmatprep.subr.mxu0 0.0
        %5780 = vmatpush1.msra.mxu0 %v5751
        %5781 = vmatprep.subr.mxu0 0.0
        %5782 = vmatpush1.msra.mxu0 %v5752
        %5783 = vmatprep.subr.mxu0 0.0
        %5784 = vmatpush1.msra.mxu0 %v5753
        %5785 = vmatprep.subr.mxu0 0.0
        %5786 = vmatpush1.msra.mxu0 %v5754
        %5787 = vmatprep.subr.mxu0 0.0
        %5788 = vmatpush1.msra.mxu0 0.0
        %5789 = vmatprep.subr.mxu0 0.0
        %5790 = vmatpush1.msra.mxu0 0.0
        %5791 = vmatprep.subr.mxu0 0.0
        %5792 = vmatpush1.msra.mxu0 0.0
        %5793 = vmatprep.subr.mxu0 0.0
        %5794 = vmatpush1.msra.mxu0 0.0
        %5795 = vmatprep.subr.mxu0 0.0
        %5796 = vmatpush1.msra.mxu0 0.0
        %5797 = vmatprep.subr.mxu0 0.0
        %5798 = vmatpush1.msra.mxu0 0.0
        %5799 = vmatprep.subr.mxu0 0.0
        %5800 = vmatpush1.msra.mxu0 0.0
        %5801 = vmatprep.subr.mxu0 0.0
        %5802 = vmatpush1.msra.mxu0 0.0
        %5803 = vmatprep.subr.mxu0 0.0
        %5804 = vmatpush1.msra.mxu0 0.0
        %5805 = vmatprep.subr.mxu0 0.0
        %5806 = vmatpush1.msra.mxu0 0.0
        %5807 = vmatprep.subr.mxu0 0.0
        %5808 = vmatpush1.msra.mxu0 0.0
        %5809 = vmatprep.subr.mxu0 0.0
        %5810 = vmatpush1.msra.mxu0 0.0
        %5811 = vmatprep.subr.mxu0 0.0
        %5812 = vmatpush1.msra.mxu0 0.0
        %5813 = vmatprep.subr.mxu0 0.0
        %5814 = vmatpush1.msra.mxu0 0.0
        %5815 = vmatprep.subr.mxu0 0.0
        %5816 = vmatpush1.msra.mxu0 0.0
        %5817 = vmatprep.subr.mxu0 0.0
        %5818 = vmatpush1.msra.mxu0 0.0
        %5819 = vmatprep.mubr.f32.mxu0 0.0
        %5820 = vmatmul.mubr.f32.gmra.mrb[0].mxu0 %v5463
        %v5821 = vpop.f32.mrb[0].mxu0
        %v5822 = vadd.f32 0.0, %v5821
        %v5823 = vpop.f32.mrb[0].mxu0
        %5824 = vmatprep.mubr.f32.mxu0 0.0
        %5825 = vmatmul.mubr.f32.gmra.mrb[0].mxu0 %v5462
        %v5826 = vpop.f32.mrb[0].mxu0
        %v5827 = vadd.f32 0.0, %v5826
        %v5828 = vpop.f32.mrb[0].mxu0
        %5829 = vmatprep.mubr.f32.mxu0 0.0
        %5830 = vmatmul.mubr.f32.gmra.mrb[0].mxu0 %v5461
        %v5831 = vpop.f32.mrb[0].mxu0
        %v5832 = vadd.f32 0.0, %v5831
        %v5833 = vpop.f32.mrb[0].mxu0
        %5834 = vmatprep.mubr.f32.mxu0 0.0
        %5835 = vmatmul.mubr.f32.gmra.mrb[0].mxu0 %v5460
        %v5836 = vpop.f32.mrb[0].mxu0
        %v5837 = vadd.f32 0.0, %v5836
        %v5838 = vpop.f32.mrb[0].mxu0
        %5839 = vmatprep.mubr.f32.mxu0 0.0
        %5840 = vmatmul.mubr.f32.gmra.mrb[0].mxu0 %v5459
        %v5841 = vpop.f32.mrb[0].mxu0
        %v5842 = vadd.f32 0.0, %v5841
        %v5843 = vpop.f32.mrb[0].mxu0
        %5844 = vmatprep.mubr.f32.mxu0 0.0
        %5845 = vmatmul.mubr.f32.gmra.mrb[0].mxu0 %v5458
        %v5846 = vpop.f32.mrb[0].mxu0
        %v5847 = vadd.f32 0.0, %v5846
        %v5848 = vpop.f32.mrb[0].mxu0
        %5849 = vmatprep.mubr.f32.mxu0 0.0
        %5850 = vmatmul.mubr.f32.gmra.mrb[0].mxu0 %v5457
        %v5851 = vpop.f32.mrb[0].mxu0
        %v5852 = vadd.f32 0.0, %v5851
        %v5853 = vpop.f32.mrb[0].mxu0
        %5854 = vmatprep.mubr.f32.mxu0 0.0
        %5855 = vmatmul.mubr.f32.gmra.mrb[0].mxu0 %v5456
        %v5856 = vpop.f32.mrb[0].mxu0
        %v5857 = vadd.f32 0.0, %v5856
        %v5858 = vpop.f32.mrb[0].mxu0
        %5859 = vmatprep.mubr.f32.mxu0 0.0
        %5860 = vmatmul.mubr.f32.gmra.mrb[0].mxu0 %v5455
        %v5861 = vpop.f32.mrb[0].mxu0
        %v5862 = vadd.f32 0.0, %v5861
        %v5863 = vpop.f32.mrb[0].mxu0
        %5864 = vmatprep.mubr.f32.mxu0 0.0
        %5865 = vmatmul.mubr.f32.gmra.mrb[0].mxu0 %v5454
        %v5866 = vpop.f32.mrb[0].mxu0
        %v5867 = vadd.f32 0.0, %v5866
        %v5868 = vpop.f32.mrb[0].mxu0
        %5869 = vmatprep.mubr.f32.mxu0 0.0
        %5870 = vmatmul.mubr.f32.gmra.mrb[0].mxu0 %v5453
        %v5871 = vpop.f32.mrb[0].mxu0
        %v5872 = vadd.f32 0.0, %v5871
        %v5873 = vpop.f32.mrb[0].mxu0
        %5874 = vmatprep.mubr.f32.mxu0 0.0
        %5875 = vmatmul.mubr.f32.gmra.mrb[0].mxu0 %v5452
        %v5876 = vpop.f32.mrb[0].mxu0
        %v5877 = vadd.f32 0.0, %v5876
        %v5878 = vpop.f32.mrb[0].mxu0
        %5879 = vmatprep.mubr.f32.mxu0 0.0
        %5880 = vmatmul.mubr.f32.gmra.mrb[0].mxu0 %v5451
        %v5881 = vpop.f32.mrb[0].mxu0
        %v5882 = vadd.f32 0.0, %v5881
        %v5883 = vpop.f32.mrb[0].mxu0
        %5884 = vmatprep.mubr.f32.mxu0 0.0
        %5885 = vmatmul.mubr.f32.gmra.mrb[0].mxu0 %v5450
        %v5886 = vpop.f32.mrb[0].mxu0
        %v5887 = vadd.f32 0.0, %v5886
        %v5888 = vpop.f32.mrb[0].mxu0
        %5889 = vmatprep.mubr.f32.mxu0 0.0
        %5890 = vmatmul.mubr.f32.gmra.mrb[0].mxu0 %v5449
        %v5891 = vpop.f32.mrb[0].mxu0
        %v5892 = vadd.f32 0.0, %v5891
        %v5893 = vpop.f32.mrb[0].mxu0
        %5894 = vmatprep.mubr.f32.mxu0 0.0
        %5895 = vmatmul.mubr.f32.gmra.mrb[0].mxu0 %v5448
        %v5896 = vpop.f32.mrb[0].mxu0
        %v5897 = vadd.f32 0.0, %v5896
        %v5898 = vpop.f32.mrb[0].mxu0
        %5899 = vmatprep.mubr.f32.mxu0 0.0
        %5900 = vmatmul.mubr.f32.gmra.mrb[0].mxu0 %v5447
        %v5901 = vpop.f32.mrb[0].mxu0
        %v5902 = vadd.f32 0.0, %v5901
        %v5903 = vpop.f32.mrb[0].mxu0
        %5904 = vmatprep.mubr.f32.mxu0 0.0
        %5905 = vmatmul.mubr.f32.gmra.mrb[0].mxu0 %v5446
        %v5906 = vpop.f32.mrb[0].mxu0
        %v5907 = vadd.f32 0.0, %v5906
        %v5908 = vpop.f32.mrb[0].mxu0
        %5909 = vmatprep.mubr.f32.mxu0 0.0
        %5910 = vmatmul.mubr.f32.gmra.mrb[0].mxu0 %v5445
        %v5911 = vpop.f32.mrb[0].mxu0
        %v5912 = vadd.f32 0.0, %v5911
        %v5913 = vpop.f32.mrb[0].mxu0
        %5914 = vmatprep.mubr.f32.mxu0 0.0
        %5915 = vmatmul.mubr.f32.gmra.mrb[0].mxu0 %v5444
        %v5916 = vpop.f32.mrb[0].mxu0
        %v5917 = vadd.f32 0.0, %v5916
        %v5918 = vpop.f32.mrb[0].mxu0
        %5919 = vmatprep.mubr.f32.mxu0 0.0
        %5920 = vmatmul.mubr.f32.gmra.mrb[0].mxu0 %v5443
        %v5921 = vpop.f32.mrb[0].mxu0
        %v5922 = vadd.f32 0.0, %v5921
        %v5923 = vpop.f32.mrb[0].mxu0
        %5924 = vmatprep.mubr.f32.mxu0 0.0
        %5925 = vmatmul.mubr.f32.gmra.mrb[0].mxu0 %v5442
        %v5926 = vpop.f32.mrb[0].mxu0
        %v5927 = vadd.f32 0.0, %v5926
        %v5928 = vpop.f32.mrb[0].mxu0
        %5929 = vmatprep.mubr.f32.mxu0 0.0
        %5930 = vmatmul.mubr.f32.gmra.mrb[0].mxu0 %v5441
        %v5931 = vpop.f32.mrb[0].mxu0
        %v5932 = vadd.f32 0.0, %v5931
        %v5933 = vpop.f32.mrb[0].mxu0
        %5934 = vmatprep.mubr.f32.mxu0 0.0
        %5935 = vmatmul.mubr.f32.gmra.mrb[0].mxu0 %v5440
        %v5936 = vpop.f32.mrb[0].mxu0
        %v5937 = vadd.f32 0.0, %v5936
        %v5938 = vpop.f32.mrb[0].mxu0
        %5939 = vmatprep.mubr.f32.mxu0 0.0
        %5940 = vmatmul.mubr.f32.gmra.mrb[0].mxu0 %v5439
        %v5941 = vpop.f32.mrb[0].mxu0
        %v5942 = vadd.f32 0.0, %v5941
        %v5943 = vpop.f32.mrb[0].mxu0
        %5944 = vmatprep.mubr.f32.mxu0 0.0
        %5945 = vmatmul.mubr.f32.gmra.mrb[0].mxu0 %v5438
        %v5946 = vpop.f32.mrb[0].mxu0
        %v5947 = vadd.f32 0.0, %v5946
        %v5948 = vpop.f32.mrb[0].mxu0
        %5949 = vmatprep.mubr.f32.mxu0 0.0
        %5950 = vmatmul.mubr.f32.gmra.mrb[0].mxu0 %v5437
        %v5951 = vpop.f32.mrb[0].mxu0
        %v5952 = vadd.f32 0.0, %v5951
        %v5953 = vpop.f32.mrb[0].mxu0
        %5954 = vmatprep.mubr.f32.mxu0 0.0
        %5955 = vmatmul.mubr.f32.gmra.mrb[0].mxu0 %v5436
        %v5956 = vpop.f32.mrb[0].mxu0
        %v5957 = vadd.f32 0.0, %v5956
        %v5958 = vpop.f32.mrb[0].mxu0
        %5959 = vmatprep.mubr.f32.mxu0 0.0
        %5960 = vmatmul.mubr.f32.gmra.mrb[0].mxu0 %v5433
        %v5961 = vpop.f32.mrb[0].mxu0
        %v5962 = vadd.f32 0.0, %v5961
        %v5963 = vpop.f32.mrb[0].mxu0
        %5964 = vmatprep.mubr.f32.mxu0 0.0
        %5965 = vmatmul.mubr.f32.gmra.mrb[0].mxu0 %v5432
        %v5966 = vpop.f32.mrb[0].mxu0
        %v5967 = vadd.f32 0.0, %v5966
        %v5968 = vpop.f32.mrb[0].mxu0
        %5969 = vmatprep.mubr.f32.mxu0 0.0
        %5970 = vmatmul.mubr.f32.gmra.mrb[0].mxu0 %v5435
        %v5971 = vpop.f32.mrb[0].mxu0
        %v5972 = vadd.f32 0.0, %v5971
        %v5973 = vpop.f32.mrb[0].mxu0
        %5974 = vmatprep.mubr.f32.mxu0 0.0
        %5975 = vmatmul.mubr.f32.gmra.mrb[0].mxu0 %v5434
        %v5976 = vpop.f32.mrb[0].mxu0
        %v5977 = vadd.f32 0.0, %v5976
        %v5978 = vpop.f32.mrb[0].mxu0
        %5979 = vdwg.mxu0
        %v5980 = vadd.f32 %v5706, %v5822
        %v5981 = vadd.f32 %v5707, %v5827
        %v5982 = vadd.f32 %v5708, %v5832
        %v5983 = vadd.f32 %v5709, %v5837
        %v5984 = vadd.f32 %v5710, %v5842
        %v5985 = vadd.f32 %v5711, %v5847
        %v5986 = vadd.f32 %v5712, %v5852
        %v5987 = vadd.f32 %v5713, %v5857
        %v5988 = vadd.f32 %v5714, %v5862
        %v5989 = vadd.f32 %v5715, %v5867
        %v5990 = vadd.f32 %v5716, %v5872
        %v5991 = vadd.f32 %v5717, %v5877
        %v5992 = vadd.f32 %v5718, %v5882
        %v5993 = vadd.f32 %v5719, %v5887
        %v5994 = vadd.f32 %v5720, %v5892
        %v5995 = vadd.f32 %v5721, %v5897
        %v5996 = vadd.f32 %v5722, %v5902
        %v5997 = vadd.f32 %v5723, %v5907
        %v5998 = vadd.f32 %v5724, %v5912
        %v5999 = vadd.f32 %v5725, %v5917
        %v6000 = vadd.f32 %v5726, %v5922
        %v6001 = vadd.f32 %v5727, %v5927
        %v6002 = vadd.f32 %v5728, %v5932
        %v6003 = vadd.f32 %v5729, %v5937
        %v6004 = vadd.f32 %v5730, %v5942
        %v6005 = vadd.f32 %v5731, %v5947
        %v6006 = vadd.f32 %v5732, %v5952
        %v6007 = vadd.f32 %v5733, %v5957
        %v6008 = vadd.f32 %v5734, %v5962
        %v6009 = vadd.f32 %v5735, %v5967
        %v6010 = vadd.f32 %v5736, %v5972
        %v6011 = vadd.f32 %v5737, %v5977
        %s6012 = scalar_lea.vmem [#allocation8], 1024
        %v6013 = vld [vmem:[%s6012] sm:$0xff]
        %v6014 = vld [vmem:[%s6012 + $0x8] sm:$0xff]
        %v6015 = vld [vmem:[%s6012 + $0x10] sm:$0xff]
        %v6016 = vld [vmem:[%s6012 + $0x18] sm:$0xff]
        %v6017 = vld [vmem:[%s6012 + $0x20] sm:$0xff]
        %v6018 = vld [vmem:[%s6012 + $0x28] sm:$0xff]
        %v6019 = vld [vmem:[%s6012 + $0x30] sm:$0xff]
        %v6020 = vld [vmem:[%s6012 + $0x38] sm:$0xff]
        %v6021 = vld [vmem:[%s6012 + $0x40] sm:$0xff]
        %v6022 = vld [vmem:[%s6012 + $0x48] sm:$0xff]
        %v6023 = vld [vmem:[%s6012 + $0x50] sm:$0xff]
        %v6024 = vld [vmem:[%s6012 + $0x58] sm:$0xff]
        %v6025 = vld [vmem:[%s6012 + $0x60] sm:$0xff]
        %v6026 = vld [vmem:[%s6012 + $0x68] sm:$0xff]
        %v6027 = vld [vmem:[%s6012 + $0x70] sm:$0xff]
        %v6028 = vld [vmem:[%s6012 + $0x78] sm:$0xff]
        %6029 = vmatprep.subr.mxu0 0.0
        %6030 = vmatpush1.msra.mxu0 %v6013
        %6031 = vmatprep.subr.mxu0 0.0
        %6032 = vmatpush1.msra.mxu0 %v6014
        %6033 = vmatprep.subr.mxu0 0.0
        %6034 = vmatpush1.msra.mxu0 %v6015
        %6035 = vmatprep.subr.mxu0 0.0
        %6036 = vmatpush1.msra.mxu0 %v6016
        %6037 = vmatprep.subr.mxu0 0.0
        %6038 = vmatpush1.msra.mxu0 %v6017
        %6039 = vmatprep.subr.mxu0 0.0
        %6040 = vmatpush1.msra.mxu0 %v6018
        %6041 = vmatprep.subr.mxu0 0.0
        %6042 = vmatpush1.msra.mxu0 %v6019
        %6043 = vmatprep.subr.mxu0 0.0
        %6044 = vmatpush1.msra.mxu0 %v6020
        %6045 = vmatprep.subr.mxu0 0.0
        %6046 = vmatpush1.msra.mxu0 %v6021
        %6047 = vmatprep.subr.mxu0 0.0
        %6048 = vmatpush1.msra.mxu0 %v6022
        %6049 = vmatprep.subr.mxu0 0.0
        %6050 = vmatpush1.msra.mxu0 %v6023
        %6051 = vmatprep.subr.mxu0 0.0
        %6052 = vmatpush1.msra.mxu0 %v6024
        %6053 = vmatprep.subr.mxu0 0.0
        %6054 = vmatpush1.msra.mxu0 %v6025
        %6055 = vmatprep.subr.mxu0 0.0
        %6056 = vmatpush1.msra.mxu0 %v6026
        %6057 = vmatprep.subr.mxu0 0.0
        %6058 = vmatpush1.msra.mxu0 %v6027
        %6059 = vmatprep.subr.mxu0 0.0
        %6060 = vmatpush1.msra.mxu0 %v6028
        %6061 = vmatprep.subr.mxu0 0.0
        %6062 = vmatpush1.msra.mxu0 0.0
        %6063 = vmatprep.subr.mxu0 0.0
        %6064 = vmatpush1.msra.mxu0 0.0
        %6065 = vmatprep.subr.mxu0 0.0
        %6066 = vmatpush1.msra.mxu0 0.0
        %6067 = vmatprep.subr.mxu0 0.0
        %6068 = vmatpush1.msra.mxu0 0.0
        %6069 = vmatprep.subr.mxu0 0.0
        %6070 = vmatpush1.msra.mxu0 0.0
        %6071 = vmatprep.subr.mxu0 0.0
        %6072 = vmatpush1.msra.mxu0 0.0
        %6073 = vmatprep.subr.mxu0 0.0
        %6074 = vmatpush1.msra.mxu0 0.0
        %6075 = vmatprep.subr.mxu0 0.0
        %6076 = vmatpush1.msra.mxu0 0.0
        %6077 = vmatprep.subr.mxu0 0.0
        %6078 = vmatpush1.msra.mxu0 0.0
        %6079 = vmatprep.subr.mxu0 0.0
        %6080 = vmatpush1.msra.mxu0 0.0
        %6081 = vmatprep.subr.mxu0 0.0
        %6082 = vmatpush1.msra.mxu0 0.0
        %6083 = vmatprep.subr.mxu0 0.0
        %6084 = vmatpush1.msra.mxu0 0.0
        %6085 = vmatprep.subr.mxu0 0.0
        %6086 = vmatpush1.msra.mxu0 0.0
        %6087 = vmatprep.subr.mxu0 0.0
        %6088 = vmatpush1.msra.mxu0 0.0
        %6089 = vmatprep.subr.mxu0 0.0
        %6090 = vmatpush1.msra.mxu0 0.0
        %6091 = vmatprep.subr.mxu0 0.0
        %6092 = vmatpush1.msra.mxu0 0.0
        %6093 = vmatprep.mubr.f32.mxu0 0.0
        %6094 = vmatmul.mubr.f32.gmra.mrb[0].mxu0 %v5461
        %v6095 = vpop.f32.mrb[0].mxu0
        %v6096 = vadd.f32 0.0, %v6095
        %v6097 = vpop.f32.mrb[0].mxu0
        %6098 = vmatprep.mubr.f32.mxu0 0.0
        %6099 = vmatmul.mubr.f32.gmra.mrb[0].mxu0 %v5460
        %v6100 = vpop.f32.mrb[0].mxu0
        %v6101 = vadd.f32 0.0, %v6100
        %v6102 = vpop.f32.mrb[0].mxu0
        %6103 = vmatprep.mubr.f32.mxu0 0.0
        %6104 = vmatmul.mubr.f32.gmra.mrb[0].mxu0 %v5459
        %v6105 = vpop.f32.mrb[0].mxu0
        %v6106 = vadd.f32 0.0, %v6105
        %v6107 = vpop.f32.mrb[0].mxu0
        %6108 = vmatprep.mubr.f32.mxu0 0.0
        %6109 = vmatmul.mubr.f32.gmra.mrb[0].mxu0 %v5458
        %v6110 = vpop.f32.mrb[0].mxu0
        %v6111 = vadd.f32 0.0, %v6110
        %v6112 = vpop.f32.mrb[0].mxu0
        %6113 = vmatprep.mubr.f32.mxu0 0.0
        %6114 = vmatmul.mubr.f32.gmra.mrb[0].mxu0 %v5457
        %v6115 = vpop.f32.mrb[0].mxu0
        %v6116 = vadd.f32 0.0, %v6115
        %v6117 = vpop.f32.mrb[0].mxu0
        %6118 = vmatprep.mubr.f32.mxu0 0.0
        %6119 = vmatmul.mubr.f32.gmra.mrb[0].mxu0 %v5456
        %v6120 = vpop.f32.mrb[0].mxu0
        %v6121 = vadd.f32 0.0, %v6120
        %v6122 = vpop.f32.mrb[0].mxu0
        %6123 = vmatprep.mubr.f32.mxu0 0.0
        %6124 = vmatmul.mubr.f32.gmra.mrb[0].mxu0 %v5455
        %v6125 = vpop.f32.mrb[0].mxu0
        %v6126 = vadd.f32 0.0, %v6125
        %v6127 = vpop.f32.mrb[0].mxu0
        %6128 = vmatprep.mubr.f32.mxu0 0.0
        %6129 = vmatmul.mubr.f32.gmra.mrb[0].mxu0 %v5454
        %v6130 = vpop.f32.mrb[0].mxu0
        %v6131 = vadd.f32 0.0, %v6130
        %v6132 = vpop.f32.mrb[0].mxu0
        %6133 = vmatprep.mubr.f32.mxu0 0.0
        %6134 = vmatmul.mubr.f32.gmra.mrb[0].mxu0 %v5453
        %v6135 = vpop.f32.mrb[0].mxu0
        %v6136 = vadd.f32 0.0, %v6135
        %v6137 = vpop.f32.mrb[0].mxu0
        %6138 = vmatprep.mubr.f32.mxu0 0.0
        %6139 = vmatmul.mubr.f32.gmra.mrb[0].mxu0 %v5452
        %v6140 = vpop.f32.mrb[0].mxu0
        %v6141 = vadd.f32 0.0, %v6140
        %v6142 = vpop.f32.mrb[0].mxu0
        %6143 = vmatprep.mubr.f32.mxu0 0.0
        %6144 = vmatmul.mubr.f32.gmra.mrb[0].mxu0 %v5451
        %v6145 = vpop.f32.mrb[0].mxu0
        %v6146 = vadd.f32 0.0, %v6145
        %v6147 = vpop.f32.mrb[0].mxu0
        %6148 = vmatprep.mubr.f32.mxu0 0.0
        %6149 = vmatmul.mubr.f32.gmra.mrb[0].mxu0 %v5450
        %v6150 = vpop.f32.mrb[0].mxu0
        %v6151 = vadd.f32 0.0, %v6150
        %v6152 = vpop.f32.mrb[0].mxu0
        %6153 = vmatprep.mubr.f32.mxu0 0.0
        %6154 = vmatmul.mubr.f32.gmra.mrb[0].mxu0 %v5449
        %v6155 = vpop.f32.mrb[0].mxu0
        %v6156 = vadd.f32 0.0, %v6155
        %v6157 = vpop.f32.mrb[0].mxu0
        %6158 = vmatprep.mubr.f32.mxu0 0.0
        %6159 = vmatmul.mubr.f32.gmra.mrb[0].mxu0 %v5448
        %v6160 = vpop.f32.mrb[0].mxu0
        %v6161 = vadd.f32 0.0, %v6160
        %v6162 = vpop.f32.mrb[0].mxu0
        %6163 = vmatprep.mubr.f32.mxu0 0.0
        %6164 = vmatmul.mubr.f32.gmra.mrb[0].mxu0 %v5447
        %v6165 = vpop.f32.mrb[0].mxu0
        %v6166 = vadd.f32 0.0, %v6165
        %v6167 = vpop.f32.mrb[0].mxu0
        %6168 = vmatprep.mubr.f32.mxu0 0.0
        %6169 = vmatmul.mubr.f32.gmra.mrb[0].mxu0 %v5446
        %v6170 = vpop.f32.mrb[0].mxu0
        %v6171 = vadd.f32 0.0, %v6170
        %v6172 = vpop.f32.mrb[0].mxu0
        %6173 = vmatprep.mubr.f32.mxu0 0.0
        %6174 = vmatmul.mubr.f32.gmra.mrb[0].mxu0 %v5445
        %v6175 = vpop.f32.mrb[0].mxu0
        %v6176 = vadd.f32 0.0, %v6175
        %v6177 = vpop.f32.mrb[0].mxu0
        %6178 = vmatprep.mubr.f32.mxu0 0.0
        %6179 = vmatmul.mubr.f32.gmra.mrb[0].mxu0 %v5444
        %v6180 = vpop.f32.mrb[0].mxu0
        %v6181 = vadd.f32 0.0, %v6180
        %v6182 = vpop.f32.mrb[0].mxu0
        %6183 = vmatprep.mubr.f32.mxu0 0.0
        %6184 = vmatmul.mubr.f32.gmra.mrb[0].mxu0 %v5443
        %v6185 = vpop.f32.mrb[0].mxu0
        %v6186 = vadd.f32 0.0, %v6185
        %v6187 = vpop.f32.mrb[0].mxu0
        %6188 = vmatprep.mubr.f32.mxu0 0.0
        %6189 = vmatmul.mubr.f32.gmra.mrb[0].mxu0 %v5442
        %v6190 = vpop.f32.mrb[0].mxu0
        %v6191 = vadd.f32 0.0, %v6190
        %v6192 = vpop.f32.mrb[0].mxu0
        %6193 = vmatprep.mubr.f32.mxu0 0.0
        %6194 = vmatmul.mubr.f32.gmra.mrb[0].mxu0 %v5441
        %v6195 = vpop.f32.mrb[0].mxu0
        %v6196 = vadd.f32 0.0, %v6195
        %v6197 = vpop.f32.mrb[0].mxu0
        %6198 = vmatprep.mubr.f32.mxu0 0.0
        %6199 = vmatmul.mubr.f32.gmra.mrb[0].mxu0 %v5440
        %v6200 = vpop.f32.mrb[0].mxu0
        %v6201 = vadd.f32 0.0, %v6200
        %v6202 = vpop.f32.mrb[0].mxu0
        %6203 = vmatprep.mubr.f32.mxu0 0.0
        %6204 = vmatmul.mubr.f32.gmra.mrb[0].mxu0 %v5439
        %v6205 = vpop.f32.mrb[0].mxu0
        %v6206 = vadd.f32 0.0, %v6205
        %v6207 = vpop.f32.mrb[0].mxu0
        %6208 = vmatprep.mubr.f32.mxu0 0.0
        %6209 = vmatmul.mubr.f32.gmra.mrb[0].mxu0 %v5438
        %v6210 = vpop.f32.mrb[0].mxu0
        %v6211 = vadd.f32 0.0, %v6210
        %v6212 = vpop.f32.mrb[0].mxu0
        %6213 = vmatprep.mubr.f32.mxu0 0.0
        %6214 = vmatmul.mubr.f32.gmra.mrb[0].mxu0 %v5437
        %v6215 = vpop.f32.mrb[0].mxu0
        %v6216 = vadd.f32 0.0, %v6215
        %v6217 = vpop.f32.mrb[0].mxu0
        %6218 = vmatprep.mubr.f32.mxu0 0.0
        %6219 = vmatmul.mubr.f32.gmra.mrb[0].mxu0 %v5436
        %v6220 = vpop.f32.mrb[0].mxu0
        %v6221 = vadd.f32 0.0, %v6220
        %v6222 = vpop.f32.mrb[0].mxu0
        %6223 = vmatprep.mubr.f32.mxu0 0.0
        %6224 = vmatmul.mubr.f32.gmra.mrb[0].mxu0 %v5433
        %v6225 = vpop.f32.mrb[0].mxu0
        %v6226 = vadd.f32 0.0, %v6225
        %v6227 = vpop.f32.mrb[0].mxu0
        %6228 = vmatprep.mubr.f32.mxu0 0.0
        %6229 = vmatmul.mubr.f32.gmra.mrb[0].mxu0 %v5432
        %v6230 = vpop.f32.mrb[0].mxu0
        %v6231 = vadd.f32 0.0, %v6230
        %v6232 = vpop.f32.mrb[0].mxu0
        %6233 = vmatprep.mubr.f32.mxu0 0.0
        %6234 = vmatmul.mubr.f32.gmra.mrb[0].mxu0 %v5435
        %v6235 = vpop.f32.mrb[0].mxu0
        %v6236 = vadd.f32 0.0, %v6235
        %v6237 = vpop.f32.mrb[0].mxu0
        %6238 = vmatprep.mubr.f32.mxu0 0.0
        %6239 = vmatmul.mubr.f32.gmra.mrb[0].mxu0 %v5434
        %v6240 = vpop.f32.mrb[0].mxu0
        %v6241 = vadd.f32 0.0, %v6240
        %v6242 = vpop.f32.mrb[0].mxu0
        %6243 = vmatprep.mubr.f32.mxu0 0.0
        %6244 = vmatmul.mubr.f32.gmra.mrb[0].mxu0 %v5433
        %v6245 = vpop.f32.mrb[0].mxu0
        %v6246 = vadd.f32 0.0, %v6245
        %v6247 = vpop.f32.mrb[0].mxu0
        %6248 = vmatprep.mubr.f32.mxu0 0.0
        %6249 = vmatmul.mubr.f32.gmra.mrb[0].mxu0 %v5432
        %v6250 = vpop.f32.mrb[0].mxu0
        %v6251 = vadd.f32 0.0, %v6250
        %v6252 = vpop.f32.mrb[0].mxu0
        %6253 = vdwg.mxu0
        %v6254 = vadd.f32 %v5980, %v6096
        %v6255 = vadd.f32 %v5981, %v6101
        %v6256 = vadd.f32 %v5982, %v6106
        %v6257 = vadd.f32 %v5983, %v6111
        %v6258 = vadd.f32 %v5984, %v6116
        %v6259 = vadd.f32 %v5985, %v6121
        %v6260 = vadd.f32 %v5986, %v6126
        %v6261 = vadd.f32 %v5987, %v6131
        %v6262 = vadd.f32 %v5988, %v6136
        %v6263 = vadd.f32 %v5989, %v6141
        %v6264 = vadd.f32 %v5990, %v6146
        %v6265 = vadd.f32 %v5991, %v6151
        %v6266 = vadd.f32 %v5992, %v6156
        %v6267 = vadd.f32 %v5993, %v6161
        %v6268 = vadd.f32 %v5994, %v6166
        %v6269 = vadd.f32 %v5995, %v6171
        %v6270 = vadd.f32 %v5996, %v6176
        %v6271 = vadd.f32 %v5997, %v6181
        %v6272 = vadd.f32 %v5998, %v6186
        %v6273 = vadd.f32 %v5999, %v6191
        %v6274 = vadd.f32 %v6000, %v6196
        %v6275 = vadd.f32 %v6001, %v6201
        %v6276 = vadd.f32 %v6002, %v6206
        %v6277 = vadd.f32 %v6003, %v6211
        %v6278 = vadd.f32 %v6004, %v6216
        %v6279 = vadd.f32 %v6005, %v6221
        %v6280 = vadd.f32 %v6006, %v6226
        %v6281 = vadd.f32 %v6007, %v6231
        %v6282 = vadd.f32 %v6008, %v6236
        %v6283 = vadd.f32 %v6009, %v6241
        %v6284 = vadd.f32 %v6010, %v6246
        %v6285 = vadd.f32 %v6011, %v6251
        %v6286 = vadd.f32 %v6254, %v6255
        %v6287 = vadd.f32 %v6286, %v6256
        %v6288 = vadd.f32 %v6287, %v6257
        %v6289 = vadd.f32 %v6288, %v6258
        %v6290 = vadd.f32 %v6289, %v6259
        %v6291 = vadd.f32 %v6290, %v6260
        %v6292 = vadd.f32 %v6291, %v6261
        %v6293 = vadd.f32 %v6292, %v6262
        %v6294 = vadd.f32 %v6293, %v6263
        %v6295 = vadd.f32 %v6294, %v6264
        %v6296 = vadd.f32 %v6295, %v6265
        %v6297 = vadd.f32 %v6296, %v6266
        %v6298 = vadd.f32 %v6297, %v6267
        %v6299 = vadd.f32 %v6298, %v6268
        %v6300 = vadd.f32 %v6299, %v6269
        %v6301 = vadd.f32 %v6300, %v6270
        %v6302 = vadd.f32 %v6301, %v6271
        %v6303 = vadd.f32 %v6302, %v6272
        %v6304 = vadd.f32 %v6303, %v6273
        %v6305 = vadd.f32 %v6304, %v6274
        %v6306 = vadd.f32 %v6305, %v6275
        %v6307 = vadd.f32 %v6306, %v6276
        %v6308 = vadd.f32 %v6307, %v6277
        %v6309 = vadd.f32 %v6308, %v6278
        %v6310 = vadd.f32 %v6309, %v6279
        %v6311 = vadd.f32 %v6310, %v6280
        %v6312 = vadd.f32 %v6311, %v6281
        %v6313 = vadd.f32 %v6312, %v6282
        %v6314 = vadd.f32 %v6313, %v6283
        %v6315 = vadd.f32 %v6314, %v6284
        %v6316 = vadd.f32 %v6315, %v6285
        %v6317 = vrot.slane %v6316, 4
        %v6318 = vadd.f32 %v6316, %v6317
        %v6319 = vrot.slane %v6318, 2
        %v6320 = vadd.f32 %v6318, %v6319
        %v6321 = vrot.slane %v6320, 1
        %v6322 = vadd.f32 %v6320, %v6321
        %v6323 = vmul.f32 %v6322, %v3244
        %v6324 = vsub.f32 %v6254, %v6323
        %v6325 = vsub.f32 %v6255, %v6323
        %v6326 = vsub.f32 %v6256, %v6323
        %v6327 = vsub.f32 %v6257, %v6323
        %v6328 = vsub.f32 %v6258, %v6323
        %v6329 = vsub.f32 %v6259, %v6323
        %v6330 = vsub.f32 %v6260, %v6323
        %v6331 = vsub.f32 %v6261, %v6323
        %v6332 = vsub.f32 %v6262, %v6323
        %v6333 = vsub.f32 %v6263, %v6323
        %v6334 = vsub.f32 %v6264, %v6323
        %v6335 = vsub.f32 %v6265, %v6323
        %v6336 = vsub.f32 %v6266, %v6323
        %v6337 = vsub.f32 %v6267, %v6323
        %v6338 = vsub.f32 %v6268, %v6323
        %v6339 = vsub.f32 %v6269, %v6323
        %v6340 = vsub.f32 %v6270, %v6323
        %v6341 = vsub.f32 %v6271, %v6323
        %v6342 = vsub.f32 %v6272, %v6323
        %v6343 = vsub.f32 %v6273, %v6323
        %v6344 = vsub.f32 %v6274, %v6323
        %v6345 = vsub.f32 %v6275, %v6323
        %v6346 = vsub.f32 %v6276, %v6323
        %v6347 = vsub.f32 %v6277, %v6323
        %v6348 = vsub.f32 %v6278, %v6323
        %v6349 = vsub.f32 %v6279, %v6323
        %v6350 = vsub.f32 %v6280, %v6323
        %v6351 = vsub.f32 %v6281, %v6323
        %v6352 = vsub.f32 %v6282, %v6323
        %v6353 = vsub.f32 %v6283, %v6323
        %v6354 = vsub.f32 %v6284, %v6323
        %v6355 = vsub.f32 %v6285, %v6323
        %v6356 = vmul.f32 %v6324, %v6324
        %v6357 = vmul.f32 %v6325, %v6325
        %v6358 = vmul.f32 %v6326, %v6326
        %v6359 = vmul.f32 %v6327, %v6327
        %v6360 = vmul.f32 %v6328, %v6328
        %v6361 = vmul.f32 %v6329, %v6329
        %v6362 = vmul.f32 %v6330, %v6330
        %v6363 = vmul.f32 %v6331, %v6331
        %v6364 = vmul.f32 %v6332, %v6332
        %v6365 = vmul.f32 %v6333, %v6333
        %v6366 = vmul.f32 %v6334, %v6334
        %v6367 = vmul.f32 %v6335, %v6335
        %v6368 = vmul.f32 %v6336, %v6336
        %v6369 = vmul.f32 %v6337, %v6337
        %v6370 = vmul.f32 %v6338, %v6338
        %v6371 = vmul.f32 %v6339, %v6339
        %v6372 = vmul.f32 %v6340, %v6340
        %v6373 = vmul.f32 %v6341, %v6341
        %v6374 = vmul.f32 %v6342, %v6342
        %v6375 = vmul.f32 %v6343, %v6343
        %v6376 = vmul.f32 %v6344, %v6344
        %v6377 = vmul.f32 %v6345, %v6345
        %v6378 = vmul.f32 %v6346, %v6346
        %v6379 = vmul.f32 %v6347, %v6347
        %v6380 = vmul.f32 %v6348, %v6348
        %v6381 = vmul.f32 %v6349, %v6349
        %v6382 = vmul.f32 %v6350, %v6350
        %v6383 = vmul.f32 %v6351, %v6351
        %v6384 = vmul.f32 %v6352, %v6352
        %v6385 = vmul.f32 %v6353, %v6353
        %v6386 = vmul.f32 %v6354, %v6354
        %v6387 = vmul.f32 %v6355, %v6355
        %v6388 = vadd.f32 %v6356, %v6357
        %v6389 = vadd.f32 %v6388, %v6358
        %v6390 = vadd.f32 %v6389, %v6359
        %v6391 = vadd.f32 %v6390, %v6360
        %v6392 = vadd.f32 %v6391, %v6361
        %v6393 = vadd.f32 %v6392, %v6362
        %v6394 = vadd.f32 %v6393, %v6363
        %v6395 = vadd.f32 %v6394, %v6364
        %v6396 = vadd.f32 %v6395, %v6365
        %v6397 = vadd.f32 %v6396, %v6366
        %v6398 = vadd.f32 %v6397, %v6367
        %v6399 = vadd.f32 %v6398, %v6368
        %v6400 = vadd.f32 %v6399, %v6369
        %v6401 = vadd.f32 %v6400, %v6370
        %v6402 = vadd.f32 %v6401, %v6371
        %v6403 = vadd.f32 %v6402, %v6372
        %v6404 = vadd.f32 %v6403, %v6373
        %v6405 = vadd.f32 %v6404, %v6374
        %v6406 = vadd.f32 %v6405, %v6375
        %v6407 = vadd.f32 %v6406, %v6376
        %v6408 = vadd.f32 %v6407, %v6377
        %v6409 = vadd.f32 %v6408, %v6378
        %v6410 = vadd.f32 %v6409, %v6379
        %v6411 = vadd.f32 %v6410, %v6380
        %v6412 = vadd.f32 %v6411, %v6381
        %v6413 = vadd.f32 %v6412, %v6382
        %v6414 = vadd.f32 %v6413, %v6383
        %v6415 = vadd.f32 %v6414, %v6384
        %v6416 = vadd.f32 %v6415, %v6385
        %v6417 = vadd.f32 %v6416, %v6386
        %v6418 = vadd.f32 %v6417, %v6387
        %v6419 = vrot.slane %v6418, 4
        %v6420 = vadd.f32 %v6418, %v6419
        %v6421 = vrot.slane %v6420, 2
        %v6422 = vadd.f32 %v6420, %v6421
        %v6423 = vrot.slane %v6422, 1
        %v6424 = vadd.f32 %v6422, %v6423
        %v6425 = vmul.f32 %v6424, %v3244
        %v6426 = vadd.f32 %v6425, 1e-05
        %v6427 = vrsqrt.pop %v6426
        %v6428 = vmul.f32 %v6324, %v6427
        %v6429 = vmul.f32 %v6325, %v6427
        %v6430 = vmul.f32 %v6326, %v6427
        %v6431 = vmul.f32 %v6327, %v6427
        %v6432 = vmul.f32 %v6328, %v6427
        %v6433 = vmul.f32 %v6329, %v6427
        %v6434 = vmul.f32 %v6330, %v6427
        %v6435 = vmul.f32 %v6331, %v6427
        %v6436 = vmul.f32 %v6332, %v6427
        %v6437 = vmul.f32 %v6333, %v6427
        %v6438 = vmul.f32 %v6334, %v6427
        %v6439 = vmul.f32 %v6335, %v6427
        %v6440 = vmul.f32 %v6336, %v6427
        %v6441 = vmul.f32 %v6337, %v6427
        %v6442 = vmul.f32 %v6338, %v6427
        %v6443 = vmul.f32 %v6339, %v6427
        %v6444 = vmul.f32 %v6340, %v6427
        %v6445 = vmul.f32 %v6341, %v6427
        %v6446 = vmul.f32 %v6342, %v6427
        %v6447 = vmul.f32 %v6343, %v6427
        %v6448 = vmul.f32 %v6344, %v6427
        %v6449 = vmul.f32 %v6345, %v6427
        %v6450 = vmul.f32 %v6346, %v6427
        %v6451 = vmul.f32 %v6347, %v6427
        %v6452 = vmul.f32 %v6348, %v6427
        %v6453 = vmul.f32 %v6349, %v6427
        %v6454 = vmul.f32 %v6350, %v6427
        %v6455 = vmul.f32 %v6351, %v6427
        %v6456 = vmul.f32 %v6352, %v6427
        %v6457 = vmul.f32 %v6353, %v6427
        %v6458 = vmul.f32 %v6354, %v6427
        %v6459 = vmul.f32 %v6355, %v6427
        %v6460 = vadd.f32 %v297, %v6428
        %v6461 = vadd.f32 %v298, %v6429
        %v6462 = vadd.f32 %v299, %v6430
        %v6463 = vadd.f32 %v300, %v6431
        %v6464 = vadd.f32 %v301, %v6432
        %v6465 = vadd.f32 %v302, %v6433
        %v6466 = vadd.f32 %v303, %v6434
        %v6467 = vadd.f32 %v304, %v6435
        %v6468 = vadd.f32 %v305, %v6436
        %v6469 = vadd.f32 %v306, %v6437
        %v6470 = vadd.f32 %v307, %v6438
        %v6471 = vadd.f32 %v308, %v6439
        %v6472 = vadd.f32 %v309, %v6440
        %v6473 = vadd.f32 %v310, %v6441
        %v6474 = vadd.f32 %v311, %v6442
        %v6475 = vadd.f32 %v312, %v6443
        %v6476 = vadd.f32 %v313, %v6444
        %v6477 = vadd.f32 %v314, %v6445
        %v6478 = vadd.f32 %v315, %v6446
        %v6479 = vadd.f32 %v316, %v6447
        %v6480 = vadd.f32 %v317, %v6448
        %v6481 = vadd.f32 %v318, %v6449
        %v6482 = vadd.f32 %v319, %v6450
        %v6483 = vadd.f32 %v320, %v6451
        %v6484 = vadd.f32 %v321, %v6452
        %v6485 = vadd.f32 %v322, %v6453
        %v6486 = vadd.f32 %v323, %v6454
        %v6487 = vadd.f32 %v324, %v6455
        %v6488 = vadd.f32 %v325, %v6456
        %v6489 = vadd.f32 %v326, %v6457
        %v6490 = vadd.f32 %v327, %v6458
        %v6491 = vadd.f32 %v328, %v6459
        %6492 = vst [vmem:[%s296] sm:$0xff] %v6460
        %6493 = vst [vmem:[%s296 + $0x8] sm:$0xff] %v6461
        %6494 = vst [vmem:[%s296 + $0x10] sm:$0xff] %v6462
        %6495 = vst [vmem:[%s296 + $0x18] sm:$0xff] %v6463
        %6496 = vst [vmem:[%s296 + $0x20] sm:$0xff] %v6464
        %6497 = vst [vmem:[%s296 + $0x28] sm:$0xff] %v6465
        %6498 = vst [vmem:[%s296 + $0x30] sm:$0xff] %v6466
        %6499 = vst [vmem:[%s296 + $0x38] sm:$0xff] %v6467
        %6500 = vst [vmem:[%s296 + $0x40] sm:$0xff] %v6468
        %6501 = vst [vmem:[%s296 + $0x48] sm:$0xff] %v6469
        %6502 = vst [vmem:[%s296 + $0x50] sm:$0xff] %v6470
        %6503 = vst [vmem:[%s296 + $0x58] sm:$0xff] %v6471
        %6504 = vst [vmem:[%s296 + $0x60] sm:$0xff] %v6472
        %6505 = vst [vmem:[%s296 + $0x68] sm:$0xff] %v6473
        %6506 = vst [vmem:[%s296 + $0x70] sm:$0xff] %v6474
        %6507 = vst [vmem:[%s296 + $0x78] sm:$0xff] %v6475
        %6508 = vst [vmem:[%s296 + $0x80] sm:$0xff] %v6476
        %6509 = vst [vmem:[%s296 + $0x88] sm:$0xff] %v6477
        %6510 = vst [vmem:[%s296 + $0x90] sm:$0xff] %v6478
        %6511 = vst [vmem:[%s296 + $0x98] sm:$0xff] %v6479
        %6512 = vst [vmem:[%s296 + $0xa0] sm:$0xff] %v6480
        %6513 = vst [vmem:[%s296 + $0xa8] sm:$0xff] %v6481
        %6514 = vst [vmem:[%s296 + $0xb0] sm:$0xff] %v6482
        %6515 = vst [vmem:[%s296 + $0xb8] sm:$0xff] %v6483
        %6516 = vst [vmem:[%s296 + $0xc0] sm:$0xff] %v6484
        %6517 = vst [vmem:[%s296 + $0xc8] sm:$0xff] %v6485
        %6518 = vst [vmem:[%s296 + $0xd0] sm:$0xff] %v6486
        %6519 = vst [vmem:[%s296 + $0xd8] sm:$0xff] %v6487
        %6520 = vst [vmem:[%s296 + $0xe0] sm:$0xff] %v6488
        %6521 = vst [vmem:[%s296 + $0xe8] sm:$0xff] %v6489
        %6522 = vst [vmem:[%s296 + $0xf0] sm:$0xff] %v6490
        %6523 = vst [vmem:[%s296 + $0xf8] sm:$0xff] %v6491
        %s6524 = sand.u32 %s142, 1
        %s6525 = scalar_lea.sflag [#allocation4], %s6524
        %s6526 = sand.u32 %s142, 1
        %s6527 = smul.addr %s6526, 256
        %s6528 = scalar_lea.vmem [#allocation11], %s6527
        // Predicated region
        $region61: #{tpu_custom_call.1} parent=39 // pred_check
          %p6529 = pneg %p152
        $region62: #{tpu_custom_call.1} parent=39 // pred_check_branch
          %6531 = sbr.rel (%p6529) target = $region64
        $region63: #{tpu_custom_call.1} parent=39 // pred_region
          %s6533 = ssub.s32 4096, 4096
          %6534 = vsyncadd %s6525, %s6533
          %s6535 = smul.addr %s24, 32
          %s6536 = smul.addr %s6535, 128
          %s6537 = scalar_lea.hbm %s5, %s6536
          %s6538 = sshll.u32 %s6528, 4
          %s6539 = int_to_ptr.vmem [resolvable:$true] %s6538
          %6544 = dma.vmem_to_hbm [thread:$0]  %s6539, 4096, %s6537, %s6525, 128, 128, 8
        $region64: #{tpu_custom_call.1} parent=39 // pred_fallthru
          _
      $region40: #{tpu_custom_call.1} parent=5 // pred_fallthru
        _
      %p6545 = scmp.le.s32.totalorder 2, %s19
      // Predicated region
      $region65: #{tpu_custom_call.1} parent=5 // pred_check
        %p6546 = pneg %p6545
      $region66: #{tpu_custom_call.1} parent=5 // pred_check_branch
        %6548 = sbr.rel (%p6546) target = $region68
      $region67: #{tpu_custom_call.1} parent=5 // pred_region
        %s6549 = ssub.s32 %s19, 2
        // Predicated region
        $region69: #{tpu_custom_call.1} parent=67 // pred_check
          %p6550 = pneg %p158
        $region70: #{tpu_custom_call.1} parent=67 // pred_check_branch
          %6552 = sbr.rel (%p6550) target = $region72
        $region71: #{tpu_custom_call.1} parent=67 // pred_region
          %s6553 = sand.u32 %s143, 1
          %s6554 = scalar_lea.sflag [#allocation4], %s6553
          %s6555 = sand.u32 %s143, 1
          %s6556 = smul.addr %s6555, 256
          %s6557 = scalar_lea.vmem [#allocation11], %s6556
          %6558 = dma.done %s6554, 4096
        $region72: #{tpu_custom_call.1} parent=67 // pred_fallthru
          _
      $region68: #{tpu_custom_call.1} parent=5 // pred_fallthru
        _
    $region6: #{tpu_custom_call.1} parent=1 // loop_footer
      %s23 = sadd.s32 1, %s19
    $region7: #{tpu_custom_call.1} parent=1 // loop_footer_branch
      %18 = sbr.rel target = $region3
    $region8: #{tpu_custom_call.1} parent=1 // loop_exit
      _
    %6559 = vsyncpa [#allocation3], 1
    %s6560 = scalar_lea.sflag [#allocation3], 1
    %6561 = vsyncpa %s6560, 1
    %6562 = vsyncpa [#allocation6], 1
    %6563 = vsyncpa [#allocation9], 1
    %6564 = vsyncpa [#allocation4], 1
    %s6565 = scalar_lea.sflag [#allocation4], 1
    %6566 = vsyncpa %s6565, 1

</llo_original>
